<compile_context>
chip_gen: v7x
topology: tpu7x:2x2x1
jax: 0.10.0
libtpu: 0.0.40
codegen_flags: <defaults>
</compile_context>

<pallas_src>
import functools

import jax
import jax.numpy as jnp
from jax.experimental import pallas as pl
from jax.experimental.pallas import tpu as pltpu


LANE = 128
SUB = 8
GUARD = 8   # unzeroed guard rows around the flat slab; only masked taps touch them


def _round_up(x, m):
    return (x + m - 1) // m * m


def _pad_ch(c):
    """Channel padding: multiple of 8 for small counts, multiple of 128 otherwise."""
    return _round_up(c, SUB) if c < LANE else _round_up(c, LANE)


def _device_kind():
    try:
        return jax.local_devices()[0].device_kind.lower()
    except Exception:
        return ""


def _is_v5e():
    kind = _device_kind()
    return ("v5 lite" in kind) or ("v5e" in kind) or ("v5litepod" in kind)


def _vmem_limit_bytes():
    cap = None
    try:
        cap = int(pltpu.get_tpu_info().vmem_capacity_bytes)
    except Exception:
        kind = _device_kind()
        if any(t in kind for t in ("v4", "v5", "v6")):
            cap = 128 * 1024 * 1024
        else:                       # v7x / unknown: be conservative (64 MiB VMEM)
            cap = 64 * 1024 * 1024
    # 32 MiB scoped limit on 64-MiB parts (v7x), 96 MiB on 128-MiB parts (v5e/v6e).
    return 96 * 1024 * 1024 if cap >= 128 * 1024 * 1024 else 32 * 1024 * 1024


def _pick_cout_tile(cout_k):
    if cout_k <= LANE or cout_k % LANE != 0:
        return cout_k
    if (not _is_v5e()) and cout_k % 256 == 0:
        return 256            # v6e/v7x MXU is 256-wide; v5e stays at 128
    return LANE


def _pick_row_block(H, W, cin_k, tcout, in_itemsize, vmem_limit, use_patch):
    """Largest row-block height TR (dividing H) whose VMEM footprint fits budget."""
    hw = H * W
    K = 9 * cin_k
    fixed = (2 * hw * cin_k * in_itemsize        # whole-image input block (x2 bufs)
             + 2 * K * tcout * 2                 # weight tile (x2 bufs, bf16)
             + 512 * 1024)                       # bias / stats / misc slack
    per_row = W * (2 * tcout * 2 + cin_k * 2)    # out block (x2, bf16) + slab (bf16)
    if use_patch:
        per_row += W * K * 2                     # im2col patch scratch (bf16)
    budget = int(vmem_limit * 0.7) - fixed
    max_tr = max(1, budget // max(per_row, 1))
    tr = 1
    for cand in range(1, H + 1):
        if H % cand == 0 and cand <= max_tr:
            tr = cand
    return tr, H // tr


# ----------------------------------------------------------------------------
# Kernel 1: fused [optional BN+ReLU prologue] + 3x3 "same" conv (+bias) with bf16
# MXU operands and f32 accumulation, plus per-(image, row-block) BN partial sums.
# ----------------------------------------------------------------------------
def _make_conv_kernel(W, TR, cin_k, tcout, n_rb, apply_prologue, use_patch):
    P = TR * W
    hint_ok = (W % SUB == 0) and (P % SUB == 0)

    def _hint(v):
        return pl.multiple_of(v, SUB) if hint_ok else v

    def kernel(*refs):
        it = iter(refs)
        x_ref = next(it)
        w_ref = next(it)
        b_ref = next(it)
        scale_ref = shift_ref = None
        if apply_prologue:
            scale_ref = next(it)
            shift_ref = next(it)
        out_ref = next(it)
        sum_ref = next(it)
        sq_ref = next(it)
        xpad_ref = next(it)
        patch_ref = next(it) if use_patch else None

        r = pl.program_id(1)   # row-block index
        j = pl.program_id(2)   # Cout-tile index (innermost, 'arbitrary')

        def load_rows(start, n):
            v = x_ref[0, pl.ds(_hint(start), n), :].astype(jnp.float32)
            if apply_prologue:
                # Fused BN+ReLU of the previous conv stage (f32 math, bf16 store).
                v = jnp.maximum(v * scale_ref[...] + shift_ref[...], 0.0)
            return v.astype(xpad_ref.dtype)

        def taps():
            # All 9 taps are contiguous slices of the flat padded slab at static
            # +-1 sublane offsets (XLU rotates, pltpu.roll-equivalent).  Positions
            # that wrap across an image row (x==0 / x==W-1) must read zero padding.
            col = jax.lax.broadcasted_iota(jnp.int32, (P, 1), 0) % W
            not_left = col != 0
            not_right = col != (W - 1)
            out = []
            for dy in range(3):
                for dx in range(3):
                    start = GUARD + dy * W + (dx - 1)       # static offset
                    tap = xpad_ref[start:start + P, :]
                    if dx == 0:
                        tap = jnp.where(not_left, tap, jnp.zeros_like(tap))
                    elif dx == 2:
                        tap = jnp.where(not_right, tap, jnp.zeros_like(tap))
                    out.append(tap)
            return out

        # Build the padded slab (and optional im2col patch) once per (image, row
        # block); reused across all Cout tiles.  Only the halo rows are zeroed.
        @pl.when(j == 0)
        def _build():
            p0 = r * P
            zrow = jnp.zeros((W, cin_k), xpad_ref.dtype)

            # Interior rows of this block.
            xpad_ref[GUARD + W:GUARD + W + P, :] = load_rows(p0, P)

            # Top halo: previous image row, or zero padding at the image edge.
            @pl.when(r == 0)
            def _():
                xpad_ref[GUARD:GUARD + W, :] = zrow

            @pl.when(r > 0)
            def _():
                xpad_ref[GUARD:GUARD + W, :] = load_rows(p0 - W, W)

            # Bottom halo.
            @pl.when(r == n_rb - 1)
            def _():
                xpad_ref[GUARD + W + P:GUARD + 2 * W + P, :] = zrow

            @pl.when(r < n_rb - 1)
            def _():
                xpad_ref[GUARD + W + P:GUARD + 2 * W + P, :] = load_rows(p0 + P, W)

            if use_patch:
                # cin_k is a multiple of 128 here -> all column stores lane-aligned.
                for t, tap in enumerate(taps()):
                    patch_ref[:, t * cin_k:(t + 1) * cin_k] = tap

        if use_patch:
            # One big bf16 MXU dot: (P, 9*cin_k) @ (9*cin_k, tcout), f32 accumulate.
            acc = jnp.dot(patch_ref[...], w_ref[...],
                          preferred_element_type=jnp.float32)
        else:
            # Small-channel path: no patch scratch / 128-padding; 9 dense small dots
            # (same number of MXU passes as one packed dot at these K sizes).
            acc = jnp.zeros((P, tcout), jnp.float32)
            for t, tap in enumerate(taps()):
                acc = acc + jnp.dot(tap, w_ref[t * cin_k:(t + 1) * cin_k, :],
                                    preferred_element_type=jnp.float32)

        acc = acc + b_ref[...]                       # (1, tcout) broadcast

        # BN partial sums via MXU dots against a ones row (no XLU axis-0 reduce,
        # no resident accumulator -> batch AND row-block axes stay 'parallel').
        ones_row = jnp.ones((1, P), jnp.float32)
        sum_ref[0, 0] = jnp.dot(ones_row, acc, preferred_element_type=jnp.float32)
        sq_ref[0, 0] = jnp.dot(ones_row, acc * acc,
                               preferred_element_type=jnp.float32)

        # bf16 intermediate store (f32 accumulation kept in-kernel).
        out_ref[0] = acc.astype(out_ref.dtype)

    return kernel


def _conv3x3(x_flat, w_flat, bias, H, W, scale=None, shift=None):
    """x_flat: (N, H*W, cin_k); w_flat: (9*cin_k, cout_k) bf16; bias: (1, cout_k) f32.
    scale/shift (cin_k,) enable the fused BN+ReLU input prologue."""
    N, HW, cin_k = x_flat.shape
    K, cout_k = w_flat.shape
    assert K == 9 * cin_k and HW == H * W

    tcout = _pick_cout_tile(cout_k)
    n_j = cout_k // tcout
    use_patch = (cin_k % LANE == 0)
    vmem_limit = _vmem_limit_bytes()
    TR, n_rb = _pick_row_block(H, W, cin_k, tcout, x_flat.dtype.itemsize,
                               vmem_limit, use_patch)
    P = TR * W
    apply_prologue = scale is not None

    kernel = _make_conv_kernel(W, TR, cin_k, tcout, n_rb, apply_prologue, use_patch)

    in_specs = [
        pl.BlockSpec((1, HW, cin_k), lambda i, r, j: (i, 0, 0)),
        pl.BlockSpec((K, tcout), lambda i, r, j: (0, j)),
        pl.BlockSpec((1, tcout), lambda i, r, j: (0, j)),
    ]
    operands = [x_flat, w_flat, bias]
    if apply_prologue:
        in_specs += [
            pl.BlockSpec((1, cin_k), lambda i, r, j: (0, 0)),
            pl.BlockSpec((1, cin_k), lambda i, r, j: (0, 0)),
        ]
        operands += [scale.reshape(1, cin_k).astype(jnp.float32),
                     shift.reshape(1, cin_k).astype(jnp.float32)]

    scratch = [pltpu.VMEM((2 * GUARD + (TR + 2) * W, cin_k), jnp.bfloat16)]
    if use_patch:
        scratch.append(pltpu.VMEM((P, K), jnp.bfloat16))

    flops = 2 * N * HW * K * cout_k + 4 * N * HW * cout_k
    bytes_accessed = (x_flat.size * x_flat.dtype.itemsize
                      + w_flat.size * w_flat.dtype.itemsize
                      + bias.size * 4
                      + N * HW * cout_k * 2                  # bf16 conv output
                      + 2 * N * n_rb * cout_k * 4)           # partial stats

    out, s1, s2 = pl.pallas_call(
        kernel,
        out_shape=(
            jax.ShapeDtypeStruct((N, HW, cout_k), jnp.bfloat16),
            jax.ShapeDtypeStruct((N, n_rb, 1, cout_k), jnp.float32),
            jax.ShapeDtypeStruct((N, n_rb, 1, cout_k), jnp.float32),
        ),
        grid_spec=pltpu.PrefetchScalarGridSpec(
            num_scalar_prefetch=0,
            grid=(N, n_rb, n_j),
            in_specs=in_specs,
            out_specs=(
                pl.BlockSpec((1, P, tcout), lambda i, r, j: (i, r, j)),
                pl.BlockSpec((1, 1, 1, tcout), lambda i, r, j: (i, r, 0, j)),
                pl.BlockSpec((1, 1, 1, tcout), lambda i, r, j: (i, r, 0, j)),
            ),
            scratch_shapes=scratch,
        ),
        compiler_params=pltpu.CompilerParams(
            # Per-step partial stats -> batch AND row-block axes are parallel
            # (v7x 2-TC sharding even for N==1); the Cout-tile axis reuses the
            # per-row-block scratch, so it stays 'arbitrary'.
            dimension_semantics=("parallel", "parallel", "arbitrary"),
            vmem_limit_bytes=vmem_limit,
        ),
        cost_estimate=pl.CostEstimate(
            flops=int(flops), transcendentals=0,
            bytes_accessed=int(bytes_accessed)),
    )(*operands)
    return out, s1, s2


# ----------------------------------------------------------------------------
# Kernel 2: final BN + ReLU on a lane-dense (N*H*W, C) view; writes only the
# valid output channels (no post-kernel slice).
# ----------------------------------------------------------------------------
def _make_bn_relu_kernel(out_ch, ck):
    def kernel(x_ref, scale_ref, shift_ref, o_ref):
        x = x_ref[...].astype(jnp.float32)
        y = jnp.maximum(x * scale_ref[...] + shift_ref[...], 0.0)
        if out_ch != ck:
            y = y[:, :out_ch]
        o_ref[...] = y
    return kernel


def _bn_relu(x2, scale, shift, out_ch):
    rows, ck = x2.shape
    rows_p = _round_up(rows, SUB)
    if rows_p != rows:
        x2 = jnp.pad(x2, ((0, rows_p - rows), (0, 0)))

    vmem_limit = _vmem_limit_bytes()
    per_row = 2 * (ck * 2 + out_ch * 4) + 8
    tr = (vmem_limit // 3) // per_row
    tr = min(tr, 4096, rows_p)
    tr = max(SUB, (tr // SUB) * SUB)

    out = pl.pallas_call(
        _make_bn_relu_kernel(out_ch, ck),
        out_shape=jax.ShapeDtypeStruct((rows_p, out_ch), jnp.float32),
        grid_spec=pltpu.PrefetchScalarGridSpec(
            num_scalar_prefetch=0,
            grid=(pl.cdiv(rows_p, tr),),
            in_specs=[
                pl.BlockSpec((tr, ck), lambda b: (b, 0)),
                pl.BlockSpec((1, ck), lambda b: (0, 0)),
                pl.BlockSpec((1, ck), lambda b: (0, 0)),
            ],
            out_specs=pl.BlockSpec((tr, out_ch), lambda b: (b, 0)),
        ),
        compiler_params=pltpu.CompilerParams(
            dimension_semantics=("parallel",),
            vmem_limit_bytes=vmem_limit),
        cost_estimate=pl.CostEstimate(
            flops=int(2 * rows_p * ck), transcendentals=0,
            bytes_accessed=int(rows_p * (ck * 2 + out_ch * 4) + 2 * ck * 4)),
    )(x2,
      scale.reshape(1, ck).astype(jnp.float32),
      shift.reshape(1, ck).astype(jnp.float32))
    return out[:rows] if rows_p != rows else out


# ----------------------------------------------------------------------------
# Plain-JAX glue: fold batch statistics into per-channel scale/shift.
# ----------------------------------------------------------------------------
def _bn_fold(s, q, gamma, beta, count, eps=1e-5):
    ssum = jnp.sum(s, axis=(0, 1, 2))          # (C,)
    qsum = jnp.sum(q, axis=(0, 1, 2))          # (C,)
    mean = ssum / count
    # NOTE: sum / sum-of-squares variance (f32) can lose precision for very large
    # N*H*W; a shifted-moment / Welford scheme would fix it (documented trade-off).
    var = jnp.maximum(qsum / count - mean * mean, 0.0)
    scale = gamma / jnp.sqrt(var + eps)
    shift = beta - mean * scale
    return scale, shift


def double_conv(x_nchw, params, out_channels):
    """(Conv3x3 -> BN(batch stats) -> ReLU) x 2. x: (N,Cin,H,W) f32 -> (N,Cout,H,W) f32."""
    N, cin, H, W = x_nchw.shape
    w1, w2 = params["w1"], params["w2"]
    cin_k = w1.shape[0] // 9
    mid_k = w1.shape[1]
    cout_k = w2.shape[1]

    # NCHW -> flattened NHWC (N, H*W, cin_k).  Channel pad only to a multiple of 8
    # for small channel counts (no 32x inflation of tiny inputs).
    x = jnp.transpose(x_nchw, (0, 2, 3, 1)).astype(jnp.float32)
    if cin_k != cin:
        x = jnp.pad(x, ((0, 0), (0, 0), (0, 0), (0, cin_k - cin)))
    x = x.reshape(N, H * W, cin_k)
    count = N * H * W

    # Stage 1: conv (partial stats emitted; BN+ReLU deferred into stage-2 prologue).
    h1, s1, q1 = _conv3x3(x, w1, params["b1"], H, W)
    # NOTE: scale1/shift1 come from f32 pre-rounding sums but are applied to the
    # bf16-rounded h1 in the prologue -> small deviation vs. an f32 reference.
    scale1, shift1 = _bn_fold(s1, q1, params["gamma1"], params["beta1"], count)

    # Stage 2: fused BN1+ReLU prologue + conv.
    h2, s2, q2 = _conv3x3(h1, w2, params["b2"], H, W, scale=scale1, shift=shift1)
    scale2, shift2 = _bn_fold(s2, q2, params["gamma2"], params["beta2"], count)

    # Final BN2 + ReLU: lane-dense flattened pass, only valid channels written.
    out = _bn_relu(h2.reshape(N * H * W, cout_k), scale2, shift2, out_channels)
    out = out.reshape(N, H, W, out_channels)
    # TODO(synk): for W >= 128 the NCHW result could be emitted directly from the BN
    # kernel (W as the lane dim); at these feature-map widths keep one XLA transpose.
    return jnp.transpose(out, (0, 3, 1, 2))


# ----------------------------------------------------------------------------
# Parameter construction (PyTorch layout -> padded taps-major flat bf16 weights).
# ----------------------------------------------------------------------------
def make_params(key, in_channels, out_channels, mid_channels=None):
    if mid_channels is None:
        mid_channels = out_channels
    cin_k = _pad_ch(in_channels)
    mid_k = _pad_ch(mid_channels)
    cout_k = _pad_ch(out_channels)
    k1, k2, k3, k4 = jax.random.split(key, 4)

    def conv_w(k, cin, cout, cin_kk, cout_kk):
        # PyTorch (Cout, Cin, 3, 3) -> taps-major (9, Cin, Cout) -> (9*cin_kk, cout_kk)
        w_pt = jax.random.normal(k, (cout, cin, 3, 3), jnp.float32) / jnp.sqrt(9.0 * cin)
        w9 = jnp.transpose(w_pt, (2, 3, 1, 0)).reshape(9, cin, cout)
        w9p = jnp.zeros((9, cin_kk, cout_kk), jnp.float32).at[:, :cin, :cout].set(w9)
        # bf16 weights: native MXU operand dtype (f32 accumulation in-kernel).
        return w9p.reshape(9 * cin_kk, cout_kk).astype(jnp.bfloat16)

    def pad_vec(v, cp, fill):
        if cp == v.shape[0]:
            return v
        return jnp.concatenate([v, jnp.full((cp - v.shape[0],), fill, v.dtype)])

    b1 = 0.01 * jax.random.normal(k2, (mid_channels,), jnp.float32)
    b2 = 0.01 * jax.random.normal(k4, (out_channels,), jnp.float32)

    return {
        "w1": conv_w(k1, in_channels, mid_channels, cin_k, mid_k),
        "b1": pad_vec(b1, mid_k, 0.0).reshape(1, mid_k),
        "gamma1": pad_vec(jnp.ones((mid_channels,), jnp.float32), mid_k, 1.0),
        "beta1": pad_vec(jnp.zeros((mid_channels,), jnp.float32), mid_k, 0.0),
        "w2": conv_w(k3, mid_channels, out_channels, mid_k, cout_k),
        "b2": pad_vec(b2, cout_k, 0.0).reshape(1, cout_k),
        "gamma2": pad_vec(jnp.ones((out_channels,), jnp.float32), cout_k, 1.0),
        "beta2": pad_vec(jnp.zeros((out_channels,), jnp.float32), cout_k, 0.0),
    }


if __name__ == "__main__":
    N, Cin, H, W = 2, 4, 16, 16
    Cout = 8

    key = jax.random.PRNGKey(0)
    kx, kp = jax.random.split(key)
    x = jax.random.normal(kx, (N, Cin, H, W), jnp.float32)
    params = make_params(kp, Cin, Cout)

    fwd = jax.jit(functools.partial(double_conv, out_channels=Cout))
    out = jax.block_until_ready(fwd(x, params))

    assert out.shape == (N, Cout, H, W), out.shape
    assert out.dtype == jnp.float32
    assert bool(jnp.all(out >= 0.0))  # ReLU output
    print("KERNEL_OK")
</pallas_src>

<mosaic_0001>
module attributes {stable_mosaic.version = 11 : i64} {
  func.func @kernel(%arg0: i32, %arg1: i32, %arg2: i32, %arg3: memref<1x256x8xf32, #tpu.memory_space<vmem>>, %arg4: memref<72x8xbf16, #tpu.memory_space<vmem>>, %arg5: memref<1x8xf32, #tpu.memory_space<vmem>>, %arg6: memref<1x256x8xbf16, #tpu.memory_space<vmem>>, %arg7: memref<1x1x1x8xf32, #tpu.memory_space<vmem>>, %arg8: memref<1x1x1x8xf32, #tpu.memory_space<vmem>>, %arg9: memref<304x8xbf16, #tpu.memory_space<vmem>>) attributes {dimension_semantics = [#tpu.dimension_semantics<parallel>, #tpu.dimension_semantics<parallel>, #tpu.dimension_semantics<arbitrary>], iteration_bounds = array<i64: 2, 1, 1>, scalar_prefetch = 0 : i64, scratch_operands = 1 : i64, tpu.core_type = #tpu.core_type<tc>, window_params = [{transform_indices = @transform_0, window_bounds = array<i64: 1, 256, 8>}, {transform_indices = @transform_1, window_bounds = array<i64: 72, 8>}, {transform_indices = @transform_2, window_bounds = array<i64: 1, 8>}, {transform_indices = @transform_3, window_bounds = array<i64: 1, 256, 8>}, {transform_indices = @transform_4, window_bounds = array<i64: 1, 1, 1, 8>}, {transform_indices = @transform_5, window_bounds = array<i64: 1, 1, 1, 8>}]} {
    %c0_i32 = arith.constant 0 : i32
    %0 = arith.cmpi eq, %arg2, %c0_i32 : i32
    %1 = arith.extui %0 : i1 to i32
    %c0_i32_0 = arith.constant 0 : i32
    %2 = arith.cmpi ne, %1, %c0_i32_0 : i32
    scf.if %2 {
      %c256_i32 = arith.constant 256 : i32
      %102 = arith.muli %arg1, %c256_i32 : i32
      %cst_58 = arith.constant 0.000000e+00 : bf16
      %103 = vector.broadcast %cst_58 : bf16 to vector<16x8xbf16>
      %104 = tpu.assume_multiple %102, 8 : i32
      %c0_59 = arith.constant 0 : index
      %105 = arith.index_cast %104 : i32 to index
      %c0_60 = arith.constant 0 : index
      %106 = vector.load %arg3[%c0_59, %105, %c0_60] : memref<1x256x8xf32, #tpu.memory_space<vmem>>, vector<1x256x8xf32>
      %107 = vector.shape_cast %106 : vector<1x256x8xf32> to vector<256x8xf32>
      %108 = arith.truncf %107 : vector<256x8xf32> to vector<256x8xbf16>
      %c24_61 = arith.constant 24 : index
      %c0_62 = arith.constant 0 : index
      %109 = vector.load %arg9[%c24_61, %c0_62] : memref<304x8xbf16, #tpu.memory_space<vmem>>, vector<256x8xbf16>
      tpu.vector_store %arg9[%c24_61, %c0_62], %108 {strides = array<i32>} : memref<304x8xbf16, #tpu.memory_space<vmem>>, vector<256x8xbf16>,
      %c0_i32_63 = arith.constant 0 : i32
      %110 = arith.cmpi eq, %arg1, %c0_i32_63 : i32
      %111 = arith.extui %110 : i1 to i32
      %c0_i32_64 = arith.constant 0 : i32
      %112 = arith.cmpi ne, %111, %c0_i32_64 : i32
      scf.if %112 {
        %c8_71 = arith.constant 8 : index
        %c0_72 = arith.constant 0 : index
        %122 = vector.load %arg9[%c8_71, %c0_72] : memref<304x8xbf16, #tpu.memory_space<vmem>>, vector<16x8xbf16>
        tpu.vector_store %arg9[%c8_71, %c0_72], %103 {strides = array<i32>} : memref<304x8xbf16, #tpu.memory_space<vmem>>, vector<16x8xbf16>,
      } else {
      }
      %c0_i32_65 = arith.constant 0 : i32
      %113 = arith.cmpi sgt, %arg1, %c0_i32_65 : i32
      %114 = arith.extui %113 : i1 to i32
      %c0_i32_66 = arith.constant 0 : i32
      %115 = arith.cmpi ne, %114, %c0_i32_66 : i32
      scf.if %115 {
        %c16_i32_71 = arith.constant 16 : i32
        %122 = arith.subi %102, %c16_i32_71 : i32
        %123 = tpu.assume_multiple %122, 8 : i32
        %c0_72 = arith.constant 0 : index
        %124 = arith.index_cast %123 : i32 to index
        %c0_73 = arith.constant 0 : index
        %125 = vector.load %arg3[%c0_72, %124, %c0_73] : memref<1x256x8xf32, #tpu.memory_space<vmem>>, vector<1x16x8xf32>
        %126 = vector.shape_cast %125 : vector<1x16x8xf32> to vector<16x8xf32>
        %127 = arith.truncf %126 : vector<16x8xf32> to vector<16x8xbf16>
        %c8_74 = arith.constant 8 : index
        %c0_75 = arith.constant 0 : index
        %128 = vector.load %arg9[%c8_74, %c0_75] : memref<304x8xbf16, #tpu.memory_space<vmem>>, vector<16x8xbf16>
        tpu.vector_store %arg9[%c8_74, %c0_75], %127 {strides = array<i32>} : memref<304x8xbf16, #tpu.memory_space<vmem>>, vector<16x8xbf16>,
      } else {
      }
      %c0_i32_67 = arith.constant 0 : i32
      %116 = arith.cmpi eq, %arg1, %c0_i32_67 : i32
      %117 = arith.extui %116 : i1 to i32
      %c0_i32_68 = arith.constant 0 : i32
      %118 = arith.cmpi ne, %117, %c0_i32_68 : i32
      scf.if %118 {
        %c280 = arith.constant 280 : index
        %c0_71 = arith.constant 0 : index
        %122 = vector.load %arg9[%c280, %c0_71] : memref<304x8xbf16, #tpu.memory_space<vmem>>, vector<16x8xbf16>
        tpu.vector_store %arg9[%c280, %c0_71], %103 {strides = array<i32>} : memref<304x8xbf16, #tpu.memory_space<vmem>>, vector<16x8xbf16>,
      } else {
      }
      %c0_i32_69 = arith.constant 0 : i32
      %119 = arith.cmpi slt, %arg1, %c0_i32_69 : i32
      %120 = arith.extui %119 : i1 to i32
      %c0_i32_70 = arith.constant 0 : i32
      %121 = arith.cmpi ne, %120, %c0_i32_70 : i32
      scf.if %121 {
        %c256_i32_71 = arith.constant 256 : i32
        %122 = arith.addi %102, %c256_i32_71 : i32
        %123 = tpu.assume_multiple %122, 8 : i32
        %c0_72 = arith.constant 0 : index
        %124 = arith.index_cast %123 : i32 to index
        %c0_73 = arith.constant 0 : index
        %125 = vector.load %arg3[%c0_72, %124, %c0_73] : memref<1x256x8xf32, #tpu.memory_space<vmem>>, vector<1x16x8xf32>
        %126 = vector.shape_cast %125 : vector<1x16x8xf32> to vector<16x8xf32>
        %127 = arith.truncf %126 : vector<16x8xf32> to vector<16x8xbf16>
        %c280 = arith.constant 280 : index
        %c0_74 = arith.constant 0 : index
        %128 = vector.load %arg9[%c280, %c0_74] : memref<304x8xbf16, #tpu.memory_space<vmem>>, vector<16x8xbf16>
        tpu.vector_store %arg9[%c280, %c0_74], %127 {strides = array<i32>} : memref<304x8xbf16, #tpu.memory_space<vmem>>, vector<16x8xbf16>,
      } else {
      }
    } else {
    }
    %cst = arith.constant 0.000000e+00 : f32
    %3 = vector.broadcast %cst : f32 to vector<256x8xf32>
    %4 = tpu.iota {dimensions = array<i32: 0>} : vector<256x1xi32>
    %c16_i32 = arith.constant 16 : i32
    %c0_i32_1 = arith.constant 0 : i32
    %5 = arith.cmpi eq, %c16_i32, %c0_i32_1 : i32
    %c1_i32 = arith.constant 1 : i32
    %6 = arith.select %5, %c1_i32, %c16_i32 : i32
    %7 = vector.broadcast %6 : i32 to vector<256x1xi32>
    %8 = arith.remsi %4, %7 : vector<256x1xi32>
    %c0_i32_2 = arith.constant 0 : i32
    %9 = vector.broadcast %c0_i32_2 : i32 to vector<256x1xi32>
    %10 = arith.cmpi ne, %8, %9 : vector<256x1xi32>
    %c0_i32_3 = arith.constant 0 : i32
    %11 = vector.broadcast %c0_i32_3 : i32 to vector<256x1xi32>
    %12 = arith.cmpi slt, %8, %11 : vector<256x1xi32>
    %c0_i32_4 = arith.constant 0 : i32
    %13 = arith.cmpi slt, %6, %c0_i32_4 : i32
    %14 = vector.broadcast %13 : i1 to vector<256x1xi1>
    %15 = vector.broadcast %14 : vector<256x1xi1> to vector<256x1xi1>
    %16 = arith.xori %12, %15 : vector<256x1xi1>
    %17 = arith.andi %16, %10 : vector<256x1xi1>
    %18 = vector.broadcast %6 : i32 to vector<256x1xi32>
    %19 = arith.addi %8, %18 : vector<256x1xi32>
    %20 = arith.select %17, %19, %8 : vector<256x1xi1>, vector<256x1xi32>
    %c0_i32_5 = arith.constant 0 : i32
    %21 = vector.broadcast %c0_i32_5 : i32 to vector<256x1xi32>
    %22 = arith.cmpi ne, %20, %21 : vector<256x1xi32>
    %c15_i32 = arith.constant 15 : i32
    %23 = vector.broadcast %c15_i32 : i32 to vector<256x1xi32>
    %24 = arith.cmpi ne, %20, %23 : vector<256x1xi32>
    %c7 = arith.constant 7 : index
    %c0 = arith.constant 0 : index
    %25 = vector.load %arg9[%c7, %c0] : memref<304x8xbf16, #tpu.memory_space<vmem>>, vector<256x8xbf16>
    %cst_6 = arith.constant 0.000000e+00 : bf16
    %26 = vector.broadcast %cst_6 : bf16 to vector<256x8xbf16>
    %27 = vector.shape_cast %22 : vector<256x1xi1> to vector<256x1xi1>
    %28 = vector.broadcast %27 : vector<256x1xi1> to vector<256x8xi1>
    %29 = arith.select %28, %25, %26 : vector<256x8xi1>, vector<256x8xbf16>
    %c8 = arith.constant 8 : index
    %c0_7 = arith.constant 0 : index
    %30 = vector.load %arg9[%c8, %c0_7] : memref<304x8xbf16, #tpu.memory_space<vmem>>, vector<256x8xbf16>
    %c9 = arith.constant 9 : index
    %c0_8 = arith.constant 0 : index
    %31 = vector.load %arg9[%c9, %c0_8] : memref<304x8xbf16, #tpu.memory_space<vmem>>, vector<256x8xbf16>
    %cst_9 = arith.constant 0.000000e+00 : bf16
    %32 = vector.broadcast %cst_9 : bf16 to vector<256x8xbf16>
    %33 = vector.shape_cast %24 : vector<256x1xi1> to vector<256x1xi1>
    %34 = vector.broadcast %33 : vector<256x1xi1> to vector<256x8xi1>
    %35 = arith.select %34, %31, %32 : vector<256x8xi1>, vector<256x8xbf16>
    %c23 = arith.constant 23 : index
    %c0_10 = arith.constant 0 : index
    %36 = vector.load %arg9[%c23, %c0_10] : memref<304x8xbf16, #tpu.memory_space<vmem>>, vector<256x8xbf16>
    %cst_11 = arith.constant 0.000000e+00 : bf16
    %37 = vector.broadcast %cst_11 : bf16 to vector<256x8xbf16>
    %38 = vector.shape_cast %22 : vector<256x1xi1> to vector<256x1xi1>
    %39 = vector.broadcast %38 : vector<256x1xi1> to vector<256x8xi1>
    %40 = arith.select %39, %36, %37 : vector<256x8xi1>, vector<256x8xbf16>
    %c24 = arith.constant 24 : index
    %c0_12 = arith.constant 0 : index
    %41 = vector.load %arg9[%c24, %c0_12] : memref<304x8xbf16, #tpu.memory_space<vmem>>, vector<256x8xbf16>
    %c25 = arith.constant 25 : index
    %c0_13 = arith.constant 0 : index
    %42 = vector.load %arg9[%c25, %c0_13] : memref<304x8xbf16, #tpu.memory_space<vmem>>, vector<256x8xbf16>
    %cst_14 = arith.constant 0.000000e+00 : bf16
    %43 = vector.broadcast %cst_14 : bf16 to vector<256x8xbf16>
    %44 = vector.shape_cast %24 : vector<256x1xi1> to vector<256x1xi1>
    %45 = vector.broadcast %44 : vector<256x1xi1> to vector<256x8xi1>
    %46 = arith.select %45, %42, %43 : vector<256x8xi1>, vector<256x8xbf16>
    %c39 = arith.constant 39 : index
    %c0_15 = arith.constant 0 : index
    %47 = vector.load %arg9[%c39, %c0_15] : memref<304x8xbf16, #tpu.memory_space<vmem>>, vector<256x8xbf16>
    %cst_16 = arith.constant 0.000000e+00 : bf16
    %48 = vector.broadcast %cst_16 : bf16 to vector<256x8xbf16>
    %49 = vector.shape_cast %22 : vector<256x1xi1> to vector<256x1xi1>
    %50 = vector.broadcast %49 : vector<256x1xi1> to vector<256x8xi1>
    %51 = arith.select %50, %47, %48 : vector<256x8xi1>, vector<256x8xbf16>
    %c40 = arith.constant 40 : index
    %c0_17 = arith.constant 0 : index
    %52 = vector.load %arg9[%c40, %c0_17] : memref<304x8xbf16, #tpu.memory_space<vmem>>, vector<256x8xbf16>
    %c41 = arith.constant 41 : index
    %c0_18 = arith.constant 0 : index
    %53 = vector.load %arg9[%c41, %c0_18] : memref<304x8xbf16, #tpu.memory_space<vmem>>, vector<256x8xbf16>
    %cst_19 = arith.constant 0.000000e+00 : bf16
    %54 = vector.broadcast %cst_19 : bf16 to vector<256x8xbf16>
    %55 = vector.shape_cast %24 : vector<256x1xi1> to vector<256x1xi1>
    %56 = vector.broadcast %55 : vector<256x1xi1> to vector<256x8xi1>
    %57 = arith.select %56, %53, %54 : vector<256x8xi1>, vector<256x8xbf16>
    %c0_20 = arith.constant 0 : index
    %c0_21 = arith.constant 0 : index
    %58 = vector.load %arg4[%c0_20, %c0_21] : memref<72x8xbf16, #tpu.memory_space<vmem>>, vector<8x8xbf16>
    %cst_22 = arith.constant dense<0.000000e+00> : vector<256x8xf32>
    %59 = tpu.matmul %29, %58, %cst_22 {dimension_numbers = #tpu.dot_dimension_numbers<[1], [0], [0], [1], [0, 0, 1, 1], [], []>} : vector<256x8xbf16>, vector<8x8xbf16>, vector<256x8xf32> -> vector<256x8xf32>
    %60 = arith.addf %3, %59 : vector<256x8xf32>
    %c8_23 = arith.constant 8 : index
    %c0_24 = arith.constant 0 : index
    %61 = vector.load %arg4[%c8_23, %c0_24] : memref<72x8xbf16, #tpu.memory_space<vmem>>, vector<8x8xbf16>
    %cst_25 = arith.constant dense<0.000000e+00> : vector<256x8xf32>
    %62 = tpu.matmul %30, %61, %cst_25 {dimension_numbers = #tpu.dot_dimension_numbers<[1], [0], [0], [1], [0, 0, 1, 1], [], []>} : vector<256x8xbf16>, vector<8x8xbf16>, vector<256x8xf32> -> vector<256x8xf32>
    %63 = arith.addf %60, %62 : vector<256x8xf32>
    %c16 = arith.constant 16 : index
    %c0_26 = arith.constant 0 : index
    %64 = vector.load %arg4[%c16, %c0_26] : memref<72x8xbf16, #tpu.memory_space<vmem>>, vector<8x8xbf16>
    %cst_27 = arith.constant dense<0.000000e+00> : vector<256x8xf32>
    %65 = tpu.matmul %35, %64, %cst_27 {dimension_numbers = #tpu.dot_dimension_numbers<[1], [0], [0], [1], [0, 0, 1, 1], [], []>} : vector<256x8xbf16>, vector<8x8xbf16>, vector<256x8xf32> -> vector<256x8xf32>
    %66 = arith.addf %63, %65 : vector<256x8xf32>
    %c24_28 = arith.constant 24 : index
    %c0_29 = arith.constant 0 : index
    %67 = vector.load %arg4[%c24_28, %c0_29] : memref<72x8xbf16, #tpu.memory_space<vmem>>, vector<8x8xbf16>
    %cst_30 = arith.constant dense<0.000000e+00> : vector<256x8xf32>
    %68 = tpu.matmul %40, %67, %cst_30 {dimension_numbers = #tpu.dot_dimension_numbers<[1], [0], [0], [1], [0, 0, 1, 1], [], []>} : vector<256x8xbf16>, vector<8x8xbf16>, vector<256x8xf32> -> vector<256x8xf32>
    %69 = arith.addf %66, %68 : vector<256x8xf32>
    %c32 = arith.constant 32 : index
    %c0_31 = arith.constant 0 : index
    %70 = vector.load %arg4[%c32, %c0_31] : memref<72x8xbf16, #tpu.memory_space<vmem>>, vector<8x8xbf16>
    %cst_32 = arith.constant dense<0.000000e+00> : vector<256x8xf32>
    %71 = tpu.matmul %41, %70, %cst_32 {dimension_numbers = #tpu.dot_dimension_numbers<[1], [0], [0], [1], [0, 0, 1, 1], [], []>} : vector<256x8xbf16>, vector<8x8xbf16>, vector<256x8xf32> -> vector<256x8xf32>
    %72 = arith.addf %69, %71 : vector<256x8xf32>
    %c40_33 = arith.constant 40 : index
    %c0_34 = arith.constant 0 : index
    %73 = vector.load %arg4[%c40_33, %c0_34] : memref<72x8xbf16, #tpu.memory_space<vmem>>, vector<8x8xbf16>
    %cst_35 = arith.constant dense<0.000000e+00> : vector<256x8xf32>
    %74 = tpu.matmul %46, %73, %cst_35 {dimension_numbers = #tpu.dot_dimension_numbers<[1], [0], [0], [1], [0, 0, 1, 1], [], []>} : vector<256x8xbf16>, vector<8x8xbf16>, vector<256x8xf32> -> vector<256x8xf32>
    %75 = arith.addf %72, %74 : vector<256x8xf32>
    %c48 = arith.constant 48 : index
    %c0_36 = arith.constant 0 : index
    %76 = vector.load %arg4[%c48, %c0_36] : memref<72x8xbf16, #tpu.memory_space<vmem>>, vector<8x8xbf16>
    %cst_37 = arith.constant dense<0.000000e+00> : vector<256x8xf32>
    %77 = tpu.matmul %51, %76, %cst_37 {dimension_numbers = #tpu.dot_dimension_numbers<[1], [0], [0], [1], [0, 0, 1, 1], [], []>} : vector<256x8xbf16>, vector<8x8xbf16>, vector<256x8xf32> -> vector<256x8xf32>
    %78 = arith.addf %75, %77 : vector<256x8xf32>
    %c56 = arith.constant 56 : index
    %c0_38 = arith.constant 0 : index
    %79 = vector.load %arg4[%c56, %c0_38] : memref<72x8xbf16, #tpu.memory_space<vmem>>, vector<8x8xbf16>
    %cst_39 = arith.constant dense<0.000000e+00> : vector<256x8xf32>
    %80 = tpu.matmul %52, %79, %cst_39 {dimension_numbers = #tpu.dot_dimension_numbers<[1], [0], [0], [1], [0, 0, 1, 1], [], []>} : vector<256x8xbf16>, vector<8x8xbf16>, vector<256x8xf32> -> vector<256x8xf32>
    %81 = arith.addf %78, %80 : vector<256x8xf32>
    %c64 = arith.constant 64 : index
    %c0_40 = arith.constant 0 : index
    %82 = vector.load %arg4[%c64, %c0_40] : memref<72x8xbf16, #tpu.memory_space<vmem>>, vector<8x8xbf16>
    %cst_41 = arith.constant dense<0.000000e+00> : vector<256x8xf32>
    %83 = tpu.matmul %57, %82, %cst_41 {dimension_numbers = #tpu.dot_dimension_numbers<[1], [0], [0], [1], [0, 0, 1, 1], [], []>} : vector<256x8xbf16>, vector<8x8xbf16>, vector<256x8xf32> -> vector<256x8xf32>
    %84 = arith.addf %81, %83 : vector<256x8xf32>
    %c0_42 = arith.constant 0 : index
    %c0_43 = arith.constant 0 : index
    %85 = vector.load %arg5[%c0_42, %c0_43] : memref<1x8xf32, #tpu.memory_space<vmem>>, vector<1x8xf32>
    %86 = vector.broadcast %85 : vector<1x8xf32> to vector<256x8xf32>
    %87 = arith.addf %84, %86 : vector<256x8xf32>
    %cst_44 = arith.constant 1.000000e+00 : f32
    %88 = vector.broadcast %cst_44 : f32 to vector<1x256xf32>
    %cst_45 = arith.constant dense<0.000000e+00> : vector<1x8xf32>
    %89 = tpu.matmul %88, %87, %cst_45 {dimension_numbers = #tpu.dot_dimension_numbers<[1], [0], [0], [1], [0, 0, 1, 1], [], []>} : vector<1x256xf32>, vector<256x8xf32>, vector<1x8xf32> -> vector<1x8xf32>
    %c0_46 = arith.constant 0 : index
    %c0_47 = arith.constant 0 : index
    %c0_48 = arith.constant 0 : index
    %c0_49 = arith.constant 0 : index
    %90 = vector.load %arg7[%c0_46, %c0_47, %c0_48, %c0_49] : memref<1x1x1x8xf32, #tpu.memory_space<vmem>>, vector<1x1x1x8xf32>
    %91 = vector.shape_cast %90 : vector<1x1x1x8xf32> to vector<1x8xf32>
    %92 = vector.shape_cast %89 : vector<1x8xf32> to vector<1x1x1x8xf32>
    tpu.vector_store %arg7[%c0_46, %c0_47, %c0_48, %c0_49], %92 {strides = array<i32>} : memref<1x1x1x8xf32, #tpu.memory_space<vmem>>, vector<1x1x1x8xf32>,
    %93 = arith.mulf %87, %87 : vector<256x8xf32>
    %cst_50 = arith.constant dense<0.000000e+00> : vector<1x8xf32>
    %94 = tpu.matmul %88, %93, %cst_50 {dimension_numbers = #tpu.dot_dimension_numbers<[1], [0], [0], [1], [0, 0, 1, 1], [], []>} : vector<1x256xf32>, vector<256x8xf32>, vector<1x8xf32> -> vector<1x8xf32>
    %c0_51 = arith.constant 0 : index
    %c0_52 = arith.constant 0 : index
    %c0_53 = arith.constant 0 : index
    %c0_54 = arith.constant 0 : index
    %95 = vector.load %arg8[%c0_51, %c0_52, %c0_53, %c0_54] : memref<1x1x1x8xf32, #tpu.memory_space<vmem>>, vector<1x1x1x8xf32>
    %96 = vector.shape_cast %95 : vector<1x1x1x8xf32> to vector<1x8xf32>
    %97 = vector.shape_cast %94 : vector<1x8xf32> to vector<1x1x1x8xf32>
    tpu.vector_store %arg8[%c0_51, %c0_52, %c0_53, %c0_54], %97 {strides = array<i32>} : memref<1x1x1x8xf32, #tpu.memory_space<vmem>>, vector<1x1x1x8xf32>,
    %98 = arith.truncf %87 : vector<256x8xf32> to vector<256x8xbf16>
    %c0_55 = arith.constant 0 : index
    %c0_56 = arith.constant 0 : index
    %c0_57 = arith.constant 0 : index
    %99 = vector.load %arg6[%c0_55, %c0_56, %c0_57] : memref<1x256x8xbf16, #tpu.memory_space<vmem>>, vector<1x256x8xbf16>
    %100 = vector.shape_cast %99 : vector<1x256x8xbf16> to vector<256x8xbf16>
    %101 = vector.shape_cast %98 : vector<256x8xbf16> to vector<1x256x8xbf16>
    tpu.vector_store %arg6[%c0_55, %c0_56, %c0_57], %101 {strides = array<i32>} : memref<1x256x8xbf16, #tpu.memory_space<vmem>>, vector<1x256x8xbf16>,
    return
  }
  func.func @transform_0(%arg0: i32, %arg1: i32, %arg2: i32) -> (i32, i32, i32) {
    %c0_i32 = arith.constant 0 : i32
    %c0_i32_0 = arith.constant 0 : i32
    %c0_i32_1 = arith.constant 0 : i32
    return %arg0, %c0_i32, %c0_i32_0 : i32, i32, i32
  }
  func.func @transform_1(%arg0: i32, %arg1: i32, %arg2: i32) -> (i32, i32) {
    %c0_i32 = arith.constant 0 : i32
    %c0_i32_0 = arith.constant 0 : i32
    return %c0_i32, %arg2 : i32, i32
  }
  func.func @transform_2(%arg0: i32, %arg1: i32, %arg2: i32) -> (i32, i32) {
    %c0_i32 = arith.constant 0 : i32
    %c0_i32_0 = arith.constant 0 : i32
    return %c0_i32, %arg2 : i32, i32
  }
  func.func @transform_3(%arg0: i32, %arg1: i32, %arg2: i32) -> (i32, i32, i32) {
    %c0_i32 = arith.constant 0 : i32
    return %arg0, %arg1, %arg2 : i32, i32, i32
  }
  func.func @transform_4(%arg0: i32, %arg1: i32, %arg2: i32) -> (i32, i32, i32, i32) {
    %c0_i32 = arith.constant 0 : i32
    %c0_i32_0 = arith.constant 0 : i32
    return %arg0, %arg1, %c0_i32, %arg2 : i32, i32, i32, i32
  }
  func.func @transform_5(%arg0: i32, %arg1: i32, %arg2: i32) -> (i32, i32, i32, i32) {
    %c0_i32 = arith.constant 0 : i32
    %c0_i32_0 = arith.constant 0 : i32
    return %arg0, %arg1, %c0_i32, %arg2 : i32, i32, i32, i32
  }
}

module attributes {stable_mosaic.version = 11 : i64} {
  func.func @kernel(%arg0: i32, %arg1: memref<512x8xbf16, #tpu.memory_space<vmem>>, %arg2: memref<1x8xf32, #tpu.memory_space<vmem>>, %arg3: memref<1x8xf32, #tpu.memory_space<vmem>>, %arg4: memref<512x8xf32, #tpu.memory_space<vmem>>) attributes {dimension_semantics = [#tpu.dimension_semantics<parallel>], iteration_bounds = array<i64: 1>, scalar_prefetch = 0 : i64, scratch_operands = 0 : i64, tpu.core_type = #tpu.core_type<tc>, window_params = [{transform_indices = @transform_0, window_bounds = array<i64: 512, 8>}, {pipeline_mode = #tpu.pipeline_mode<synchronous>, transform_indices = @transform_1, window_bounds = array<i64: 1, 8>}, {pipeline_mode = #tpu.pipeline_mode<synchronous>, transform_indices = @transform_2, window_bounds = array<i64: 1, 8>}, {transform_indices = @transform_3, window_bounds = array<i64: 512, 8>}]} {
    %c0 = arith.constant 0 : index
    %c0_0 = arith.constant 0 : index
    %0 = vector.load %arg1[%c0, %c0_0] : memref<512x8xbf16, #tpu.memory_space<vmem>>, vector<512x8xbf16>
    %1 = arith.extf %0 : vector<512x8xbf16> to vector<512x8xf32>
    %c0_1 = arith.constant 0 : index
    %c0_2 = arith.constant 0 : index
    %2 = vector.load %arg2[%c0_1, %c0_2] : memref<1x8xf32, #tpu.memory_space<vmem>>, vector<1x8xf32>
    %3 = vector.broadcast %2 : vector<1x8xf32> to vector<512x8xf32>
    %4 = arith.mulf %1, %3 : vector<512x8xf32>
    %c0_3 = arith.constant 0 : index
    %c0_4 = arith.constant 0 : index
    %5 = vector.load %arg3[%c0_3, %c0_4] : memref<1x8xf32, #tpu.memory_space<vmem>>, vector<1x8xf32>
    %6 = vector.broadcast %5 : vector<1x8xf32> to vector<512x8xf32>
    %7 = arith.addf %4, %6 : vector<512x8xf32>
    %cst = arith.constant 0.000000e+00 : f32
    %8 = vector.broadcast %cst : f32 to vector<512x8xf32>
    %9 = arith.maximumf %7, %8 : vector<512x8xf32>
    %c0_5 = arith.constant 0 : index
    %c0_6 = arith.constant 0 : index
    %10 = vector.load %arg4[%c0_5, %c0_6] : memref<512x8xf32, #tpu.memory_space<vmem>>, vector<512x8xf32>
    tpu.vector_store %arg4[%c0_5, %c0_6], %9 {strides = array<i32>} : memref<512x8xf32, #tpu.memory_space<vmem>>, vector<512x8xf32>,
    return
  }
  func.func @transform_0(%arg0: i32) -> (i32, i32) {
    %c0_i32 = arith.constant 0 : i32
    %c0_i32_0 = arith.constant 0 : i32
    return %arg0, %c0_i32 : i32, i32
  }
  func.func @transform_1(%arg0: i32) -> (i32, i32) {
    %c0_i32 = arith.constant 0 : i32
    %c0_i32_0 = arith.constant 0 : i32
    %c0_i32_1 = arith.constant 0 : i32
    return %c0_i32, %c0_i32_0 : i32, i32
  }
  func.func @transform_2(%arg0: i32) -> (i32, i32) {
    %c0_i32 = arith.constant 0 : i32
    %c0_i32_0 = arith.constant 0 : i32
    %c0_i32_1 = arith.constant 0 : i32
    return %c0_i32, %c0_i32_0 : i32, i32
  }
  func.func @transform_3(%arg0: i32) -> (i32, i32) {
    %c0_i32 = arith.constant 0 : i32
    %c0_i32_0 = arith.constant 0 : i32
    return %arg0, %c0_i32 : i32, i32
  }
}

module attributes {stable_mosaic.version = 11 : i64} {
  func.func @kernel(%arg0: i32, %arg1: i32, %arg2: i32, %arg3: memref<1x256x8xbf16, #tpu.memory_space<vmem>>, %arg4: memref<72x8xbf16, #tpu.memory_space<vmem>>, %arg5: memref<1x8xf32, #tpu.memory_space<vmem>>, %arg6: memref<1x8xf32, #tpu.memory_space<vmem>>, %arg7: memref<1x8xf32, #tpu.memory_space<vmem>>, %arg8: memref<1x256x8xbf16, #tpu.memory_space<vmem>>, %arg9: memref<1x1x1x8xf32, #tpu.memory_space<vmem>>, %arg10: memref<1x1x1x8xf32, #tpu.memory_space<vmem>>, %arg11: memref<304x8xbf16, #tpu.memory_space<vmem>>) attributes {dimension_semantics = [#tpu.dimension_semantics<parallel>, #tpu.dimension_semantics<parallel>, #tpu.dimension_semantics<arbitrary>], iteration_bounds = array<i64: 2, 1, 1>, scalar_prefetch = 0 : i64, scratch_operands = 1 : i64, tpu.core_type = #tpu.core_type<tc>, window_params = [{transform_indices = @transform_0, window_bounds = array<i64: 1, 256, 8>}, {transform_indices = @transform_1, window_bounds = array<i64: 72, 8>}, {transform_indices = @transform_2, window_bounds = array<i64: 1, 8>}, {pipeline_mode = #tpu.pipeline_mode<synchronous>, transform_indices = @transform_3, window_bounds = array<i64: 1, 8>}, {pipeline_mode = #tpu.pipeline_mode<synchronous>, transform_indices = @transform_4, window_bounds = array<i64: 1, 8>}, {transform_indices = @transform_5, window_bounds = array<i64: 1, 256, 8>}, {transform_indices = @transform_6, window_bounds = array<i64: 1, 1, 1, 8>}, {transform_indices = @transform_7, window_bounds = array<i64: 1, 1, 1, 8>}]} {
    %c0_i32 = arith.constant 0 : i32
    %0 = arith.cmpi eq, %arg2, %c0_i32 : i32
    %1 = arith.extui %0 : i1 to i32
    %c0_i32_0 = arith.constant 0 : i32
    %2 = arith.cmpi ne, %1, %c0_i32_0 : i32
    scf.if %2 {
      %c256_i32 = arith.constant 256 : i32
      %102 = arith.muli %arg1, %c256_i32 : i32
      %cst_58 = arith.constant 0.000000e+00 : bf16
      %103 = vector.broadcast %cst_58 : bf16 to vector<16x8xbf16>
      %104 = tpu.assume_multiple %102, 8 : i32
      %c0_59 = arith.constant 0 : index
      %105 = arith.index_cast %104 : i32 to index
      %c0_60 = arith.constant 0 : index
      %106 = vector.load %arg3[%c0_59, %105, %c0_60] : memref<1x256x8xbf16, #tpu.memory_space<vmem>>, vector<1x256x8xbf16>
      %107 = vector.shape_cast %106 : vector<1x256x8xbf16> to vector<256x8xbf16>
      %108 = arith.extf %107 : vector<256x8xbf16> to vector<256x8xf32>
      %c0_61 = arith.constant 0 : index
      %c0_62 = arith.constant 0 : index
      %109 = vector.load %arg6[%c0_61, %c0_62] : memref<1x8xf32, #tpu.memory_space<vmem>>, vector<1x8xf32>
      %110 = vector.broadcast %109 : vector<1x8xf32> to vector<256x8xf32>
      %111 = arith.mulf %108, %110 : vector<256x8xf32>
      %c0_63 = arith.constant 0 : index
      %c0_64 = arith.constant 0 : index
      %112 = vector.load %arg7[%c0_63, %c0_64] : memref<1x8xf32, #tpu.memory_space<vmem>>, vector<1x8xf32>
      %113 = vector.broadcast %112 : vector<1x8xf32> to vector<256x8xf32>
      %114 = arith.addf %111, %113 : vector<256x8xf32>
      %cst_65 = arith.constant 0.000000e+00 : f32
      %115 = vector.broadcast %cst_65 : f32 to vector<256x8xf32>
      %116 = arith.maximumf %114, %115 : vector<256x8xf32>
      %117 = arith.truncf %116 : vector<256x8xf32> to vector<256x8xbf16>
      %c24_66 = arith.constant 24 : index
      %c0_67 = arith.constant 0 : index
      %118 = vector.load %arg11[%c24_66, %c0_67] : memref<304x8xbf16, #tpu.memory_space<vmem>>, vector<256x8xbf16>
      tpu.vector_store %arg11[%c24_66, %c0_67], %117 {strides = array<i32>} : memref<304x8xbf16, #tpu.memory_space<vmem>>, vector<256x8xbf16>,
      %c0_i32_68 = arith.constant 0 : i32
      %119 = arith.cmpi eq, %arg1, %c0_i32_68 : i32
      %120 = arith.extui %119 : i1 to i32
      %c0_i32_69 = arith.constant 0 : i32
      %121 = arith.cmpi ne, %120, %c0_i32_69 : i32
      scf.if %121 {
        %c8_76 = arith.constant 8 : index
        %c0_77 = arith.constant 0 : index
        %131 = vector.load %arg11[%c8_76, %c0_77] : memref<304x8xbf16, #tpu.memory_space<vmem>>, vector<16x8xbf16>
        tpu.vector_store %arg11[%c8_76, %c0_77], %103 {strides = array<i32>} : memref<304x8xbf16, #tpu.memory_space<vmem>>, vector<16x8xbf16>,
      } else {
      }
      %c0_i32_70 = arith.constant 0 : i32
      %122 = arith.cmpi sgt, %arg1, %c0_i32_70 : i32
      %123 = arith.extui %122 : i1 to i32
      %c0_i32_71 = arith.constant 0 : i32
      %124 = arith.cmpi ne, %123, %c0_i32_71 : i32
      scf.if %124 {
        %c16_i32_76 = arith.constant 16 : i32
        %131 = arith.subi %102, %c16_i32_76 : i32
        %132 = tpu.assume_multiple %131, 8 : i32
        %c0_77 = arith.constant 0 : index
        %133 = arith.index_cast %132 : i32 to index
        %c0_78 = arith.constant 0 : index
        %134 = vector.load %arg3[%c0_77, %133, %c0_78] : memref<1x256x8xbf16, #tpu.memory_space<vmem>>, vector<1x16x8xbf16>
        %135 = vector.shape_cast %134 : vector<1x16x8xbf16> to vector<16x8xbf16>
        %136 = arith.extf %135 : vector<16x8xbf16> to vector<16x8xf32>
        %c0_79 = arith.constant 0 : index
        %c0_80 = arith.constant 0 : index
        %137 = vector.load %arg6[%c0_79, %c0_80] : memref<1x8xf32, #tpu.memory_space<vmem>>, vector<1x8xf32>
        %138 = vector.broadcast %137 : vector<1x8xf32> to vector<16x8xf32>
        %139 = arith.mulf %136, %138 : vector<16x8xf32>
        %c0_81 = arith.constant 0 : index
        %c0_82 = arith.constant 0 : index
        %140 = vector.load %arg7[%c0_81, %c0_82] : memref<1x8xf32, #tpu.memory_space<vmem>>, vector<1x8xf32>
        %141 = vector.broadcast %140 : vector<1x8xf32> to vector<16x8xf32>
        %142 = arith.addf %139, %141 : vector<16x8xf32>
        %cst_83 = arith.constant 0.000000e+00 : f32
        %143 = vector.broadcast %cst_83 : f32 to vector<16x8xf32>
        %144 = arith.maximumf %142, %143 : vector<16x8xf32>
        %145 = arith.truncf %144 : vector<16x8xf32> to vector<16x8xbf16>
        %c8_84 = arith.constant 8 : index
        %c0_85 = arith.constant 0 : index
        %146 = vector.load %arg11[%c8_84, %c0_85] : memref<304x8xbf16, #tpu.memory_space<vmem>>, vector<16x8xbf16>
        tpu.vector_store %arg11[%c8_84, %c0_85], %145 {strides = array<i32>} : memref<304x8xbf16, #tpu.memory_space<vmem>>, vector<16x8xbf16>,
      } else {
      }
      %c0_i32_72 = arith.constant 0 : i32
      %125 = arith.cmpi eq, %arg1, %c0_i32_72 : i32
      %126 = arith.extui %125 : i1 to i32
      %c0_i32_73 = arith.constant 0 : i32
      %127 = arith.cmpi ne, %126, %c0_i32_73 : i32
      scf.if %127 {
        %c280 = arith.constant 280 : index
        %c0_76 = arith.constant 0 : index
        %131 = vector.load %arg11[%c280, %c0_76] : memref<304x8xbf16, #tpu.memory_space<vmem>>, vector<16x8xbf16>
        tpu.vector_store %arg11[%c280, %c0_76], %103 {strides = array<i32>} : memref<304x8xbf16, #tpu.memory_space<vmem>>, vector<16x8xbf16>,
      } else {
      }
      %c0_i32_74 = arith.constant 0 : i32
      %128 = arith.cmpi slt, %arg1, %c0_i32_74 : i32
      %129 = arith.extui %128 : i1 to i32
      %c0_i32_75 = arith.constant 0 : i32
      %130 = arith.cmpi ne, %129, %c0_i32_75 : i32
      scf.if %130 {
        %c256_i32_76 = arith.constant 256 : i32
        %131 = arith.addi %102, %c256_i32_76 : i32
        %132 = tpu.assume_multiple %131, 8 : i32
        %c0_77 = arith.constant 0 : index
        %133 = arith.index_cast %132 : i32 to index
        %c0_78 = arith.constant 0 : index
        %134 = vector.load %arg3[%c0_77, %133, %c0_78] : memref<1x256x8xbf16, #tpu.memory_space<vmem>>, vector<1x16x8xbf16>
        %135 = vector.shape_cast %134 : vector<1x16x8xbf16> to vector<16x8xbf16>
        %136 = arith.extf %135 : vector<16x8xbf16> to vector<16x8xf32>
        %c0_79 = arith.constant 0 : index
        %c0_80 = arith.constant 0 : index
        %137 = vector.load %arg6[%c0_79, %c0_80] : memref<1x8xf32, #tpu.memory_space<vmem>>, vector<1x8xf32>
        %138 = vector.broadcast %137 : vector<1x8xf32> to vector<16x8xf32>
        %139 = arith.mulf %136, %138 : vector<16x8xf32>
        %c0_81 = arith.constant 0 : index
        %c0_82 = arith.constant 0 : index
        %140 = vector.load %arg7[%c0_81, %c0_82] : memref<1x8xf32, #tpu.memory_space<vmem>>, vector<1x8xf32>
        %141 = vector.broadcast %140 : vector<1x8xf32> to vector<16x8xf32>
        %142 = arith.addf %139, %141 : vector<16x8xf32>
        %cst_83 = arith.constant 0.000000e+00 : f32
        %143 = vector.broadcast %cst_83 : f32 to vector<16x8xf32>
        %144 = arith.maximumf %142, %143 : vector<16x8xf32>
        %145 = arith.truncf %144 : vector<16x8xf32> to vector<16x8xbf16>
        %c280 = arith.constant 280 : index
        %c0_84 = arith.constant 0 : index
        %146 = vector.load %arg11[%c280, %c0_84] : memref<304x8xbf16, #tpu.memory_space<vmem>>, vector<16x8xbf16>
        tpu.vector_store %arg11[%c280, %c0_84], %145 {strides = array<i32>} : memref<304x8xbf16, #tpu.memory_space<vmem>>, vector<16x8xbf16>,
      } else {
      }
    } else {
    }
    %cst = arith.constant 0.000000e+00 : f32
    %3 = vector.broadcast %cst : f32 to vector<256x8xf32>
    %4 = tpu.iota {dimensions = array<i32: 0>} : vector<256x1xi32>
    %c16_i32 = arith.constant 16 : i32
    %c0_i32_1 = arith.constant 0 : i32
    %5 = arith.cmpi eq, %c16_i32, %c0_i32_1 : i32
    %c1_i32 = arith.constant 1 : i32
    %6 = arith.select %5, %c1_i32, %c16_i32 : i32
    %7 = vector.broadcast %6 : i32 to vector<256x1xi32>
    %8 = arith.remsi %4, %7 : vector<256x1xi32>
    %c0_i32_2 = arith.constant 0 : i32
    %9 = vector.broadcast %c0_i32_2 : i32 to vector<256x1xi32>
    %10 = arith.cmpi ne, %8, %9 : vector<256x1xi32>
    %c0_i32_3 = arith.constant 0 : i32
    %11 = vector.broadcast %c0_i32_3 : i32 to vector<256x1xi32>
    %12 = arith.cmpi slt, %8, %11 : vector<256x1xi32>
    %c0_i32_4 = arith.constant 0 : i32
    %13 = arith.cmpi slt, %6, %c0_i32_4 : i32
    %14 = vector.broadcast %13 : i1 to vector<256x1xi1>
    %15 = vector.broadcast %14 : vector<256x1xi1> to vector<256x1xi1>
    %16 = arith.xori %12, %15 : vector<256x1xi1>
    %17 = arith.andi %16, %10 : vector<256x1xi1>
    %18 = vector.broadcast %6 : i32 to vector<256x1xi32>
    %19 = arith.addi %8, %18 : vector<256x1xi32>
    %20 = arith.select %17, %19, %8 : vector<256x1xi1>, vector<256x1xi32>
    %c0_i32_5 = arith.constant 0 : i32
    %21 = vector.broadcast %c0_i32_5 : i32 to vector<256x1xi32>
    %22 = arith.cmpi ne, %20, %21 : vector<256x1xi32>
    %c15_i32 = arith.constant 15 : i32
    %23 = vector.broadcast %c15_i32 : i32 to vector<256x1xi32>
    %24 = arith.cmpi ne, %20, %23 : vector<256x1xi32>
    %c7 = arith.constant 7 : index
    %c0 = arith.constant 0 : index
    %25 = vector.load %arg11[%c7, %c0] : memref<304x8xbf16, #tpu.memory_space<vmem>>, vector<256x8xbf16>
    %cst_6 = arith.constant 0.000000e+00 : bf16
    %26 = vector.broadcast %cst_6 : bf16 to vector<256x8xbf16>
    %27 = vector.shape_cast %22 : vector<256x1xi1> to vector<256x1xi1>
    %28 = vector.broadcast %27 : vector<256x1xi1> to vector<256x8xi1>
    %29 = arith.select %28, %25, %26 : vector<256x8xi1>, vector<256x8xbf16>
    %c8 = arith.constant 8 : index
    %c0_7 = arith.constant 0 : index
    %30 = vector.load %arg11[%c8, %c0_7] : memref<304x8xbf16, #tpu.memory_space<vmem>>, vector<256x8xbf16>
    %c9 = arith.constant 9 : index
    %c0_8 = arith.constant 0 : index
    %31 = vector.load %arg11[%c9, %c0_8] : memref<304x8xbf16, #tpu.memory_space<vmem>>, vector<256x8xbf16>
    %cst_9 = arith.constant 0.000000e+00 : bf16
    %32 = vector.broadcast %cst_9 : bf16 to vector<256x8xbf16>
    %33 = vector.shape_cast %24 : vector<256x1xi1> to vector<256x1xi1>
    %34 = vector.broadcast %33 : vector<256x1xi1> to vector<256x8xi1>
    %35 = arith.select %34, %31, %32 : vector<256x8xi1>, vector<256x8xbf16>
    %c23 = arith.constant 23 : index
    %c0_10 = arith.constant 0 : index
    %36 = vector.load %arg11[%c23, %c0_10] : memref<304x8xbf16, #tpu.memory_space<vmem>>, vector<256x8xbf16>
    %cst_11 = arith.constant 0.000000e+00 : bf16
    %37 = vector.broadcast %cst_11 : bf16 to vector<256x8xbf16>
    %38 = vector.shape_cast %22 : vector<256x1xi1> to vector<256x1xi1>
    %39 = vector.broadcast %38 : vector<256x1xi1> to vector<256x8xi1>
    %40 = arith.select %39, %36, %37 : vector<256x8xi1>, vector<256x8xbf16>
    %c24 = arith.constant 24 : index
    %c0_12 = arith.constant 0 : index
    %41 = vector.load %arg11[%c24, %c0_12] : memref<304x8xbf16, #tpu.memory_space<vmem>>, vector<256x8xbf16>
    %c25 = arith.constant 25 : index
    %c0_13 = arith.constant 0 : index
    %42 = vector.load %arg11[%c25, %c0_13] : memref<304x8xbf16, #tpu.memory_space<vmem>>, vector<256x8xbf16>
    %cst_14 = arith.constant 0.000000e+00 : bf16
    %43 = vector.broadcast %cst_14 : bf16 to vector<256x8xbf16>
    %44 = vector.shape_cast %24 : vector<256x1xi1> to vector<256x1xi1>
    %45 = vector.broadcast %44 : vector<256x1xi1> to vector<256x8xi1>
    %46 = arith.select %45, %42, %43 : vector<256x8xi1>, vector<256x8xbf16>
    %c39 = arith.constant 39 : index
    %c0_15 = arith.constant 0 : index
    %47 = vector.load %arg11[%c39, %c0_15] : memref<304x8xbf16, #tpu.memory_space<vmem>>, vector<256x8xbf16>
    %cst_16 = arith.constant 0.000000e+00 : bf16
    %48 = vector.broadcast %cst_16 : bf16 to vector<256x8xbf16>
    %49 = vector.shape_cast %22 : vector<256x1xi1> to vector<256x1xi1>
    %50 = vector.broadcast %49 : vector<256x1xi1> to vector<256x8xi1>
    %51 = arith.select %50, %47, %48 : vector<256x8xi1>, vector<256x8xbf16>
    %c40 = arith.constant 40 : index
    %c0_17 = arith.constant 0 : index
    %52 = vector.load %arg11[%c40, %c0_17] : memref<304x8xbf16, #tpu.memory_space<vmem>>, vector<256x8xbf16>
    %c41 = arith.constant 41 : index
    %c0_18 = arith.constant 0 : index
    %53 = vector.load %arg11[%c41, %c0_18] : memref<304x8xbf16, #tpu.memory_space<vmem>>, vector<256x8xbf16>
    %cst_19 = arith.constant 0.000000e+00 : bf16
    %54 = vector.broadcast %cst_19 : bf16 to vector<256x8xbf16>
    %55 = vector.shape_cast %24 : vector<256x1xi1> to vector<256x1xi1>
    %56 = vector.broadcast %55 : vector<256x1xi1> to vector<256x8xi1>
    %57 = arith.select %56, %53, %54 : vector<256x8xi1>, vector<256x8xbf16>
    %c0_20 = arith.constant 0 : index
    %c0_21 = arith.constant 0 : index
    %58 = vector.load %arg4[%c0_20, %c0_21] : memref<72x8xbf16, #tpu.memory_space<vmem>>, vector<8x8xbf16>
    %cst_22 = arith.constant dense<0.000000e+00> : vector<256x8xf32>
    %59 = tpu.matmul %29, %58, %cst_22 {dimension_numbers = #tpu.dot_dimension_numbers<[1], [0], [0], [1], [0, 0, 1, 1], [], []>} : vector<256x8xbf16>, vector<8x8xbf16>, vector<256x8xf32> -> vector<256x8xf32>
    %60 = arith.addf %3, %59 : vector<256x8xf32>
    %c8_23 = arith.constant 8 : index
    %c0_24 = arith.constant 0 : index
    %61 = vector.load %arg4[%c8_23, %c0_24] : memref<72x8xbf16, #tpu.memory_space<vmem>>, vector<8x8xbf16>
    %cst_25 = arith.constant dense<0.000000e+00> : vector<256x8xf32>
    %62 = tpu.matmul %30, %61, %cst_25 {dimension_numbers = #tpu.dot_dimension_numbers<[1], [0], [0], [1], [0, 0, 1, 1], [], []>} : vector<256x8xbf16>, vector<8x8xbf16>, vector<256x8xf32> -> vector<256x8xf32>
    %63 = arith.addf %60, %62 : vector<256x8xf32>
    %c16 = arith.constant 16 : index
    %c0_26 = arith.constant 0 : index
    %64 = vector.load %arg4[%c16, %c0_26] : memref<72x8xbf16, #tpu.memory_space<vmem>>, vector<8x8xbf16>
    %cst_27 = arith.constant dense<0.000000e+00> : vector<256x8xf32>
    %65 = tpu.matmul %35, %64, %cst_27 {dimension_numbers = #tpu.dot_dimension_numbers<[1], [0], [0], [1], [0, 0, 1, 1], [], []>} : vector<256x8xbf16>, vector<8x8xbf16>, vector<256x8xf32> -> vector<256x8xf32>
    %66 = arith.addf %63, %65 : vector<256x8xf32>
    %c24_28 = arith.constant 24 : index
    %c0_29 = arith.constant 0 : index
    %67 = vector.load %arg4[%c24_28, %c0_29] : memref<72x8xbf16, #tpu.memory_space<vmem>>, vector<8x8xbf16>
    %cst_30 = arith.constant dense<0.000000e+00> : vector<256x8xf32>
    %68 = tpu.matmul %40, %67, %cst_30 {dimension_numbers = #tpu.dot_dimension_numbers<[1], [0], [0], [1], [0, 0, 1, 1], [], []>} : vector<256x8xbf16>, vector<8x8xbf16>, vector<256x8xf32> -> vector<256x8xf32>
    %69 = arith.addf %66, %68 : vector<256x8xf32>
    %c32 = arith.constant 32 : index
    %c0_31 = arith.constant 0 : index
    %70 = vector.load %arg4[%c32, %c0_31] : memref<72x8xbf16, #tpu.memory_space<vmem>>, vector<8x8xbf16>
    %cst_32 = arith.constant dense<0.000000e+00> : vector<256x8xf32>
    %71 = tpu.matmul %41, %70, %cst_32 {dimension_numbers = #tpu.dot_dimension_numbers<[1], [0], [0], [1], [0, 0, 1, 1], [], []>} : vector<256x8xbf16>, vector<8x8xbf16>, vector<256x8xf32> -> vector<256x8xf32>
    %72 = arith.addf %69, %71 : vector<256x8xf32>
    %c40_33 = arith.constant 40 : index
    %c0_34 = arith.constant 0 : index
    %73 = vector.load %arg4[%c40_33, %c0_34] : memref<72x8xbf16, #tpu.memory_space<vmem>>, vector<8x8xbf16>
    %cst_35 = arith.constant dense<0.000000e+00> : vector<256x8xf32>
    %74 = tpu.matmul %46, %73, %cst_35 {dimension_numbers = #tpu.dot_dimension_numbers<[1], [0], [0], [1], [0, 0, 1, 1], [], []>} : vector<256x8xbf16>, vector<8x8xbf16>, vector<256x8xf32> -> vector<256x8xf32>
    %75 = arith.addf %72, %74 : vector<256x8xf32>
    %c48 = arith.constant 48 : index
    %c0_36 = arith.constant 0 : index
    %76 = vector.load %arg4[%c48, %c0_36] : memref<72x8xbf16, #tpu.memory_space<vmem>>, vector<8x8xbf16>
    %cst_37 = arith.constant dense<0.000000e+00> : vector<256x8xf32>
    %77 = tpu.matmul %51, %76, %cst_37 {dimension_numbers = #tpu.dot_dimension_numbers<[1], [0], [0], [1], [0, 0, 1, 1], [], []>} : vector<256x8xbf16>, vector<8x8xbf16>, vector<256x8xf32> -> vector<256x8xf32>
    %78 = arith.addf %75, %77 : vector<256x8xf32>
    %c56 = arith.constant 56 : index
    %c0_38 = arith.constant 0 : index
    %79 = vector.load %arg4[%c56, %c0_38] : memref<72x8xbf16, #tpu.memory_space<vmem>>, vector<8x8xbf16>
    %cst_39 = arith.constant dense<0.000000e+00> : vector<256x8xf32>
    %80 = tpu.matmul %52, %79, %cst_39 {dimension_numbers = #tpu.dot_dimension_numbers<[1], [0], [0], [1], [0, 0, 1, 1], [], []>} : vector<256x8xbf16>, vector<8x8xbf16>, vector<256x8xf32> -> vector<256x8xf32>
    %81 = arith.addf %78, %80 : vector<256x8xf32>
    %c64 = arith.constant 64 : index
    %c0_40 = arith.constant 0 : index
    %82 = vector.load %arg4[%c64, %c0_40] : memref<72x8xbf16, #tpu.memory_space<vmem>>, vector<8x8xbf16>
    %cst_41 = arith.constant dense<0.000000e+00> : vector<256x8xf32>
    %83 = tpu.matmul %57, %82, %cst_41 {dimension_numbers = #tpu.dot_dimension_numbers<[1], [0], [0], [1], [0, 0, 1, 1], [], []>} : vector<256x8xbf16>, vector<8x8xbf16>, vector<256x8xf32> -> vector<256x8xf32>
    %84 = arith.addf %81, %83 : vector<256x8xf32>
    %c0_42 = arith.constant 0 : index
    %c0_43 = arith.constant 0 : index
    %85 = vector.load %arg5[%c0_42, %c0_43] : memref<1x8xf32, #tpu.memory_space<vmem>>, vector<1x8xf32>
    %86 = vector.broadcast %85 : vector<1x8xf32> to vector<256x8xf32>
    %87 = arith.addf %84, %86 : vector<256x8xf32>
    %cst_44 = arith.constant 1.000000e+00 : f32
    %88 = vector.broadcast %cst_44 : f32 to vector<1x256xf32>
    %cst_45 = arith.constant dense<0.000000e+00> : vector<1x8xf32>
    %89 = tpu.matmul %88, %87, %cst_45 {dimension_numbers = #tpu.dot_dimension_numbers<[1], [0], [0], [1], [0, 0, 1, 1], [], []>} : vector<1x256xf32>, vector<256x8xf32>, vector<1x8xf32> -> vector<1x8xf32>
    %c0_46 = arith.constant 0 : index
    %c0_47 = arith.constant 0 : index
    %c0_48 = arith.constant 0 : index
    %c0_49 = arith.constant 0 : index
    %90 = vector.load %arg9[%c0_46, %c0_47, %c0_48, %c0_49] : memref<1x1x1x8xf32, #tpu.memory_space<vmem>>, vector<1x1x1x8xf32>
    %91 = vector.shape_cast %90 : vector<1x1x1x8xf32> to vector<1x8xf32>
    %92 = vector.shape_cast %89 : vector<1x8xf32> to vector<1x1x1x8xf32>
    tpu.vector_store %arg9[%c0_46, %c0_47, %c0_48, %c0_49], %92 {strides = array<i32>} : memref<1x1x1x8xf32, #tpu.memory_space<vmem>>, vector<1x1x1x8xf32>,
    %93 = arith.mulf %87, %87 : vector<256x8xf32>
    %cst_50 = arith.constant dense<0.000000e+00> : vector<1x8xf32>
    %94 = tpu.matmul %88, %93, %cst_50 {dimension_numbers = #tpu.dot_dimension_numbers<[1], [0], [0], [1], [0, 0, 1, 1], [], []>} : vector<1x256xf32>, vector<256x8xf32>, vector<1x8xf32> -> vector<1x8xf32>
    %c0_51 = arith.constant 0 : index
    %c0_52 = arith.constant 0 : index
    %c0_53 = arith.constant 0 : index
    %c0_54 = arith.constant 0 : index
    %95 = vector.load %arg10[%c0_51, %c0_52, %c0_53, %c0_54] : memref<1x1x1x8xf32, #tpu.memory_space<vmem>>, vector<1x1x1x8xf32>
    %96 = vector.shape_cast %95 : vector<1x1x1x8xf32> to vector<1x8xf32>
    %97 = vector.shape_cast %94 : vector<1x8xf32> to vector<1x1x1x8xf32>
    tpu.vector_store %arg10[%c0_51, %c0_52, %c0_53, %c0_54], %97 {strides = array<i32>} : memref<1x1x1x8xf32, #tpu.memory_space<vmem>>, vector<1x1x1x8xf32>,
    %98 = arith.truncf %87 : vector<256x8xf32> to vector<256x8xbf16>
    %c0_55 = arith.constant 0 : index
    %c0_56 = arith.constant 0 : index
    %c0_57 = arith.constant 0 : index
    %99 = vector.load %arg8[%c0_55, %c0_56, %c0_57] : memref<1x256x8xbf16, #tpu.memory_space<vmem>>, vector<1x256x8xbf16>
    %100 = vector.shape_cast %99 : vector<1x256x8xbf16> to vector<256x8xbf16>
    %101 = vector.shape_cast %98 : vector<256x8xbf16> to vector<1x256x8xbf16>
    tpu.vector_store %arg8[%c0_55, %c0_56, %c0_57], %101 {strides = array<i32>} : memref<1x256x8xbf16, #tpu.memory_space<vmem>>, vector<1x256x8xbf16>,
    return
  }
  func.func @transform_0(%arg0: i32, %arg1: i32, %arg2: i32) -> (i32, i32, i32) {
    %c0_i32 = arith.constant 0 : i32
    %c0_i32_0 = arith.constant 0 : i32
    %c0_i32_1 = arith.constant 0 : i32
    return %arg0, %c0_i32, %c0_i32_0 : i32, i32, i32
  }
  func.func @transform_1(%arg0: i32, %arg1: i32, %arg2: i32) -> (i32, i32) {
    %c0_i32 = arith.constant 0 : i32
    %c0_i32_0 = arith.constant 0 : i32
    return %c0_i32, %arg2 : i32, i32
  }
  func.func @transform_2(%arg0: i32, %arg1: i32, %arg2: i32) -> (i32, i32) {
    %c0_i32 = arith.constant 0 : i32
    %c0_i32_0 = arith.constant 0 : i32
    return %c0_i32, %arg2 : i32, i32
  }
  func.func @transform_3(%arg0: i32, %arg1: i32, %arg2: i32) -> (i32, i32) {
    %c0_i32 = arith.constant 0 : i32
    %c0_i32_0 = arith.constant 0 : i32
    %c0_i32_1 = arith.constant 0 : i32
    return %c0_i32, %c0_i32_0 : i32, i32
  }
  func.func @transform_4(%arg0: i32, %arg1: i32, %arg2: i32) -> (i32, i32) {
    %c0_i32 = arith.constant 0 : i32
    %c0_i32_0 = arith.constant 0 : i32
    %c0_i32_1 = arith.constant 0 : i32
    return %c0_i32, %c0_i32_0 : i32, i32
  }
  func.func @transform_5(%arg0: i32, %arg1: i32, %arg2: i32) -> (i32, i32, i32) {
    %c0_i32 = arith.constant 0 : i32
    return %arg0, %arg1, %arg2 : i32, i32, i32
  }
  func.func @transform_6(%arg0: i32, %arg1: i32, %arg2: i32) -> (i32, i32, i32, i32) {
    %c0_i32 = arith.constant 0 : i32
    %c0_i32_0 = arith.constant 0 : i32
    return %arg0, %arg1, %c0_i32, %arg2 : i32, i32, i32, i32
  }
  func.func @transform_7(%arg0: i32, %arg1: i32, %arg2: i32) -> (i32, i32, i32, i32) {
    %c0_i32 = arith.constant 0 : i32
    %c0_i32_0 = arith.constant 0 : i32
    return %arg0, %arg1, %c0_i32, %arg2 : i32, i32, i32, i32
  }
}

</mosaic_0001>

<llo_original>
// kernel: double_conv.5
$region0: #{double_conv.5}
  #allocation0 [shape = 'u32[]', space=smem, size = 0x4, offset = 0x4, fixed_abs, tag = 'smem constant byte address 0x4 - core index']
  #allocation1 [shape = 'u32[144,128]{1,0:T(1,128)}', space=vmem, size = 0x12000, scoped, tag = 'internal scratch']
  %s0 = inlined_call_operand.vmem [shape: bf16[512,8], index: 0, kind: input, shape index: {}]
  %s1 = inlined_call_operand.vmem [shape: f32[1,8], index: 1, kind: input, shape index: {}]
  %s2 = inlined_call_operand.vmem [shape: f32[1,8], index: 2, kind: input, shape index: {}]
  %s3 = inlined_call_operand.vmem [shape: f32[512,8], index: 3, kind: output, shape index: {}]
  %s4 = sld [smem:[#allocation0]]
  $region22: #{double_conv.5} parent=0
    _
  %s6 = ssub.s32 1, %s4
  %s7 = scalar_select 0, %s6, %s4
  // Predicated region
  $region2: #{double_conv.5} parent=0 // pred_check
    _
  $region3: #{double_conv.5} parent=0 // pred_check_branch
    %9 = sbr.rel (0) target = $region5
  $region4: #{double_conv.5} parent=0 // pred_region
    _
  $region5: #{double_conv.5} parent=0 // pred_fallthru
    _
  // Predicated region
  $region6: #{double_conv.5} parent=0 // pred_check
    _
  $region7: #{double_conv.5} parent=0 // pred_check_branch
    %11 = sbr.rel (0) target = $region9
  $region8: #{double_conv.5} parent=0 // pred_region
    _
  $region9: #{double_conv.5} parent=0 // pred_fallthru
    _
  // Predicated region
  $region10: #{double_conv.5} parent=0 // pred_check
    _
  $region11: #{double_conv.5} parent=0 // pred_check_branch
    %13 = sbr.rel (0) target = $region13
  $region12: #{double_conv.5} parent=0 // pred_region
    _
  $region13: #{double_conv.5} parent=0 // pred_fallthru
    _
  %v14 = vld [vmem:[%s0] sm:$0xf]
  %v15 = vld [vmem:[%s0 + $0x4] sm:$0xf]
  %v16 = vld [vmem:[%s0 + $0x8] sm:$0xf]
  %v17 = vld [vmem:[%s0 + $0xc] sm:$0xf]
  %v18 = vld [vmem:[%s0 + $0x10] sm:$0xf]
  %v19 = vld [vmem:[%s0 + $0x14] sm:$0xf]
  %v20 = vld [vmem:[%s0 + $0x18] sm:$0xf]
  %v21 = vld [vmem:[%s0 + $0x1c] sm:$0xf]
  %v22 = vld [vmem:[%s0 + $0x20] sm:$0xf]
  %v23 = vld [vmem:[%s0 + $0x24] sm:$0xf]
  %v24 = vld [vmem:[%s0 + $0x28] sm:$0xf]
  %v25 = vld [vmem:[%s0 + $0x2c] sm:$0xf]
  %v26 = vld [vmem:[%s0 + $0x30] sm:$0xf]
  %v27 = vld [vmem:[%s0 + $0x34] sm:$0xf]
  %v28 = vld [vmem:[%s0 + $0x38] sm:$0xf]
  %v29 = vld [vmem:[%s0 + $0x3c] sm:$0xf]
  %v30 = vld [vmem:[%s0 + $0x40] sm:$0xf]
  %v31 = vld [vmem:[%s0 + $0x44] sm:$0xf]
  %v32 = vld [vmem:[%s0 + $0x48] sm:$0xf]
  %v33 = vld [vmem:[%s0 + $0x4c] sm:$0xf]
  %v34 = vld [vmem:[%s0 + $0x50] sm:$0xf]
  %v35 = vld [vmem:[%s0 + $0x54] sm:$0xf]
  %v36 = vld [vmem:[%s0 + $0x58] sm:$0xf]
  %v37 = vld [vmem:[%s0 + $0x5c] sm:$0xf]
  %v38 = vld [vmem:[%s0 + $0x60] sm:$0xf]
  %v39 = vld [vmem:[%s0 + $0x64] sm:$0xf]
  %v40 = vld [vmem:[%s0 + $0x68] sm:$0xf]
  %v41 = vld [vmem:[%s0 + $0x6c] sm:$0xf]
  %v42 = vld [vmem:[%s0 + $0x70] sm:$0xf]
  %v43 = vld [vmem:[%s0 + $0x74] sm:$0xf]
  %v44 = vld [vmem:[%s0 + $0x78] sm:$0xf]
  %v45 = vld [vmem:[%s0 + $0x7c] sm:$0xf]
  %v46 = vld [vmem:[%s0 + $0x80] sm:$0xf]
  %v47 = vld [vmem:[%s0 + $0x84] sm:$0xf]
  %v48 = vld [vmem:[%s0 + $0x88] sm:$0xf]
  %v49 = vld [vmem:[%s0 + $0x8c] sm:$0xf]
  %v50 = vld [vmem:[%s0 + $0x90] sm:$0xf]
  %v51 = vld [vmem:[%s0 + $0x94] sm:$0xf]
  %v52 = vld [vmem:[%s0 + $0x98] sm:$0xf]
  %v53 = vld [vmem:[%s0 + $0x9c] sm:$0xf]
  %v54 = vld [vmem:[%s0 + $0xa0] sm:$0xf]
  %v55 = vld [vmem:[%s0 + $0xa4] sm:$0xf]
  %v56 = vld [vmem:[%s0 + $0xa8] sm:$0xf]
  %v57 = vld [vmem:[%s0 + $0xac] sm:$0xf]
  %v58 = vld [vmem:[%s0 + $0xb0] sm:$0xf]
  %v59 = vld [vmem:[%s0 + $0xb4] sm:$0xf]
  %v60 = vld [vmem:[%s0 + $0xb8] sm:$0xf]
  %v61 = vld [vmem:[%s0 + $0xbc] sm:$0xf]
  %v62 = vld [vmem:[%s0 + $0xc0] sm:$0xf]
  %v63 = vld [vmem:[%s0 + $0xc4] sm:$0xf]
  %v64 = vld [vmem:[%s0 + $0xc8] sm:$0xf]
  %v65 = vld [vmem:[%s0 + $0xcc] sm:$0xf]
  %v66 = vld [vmem:[%s0 + $0xd0] sm:$0xf]
  %v67 = vld [vmem:[%s0 + $0xd4] sm:$0xf]
  %v68 = vld [vmem:[%s0 + $0xd8] sm:$0xf]
  %v69 = vld [vmem:[%s0 + $0xdc] sm:$0xf]
  %v70 = vld [vmem:[%s0 + $0xe0] sm:$0xf]
  %v71 = vld [vmem:[%s0 + $0xe4] sm:$0xf]
  %v72 = vld [vmem:[%s0 + $0xe8] sm:$0xf]
  %v73 = vld [vmem:[%s0 + $0xec] sm:$0xf]
  %v74 = vld [vmem:[%s0 + $0xf0] sm:$0xf]
  %v75 = vld [vmem:[%s0 + $0xf4] sm:$0xf]
  %v76 = vld [vmem:[%s0 + $0xf8] sm:$0xf]
  %v77 = vld [vmem:[%s0 + $0xfc] sm:$0xf]
  %v78 = vunpack.c.l.bf16 %v14
  %v79 = vunpack.c.l.bf16 %v15
  %v80 = vunpack.c.l.bf16 %v16
  %v81 = vunpack.c.l.bf16 %v17
  %v82 = vunpack.c.l.bf16 %v18
  %v83 = vunpack.c.l.bf16 %v19
  %v84 = vunpack.c.l.bf16 %v20
  %v85 = vunpack.c.l.bf16 %v21
  %v86 = vunpack.c.l.bf16 %v22
  %v87 = vunpack.c.l.bf16 %v23
  %v88 = vunpack.c.l.bf16 %v24
  %v89 = vunpack.c.l.bf16 %v25
  %v90 = vunpack.c.l.bf16 %v26
  %v91 = vunpack.c.l.bf16 %v27
  %v92 = vunpack.c.l.bf16 %v28
  %v93 = vunpack.c.l.bf16 %v29
  %v94 = vunpack.c.l.bf16 %v30
  %v95 = vunpack.c.l.bf16 %v31
  %v96 = vunpack.c.l.bf16 %v32
  %v97 = vunpack.c.l.bf16 %v33
  %v98 = vunpack.c.l.bf16 %v34
  %v99 = vunpack.c.l.bf16 %v35
  %v100 = vunpack.c.l.bf16 %v36
  %v101 = vunpack.c.l.bf16 %v37
  %v102 = vunpack.c.l.bf16 %v38
  %v103 = vunpack.c.l.bf16 %v39
  %v104 = vunpack.c.l.bf16 %v40
  %v105 = vunpack.c.l.bf16 %v41
  %v106 = vunpack.c.l.bf16 %v42
  %v107 = vunpack.c.l.bf16 %v43
  %v108 = vunpack.c.l.bf16 %v44
  %v109 = vunpack.c.l.bf16 %v45
  %v110 = vunpack.c.l.bf16 %v46
  %v111 = vunpack.c.l.bf16 %v47
  %v112 = vunpack.c.l.bf16 %v48
  %v113 = vunpack.c.l.bf16 %v49
  %v114 = vunpack.c.l.bf16 %v50
  %v115 = vunpack.c.l.bf16 %v51
  %v116 = vunpack.c.l.bf16 %v52
  %v117 = vunpack.c.l.bf16 %v53
  %v118 = vunpack.c.l.bf16 %v54
  %v119 = vunpack.c.l.bf16 %v55
  %v120 = vunpack.c.l.bf16 %v56
  %v121 = vunpack.c.l.bf16 %v57
  %v122 = vunpack.c.l.bf16 %v58
  %v123 = vunpack.c.l.bf16 %v59
  %v124 = vunpack.c.l.bf16 %v60
  %v125 = vunpack.c.l.bf16 %v61
  %v126 = vunpack.c.l.bf16 %v62
  %v127 = vunpack.c.l.bf16 %v63
  %v128 = vunpack.c.l.bf16 %v64
  %v129 = vunpack.c.l.bf16 %v65
  %v130 = vunpack.c.l.bf16 %v66
  %v131 = vunpack.c.l.bf16 %v67
  %v132 = vunpack.c.l.bf16 %v68
  %v133 = vunpack.c.l.bf16 %v69
  %v134 = vunpack.c.l.bf16 %v70
  %v135 = vunpack.c.l.bf16 %v71
  %v136 = vunpack.c.l.bf16 %v72
  %v137 = vunpack.c.l.bf16 %v73
  %v138 = vunpack.c.l.bf16 %v74
  %v139 = vunpack.c.l.bf16 %v75
  %v140 = vunpack.c.l.bf16 %v76
  %v141 = vunpack.c.l.bf16 %v77
  %v142 = vld [vmem:[%s1] sm:$0x1]
  %v144 = vlaneseq
  %v145 = vshrl.u32 %v144, 7
  %v146 = vsub.s32 0, %v145
  %v147 = vrot.slane %v142, %v146
  %v149 = vmul.f32 %v78, %v147
  %v150 = vmul.f32 %v79, %v147
  %v151 = vmul.f32 %v80, %v147
  %v152 = vmul.f32 %v81, %v147
  %v153 = vmul.f32 %v82, %v147
  %v154 = vmul.f32 %v83, %v147
  %v155 = vmul.f32 %v84, %v147
  %v156 = vmul.f32 %v85, %v147
  %v157 = vmul.f32 %v86, %v147
  %v158 = vmul.f32 %v87, %v147
  %v159 = vmul.f32 %v88, %v147
  %v160 = vmul.f32 %v89, %v147
  %v161 = vmul.f32 %v90, %v147
  %v162 = vmul.f32 %v91, %v147
  %v163 = vmul.f32 %v92, %v147
  %v164 = vmul.f32 %v93, %v147
  %v165 = vmul.f32 %v94, %v147
  %v166 = vmul.f32 %v95, %v147
  %v167 = vmul.f32 %v96, %v147
  %v168 = vmul.f32 %v97, %v147
  %v169 = vmul.f32 %v98, %v147
  %v170 = vmul.f32 %v99, %v147
  %v171 = vmul.f32 %v100, %v147
  %v172 = vmul.f32 %v101, %v147
  %v173 = vmul.f32 %v102, %v147
  %v174 = vmul.f32 %v103, %v147
  %v175 = vmul.f32 %v104, %v147
  %v176 = vmul.f32 %v105, %v147
  %v177 = vmul.f32 %v106, %v147
  %v178 = vmul.f32 %v107, %v147
  %v179 = vmul.f32 %v108, %v147
  %v180 = vmul.f32 %v109, %v147
  %v181 = vmul.f32 %v110, %v147
  %v182 = vmul.f32 %v111, %v147
  %v183 = vmul.f32 %v112, %v147
  %v184 = vmul.f32 %v113, %v147
  %v185 = vmul.f32 %v114, %v147
  %v186 = vmul.f32 %v115, %v147
  %v187 = vmul.f32 %v116, %v147
  %v188 = vmul.f32 %v117, %v147
  %v189 = vmul.f32 %v118, %v147
  %v190 = vmul.f32 %v119, %v147
  %v191 = vmul.f32 %v120, %v147
  %v192 = vmul.f32 %v121, %v147
  %v193 = vmul.f32 %v122, %v147
  %v194 = vmul.f32 %v123, %v147
  %v195 = vmul.f32 %v124, %v147
  %v196 = vmul.f32 %v125, %v147
  %v197 = vmul.f32 %v126, %v147
  %v198 = vmul.f32 %v127, %v147
  %v199 = vmul.f32 %v128, %v147
  %v200 = vmul.f32 %v129, %v147
  %v201 = vmul.f32 %v130, %v147
  %v202 = vmul.f32 %v131, %v147
  %v203 = vmul.f32 %v132, %v147
  %v204 = vmul.f32 %v133, %v147
  %v205 = vmul.f32 %v134, %v147
  %v206 = vmul.f32 %v135, %v147
  %v207 = vmul.f32 %v136, %v147
  %v208 = vmul.f32 %v137, %v147
  %v209 = vmul.f32 %v138, %v147
  %v210 = vmul.f32 %v139, %v147
  %v211 = vmul.f32 %v140, %v147
  %v212 = vmul.f32 %v141, %v147
  %v213 = vld [vmem:[%s2] sm:$0x1]
  %v215 = vlaneseq
  %v216 = vshrl.u32 %v215, 7
  %v217 = vsub.s32 0, %v216
  %v218 = vrot.slane %v213, %v217
  %v220 = vadd.f32 %v149, %v218
  %v221 = vadd.f32 %v150, %v218
  %v222 = vadd.f32 %v151, %v218
  %v223 = vadd.f32 %v152, %v218
  %v224 = vadd.f32 %v153, %v218
  %v225 = vadd.f32 %v154, %v218
  %v226 = vadd.f32 %v155, %v218
  %v227 = vadd.f32 %v156, %v218
  %v228 = vadd.f32 %v157, %v218
  %v229 = vadd.f32 %v158, %v218
  %v230 = vadd.f32 %v159, %v218
  %v231 = vadd.f32 %v160, %v218
  %v232 = vadd.f32 %v161, %v218
  %v233 = vadd.f32 %v162, %v218
  %v234 = vadd.f32 %v163, %v218
  %v235 = vadd.f32 %v164, %v218
  %v236 = vadd.f32 %v165, %v218
  %v237 = vadd.f32 %v166, %v218
  %v238 = vadd.f32 %v167, %v218
  %v239 = vadd.f32 %v168, %v218
  %v240 = vadd.f32 %v169, %v218
  %v241 = vadd.f32 %v170, %v218
  %v242 = vadd.f32 %v171, %v218
  %v243 = vadd.f32 %v172, %v218
  %v244 = vadd.f32 %v173, %v218
  %v245 = vadd.f32 %v174, %v218
  %v246 = vadd.f32 %v175, %v218
  %v247 = vadd.f32 %v176, %v218
  %v248 = vadd.f32 %v177, %v218
  %v249 = vadd.f32 %v178, %v218
  %v250 = vadd.f32 %v179, %v218
  %v251 = vadd.f32 %v180, %v218
  %v252 = vadd.f32 %v181, %v218
  %v253 = vadd.f32 %v182, %v218
  %v254 = vadd.f32 %v183, %v218
  %v255 = vadd.f32 %v184, %v218
  %v256 = vadd.f32 %v185, %v218
  %v257 = vadd.f32 %v186, %v218
  %v258 = vadd.f32 %v187, %v218
  %v259 = vadd.f32 %v188, %v218
  %v260 = vadd.f32 %v189, %v218
  %v261 = vadd.f32 %v190, %v218
  %v262 = vadd.f32 %v191, %v218
  %v263 = vadd.f32 %v192, %v218
  %v264 = vadd.f32 %v193, %v218
  %v265 = vadd.f32 %v194, %v218
  %v266 = vadd.f32 %v195, %v218
  %v267 = vadd.f32 %v196, %v218
  %v268 = vadd.f32 %v197, %v218
  %v269 = vadd.f32 %v198, %v218
  %v270 = vadd.f32 %v199, %v218
  %v271 = vadd.f32 %v200, %v218
  %v272 = vadd.f32 %v201, %v218
  %v273 = vadd.f32 %v202, %v218
  %v274 = vadd.f32 %v203, %v218
  %v275 = vadd.f32 %v204, %v218
  %v276 = vadd.f32 %v205, %v218
  %v277 = vadd.f32 %v206, %v218
  %v278 = vadd.f32 %v207, %v218
  %v279 = vadd.f32 %v208, %v218
  %v280 = vadd.f32 %v209, %v218
  %v281 = vadd.f32 %v210, %v218
  %v282 = vadd.f32 %v211, %v218
  %v283 = vadd.f32 %v212, %v218
  %v284 = vmax.f32 %v220, 0.0
  %v285 = vmax.f32 %v221, 0.0
  %v286 = vmax.f32 %v222, 0.0
  %v287 = vmax.f32 %v223, 0.0
  %v288 = vmax.f32 %v224, 0.0
  %v289 = vmax.f32 %v225, 0.0
  %v290 = vmax.f32 %v226, 0.0
  %v291 = vmax.f32 %v227, 0.0
  %v292 = vmax.f32 %v228, 0.0
  %v293 = vmax.f32 %v229, 0.0
  %v294 = vmax.f32 %v230, 0.0
  %v295 = vmax.f32 %v231, 0.0
  %v296 = vmax.f32 %v232, 0.0
  %v297 = vmax.f32 %v233, 0.0
  %v298 = vmax.f32 %v234, 0.0
  %v299 = vmax.f32 %v235, 0.0
  %v300 = vmax.f32 %v236, 0.0
  %v301 = vmax.f32 %v237, 0.0
  %v302 = vmax.f32 %v238, 0.0
  %v303 = vmax.f32 %v239, 0.0
  %v304 = vmax.f32 %v240, 0.0
  %v305 = vmax.f32 %v241, 0.0
  %v306 = vmax.f32 %v242, 0.0
  %v307 = vmax.f32 %v243, 0.0
  %v308 = vmax.f32 %v244, 0.0
  %v309 = vmax.f32 %v245, 0.0
  %v310 = vmax.f32 %v246, 0.0
  %v311 = vmax.f32 %v247, 0.0
  %v312 = vmax.f32 %v248, 0.0
  %v313 = vmax.f32 %v249, 0.0
  %v314 = vmax.f32 %v250, 0.0
  %v315 = vmax.f32 %v251, 0.0
  %v316 = vmax.f32 %v252, 0.0
  %v317 = vmax.f32 %v253, 0.0
  %v318 = vmax.f32 %v254, 0.0
  %v319 = vmax.f32 %v255, 0.0
  %v320 = vmax.f32 %v256, 0.0
  %v321 = vmax.f32 %v257, 0.0
  %v322 = vmax.f32 %v258, 0.0
  %v323 = vmax.f32 %v259, 0.0
  %v324 = vmax.f32 %v260, 0.0
  %v325 = vmax.f32 %v261, 0.0
  %v326 = vmax.f32 %v262, 0.0
  %v327 = vmax.f32 %v263, 0.0
  %v328 = vmax.f32 %v264, 0.0
  %v329 = vmax.f32 %v265, 0.0
  %v330 = vmax.f32 %v266, 0.0
  %v331 = vmax.f32 %v267, 0.0
  %v332 = vmax.f32 %v268, 0.0
  %v333 = vmax.f32 %v269, 0.0
  %v334 = vmax.f32 %v270, 0.0
  %v335 = vmax.f32 %v271, 0.0
  %v336 = vmax.f32 %v272, 0.0
  %v337 = vmax.f32 %v273, 0.0
  %v338 = vmax.f32 %v274, 0.0
  %v339 = vmax.f32 %v275, 0.0
  %v340 = vmax.f32 %v276, 0.0
  %v341 = vmax.f32 %v277, 0.0
  %v342 = vmax.f32 %v278, 0.0
  %v343 = vmax.f32 %v279, 0.0
  %v344 = vmax.f32 %v280, 0.0
  %v345 = vmax.f32 %v281, 0.0
  %v346 = vmax.f32 %v282, 0.0
  %v347 = vmax.f32 %v283, 0.0
  %vm348 = vcmask 64512
  %349 = vst.msk [vmem:[%s3] sm:$0xff] %vm348, %v284
  %350 = vst.msk [vmem:[%s3 + $0x8] sm:$0xff] %vm348, %v285
  %351 = vst.msk [vmem:[%s3 + $0x10] sm:$0xff] %vm348, %v286
  %352 = vst.msk [vmem:[%s3 + $0x18] sm:$0xff] %vm348, %v287
  %353 = vst.msk [vmem:[%s3 + $0x20] sm:$0xff] %vm348, %v288
  %354 = vst.msk [vmem:[%s3 + $0x28] sm:$0xff] %vm348, %v289
  %355 = vst.msk [vmem:[%s3 + $0x30] sm:$0xff] %vm348, %v290
  %356 = vst.msk [vmem:[%s3 + $0x38] sm:$0xff] %vm348, %v291
  %357 = vst.msk [vmem:[%s3 + $0x40] sm:$0xff] %vm348, %v292
  %358 = vst.msk [vmem:[%s3 + $0x48] sm:$0xff] %vm348, %v293
  %359 = vst.msk [vmem:[%s3 + $0x50] sm:$0xff] %vm348, %v294
  %360 = vst.msk [vmem:[%s3 + $0x58] sm:$0xff] %vm348, %v295
  %361 = vst.msk [vmem:[%s3 + $0x60] sm:$0xff] %vm348, %v296
  %362 = vst.msk [vmem:[%s3 + $0x68] sm:$0xff] %vm348, %v297
  %363 = vst.msk [vmem:[%s3 + $0x70] sm:$0xff] %vm348, %v298
  %364 = vst.msk [vmem:[%s3 + $0x78] sm:$0xff] %vm348, %v299
  %365 = vst.msk [vmem:[%s3 + $0x80] sm:$0xff] %vm348, %v300
  %366 = vst.msk [vmem:[%s3 + $0x88] sm:$0xff] %vm348, %v301
  %367 = vst.msk [vmem:[%s3 + $0x90] sm:$0xff] %vm348, %v302
  %368 = vst.msk [vmem:[%s3 + $0x98] sm:$0xff] %vm348, %v303
  %369 = vst.msk [vmem:[%s3 + $0xa0] sm:$0xff] %vm348, %v304
  %370 = vst.msk [vmem:[%s3 + $0xa8] sm:$0xff] %vm348, %v305
  %371 = vst.msk [vmem:[%s3 + $0xb0] sm:$0xff] %vm348, %v306
  %372 = vst.msk [vmem:[%s3 + $0xb8] sm:$0xff] %vm348, %v307
  %373 = vst.msk [vmem:[%s3 + $0xc0] sm:$0xff] %vm348, %v308
  %374 = vst.msk [vmem:[%s3 + $0xc8] sm:$0xff] %vm348, %v309
  %375 = vst.msk [vmem:[%s3 + $0xd0] sm:$0xff] %vm348, %v310
  %376 = vst.msk [vmem:[%s3 + $0xd8] sm:$0xff] %vm348, %v311
  %377 = vst.msk [vmem:[%s3 + $0xe0] sm:$0xff] %vm348, %v312
  %378 = vst.msk [vmem:[%s3 + $0xe8] sm:$0xff] %vm348, %v313
  %379 = vst.msk [vmem:[%s3 + $0xf0] sm:$0xff] %vm348, %v314
  %380 = vst.msk [vmem:[%s3 + $0xf8] sm:$0xff] %vm348, %v315
  %381 = vst.msk [vmem:[%s3 + $0x100] sm:$0xff] %vm348, %v316
  %382 = vst.msk [vmem:[%s3 + $0x108] sm:$0xff] %vm348, %v317
  %383 = vst.msk [vmem:[%s3 + $0x110] sm:$0xff] %vm348, %v318
  %384 = vst.msk [vmem:[%s3 + $0x118] sm:$0xff] %vm348, %v319
  %385 = vst.msk [vmem:[%s3 + $0x120] sm:$0xff] %vm348, %v320
  %386 = vst.msk [vmem:[%s3 + $0x128] sm:$0xff] %vm348, %v321
  %387 = vst.msk [vmem:[%s3 + $0x130] sm:$0xff] %vm348, %v322
  %388 = vst.msk [vmem:[%s3 + $0x138] sm:$0xff] %vm348, %v323
  %389 = vst.msk [vmem:[%s3 + $0x140] sm:$0xff] %vm348, %v324
  %390 = vst.msk [vmem:[%s3 + $0x148] sm:$0xff] %vm348, %v325
  %391 = vst.msk [vmem:[%s3 + $0x150] sm:$0xff] %vm348, %v326
  %392 = vst.msk [vmem:[%s3 + $0x158] sm:$0xff] %vm348, %v327
  %393 = vst.msk [vmem:[%s3 + $0x160] sm:$0xff] %vm348, %v328
  %394 = vst.msk [vmem:[%s3 + $0x168] sm:$0xff] %vm348, %v329
  %395 = vst.msk [vmem:[%s3 + $0x170] sm:$0xff] %vm348, %v330
  %396 = vst.msk [vmem:[%s3 + $0x178] sm:$0xff] %vm348, %v331
  %397 = vst.msk [vmem:[%s3 + $0x180] sm:$0xff] %vm348, %v332
  %398 = vst.msk [vmem:[%s3 + $0x188] sm:$0xff] %vm348, %v333
  %399 = vst.msk [vmem:[%s3 + $0x190] sm:$0xff] %vm348, %v334
  %400 = vst.msk [vmem:[%s3 + $0x198] sm:$0xff] %vm348, %v335
  %401 = vst.msk [vmem:[%s3 + $0x1a0] sm:$0xff] %vm348, %v336
  %402 = vst.msk [vmem:[%s3 + $0x1a8] sm:$0xff] %vm348, %v337
  %403 = vst.msk [vmem:[%s3 + $0x1b0] sm:$0xff] %vm348, %v338
  %404 = vst.msk [vmem:[%s3 + $0x1b8] sm:$0xff] %vm348, %v339
  %405 = vst.msk [vmem:[%s3 + $0x1c0] sm:$0xff] %vm348, %v340
  %406 = vst.msk [vmem:[%s3 + $0x1c8] sm:$0xff] %vm348, %v341
  %407 = vst.msk [vmem:[%s3 + $0x1d0] sm:$0xff] %vm348, %v342
  %408 = vst.msk [vmem:[%s3 + $0x1d8] sm:$0xff] %vm348, %v343
  %409 = vst.msk [vmem:[%s3 + $0x1e0] sm:$0xff] %vm348, %v344
  %410 = vst.msk [vmem:[%s3 + $0x1e8] sm:$0xff] %vm348, %v345
  %411 = vst.msk [vmem:[%s3 + $0x1f0] sm:$0xff] %vm348, %v346
  %412 = vst.msk [vmem:[%s3 + $0x1f8] sm:$0xff] %vm348, %v347
  // Predicated region
  $region14: #{double_conv.5} parent=0 // pred_check
    _
  $region15: #{double_conv.5} parent=0 // pred_check_branch
    %414 = sbr.rel (0) target = $region17
  $region16: #{double_conv.5} parent=0 // pred_region
    _
  $region17: #{double_conv.5} parent=0 // pred_fallthru
    _
  // Predicated region
  $region18: #{double_conv.5} parent=0 // pred_check
    _
  $region19: #{double_conv.5} parent=0 // pred_check_branch
    %416 = sbr.rel (0) target = $region21
  $region20: #{double_conv.5} parent=0 // pred_region
    _
  $region21: #{double_conv.5} parent=0 // pred_fallthru
    _

// kernel: double_conv.3
$region0: #{double_conv.3}
  #allocation0 [shape = 'u32[]', space=smem, size = 0x4, offset = 0x4, fixed_abs, tag = 'smem constant byte address 0x4 - core index']
  #allocation1 [shape = 'u32[144,128]{1,0:T(1,128)}', space=vmem, size = 0x12000, scoped, tag = 'internal scratch']
  #allocation2 [shape = 'bf16[304,8]{1,0:T(16,128)(2,1)}', space=vmem, size = 0x13000, scoped, tag = 'scratch operand']
  %s0 = inlined_call_operand.vmem [shape: f32[2,256,8], index: 0, kind: input, shape index: {}]
  %s1 = inlined_call_operand.vmem [shape: bf16[72,8], index: 1, kind: input, shape index: {}]
  %s2 = inlined_call_operand.vmem [shape: f32[1,8], index: 2, kind: input, shape index: {}]
  %s3 = inlined_call_operand.vmem [shape: bf16[2,256,8], index: 3, kind: output, shape index: {0}]
  %s4 = inlined_call_operand.vmem [shape: f32[2,1,1,8], index: 4, kind: output, shape index: {1}]
  %s5 = inlined_call_operand.vmem [shape: f32[2,1,1,8], index: 5, kind: output, shape index: {2}]
  %6 = xla_tuple %s3, %s4, %s5
  %s7 = sld [smem:[#allocation0]]
  $region81: #{double_conv.3} parent=0
    _
  %s9 = ssub.s32 1, %s7
  %s10 = scalar_select 0, %s9, %s7
  loop: start=0, step=1, limit=4
  $region2: #{double_conv.3} parent=0 // loop_pre_header
    _
  $region3: #{double_conv.3} parent=0 // loop_header
    %s12 = sphi 0, %s16
    %p13 = scmp.ge.s32.totalorder %s12, 4
    %s19 = sphi 0, %s38
    %s20 = sphi 0, %s34
    %s21 = sphi 0, %s30
    %s22 = sphi 0, %s19
    %s23 = sphi 0, %s20
    %s24 = sphi 0, %s21
    %s25 = sphi 0, %s22
    %s26 = sphi 0, %s23
    %s27 = sphi 0, %s24
    %s41 = sphi 0, %s43
    %s44 = sphi 0, %s41
    %s45 = sphi 0, %s44
    %s61 = sphi 0, %s45
    %s67 = sphi 0, %s69
    %s70 = sphi 0, %s67
    %s71 = sphi 0, %s70
    %s87 = sphi 0, %s71
    %s93 = sphi 0, %s95
    %s96 = sphi 0, %s93
    %s97 = sphi 0, %s96
    %s113 = sphi 0, %s97
    %s123 = sphi 0, %s125
    %s126 = sphi 0, %s123
    %s127 = sphi 0, %s126
    %s143 = sphi 0, %s127
    %s153 = sphi 0, %s155
    %s156 = sphi 0, %s153
    %s157 = sphi 0, %s156
    %s173 = sphi 0, %s157
    %s183 = sphi 0, %s185
    %s186 = sphi 0, %s183
    %s187 = sphi 0, %s186
    %s203 = sphi 0, %s187
  $region4: #{double_conv.3} parent=0 // loop_header_branch
    %15 = sbr.rel (%p13) target = $region8
  $region5: #{double_conv.3} parent=0 // loop_body
    %s17 = ssub.s32 %s12, 1
    %s18 = ssub.s32 %s12, 2
    %s28 = sadd.s32 1, %s21
    %p29 = scmp.ge.s32.totalorder %s28, 1
    %s30 = scalar_select %p29, 0, %s28
    %s31 = sadd.s32 1, %s20
    %s32 = scalar_select %p29, %s31, %s20
    %p33 = scmp.ge.s32.totalorder %s32, 1
    %s34 = scalar_select %p33, 0, %s32
    %s35 = sadd.s32 1, %s19
    %s36 = scalar_select %p33, %s35, %s19
    %p37 = scmp.ge.s32.totalorder %s36, 2
    %s38 = scalar_select %p37, 0, %s36
    %s39 = ssub.s32 %s19, %s38
    %p40 = scmp.eq.s32.totalorder %s39, 0
    %s42 = sadd.s32 %s41, 1
    %s43 = scalar_select %p40, %s41, %s42
    %p46 = pneg %p40
    %p47 = scmp.eq.s32.totalorder %s12, 1
    %p48 = por %p46, %p47
    %p49 = scmp.ne.s32.totalorder %s41, %s44
    %p50 = scmp.eq.s32.totalorder %s12, 0
    %p51 = por %p49, %p50
    %p52 = scmp.ne.s32.totalorder %s41, %s44
    %p53 = scmp.eq.s32.totalorder %s17, 1
    %p54 = por %p52, %p53
    %p55 = scmp.ne.s32.totalorder %s44, %s45
    %p56 = scmp.eq.s32.totalorder %s17, 0
    %p57 = por %p55, %p56
    %p58 = scmp.ne.s32.totalorder %s44, %s45
    %p59 = scmp.eq.s32.totalorder %s18, 1
    %p60 = por %p58, %p59
    %p62 = scmp.ne.s32.totalorder %s45, %s61
    %p63 = scmp.eq.s32.totalorder %s18, 0
    %p64 = por %p62, %p63
    %s65 = ssub.s32 %s21, %s30
    %p66 = scmp.eq.s32.totalorder %s65, 0
    %s68 = sadd.s32 %s67, 1
    %s69 = scalar_select %p66, %s67, %s68
    %p72 = pneg %p66
    %p73 = scmp.eq.s32.totalorder %s12, 1
    %p74 = por %p72, %p73
    %p75 = scmp.ne.s32.totalorder %s67, %s70
    %p76 = scmp.eq.s32.totalorder %s12, 0
    %p77 = por %p75, %p76
    %p78 = scmp.ne.s32.totalorder %s67, %s70
    %p79 = scmp.eq.s32.totalorder %s17, 1
    %p80 = por %p78, %p79
    %p81 = scmp.ne.s32.totalorder %s70, %s71
    %p82 = scmp.eq.s32.totalorder %s17, 0
    %p83 = por %p81, %p82
    %p84 = scmp.ne.s32.totalorder %s70, %s71
    %p85 = scmp.eq.s32.totalorder %s18, 1
    %p86 = por %p84, %p85
    %p88 = scmp.ne.s32.totalorder %s71, %s87
    %p89 = scmp.eq.s32.totalorder %s18, 0
    %p90 = por %p88, %p89
    %s91 = ssub.s32 %s21, %s30
    %p92 = scmp.eq.s32.totalorder %s91, 0
    %s94 = sadd.s32 %s93, 1
    %s95 = scalar_select %p92, %s93, %s94
    %p98 = pneg %p92
    %p99 = scmp.eq.s32.totalorder %s12, 1
    %p100 = por %p98, %p99
    %p101 = scmp.ne.s32.totalorder %s93, %s96
    %p102 = scmp.eq.s32.totalorder %s12, 0
    %p103 = por %p101, %p102
    %p104 = scmp.ne.s32.totalorder %s93, %s96
    %p105 = scmp.eq.s32.totalorder %s17, 1
    %p106 = por %p104, %p105
    %p107 = scmp.ne.s32.totalorder %s96, %s97
    %p108 = scmp.eq.s32.totalorder %s17, 0
    %p109 = por %p107, %p108
    %p110 = scmp.ne.s32.totalorder %s96, %s97
    %p111 = scmp.eq.s32.totalorder %s18, 1
    %p112 = por %p110, %p111
    %p114 = scmp.ne.s32.totalorder %s97, %s113
    %p115 = scmp.eq.s32.totalorder %s18, 0
    %p116 = por %p114, %p115
    %s117 = ssub.s32 %s19, %s38
    %s118 = ssub.s32 %s20, %s34
    %s119 = sor.u32 %s117, %s118
    %s120 = ssub.s32 %s21, %s30
    %s121 = sor.u32 %s119, %s120
    %p122 = scmp.eq.s32.totalorder %s121, 0
    %s124 = sadd.s32 %s123, 1
    %s125 = scalar_select %p122, %s123, %s124
    %p128 = pneg %p122
    %p129 = scmp.eq.s32.totalorder %s12, 1
    %p130 = por %p128, %p129
    %p131 = scmp.ne.s32.totalorder %s123, %s126
    %p132 = scmp.eq.s32.totalorder %s12, 0
    %p133 = por %p131, %p132
    %p134 = scmp.ne.s32.totalorder %s123, %s126
    %p135 = scmp.eq.s32.totalorder %s17, 1
    %p136 = por %p134, %p135
    %p137 = scmp.ne.s32.totalorder %s126, %s127
    %p138 = scmp.eq.s32.totalorder %s17, 0
    %p139 = por %p137, %p138
    %p140 = scmp.ne.s32.totalorder %s126, %s127
    %p141 = scmp.eq.s32.totalorder %s18, 1
    %p142 = por %p140, %p141
    %p144 = scmp.ne.s32.totalorder %s127, %s143
    %p145 = scmp.eq.s32.totalorder %s18, 0
    %p146 = por %p144, %p145
    %s147 = ssub.s32 %s19, %s38
    %s148 = ssub.s32 %s20, %s34
    %s149 = sor.u32 %s147, %s148
    %s150 = ssub.s32 %s21, %s30
    %s151 = sor.u32 %s149, %s150
    %p152 = scmp.eq.s32.totalorder %s151, 0
    %s154 = sadd.s32 %s153, 1
    %s155 = scalar_select %p152, %s153, %s154
    %p158 = pneg %p152
    %p159 = scmp.eq.s32.totalorder %s12, 1
    %p160 = por %p158, %p159
    %p161 = scmp.ne.s32.totalorder %s153, %s156
    %p162 = scmp.eq.s32.totalorder %s12, 0
    %p163 = por %p161, %p162
    %p164 = scmp.ne.s32.totalorder %s153, %s156
    %p165 = scmp.eq.s32.totalorder %s17, 1
    %p166 = por %p164, %p165
    %p167 = scmp.ne.s32.totalorder %s156, %s157
    %p168 = scmp.eq.s32.totalorder %s17, 0
    %p169 = por %p167, %p168
    %p170 = scmp.ne.s32.totalorder %s156, %s157
    %p171 = scmp.eq.s32.totalorder %s18, 1
    %p172 = por %p170, %p171
    %p174 = scmp.ne.s32.totalorder %s157, %s173
    %p175 = scmp.eq.s32.totalorder %s18, 0
    %p176 = por %p174, %p175
    %s177 = ssub.s32 %s19, %s38
    %s178 = ssub.s32 %s20, %s34
    %s179 = sor.u32 %s177, %s178
    %s180 = ssub.s32 %s21, %s30
    %s181 = sor.u32 %s179, %s180
    %p182 = scmp.eq.s32.totalorder %s181, 0
    %s184 = sadd.s32 %s183, 1
    %s185 = scalar_select %p182, %s183, %s184
    %p188 = pneg %p182
    %p189 = scmp.eq.s32.totalorder %s12, 1
    %p190 = por %p188, %p189
    %p191 = scmp.ne.s32.totalorder %s183, %s186
    %p192 = scmp.eq.s32.totalorder %s12, 0
    %p193 = por %p191, %p192
    %p194 = scmp.ne.s32.totalorder %s183, %s186
    %p195 = scmp.eq.s32.totalorder %s17, 1
    %p196 = por %p194, %p195
    %p197 = scmp.ne.s32.totalorder %s186, %s187
    %p198 = scmp.eq.s32.totalorder %s17, 0
    %p199 = por %p197, %p198
    %p200 = scmp.ne.s32.totalorder %s186, %s187
    %p201 = scmp.eq.s32.totalorder %s18, 1
    %p202 = por %p200, %p201
    %p204 = scmp.ne.s32.totalorder %s187, %s203
    %p205 = scmp.eq.s32.totalorder %s18, 0
    %p206 = por %p204, %p205
    %p207 = scmp.le.s32.totalorder 1, %s12
    %p208 = scmp.lt.s32.totalorder %s12, 3
    %p209 = pnand %p207, %p208
    %p210 = pneg %p209
    // Predicated region
    $region9: #{double_conv.3} parent=5 // pred_check
      _
    $region10: #{double_conv.3} parent=5 // pred_check_branch
      %212 = sbr.rel (%p209) target = $region12
    $region11: #{double_conv.3} parent=5 // pred_region
      %s213 = ssub.s32 %s12, 1
      // Predicated region
      $region13: #{double_conv.3} parent=11 // pred_check
        %p214 = pneg %p83
      $region14: #{double_conv.3} parent=11 // pred_check_branch
        %216 = sbr.rel (%p214) target = $region16
      $region15: #{double_conv.3} parent=11 // pred_region
        %p217 = scmp.lt.s32.totalorder %s24, 0
        %s218 = scalar_select %p217, %s24, 0
        %s219 = smul.addr %s218, 4
        %s220 = scalar_lea.vmem %s1, %s219
      $region16: #{double_conv.3} parent=11 // pred_fallthru
        _
      // Predicated region
      $region17: #{double_conv.3} parent=11 // pred_check
        %p221 = pneg %p109
      $region18: #{double_conv.3} parent=11 // pred_check_branch
        %223 = sbr.rel (%p221) target = $region20
      $region19: #{double_conv.3} parent=11 // pred_region
        %p224 = scmp.lt.s32.totalorder %s24, 0
        %s225 = scalar_select %p224, %s24, 0
        %s226 = scalar_lea.vmem %s2, %s225
      $region20: #{double_conv.3} parent=11 // pred_fallthru
        _
    $region12: #{double_conv.3} parent=5 // pred_fallthru
      _
    %p227 = scmp.lt.s32.totalorder %s12, 2
    // Predicated region
    $region21: #{double_conv.3} parent=5 // pred_check
      %p228 = pneg %p227
    $region22: #{double_conv.3} parent=5 // pred_check_branch
      %230 = sbr.rel (%p228) target = $region24
    $region23: #{double_conv.3} parent=5 // pred_region
      // Predicated region
      $region25: #{double_conv.3} parent=23 // pred_check
        %p231 = pneg %p51
      $region26: #{double_conv.3} parent=23 // pred_check_branch
        %233 = sbr.rel (%p231) target = $region28
      $region27: #{double_conv.3} parent=23 // pred_region
        %p234 = scmp.lt.s32.totalorder %s19, 1
        %s235 = scalar_select %p234, %s19, 1
        %s236 = smul.addr %s235, 32
        %s237 = smul.addr %s236, 8
        %s238 = scalar_lea.vmem %s0, %s237
      $region28: #{double_conv.3} parent=23 // pred_fallthru
        _
    $region24: #{double_conv.3} parent=5 // pred_fallthru
      _
    %p239 = scmp.le.s32.totalorder 1, %s12
    %p240 = scmp.lt.s32.totalorder %s12, 3
    %p241 = pnand %p239, %p240
    %p242 = pneg %p241
    // Predicated region
    $region29: #{double_conv.3} parent=5 // pred_check
      _
    $region30: #{double_conv.3} parent=5 // pred_check_branch
      %244 = sbr.rel (%p241) target = $region32
    $region31: #{double_conv.3} parent=5 // pred_region
      %s245 = ssub.s32 %s12, 1
      %p246 = scmp.lt.s32.totalorder %s22, 1
      %s247 = scalar_select %p246, %s22, 1
      %s248 = smul.addr %s247, 32
      %s249 = smul.addr %s248, 8
      %s250 = scalar_lea.vmem %s0, %s249
      %p251 = pneg %p57
      %p252 = pneg %p54
      %p253 = scmp.lt.s32.totalorder %s24, 0
      %s254 = scalar_select %p253, %s24, 0
      %s255 = smul.addr %s254, 4
      %s256 = scalar_lea.vmem %s1, %s255
      %p257 = pneg %p83
      %p258 = pneg %p80
      %p259 = scmp.lt.s32.totalorder %s24, 0
      %s260 = scalar_select %p259, %s24, 0
      %s261 = scalar_lea.vmem %s2, %s260
      %p262 = pneg %p109
      %p263 = pneg %p106
      %p264 = pneg %p139
      %p265 = pneg %p136
      %s266 = smul.u32 32, %s23
      %p267 = scmp.lt.s32.totalorder %s22, 1
      %s268 = scalar_select %p267, %s22, 1
      %p269 = scmp.lt.s32.totalorder %s266, 31
      %s270 = scalar_select %p269, %s266, 31
      %p271 = scmp.lt.s32.totalorder %s24, 0
      %s272 = scalar_select %p271, %s24, 0
      %s273 = sadd.s32 %s272, %s270
      %s274 = smul.addr %s268, 32
      %s275 = sadd.s32 %s273, %s274
      %s276 = smul.addr %s275, 4
      %s277 = scalar_lea.vmem %s3, %s276
      %p278 = pneg %p169
      %p279 = pneg %p166
      %p280 = scmp.lt.s32.totalorder %s22, 1
      %s281 = scalar_select %p280, %s22, 1
      %p282 = scmp.lt.s32.totalorder %s23, 0
      %s283 = scalar_select %p282, %s23, 0
      %p284 = scmp.lt.s32.totalorder %s24, 0
      %s285 = scalar_select %p284, %s24, 0
      %s286 = sadd.s32 %s285, %s283
      %s287 = sadd.s32 %s286, %s281
      %s288 = scalar_lea.vmem %s4, %s287
      %p289 = pneg %p199
      %p290 = pneg %p196
      %p291 = scmp.lt.s32.totalorder %s22, 1
      %s292 = scalar_select %p291, %s22, 1
      %p293 = scmp.lt.s32.totalorder %s23, 0
      %s294 = scalar_select %p293, %s23, 0
      %p295 = scmp.lt.s32.totalorder %s24, 0
      %s296 = scalar_select %p295, %s24, 0
      %s297 = sadd.s32 %s296, %s294
      %s298 = sadd.s32 %s297, %s292
      %s299 = scalar_lea.vmem %s5, %s298
      %p300 = scmp.lt.s32.totalorder %s22, 1
      %s301 = scalar_select %p300, %s22, 1
      %s302 = smul.addr %s301, 32
      %s303 = smul.addr %s302, 8
      %s304 = scalar_lea.vmem %s0, %s303
      %p305 = scmp.lt.s32.totalorder %s24, 0
      %s306 = scalar_select %p305, %s24, 0
      %s307 = smul.addr %s306, 4
      %s308 = scalar_lea.vmem %s1, %s307
      %p309 = scmp.lt.s32.totalorder %s24, 0
      %s310 = scalar_select %p309, %s24, 0
      %s311 = scalar_lea.vmem %s2, %s310
      %s312 = smul.u32 32, %s23
      %p313 = scmp.lt.s32.totalorder %s22, 1
      %s314 = scalar_select %p313, %s22, 1
      %p315 = scmp.lt.s32.totalorder %s312, 31
      %s316 = scalar_select %p315, %s312, 31
      %p317 = scmp.lt.s32.totalorder %s24, 0
      %s318 = scalar_select %p317, %s24, 0
      %s319 = sadd.s32 %s318, %s316
      %s320 = smul.addr %s314, 32
      %s321 = sadd.s32 %s319, %s320
      %s322 = smul.addr %s321, 4
      %s323 = scalar_lea.vmem %s3, %s322
      %s324 = smul.u32 32, %s23
      %p325 = scmp.lt.s32.totalorder %s22, 1
      %s326 = scalar_select %p325, %s22, 1
      %p327 = scmp.lt.s32.totalorder %s23, 0
      %s328 = scalar_select %p327, %s23, 0
      %p329 = scmp.lt.s32.totalorder %s24, 0
      %s330 = scalar_select %p329, %s24, 0
      %s331 = sadd.s32 %s330, %s328
      %s332 = sadd.s32 %s331, %s326
      %s333 = scalar_lea.vmem %s4, %s332
      %p334 = scmp.lt.s32.totalorder %s22, 1
      %s335 = scalar_select %p334, %s22, 1
      %p336 = scmp.lt.s32.totalorder %s23, 0
      %s337 = scalar_select %p336, %s23, 0
      %p338 = scmp.lt.s32.totalorder %s24, 0
      %s339 = scalar_select %p338, %s24, 0
      %s340 = sadd.s32 %s339, %s337
      %s341 = sadd.s32 %s340, %s335
      %s342 = scalar_lea.vmem %s5, %s341
      %p346 = scmp.eq.s32.totalorder %s24, 0
      // Predicated region
      $region33: #{double_conv.3} parent=31 // pred_check
        %p347 = pneg %p346
      $region34: #{double_conv.3} parent=31 // pred_check_branch
        %349 = sbr.rel (%p347) target = $region36
      $region35: #{double_conv.3} parent=31 // pred_region
        %s350 = smul.u32 %s23, 256
        %s351 = scalar_lea.vmem %s304, %s350
        %v352 = vld [vmem:[%s351] sm:$0xff]
        %v353 = vld [vmem:[%s351 + $0x8] sm:$0xff]
        %v354 = vld [vmem:[%s351 + $0x10] sm:$0xff]
        %v355 = vld [vmem:[%s351 + $0x18] sm:$0xff]
        %v356 = vld [vmem:[%s351 + $0x20] sm:$0xff]
        %v357 = vld [vmem:[%s351 + $0x28] sm:$0xff]
        %v358 = vld [vmem:[%s351 + $0x30] sm:$0xff]
        %v359 = vld [vmem:[%s351 + $0x38] sm:$0xff]
        %v360 = vld [vmem:[%s351 + $0x40] sm:$0xff]
        %v361 = vld [vmem:[%s351 + $0x48] sm:$0xff]
        %v362 = vld [vmem:[%s351 + $0x50] sm:$0xff]
        %v363 = vld [vmem:[%s351 + $0x58] sm:$0xff]
        %v364 = vld [vmem:[%s351 + $0x60] sm:$0xff]
        %v365 = vld [vmem:[%s351 + $0x68] sm:$0xff]
        %v366 = vld [vmem:[%s351 + $0x70] sm:$0xff]
        %v367 = vld [vmem:[%s351 + $0x78] sm:$0xff]
        %v368 = vld [vmem:[%s351 + $0x80] sm:$0xff]
        %v369 = vld [vmem:[%s351 + $0x88] sm:$0xff]
        %v370 = vld [vmem:[%s351 + $0x90] sm:$0xff]
        %v371 = vld [vmem:[%s351 + $0x98] sm:$0xff]
        %v372 = vld [vmem:[%s351 + $0xa0] sm:$0xff]
        %v373 = vld [vmem:[%s351 + $0xa8] sm:$0xff]
        %v374 = vld [vmem:[%s351 + $0xb0] sm:$0xff]
        %v375 = vld [vmem:[%s351 + $0xb8] sm:$0xff]
        %v376 = vld [vmem:[%s351 + $0xc0] sm:$0xff]
        %v377 = vld [vmem:[%s351 + $0xc8] sm:$0xff]
        %v378 = vld [vmem:[%s351 + $0xd0] sm:$0xff]
        %v379 = vld [vmem:[%s351 + $0xd8] sm:$0xff]
        %v380 = vld [vmem:[%s351 + $0xe0] sm:$0xff]
        %v381 = vld [vmem:[%s351 + $0xe8] sm:$0xff]
        %v382 = vld [vmem:[%s351 + $0xf0] sm:$0xff]
        %v383 = vld [vmem:[%s351 + $0xf8] sm:$0xff]
        %v384 = vpack.c.bf16 %v353, %v352
        %v385 = vpack.c.bf16 %v355, %v354
        %v386 = vpack.c.bf16 %v357, %v356
        %v387 = vpack.c.bf16 %v359, %v358
        %v388 = vpack.c.bf16 %v361, %v360
        %v389 = vpack.c.bf16 %v363, %v362
        %v390 = vpack.c.bf16 %v365, %v364
        %v391 = vpack.c.bf16 %v367, %v366
        %v392 = vpack.c.bf16 %v369, %v368
        %v393 = vpack.c.bf16 %v371, %v370
        %v394 = vpack.c.bf16 %v373, %v372
        %v395 = vpack.c.bf16 %v375, %v374
        %v396 = vpack.c.bf16 %v377, %v376
        %v397 = vpack.c.bf16 %v379, %v378
        %v398 = vpack.c.bf16 %v381, %v380
        %v399 = vpack.c.bf16 %v383, %v382
        %vm416 = vcmask 1043456
        %v417 = vrot.slane %v384, 4
        %v418 = vrot.slane %v385, 4
        %v419 = vsel %vm416, %v417, %v418
        %v420 = vrot.slane %v386, 4
        %v421 = vsel %vm416, %v418, %v420
        %v422 = vrot.slane %v387, 4
        %v423 = vsel %vm416, %v420, %v422
        %v424 = vrot.slane %v388, 4
        %v425 = vsel %vm416, %v422, %v424
        %v426 = vrot.slane %v389, 4
        %v427 = vsel %vm416, %v424, %v426
        %v428 = vrot.slane %v390, 4
        %v429 = vsel %vm416, %v426, %v428
        %v430 = vrot.slane %v391, 4
        %v431 = vsel %vm416, %v428, %v430
        %v432 = vrot.slane %v392, 4
        %v433 = vsel %vm416, %v430, %v432
        %v434 = vrot.slane %v393, 4
        %v435 = vsel %vm416, %v432, %v434
        %v436 = vrot.slane %v394, 4
        %v437 = vsel %vm416, %v434, %v436
        %v438 = vrot.slane %v395, 4
        %v439 = vsel %vm416, %v436, %v438
        %v440 = vrot.slane %v396, 4
        %v441 = vsel %vm416, %v438, %v440
        %v442 = vrot.slane %v397, 4
        %v443 = vsel %vm416, %v440, %v442
        %v444 = vrot.slane %v398, 4
        %v445 = vsel %vm416, %v442, %v444
        %v446 = vrot.slane %v399, 4
        %v447 = vsel %vm416, %v444, %v446
        %vm465 = vcmask 64516
        %466 = vst.msk [vmem:[#allocation2 + $0x8] sm:$0xf0] %vm465, %v417
        %vm467 = vcmask 64512
        %468 = vst.msk [vmem:[#allocation2 + $0x10] sm:$0xff] %vm467, %v419
        %469 = vst.msk [vmem:[#allocation2 + $0x18] sm:$0xff] %vm467, %v421
        %470 = vst.msk [vmem:[#allocation2 + $0x20] sm:$0xff] %vm467, %v423
        %471 = vst.msk [vmem:[#allocation2 + $0x28] sm:$0xff] %vm467, %v425
        %472 = vst.msk [vmem:[#allocation2 + $0x30] sm:$0xff] %vm467, %v427
        %473 = vst.msk [vmem:[#allocation2 + $0x38] sm:$0xff] %vm467, %v429
        %474 = vst.msk [vmem:[#allocation2 + $0x40] sm:$0xff] %vm467, %v431
        %475 = vst.msk [vmem:[#allocation2 + $0x48] sm:$0xff] %vm467, %v433
        %476 = vst.msk [vmem:[#allocation2 + $0x50] sm:$0xff] %vm467, %v435
        %477 = vst.msk [vmem:[#allocation2 + $0x58] sm:$0xff] %vm467, %v437
        %478 = vst.msk [vmem:[#allocation2 + $0x60] sm:$0xff] %vm467, %v439
        %479 = vst.msk [vmem:[#allocation2 + $0x68] sm:$0xff] %vm467, %v441
        %480 = vst.msk [vmem:[#allocation2 + $0x70] sm:$0xff] %vm467, %v443
        %481 = vst.msk [vmem:[#allocation2 + $0x78] sm:$0xff] %vm467, %v445
        %482 = vst.msk [vmem:[#allocation2 + $0x80] sm:$0xff] %vm467, %v447
        %vm483 = vcmask 60416
        %484 = vst.msk [vmem:[#allocation2 + $0x88] sm:$0xf] %vm483, %v446
        %p485 = scmp.eq.s32.totalorder %s23, 0
        // Predicated region
        $region37: #{double_conv.3} parent=35 // pred_check
          %p486 = pneg %p485
        $region38: #{double_conv.3} parent=35 // pred_check_branch
          %488 = sbr.rel (%p486) target = $region40
        $region39: #{double_conv.3} parent=35 // pred_region
          %489 = vst.msk [vmem:[#allocation2] sm:$0xf0] %vm465, 0
          %490 = vst.msk [vmem:[#allocation2 + $0x8] sm:$0xf] %vm483, 0
        $region40: #{double_conv.3} parent=35 // pred_fallthru
          _
        %p491 = scmp.gt.s32.totalorder %s23, 0
        // Predicated region
        $region41: #{double_conv.3} parent=35 // pred_check
          %p492 = pneg %p491
        $region42: #{double_conv.3} parent=35 // pred_check_branch
          %494 = sbr.rel (%p492) target = $region44
        $region43: #{double_conv.3} parent=35 // pred_region
          %s495 = ssub.s32 %s350, 16
          %s496 = scalar_lea.vmem %s304, %s495
          %v497 = vld [vmem:[%s496] sm:$0xff]
          %v498 = vld [vmem:[%s496 + $0x8] sm:$0xff]
          %v499 = vpack.c.bf16 %v498, %v497
          %v501 = vrot.slane %v499, 4
          %503 = vst.msk [vmem:[#allocation2] sm:$0xf0] %vm465, %v501
          %504 = vst.msk [vmem:[#allocation2 + $0x8] sm:$0xf] %vm483, %v501
        $region44: #{double_conv.3} parent=35 // pred_fallthru
          _
        // Predicated region
        $region45: #{double_conv.3} parent=35 // pred_check
          %p505 = pneg %p485
        $region46: #{double_conv.3} parent=35 // pred_check_branch
          %507 = sbr.rel (%p505) target = $region48
        $region47: #{double_conv.3} parent=35 // pred_region
          %508 = vst.msk [vmem:[#allocation2 + $0x88] sm:$0xf0] %vm465, 0
          %509 = vst.msk [vmem:[#allocation2 + $0x90] sm:$0xf] %vm483, 0
        $region48: #{double_conv.3} parent=35 // pred_fallthru
          _
        %p510 = scmp.lt.s32.totalorder %s23, 0
        // Predicated region
        $region49: #{double_conv.3} parent=35 // pred_check
          %p511 = pneg %p510
        $region50: #{double_conv.3} parent=35 // pred_check_branch
          %513 = sbr.rel (%p511) target = $region52
        $region51: #{double_conv.3} parent=35 // pred_region
          %s514 = sadd.s32 %s350, 256
          %s515 = scalar_lea.vmem %s304, %s514
          %v516 = vld [vmem:[%s515] sm:$0xff]
          %v517 = vld [vmem:[%s515 + $0x8] sm:$0xff]
          %v518 = vpack.c.bf16 %v517, %v516
          %v520 = vrot.slane %v518, 4
          %522 = vst.msk [vmem:[#allocation2 + $0x88] sm:$0xf0] %vm465, %v520
          %523 = vst.msk [vmem:[#allocation2 + $0x90] sm:$0xf] %vm483, %v520
        $region52: #{double_conv.3} parent=35 // pred_fallthru
          _
      $region36: #{double_conv.3} parent=31 // pred_fallthru
        _
      %v524 = vlaneseq
      %v525 = vshrl.u32 %v524, 7
      %v526 = vadd.s32 %v525, 8
      %v527 = vadd.s32 %v525, 16
      %v528 = vadd.s32 %v525, 24
      %v529 = vadd.s32 %v525, 32
      %v530 = vadd.s32 %v525, 40
      %v531 = vadd.s32 %v525, 48
      %v532 = vadd.s32 %v525, 56
      %v533 = vadd.s32 %v525, 64
      %v534 = vadd.s32 %v525, 72
      %v535 = vadd.s32 %v525, 80
      %v536 = vadd.s32 %v525, 88
      %v537 = vadd.s32 %v525, 96
      %v538 = vadd.s32 %v525, 104
      %v539 = vadd.s32 %v525, 112
      %v540 = vadd.s32 %v525, 120
      %v541 = vadd.s32 %v525, 128
      %v542 = vadd.s32 %v525, 136
      %v543 = vadd.s32 %v525, 144
      %v544 = vadd.s32 %v525, 152
      %v545 = vadd.s32 %v525, 160
      %v546 = vadd.s32 %v525, 168
      %v547 = vadd.s32 %v525, 176
      %v548 = vadd.s32 %v525, 184
      %v549 = vadd.s32 %v525, 192
      %v550 = vadd.s32 %v525, 200
      %v551 = vadd.s32 %v525, 208
      %v552 = vadd.s32 %v525, 216
      %v553 = vadd.s32 %v525, 224
      %v554 = vadd.s32 %v525, 232
      %v555 = vadd.s32 %v525, 240
      %v556 = vadd.s32 %v525, 248
      %vm557 = vcmp.lt.s32.totalorder %v525, 0
      %v558 = vsub.s32 0, %v525
      %v559 = vsel %vm557, %v558, %v525
      %v560 = vshrl.u32 %v559, 4
      %v561 = vand.u32 %v559, 15
      %v562 = vsub.s32 0, %v561
      %v563 = vsel %vm557, %v562, %v561
      %vm564 = vcmp.lt.s32.totalorder %v526, 0
      %v565 = vsub.s32 0, %v526
      %v566 = vsel %vm564, %v565, %v526
      %v567 = vshrl.u32 %v566, 4
      %v568 = vand.u32 %v566, 15
      %v569 = vsub.s32 0, %v568
      %v570 = vsel %vm564, %v569, %v568
      %vm571 = vcmp.lt.s32.totalorder %v527, 0
      %v572 = vsub.s32 0, %v527
      %v573 = vsel %vm571, %v572, %v527
      %v574 = vshrl.u32 %v573, 4
      %v575 = vand.u32 %v573, 15
      %v576 = vsub.s32 0, %v575
      %v577 = vsel %vm571, %v576, %v575
      %vm578 = vcmp.lt.s32.totalorder %v528, 0
      %v579 = vsub.s32 0, %v528
      %v580 = vsel %vm578, %v579, %v528
      %v581 = vshrl.u32 %v580, 4
      %v582 = vand.u32 %v580, 15
      %v583 = vsub.s32 0, %v582
      %v584 = vsel %vm578, %v583, %v582
      %vm585 = vcmp.lt.s32.totalorder %v529, 0
      %v586 = vsub.s32 0, %v529
      %v587 = vsel %vm585, %v586, %v529
      %v588 = vshrl.u32 %v587, 4
      %v589 = vand.u32 %v587, 15
      %v590 = vsub.s32 0, %v589
      %v591 = vsel %vm585, %v590, %v589
      %vm592 = vcmp.lt.s32.totalorder %v530, 0
      %v593 = vsub.s32 0, %v530
      %v594 = vsel %vm592, %v593, %v530
      %v595 = vshrl.u32 %v594, 4
      %v596 = vand.u32 %v594, 15
      %v597 = vsub.s32 0, %v596
      %v598 = vsel %vm592, %v597, %v596
      %vm599 = vcmp.lt.s32.totalorder %v531, 0
      %v600 = vsub.s32 0, %v531
      %v601 = vsel %vm599, %v600, %v531
      %v602 = vshrl.u32 %v601, 4
      %v603 = vand.u32 %v601, 15
      %v604 = vsub.s32 0, %v603
      %v605 = vsel %vm599, %v604, %v603
      %vm606 = vcmp.lt.s32.totalorder %v532, 0
      %v607 = vsub.s32 0, %v532
      %v608 = vsel %vm606, %v607, %v532
      %v609 = vshrl.u32 %v608, 4
      %v610 = vand.u32 %v608, 15
      %v611 = vsub.s32 0, %v610
      %v612 = vsel %vm606, %v611, %v610
      %vm613 = vcmp.lt.s32.totalorder %v533, 0
      %v614 = vsub.s32 0, %v533
      %v615 = vsel %vm613, %v614, %v533
      %v616 = vshrl.u32 %v615, 4
      %v617 = vand.u32 %v615, 15
      %v618 = vsub.s32 0, %v617
      %v619 = vsel %vm613, %v618, %v617
      %vm620 = vcmp.lt.s32.totalorder %v534, 0
      %v621 = vsub.s32 0, %v534
      %v622 = vsel %vm620, %v621, %v534
      %v623 = vshrl.u32 %v622, 4
      %v624 = vand.u32 %v622, 15
      %v625 = vsub.s32 0, %v624
      %v626 = vsel %vm620, %v625, %v624
      %vm627 = vcmp.lt.s32.totalorder %v535, 0
      %v628 = vsub.s32 0, %v535
      %v629 = vsel %vm627, %v628, %v535
      %v630 = vshrl.u32 %v629, 4
      %v631 = vand.u32 %v629, 15
      %v632 = vsub.s32 0, %v631
      %v633 = vsel %vm627, %v632, %v631
      %vm634 = vcmp.lt.s32.totalorder %v536, 0
      %v635 = vsub.s32 0, %v536
      %v636 = vsel %vm634, %v635, %v536
      %v637 = vshrl.u32 %v636, 4
      %v638 = vand.u32 %v636, 15
      %v639 = vsub.s32 0, %v638
      %v640 = vsel %vm634, %v639, %v638
      %vm641 = vcmp.lt.s32.totalorder %v537, 0
      %v642 = vsub.s32 0, %v537
      %v643 = vsel %vm641, %v642, %v537
      %v644 = vshrl.u32 %v643, 4
      %v645 = vand.u32 %v643, 15
      %v646 = vsub.s32 0, %v645
      %v647 = vsel %vm641, %v646, %v645
      %vm648 = vcmp.lt.s32.totalorder %v538, 0
      %v649 = vsub.s32 0, %v538
      %v650 = vsel %vm648, %v649, %v538
      %v651 = vshrl.u32 %v650, 4
      %v652 = vand.u32 %v650, 15
      %v653 = vsub.s32 0, %v652
      %v654 = vsel %vm648, %v653, %v652
      %vm655 = vcmp.lt.s32.totalorder %v539, 0
      %v656 = vsub.s32 0, %v539
      %v657 = vsel %vm655, %v656, %v539
      %v658 = vshrl.u32 %v657, 4
      %v659 = vand.u32 %v657, 15
      %v660 = vsub.s32 0, %v659
      %v661 = vsel %vm655, %v660, %v659
      %vm662 = vcmp.lt.s32.totalorder %v540, 0
      %v663 = vsub.s32 0, %v540
      %v664 = vsel %vm662, %v663, %v540
      %v665 = vshrl.u32 %v664, 4
      %v666 = vand.u32 %v664, 15
      %v667 = vsub.s32 0, %v666
      %v668 = vsel %vm662, %v667, %v666
      %vm669 = vcmp.lt.s32.totalorder %v541, 0
      %v670 = vsub.s32 0, %v541
      %v671 = vsel %vm669, %v670, %v541
      %v672 = vshrl.u32 %v671, 4
      %v673 = vand.u32 %v671, 15
      %v674 = vsub.s32 0, %v673
      %v675 = vsel %vm669, %v674, %v673
      %vm676 = vcmp.lt.s32.totalorder %v542, 0
      %v677 = vsub.s32 0, %v542
      %v678 = vsel %vm676, %v677, %v542
      %v679 = vshrl.u32 %v678, 4
      %v680 = vand.u32 %v678, 15
      %v681 = vsub.s32 0, %v680
      %v682 = vsel %vm676, %v681, %v680
      %vm683 = vcmp.lt.s32.totalorder %v543, 0
      %v684 = vsub.s32 0, %v543
      %v685 = vsel %vm683, %v684, %v543
      %v686 = vshrl.u32 %v685, 4
      %v687 = vand.u32 %v685, 15
      %v688 = vsub.s32 0, %v687
      %v689 = vsel %vm683, %v688, %v687
      %vm690 = vcmp.lt.s32.totalorder %v544, 0
      %v691 = vsub.s32 0, %v544
      %v692 = vsel %vm690, %v691, %v544
      %v693 = vshrl.u32 %v692, 4
      %v694 = vand.u32 %v692, 15
      %v695 = vsub.s32 0, %v694
      %v696 = vsel %vm690, %v695, %v694
      %vm697 = vcmp.lt.s32.totalorder %v545, 0
      %v698 = vsub.s32 0, %v545
      %v699 = vsel %vm697, %v698, %v545
      %v700 = vshrl.u32 %v699, 4
      %v701 = vand.u32 %v699, 15
      %v702 = vsub.s32 0, %v701
      %v703 = vsel %vm697, %v702, %v701
      %vm704 = vcmp.lt.s32.totalorder %v546, 0
      %v705 = vsub.s32 0, %v546
      %v706 = vsel %vm704, %v705, %v546
      %v707 = vshrl.u32 %v706, 4
      %v708 = vand.u32 %v706, 15
      %v709 = vsub.s32 0, %v708
      %v710 = vsel %vm704, %v709, %v708
      %vm711 = vcmp.lt.s32.totalorder %v547, 0
      %v712 = vsub.s32 0, %v547
      %v713 = vsel %vm711, %v712, %v547
      %v714 = vshrl.u32 %v713, 4
      %v715 = vand.u32 %v713, 15
      %v716 = vsub.s32 0, %v715
      %v717 = vsel %vm711, %v716, %v715
      %vm718 = vcmp.lt.s32.totalorder %v548, 0
      %v719 = vsub.s32 0, %v548
      %v720 = vsel %vm718, %v719, %v548
      %v721 = vshrl.u32 %v720, 4
      %v722 = vand.u32 %v720, 15
      %v723 = vsub.s32 0, %v722
      %v724 = vsel %vm718, %v723, %v722
      %vm725 = vcmp.lt.s32.totalorder %v549, 0
      %v726 = vsub.s32 0, %v549
      %v727 = vsel %vm725, %v726, %v549
      %v728 = vshrl.u32 %v727, 4
      %v729 = vand.u32 %v727, 15
      %v730 = vsub.s32 0, %v729
      %v731 = vsel %vm725, %v730, %v729
      %vm732 = vcmp.lt.s32.totalorder %v550, 0
      %v733 = vsub.s32 0, %v550
      %v734 = vsel %vm732, %v733, %v550
      %v735 = vshrl.u32 %v734, 4
      %v736 = vand.u32 %v734, 15
      %v737 = vsub.s32 0, %v736
      %v738 = vsel %vm732, %v737, %v736
      %vm739 = vcmp.lt.s32.totalorder %v551, 0
      %v740 = vsub.s32 0, %v551
      %v741 = vsel %vm739, %v740, %v551
      %v742 = vshrl.u32 %v741, 4
      %v743 = vand.u32 %v741, 15
      %v744 = vsub.s32 0, %v743
      %v745 = vsel %vm739, %v744, %v743
      %vm746 = vcmp.lt.s32.totalorder %v552, 0
      %v747 = vsub.s32 0, %v552
      %v748 = vsel %vm746, %v747, %v552
      %v749 = vshrl.u32 %v748, 4
      %v750 = vand.u32 %v748, 15
      %v751 = vsub.s32 0, %v750
      %v752 = vsel %vm746, %v751, %v750
      %vm753 = vcmp.lt.s32.totalorder %v553, 0
      %v754 = vsub.s32 0, %v553
      %v755 = vsel %vm753, %v754, %v553
      %v756 = vshrl.u32 %v755, 4
      %v757 = vand.u32 %v755, 15
      %v758 = vsub.s32 0, %v757
      %v759 = vsel %vm753, %v758, %v757
      %vm760 = vcmp.lt.s32.totalorder %v554, 0
      %v761 = vsub.s32 0, %v554
      %v762 = vsel %vm760, %v761, %v554
      %v763 = vshrl.u32 %v762, 4
      %v764 = vand.u32 %v762, 15
      %v765 = vsub.s32 0, %v764
      %v766 = vsel %vm760, %v765, %v764
      %vm767 = vcmp.lt.s32.totalorder %v555, 0
      %v768 = vsub.s32 0, %v555
      %v769 = vsel %vm767, %v768, %v555
      %v770 = vshrl.u32 %v769, 4
      %v771 = vand.u32 %v769, 15
      %v772 = vsub.s32 0, %v771
      %v773 = vsel %vm767, %v772, %v771
      %vm774 = vcmp.lt.s32.totalorder %v556, 0
      %v775 = vsub.s32 0, %v556
      %v776 = vsel %vm774, %v775, %v556
      %v777 = vshrl.u32 %v776, 4
      %v778 = vand.u32 %v776, 15
      %v779 = vsub.s32 0, %v778
      %v780 = vsel %vm774, %v779, %v778
      %vm781 = vcmp.ne.s32.totalorder %v563, 0
      %vm782 = vcmp.ne.s32.totalorder %v570, 0
      %vm783 = vcmp.ne.s32.totalorder %v577, 0
      %vm784 = vcmp.ne.s32.totalorder %v584, 0
      %vm785 = vcmp.ne.s32.totalorder %v591, 0
      %vm786 = vcmp.ne.s32.totalorder %v598, 0
      %vm787 = vcmp.ne.s32.totalorder %v605, 0
      %vm788 = vcmp.ne.s32.totalorder %v612, 0
      %vm789 = vcmp.ne.s32.totalorder %v619, 0
      %vm790 = vcmp.ne.s32.totalorder %v626, 0
      %vm791 = vcmp.ne.s32.totalorder %v633, 0
      %vm792 = vcmp.ne.s32.totalorder %v640, 0
      %vm793 = vcmp.ne.s32.totalorder %v647, 0
      %vm794 = vcmp.ne.s32.totalorder %v654, 0
      %vm795 = vcmp.ne.s32.totalorder %v661, 0
      %vm796 = vcmp.ne.s32.totalorder %v668, 0
      %vm797 = vcmp.ne.s32.totalorder %v675, 0
      %vm798 = vcmp.ne.s32.totalorder %v682, 0
      %vm799 = vcmp.ne.s32.totalorder %v689, 0
      %vm800 = vcmp.ne.s32.totalorder %v696, 0
      %vm801 = vcmp.ne.s32.totalorder %v703, 0
      %vm802 = vcmp.ne.s32.totalorder %v710, 0
      %vm803 = vcmp.ne.s32.totalorder %v717, 0
      %vm804 = vcmp.ne.s32.totalorder %v724, 0
      %vm805 = vcmp.ne.s32.totalorder %v731, 0
      %vm806 = vcmp.ne.s32.totalorder %v738, 0
      %vm807 = vcmp.ne.s32.totalorder %v745, 0
      %vm808 = vcmp.ne.s32.totalorder %v752, 0
      %vm809 = vcmp.ne.s32.totalorder %v759, 0
      %vm810 = vcmp.ne.s32.totalorder %v766, 0
      %vm811 = vcmp.ne.s32.totalorder %v773, 0
      %vm812 = vcmp.ne.s32.totalorder %v780, 0
      %vm813 = vcmp.lt.s32.totalorder %v563, 0
      %vm814 = vcmp.lt.s32.totalorder %v570, 0
      %vm815 = vcmp.lt.s32.totalorder %v577, 0
      %vm816 = vcmp.lt.s32.totalorder %v584, 0
      %vm817 = vcmp.lt.s32.totalorder %v591, 0
      %vm818 = vcmp.lt.s32.totalorder %v598, 0
      %vm819 = vcmp.lt.s32.totalorder %v605, 0
      %vm820 = vcmp.lt.s32.totalorder %v612, 0
      %vm821 = vcmp.lt.s32.totalorder %v619, 0
      %vm822 = vcmp.lt.s32.totalorder %v626, 0
      %vm823 = vcmp.lt.s32.totalorder %v633, 0
      %vm824 = vcmp.lt.s32.totalorder %v640, 0
      %vm825 = vcmp.lt.s32.totalorder %v647, 0
      %vm826 = vcmp.lt.s32.totalorder %v654, 0
      %vm827 = vcmp.lt.s32.totalorder %v661, 0
      %vm828 = vcmp.lt.s32.totalorder %v668, 0
      %vm829 = vcmp.lt.s32.totalorder %v675, 0
      %vm830 = vcmp.lt.s32.totalorder %v682, 0
      %vm831 = vcmp.lt.s32.totalorder %v689, 0
      %vm832 = vcmp.lt.s32.totalorder %v696, 0
      %vm833 = vcmp.lt.s32.totalorder %v703, 0
      %vm834 = vcmp.lt.s32.totalorder %v710, 0
      %vm835 = vcmp.lt.s32.totalorder %v717, 0
      %vm836 = vcmp.lt.s32.totalorder %v724, 0
      %vm837 = vcmp.lt.s32.totalorder %v731, 0
      %vm838 = vcmp.lt.s32.totalorder %v738, 0
      %vm839 = vcmp.lt.s32.totalorder %v745, 0
      %vm840 = vcmp.lt.s32.totalorder %v752, 0
      %vm841 = vcmp.lt.s32.totalorder %v759, 0
      %vm842 = vcmp.lt.s32.totalorder %v766, 0
      %vm843 = vcmp.lt.s32.totalorder %v773, 0
      %vm844 = vcmp.lt.s32.totalorder %v780, 0
      %vm845 = vmand %vm813, %vm781
      %vm846 = vmand %vm814, %vm782
      %vm847 = vmand %vm815, %vm783
      %vm848 = vmand %vm816, %vm784
      %vm849 = vmand %vm817, %vm785
      %vm850 = vmand %vm818, %vm786
      %vm851 = vmand %vm819, %vm787
      %vm852 = vmand %vm820, %vm788
      %vm853 = vmand %vm821, %vm789
      %vm854 = vmand %vm822, %vm790
      %vm855 = vmand %vm823, %vm791
      %vm856 = vmand %vm824, %vm792
      %vm857 = vmand %vm825, %vm793
      %vm858 = vmand %vm826, %vm794
      %vm859 = vmand %vm827, %vm795
      %vm860 = vmand %vm828, %vm796
      %vm861 = vmand %vm829, %vm797
      %vm862 = vmand %vm830, %vm798
      %vm863 = vmand %vm831, %vm799
      %vm864 = vmand %vm832, %vm800
      %vm865 = vmand %vm833, %vm801
      %vm866 = vmand %vm834, %vm802
      %vm867 = vmand %vm835, %vm803
      %vm868 = vmand %vm836, %vm804
      %vm869 = vmand %vm837, %vm805
      %vm870 = vmand %vm838, %vm806
      %vm871 = vmand %vm839, %vm807
      %vm872 = vmand %vm840, %vm808
      %vm873 = vmand %vm841, %vm809
      %vm874 = vmand %vm842, %vm810
      %vm875 = vmand %vm843, %vm811
      %vm876 = vmand %vm844, %vm812
      %v877 = vadd.s32 %v563, 16
      %v878 = vadd.s32 %v570, 16
      %v879 = vadd.s32 %v577, 16
      %v880 = vadd.s32 %v584, 16
      %v881 = vadd.s32 %v591, 16
      %v882 = vadd.s32 %v598, 16
      %v883 = vadd.s32 %v605, 16
      %v884 = vadd.s32 %v612, 16
      %v885 = vadd.s32 %v619, 16
      %v886 = vadd.s32 %v626, 16
      %v887 = vadd.s32 %v633, 16
      %v888 = vadd.s32 %v640, 16
      %v889 = vadd.s32 %v647, 16
      %v890 = vadd.s32 %v654, 16
      %v891 = vadd.s32 %v661, 16
      %v892 = vadd.s32 %v668, 16
      %v893 = vadd.s32 %v675, 16
      %v894 = vadd.s32 %v682, 16
      %v895 = vadd.s32 %v689, 16
      %v896 = vadd.s32 %v696, 16
      %v897 = vadd.s32 %v703, 16
      %v898 = vadd.s32 %v710, 16
      %v899 = vadd.s32 %v717, 16
      %v900 = vadd.s32 %v724, 16
      %v901 = vadd.s32 %v731, 16
      %v902 = vadd.s32 %v738, 16
      %v903 = vadd.s32 %v745, 16
      %v904 = vadd.s32 %v752, 16
      %v905 = vadd.s32 %v759, 16
      %v906 = vadd.s32 %v766, 16
      %v907 = vadd.s32 %v773, 16
      %v908 = vadd.s32 %v780, 16
      %v909 = vsel %vm845, %v877, %v563
      %v910 = vsel %vm846, %v878, %v570
      %v911 = vsel %vm847, %v879, %v577
      %v912 = vsel %vm848, %v880, %v584
      %v913 = vsel %vm849, %v881, %v591
      %v914 = vsel %vm850, %v882, %v598
      %v915 = vsel %vm851, %v883, %v605
      %v916 = vsel %vm852, %v884, %v612
      %v917 = vsel %vm853, %v885, %v619
      %v918 = vsel %vm854, %v886, %v626
      %v919 = vsel %vm855, %v887, %v633
      %v920 = vsel %vm856, %v888, %v640
      %v921 = vsel %vm857, %v889, %v647
      %v922 = vsel %vm858, %v890, %v654
      %v923 = vsel %vm859, %v891, %v661
      %v924 = vsel %vm860, %v892, %v668
      %v925 = vsel %vm861, %v893, %v675
      %v926 = vsel %vm862, %v894, %v682
      %v927 = vsel %vm863, %v895, %v689
      %v928 = vsel %vm864, %v896, %v696
      %v929 = vsel %vm865, %v897, %v703
      %v930 = vsel %vm866, %v898, %v710
      %v931 = vsel %vm867, %v899, %v717
      %v932 = vsel %vm868, %v900, %v724
      %v933 = vsel %vm869, %v901, %v731
      %v934 = vsel %vm870, %v902, %v738
      %v935 = vsel %vm871, %v903, %v745
      %v936 = vsel %vm872, %v904, %v752
      %v937 = vsel %vm873, %v905, %v759
      %v938 = vsel %vm874, %v906, %v766
      %v939 = vsel %vm875, %v907, %v773
      %v940 = vsel %vm876, %v908, %v780
      %vm941 = vcmp.ne.s32.totalorder %v909, 0
      %vm942 = vcmp.ne.s32.totalorder %v910, 0
      %vm943 = vcmp.ne.s32.totalorder %v911, 0
      %vm944 = vcmp.ne.s32.totalorder %v912, 0
      %vm945 = vcmp.ne.s32.totalorder %v913, 0
      %vm946 = vcmp.ne.s32.totalorder %v914, 0
      %vm947 = vcmp.ne.s32.totalorder %v915, 0
      %vm948 = vcmp.ne.s32.totalorder %v916, 0
      %vm949 = vcmp.ne.s32.totalorder %v917, 0
      %vm950 = vcmp.ne.s32.totalorder %v918, 0
      %vm951 = vcmp.ne.s32.totalorder %v919, 0
      %vm952 = vcmp.ne.s32.totalorder %v920, 0
      %vm953 = vcmp.ne.s32.totalorder %v921, 0
      %vm954 = vcmp.ne.s32.totalorder %v922, 0
      %vm955 = vcmp.ne.s32.totalorder %v923, 0
      %vm956 = vcmp.ne.s32.totalorder %v924, 0
      %vm957 = vcmp.ne.s32.totalorder %v925, 0
      %vm958 = vcmp.ne.s32.totalorder %v926, 0
      %vm959 = vcmp.ne.s32.totalorder %v927, 0
      %vm960 = vcmp.ne.s32.totalorder %v928, 0
      %vm961 = vcmp.ne.s32.totalorder %v929, 0
      %vm962 = vcmp.ne.s32.totalorder %v930, 0
      %vm963 = vcmp.ne.s32.totalorder %v931, 0
      %vm964 = vcmp.ne.s32.totalorder %v932, 0
      %vm965 = vcmp.ne.s32.totalorder %v933, 0
      %vm966 = vcmp.ne.s32.totalorder %v934, 0
      %vm967 = vcmp.ne.s32.totalorder %v935, 0
      %vm968 = vcmp.ne.s32.totalorder %v936, 0
      %vm969 = vcmp.ne.s32.totalorder %v937, 0
      %vm970 = vcmp.ne.s32.totalorder %v938, 0
      %vm971 = vcmp.ne.s32.totalorder %v939, 0
      %vm972 = vcmp.ne.s32.totalorder %v940, 0
      %vm973 = vcmp.ne.s32.totalorder %v909, 15
      %vm974 = vcmp.ne.s32.totalorder %v910, 15
      %vm975 = vcmp.ne.s32.totalorder %v911, 15
      %vm976 = vcmp.ne.s32.totalorder %v912, 15
      %vm977 = vcmp.ne.s32.totalorder %v913, 15
      %vm978 = vcmp.ne.s32.totalorder %v914, 15
      %vm979 = vcmp.ne.s32.totalorder %v915, 15
      %vm980 = vcmp.ne.s32.totalorder %v916, 15
      %vm981 = vcmp.ne.s32.totalorder %v917, 15
      %vm982 = vcmp.ne.s32.totalorder %v918, 15
      %vm983 = vcmp.ne.s32.totalorder %v919, 15
      %vm984 = vcmp.ne.s32.totalorder %v920, 15
      %vm985 = vcmp.ne.s32.totalorder %v921, 15
      %vm986 = vcmp.ne.s32.totalorder %v922, 15
      %vm987 = vcmp.ne.s32.totalorder %v923, 15
      %vm988 = vcmp.ne.s32.totalorder %v924, 15
      %vm989 = vcmp.ne.s32.totalorder %v925, 15
      %vm990 = vcmp.ne.s32.totalorder %v926, 15
      %vm991 = vcmp.ne.s32.totalorder %v927, 15
      %vm992 = vcmp.ne.s32.totalorder %v928, 15
      %vm993 = vcmp.ne.s32.totalorder %v929, 15
      %vm994 = vcmp.ne.s32.totalorder %v930, 15
      %vm995 = vcmp.ne.s32.totalorder %v931, 15
      %vm996 = vcmp.ne.s32.totalorder %v932, 15
      %vm997 = vcmp.ne.s32.totalorder %v933, 15
      %vm998 = vcmp.ne.s32.totalorder %v934, 15
      %vm999 = vcmp.ne.s32.totalorder %v935, 15
      %vm1000 = vcmp.ne.s32.totalorder %v936, 15
      %vm1001 = vcmp.ne.s32.totalorder %v937, 15
      %vm1002 = vcmp.ne.s32.totalorder %v938, 15
      %vm1003 = vcmp.ne.s32.totalorder %v939, 15
      %vm1004 = vcmp.ne.s32.totalorder %v940, 15
      %v1005 = vld [vmem:[#allocation2] sm:$0xf8]
      %v1006 = vld [vmem:[#allocation2 + $0x8] sm:$0xff]
      %v1007 = vld [vmem:[#allocation2 + $0x10] sm:$0xff]
      %v1008 = vld [vmem:[#allocation2 + $0x18] sm:$0xff]
      %v1009 = vld [vmem:[#allocation2 + $0x20] sm:$0xff]
      %v1010 = vld [vmem:[#allocation2 + $0x28] sm:$0xff]
      %v1011 = vld [vmem:[#allocation2 + $0x30] sm:$0xff]
      %v1012 = vld [vmem:[#allocation2 + $0x38] sm:$0xff]
      %v1013 = vld [vmem:[#allocation2 + $0x40] sm:$0xff]
      %v1014 = vld [vmem:[#allocation2 + $0x48] sm:$0xff]
      %v1015 = vld [vmem:[#allocation2 + $0x50] sm:$0xff]
      %v1016 = vld [vmem:[#allocation2 + $0x58] sm:$0xff]
      %v1017 = vld [vmem:[#allocation2 + $0x60] sm:$0xff]
      %v1018 = vld [vmem:[#allocation2 + $0x68] sm:$0xff]
      %v1019 = vld [vmem:[#allocation2 + $0x70] sm:$0xff]
      %v1020 = vld [vmem:[#allocation2 + $0x78] sm:$0xff]
      %v1021 = vld [vmem:[#allocation2 + $0x80] sm:$0xf]
      %v1022 = vsel %vm941, 1, 0
      %v1023 = vsel %vm942, 1, 0
      %v1024 = vsel %vm943, 1, 0
      %v1025 = vsel %vm944, 1, 0
      %v1026 = vsel %vm945, 1, 0
      %v1027 = vsel %vm946, 1, 0
      %v1028 = vsel %vm947, 1, 0
      %v1029 = vsel %vm948, 1, 0
      %v1030 = vsel %vm949, 1, 0
      %v1031 = vsel %vm950, 1, 0
      %v1032 = vsel %vm951, 1, 0
      %v1033 = vsel %vm952, 1, 0
      %v1034 = vsel %vm953, 1, 0
      %v1035 = vsel %vm954, 1, 0
      %v1036 = vsel %vm955, 1, 0
      %v1037 = vsel %vm956, 1, 0
      %v1038 = vsel %vm957, 1, 0
      %v1039 = vsel %vm958, 1, 0
      %v1040 = vsel %vm959, 1, 0
      %v1041 = vsel %vm960, 1, 0
      %v1042 = vsel %vm961, 1, 0
      %v1043 = vsel %vm962, 1, 0
      %v1044 = vsel %vm963, 1, 0
      %v1045 = vsel %vm964, 1, 0
      %v1046 = vsel %vm965, 1, 0
      %v1047 = vsel %vm966, 1, 0
      %v1048 = vsel %vm967, 1, 0
      %v1049 = vsel %vm968, 1, 0
      %v1050 = vsel %vm969, 1, 0
      %v1051 = vsel %vm970, 1, 0
      %v1052 = vsel %vm971, 1, 0
      %v1053 = vsel %vm972, 1, 0
      %vm1054 = vcmp.eq.s32.totalorder %v1022, 1
      %vm1055 = vcmp.eq.s32.totalorder %v1023, 1
      %vm1056 = vcmp.eq.s32.totalorder %v1024, 1
      %vm1057 = vcmp.eq.s32.totalorder %v1025, 1
      %vm1058 = vcmp.eq.s32.totalorder %v1026, 1
      %vm1059 = vcmp.eq.s32.totalorder %v1027, 1
      %vm1060 = vcmp.eq.s32.totalorder %v1028, 1
      %vm1061 = vcmp.eq.s32.totalorder %v1029, 1
      %vm1062 = vcmp.eq.s32.totalorder %v1030, 1
      %vm1063 = vcmp.eq.s32.totalorder %v1031, 1
      %vm1064 = vcmp.eq.s32.totalorder %v1032, 1
      %vm1065 = vcmp.eq.s32.totalorder %v1033, 1
      %vm1066 = vcmp.eq.s32.totalorder %v1034, 1
      %vm1067 = vcmp.eq.s32.totalorder %v1035, 1
      %vm1068 = vcmp.eq.s32.totalorder %v1036, 1
      %vm1069 = vcmp.eq.s32.totalorder %v1037, 1
      %vm1070 = vcmp.eq.s32.totalorder %v1038, 1
      %vm1071 = vcmp.eq.s32.totalorder %v1039, 1
      %vm1072 = vcmp.eq.s32.totalorder %v1040, 1
      %vm1073 = vcmp.eq.s32.totalorder %v1041, 1
      %vm1074 = vcmp.eq.s32.totalorder %v1042, 1
      %vm1075 = vcmp.eq.s32.totalorder %v1043, 1
      %vm1076 = vcmp.eq.s32.totalorder %v1044, 1
      %vm1077 = vcmp.eq.s32.totalorder %v1045, 1
      %vm1078 = vcmp.eq.s32.totalorder %v1046, 1
      %vm1079 = vcmp.eq.s32.totalorder %v1047, 1
      %vm1080 = vcmp.eq.s32.totalorder %v1048, 1
      %vm1081 = vcmp.eq.s32.totalorder %v1049, 1
      %vm1082 = vcmp.eq.s32.totalorder %v1050, 1
      %vm1083 = vcmp.eq.s32.totalorder %v1051, 1
      %vm1084 = vcmp.eq.s32.totalorder %v1052, 1
      %vm1085 = vcmp.eq.s32.totalorder %v1053, 1
      %vm1086 = vmpackc.low %vm1054, %vm1054
      %vm1087 = vmpackc.low %vm1055, %vm1055
      %vm1088 = vmpackc.low %vm1056, %vm1056
      %vm1089 = vmpackc.low %vm1057, %vm1057
      %vm1090 = vmpackc.low %vm1058, %vm1058
      %vm1091 = vmpackc.low %vm1059, %vm1059
      %vm1092 = vmpackc.low %vm1060, %vm1060
      %vm1093 = vmpackc.low %vm1061, %vm1061
      %vm1094 = vmpackc.low %vm1062, %vm1062
      %vm1095 = vmpackc.low %vm1063, %vm1063
      %vm1096 = vmpackc.low %vm1064, %vm1064
      %vm1097 = vmpackc.low %vm1065, %vm1065
      %vm1098 = vmpackc.low %vm1066, %vm1066
      %vm1099 = vmpackc.low %vm1067, %vm1067
      %vm1100 = vmpackc.low %vm1068, %vm1068
      %vm1101 = vmpackc.low %vm1069, %vm1069
      %vm1102 = vmpackc.low %vm1070, %vm1070
      %vm1103 = vmpackc.low %vm1071, %vm1071
      %vm1104 = vmpackc.low %vm1072, %vm1072
      %vm1105 = vmpackc.low %vm1073, %vm1073
      %vm1106 = vmpackc.low %vm1074, %vm1074
      %vm1107 = vmpackc.low %vm1075, %vm1075
      %vm1108 = vmpackc.low %vm1076, %vm1076
      %vm1109 = vmpackc.low %vm1077, %vm1077
      %vm1110 = vmpackc.low %vm1078, %vm1078
      %vm1111 = vmpackc.low %vm1079, %vm1079
      %vm1112 = vmpackc.low %vm1080, %vm1080
      %vm1113 = vmpackc.low %vm1081, %vm1081
      %vm1114 = vmpackc.low %vm1082, %vm1082
      %vm1115 = vmpackc.low %vm1083, %vm1083
      %vm1116 = vmpackc.low %vm1084, %vm1084
      %vm1117 = vmpackc.low %vm1085, %vm1085
      %v1118 = vsel %vm1086, 65537, 0
      %v1119 = vsel %vm1087, 65537, 0
      %v1120 = vsel %vm1088, 65537, 0
      %v1121 = vsel %vm1089, 65537, 0
      %v1122 = vsel %vm1090, 65537, 0
      %v1123 = vsel %vm1091, 65537, 0
      %v1124 = vsel %vm1092, 65537, 0
      %v1125 = vsel %vm1093, 65537, 0
      %v1126 = vsel %vm1094, 65537, 0
      %v1127 = vsel %vm1095, 65537, 0
      %v1128 = vsel %vm1096, 65537, 0
      %v1129 = vsel %vm1097, 65537, 0
      %v1130 = vsel %vm1098, 65537, 0
      %v1131 = vsel %vm1099, 65537, 0
      %v1132 = vsel %vm1100, 65537, 0
      %v1133 = vsel %vm1101, 65537, 0
      %v1134 = vsel %vm1102, 65537, 0
      %v1135 = vsel %vm1103, 65537, 0
      %v1136 = vsel %vm1104, 65537, 0
      %v1137 = vsel %vm1105, 65537, 0
      %v1138 = vsel %vm1106, 65537, 0
      %v1139 = vsel %vm1107, 65537, 0
      %v1140 = vsel %vm1108, 65537, 0
      %v1141 = vsel %vm1109, 65537, 0
      %v1142 = vsel %vm1110, 65537, 0
      %v1143 = vsel %vm1111, 65537, 0
      %v1144 = vsel %vm1112, 65537, 0
      %v1145 = vsel %vm1113, 65537, 0
      %v1146 = vsel %vm1114, 65537, 0
      %v1147 = vsel %vm1115, 65537, 0
      %v1148 = vsel %vm1116, 65537, 0
      %v1149 = vsel %vm1117, 65537, 0
      %v1150 = vunpack.c.l.b16 %v1118
      %v1151 = vunpack.c.l.b16 %v1119
      %v1152 = vunpack.c.l.b16 %v1120
      %v1153 = vunpack.c.l.b16 %v1121
      %v1154 = vunpack.c.l.b16 %v1122
      %v1155 = vunpack.c.l.b16 %v1123
      %v1156 = vunpack.c.l.b16 %v1124
      %v1157 = vunpack.c.l.b16 %v1125
      %v1158 = vunpack.c.l.b16 %v1126
      %v1159 = vunpack.c.l.b16 %v1127
      %v1160 = vunpack.c.l.b16 %v1128
      %v1161 = vunpack.c.l.b16 %v1129
      %v1162 = vunpack.c.l.b16 %v1130
      %v1163 = vunpack.c.l.b16 %v1131
      %v1164 = vunpack.c.l.b16 %v1132
      %v1165 = vunpack.c.l.b16 %v1133
      %v1166 = vunpack.c.l.b16 %v1134
      %v1167 = vunpack.c.l.b16 %v1135
      %v1168 = vunpack.c.l.b16 %v1136
      %v1169 = vunpack.c.l.b16 %v1137
      %v1170 = vunpack.c.l.b16 %v1138
      %v1171 = vunpack.c.l.b16 %v1139
      %v1172 = vunpack.c.l.b16 %v1140
      %v1173 = vunpack.c.l.b16 %v1141
      %v1174 = vunpack.c.l.b16 %v1142
      %v1175 = vunpack.c.l.b16 %v1143
      %v1176 = vunpack.c.l.b16 %v1144
      %v1177 = vunpack.c.l.b16 %v1145
      %v1178 = vunpack.c.l.b16 %v1146
      %v1179 = vunpack.c.l.b16 %v1147
      %v1180 = vunpack.c.l.b16 %v1148
      %v1181 = vunpack.c.l.b16 %v1149
      %v1182 = vpack.c.b16 %v1151, %v1150
      %v1183 = vpack.c.b16 %v1153, %v1152
      %v1184 = vpack.c.b16 %v1155, %v1154
      %v1185 = vpack.c.b16 %v1157, %v1156
      %v1186 = vpack.c.b16 %v1159, %v1158
      %v1187 = vpack.c.b16 %v1161, %v1160
      %v1188 = vpack.c.b16 %v1163, %v1162
      %v1189 = vpack.c.b16 %v1165, %v1164
      %v1190 = vpack.c.b16 %v1167, %v1166
      %v1191 = vpack.c.b16 %v1169, %v1168
      %v1192 = vpack.c.b16 %v1171, %v1170
      %v1193 = vpack.c.b16 %v1173, %v1172
      %v1194 = vpack.c.b16 %v1175, %v1174
      %v1195 = vpack.c.b16 %v1177, %v1176
      %v1196 = vpack.c.b16 %v1179, %v1178
      %v1197 = vpack.c.b16 %v1181, %v1180
      %vm1198 = vsmask.f32 3328
      %v1200 = vshrl.u32 %v1182, 16
      %v1202 = vrot.slane %v1200, 4
      %v1203 = vshll.u32 %v1182, 16
      %v1205 = vrot.slane %v1203, 5
      %v1206 = vor.u32 %v1202, %v1205
      %v1208 = vshrl.u32 %v1183, 16
      %v1210 = vrot.slane %v1208, 4
      %v1211 = vshll.u32 %v1183, 16
      %v1213 = vrot.slane %v1211, 5
      %v1214 = vor.u32 %v1210, %v1213
      %v1215 = vsel %vm1198, %v1206, %v1214
      %v1217 = vshrl.u32 %v1184, 16
      %v1219 = vrot.slane %v1217, 4
      %v1220 = vshll.u32 %v1184, 16
      %v1222 = vrot.slane %v1220, 5
      %v1223 = vor.u32 %v1219, %v1222
      %v1224 = vsel %vm1198, %v1214, %v1223
      %v1226 = vshrl.u32 %v1185, 16
      %v1228 = vrot.slane %v1226, 4
      %v1229 = vshll.u32 %v1185, 16
      %v1231 = vrot.slane %v1229, 5
      %v1232 = vor.u32 %v1228, %v1231
      %v1233 = vsel %vm1198, %v1223, %v1232
      %v1235 = vshrl.u32 %v1186, 16
      %v1237 = vrot.slane %v1235, 4
      %v1238 = vshll.u32 %v1186, 16
      %v1240 = vrot.slane %v1238, 5
      %v1241 = vor.u32 %v1237, %v1240
      %v1242 = vsel %vm1198, %v1232, %v1241
      %v1244 = vshrl.u32 %v1187, 16
      %v1246 = vrot.slane %v1244, 4
      %v1247 = vshll.u32 %v1187, 16
      %v1249 = vrot.slane %v1247, 5
      %v1250 = vor.u32 %v1246, %v1249
      %v1251 = vsel %vm1198, %v1241, %v1250
      %v1253 = vshrl.u32 %v1188, 16
      %v1255 = vrot.slane %v1253, 4
      %v1256 = vshll.u32 %v1188, 16
      %v1258 = vrot.slane %v1256, 5
      %v1259 = vor.u32 %v1255, %v1258
      %v1260 = vsel %vm1198, %v1250, %v1259
      %v1262 = vshrl.u32 %v1189, 16
      %v1264 = vrot.slane %v1262, 4
      %v1265 = vshll.u32 %v1189, 16
      %v1267 = vrot.slane %v1265, 5
      %v1268 = vor.u32 %v1264, %v1267
      %v1269 = vsel %vm1198, %v1259, %v1268
      %v1271 = vshrl.u32 %v1190, 16
      %v1273 = vrot.slane %v1271, 4
      %v1274 = vshll.u32 %v1190, 16
      %v1276 = vrot.slane %v1274, 5
      %v1277 = vor.u32 %v1273, %v1276
      %v1278 = vsel %vm1198, %v1268, %v1277
      %v1280 = vshrl.u32 %v1191, 16
      %v1282 = vrot.slane %v1280, 4
      %v1283 = vshll.u32 %v1191, 16
      %v1285 = vrot.slane %v1283, 5
      %v1286 = vor.u32 %v1282, %v1285
      %v1287 = vsel %vm1198, %v1277, %v1286
      %v1289 = vshrl.u32 %v1192, 16
      %v1291 = vrot.slane %v1289, 4
      %v1292 = vshll.u32 %v1192, 16
      %v1294 = vrot.slane %v1292, 5
      %v1295 = vor.u32 %v1291, %v1294
      %v1296 = vsel %vm1198, %v1286, %v1295
      %v1298 = vshrl.u32 %v1193, 16
      %v1300 = vrot.slane %v1298, 4
      %v1301 = vshll.u32 %v1193, 16
      %v1303 = vrot.slane %v1301, 5
      %v1304 = vor.u32 %v1300, %v1303
      %v1305 = vsel %vm1198, %v1295, %v1304
      %v1307 = vshrl.u32 %v1194, 16
      %v1309 = vrot.slane %v1307, 4
      %v1310 = vshll.u32 %v1194, 16
      %v1312 = vrot.slane %v1310, 5
      %v1313 = vor.u32 %v1309, %v1312
      %v1314 = vsel %vm1198, %v1304, %v1313
      %v1316 = vshrl.u32 %v1195, 16
      %v1318 = vrot.slane %v1316, 4
      %v1319 = vshll.u32 %v1195, 16
      %v1321 = vrot.slane %v1319, 5
      %v1322 = vor.u32 %v1318, %v1321
      %v1323 = vsel %vm1198, %v1313, %v1322
      %v1325 = vshrl.u32 %v1196, 16
      %v1327 = vrot.slane %v1325, 4
      %v1328 = vshll.u32 %v1196, 16
      %v1330 = vrot.slane %v1328, 5
      %v1331 = vor.u32 %v1327, %v1330
      %v1332 = vsel %vm1198, %v1322, %v1331
      %v1334 = vshrl.u32 %v1197, 16
      %v1336 = vrot.slane %v1334, 4
      %v1337 = vshll.u32 %v1197, 16
      %v1339 = vrot.slane %v1337, 5
      %v1340 = vor.u32 %v1336, %v1339
      %v1341 = vsel %vm1198, %v1331, %v1340
      %vm1342 = vcmp.ne.s16.totalorder %v1206, 0
      %vm1343 = vcmp.ne.s16.totalorder %v1215, 0
      %vm1344 = vcmp.ne.s16.totalorder %v1224, 0
      %vm1345 = vcmp.ne.s16.totalorder %v1233, 0
      %vm1346 = vcmp.ne.s16.totalorder %v1242, 0
      %vm1347 = vcmp.ne.s16.totalorder %v1251, 0
      %vm1348 = vcmp.ne.s16.totalorder %v1260, 0
      %vm1349 = vcmp.ne.s16.totalorder %v1269, 0
      %vm1350 = vcmp.ne.s16.totalorder %v1278, 0
      %vm1351 = vcmp.ne.s16.totalorder %v1287, 0
      %vm1352 = vcmp.ne.s16.totalorder %v1296, 0
      %vm1353 = vcmp.ne.s16.totalorder %v1305, 0
      %vm1354 = vcmp.ne.s16.totalorder %v1314, 0
      %vm1355 = vcmp.ne.s16.totalorder %v1323, 0
      %vm1356 = vcmp.ne.s16.totalorder %v1332, 0
      %vm1357 = vcmp.ne.s16.totalorder %v1341, 0
      %vm1358 = vcmp.ne.s16.totalorder %v1340, 0
      %v1359 = vsel %vm1342, %v1005, 0
      %v1360 = vsel %vm1343, %v1006, 0
      %v1361 = vsel %vm1344, %v1007, 0
      %v1362 = vsel %vm1345, %v1008, 0
      %v1363 = vsel %vm1346, %v1009, 0
      %v1364 = vsel %vm1347, %v1010, 0
      %v1365 = vsel %vm1348, %v1011, 0
      %v1366 = vsel %vm1349, %v1012, 0
      %v1367 = vsel %vm1350, %v1013, 0
      %v1368 = vsel %vm1351, %v1014, 0
      %v1369 = vsel %vm1352, %v1015, 0
      %v1370 = vsel %vm1353, %v1016, 0
      %v1371 = vsel %vm1354, %v1017, 0
      %v1372 = vsel %vm1355, %v1018, 0
      %v1373 = vsel %vm1356, %v1019, 0
      %v1374 = vsel %vm1357, %v1020, 0
      %v1375 = vsel %vm1358, %v1021, 0
      %v1376 = vld [vmem:[#allocation2] sm:$0xf0]
      %v1377 = vld [vmem:[#allocation2 + $0x80] sm:$0x1f]
      %v1378 = vsel %vm973, 1, 0
      %v1379 = vsel %vm974, 1, 0
      %v1380 = vsel %vm975, 1, 0
      %v1381 = vsel %vm976, 1, 0
      %v1382 = vsel %vm977, 1, 0
      %v1383 = vsel %vm978, 1, 0
      %v1384 = vsel %vm979, 1, 0
      %v1385 = vsel %vm980, 1, 0
      %v1386 = vsel %vm981, 1, 0
      %v1387 = vsel %vm982, 1, 0
      %v1388 = vsel %vm983, 1, 0
      %v1389 = vsel %vm984, 1, 0
      %v1390 = vsel %vm985, 1, 0
      %v1391 = vsel %vm986, 1, 0
      %v1392 = vsel %vm987, 1, 0
      %v1393 = vsel %vm988, 1, 0
      %v1394 = vsel %vm989, 1, 0
      %v1395 = vsel %vm990, 1, 0
      %v1396 = vsel %vm991, 1, 0
      %v1397 = vsel %vm992, 1, 0
      %v1398 = vsel %vm993, 1, 0
      %v1399 = vsel %vm994, 1, 0
      %v1400 = vsel %vm995, 1, 0
      %v1401 = vsel %vm996, 1, 0
      %v1402 = vsel %vm997, 1, 0
      %v1403 = vsel %vm998, 1, 0
      %v1404 = vsel %vm999, 1, 0
      %v1405 = vsel %vm1000, 1, 0
      %v1406 = vsel %vm1001, 1, 0
      %v1407 = vsel %vm1002, 1, 0
      %v1408 = vsel %vm1003, 1, 0
      %v1409 = vsel %vm1004, 1, 0
      %vm1410 = vcmp.eq.s32.totalorder %v1378, 1
      %vm1411 = vcmp.eq.s32.totalorder %v1379, 1
      %vm1412 = vcmp.eq.s32.totalorder %v1380, 1
      %vm1413 = vcmp.eq.s32.totalorder %v1381, 1
      %vm1414 = vcmp.eq.s32.totalorder %v1382, 1
      %vm1415 = vcmp.eq.s32.totalorder %v1383, 1
      %vm1416 = vcmp.eq.s32.totalorder %v1384, 1
      %vm1417 = vcmp.eq.s32.totalorder %v1385, 1
      %vm1418 = vcmp.eq.s32.totalorder %v1386, 1
      %vm1419 = vcmp.eq.s32.totalorder %v1387, 1
      %vm1420 = vcmp.eq.s32.totalorder %v1388, 1
      %vm1421 = vcmp.eq.s32.totalorder %v1389, 1
      %vm1422 = vcmp.eq.s32.totalorder %v1390, 1
      %vm1423 = vcmp.eq.s32.totalorder %v1391, 1
      %vm1424 = vcmp.eq.s32.totalorder %v1392, 1
      %vm1425 = vcmp.eq.s32.totalorder %v1393, 1
      %vm1426 = vcmp.eq.s32.totalorder %v1394, 1
      %vm1427 = vcmp.eq.s32.totalorder %v1395, 1
      %vm1428 = vcmp.eq.s32.totalorder %v1396, 1
      %vm1429 = vcmp.eq.s32.totalorder %v1397, 1
      %vm1430 = vcmp.eq.s32.totalorder %v1398, 1
      %vm1431 = vcmp.eq.s32.totalorder %v1399, 1
      %vm1432 = vcmp.eq.s32.totalorder %v1400, 1
      %vm1433 = vcmp.eq.s32.totalorder %v1401, 1
      %vm1434 = vcmp.eq.s32.totalorder %v1402, 1
      %vm1435 = vcmp.eq.s32.totalorder %v1403, 1
      %vm1436 = vcmp.eq.s32.totalorder %v1404, 1
      %vm1437 = vcmp.eq.s32.totalorder %v1405, 1
      %vm1438 = vcmp.eq.s32.totalorder %v1406, 1
      %vm1439 = vcmp.eq.s32.totalorder %v1407, 1
      %vm1440 = vcmp.eq.s32.totalorder %v1408, 1
      %vm1441 = vcmp.eq.s32.totalorder %v1409, 1
      %vm1442 = vmpackc.low %vm1410, %vm1410
      %vm1443 = vmpackc.low %vm1411, %vm1411
      %vm1444 = vmpackc.low %vm1412, %vm1412
      %vm1445 = vmpackc.low %vm1413, %vm1413
      %vm1446 = vmpackc.low %vm1414, %vm1414
      %vm1447 = vmpackc.low %vm1415, %vm1415
      %vm1448 = vmpackc.low %vm1416, %vm1416
      %vm1449 = vmpackc.low %vm1417, %vm1417
      %vm1450 = vmpackc.low %vm1418, %vm1418
      %vm1451 = vmpackc.low %vm1419, %vm1419
      %vm1452 = vmpackc.low %vm1420, %vm1420
      %vm1453 = vmpackc.low %vm1421, %vm1421
      %vm1454 = vmpackc.low %vm1422, %vm1422
      %vm1455 = vmpackc.low %vm1423, %vm1423
      %vm1456 = vmpackc.low %vm1424, %vm1424
      %vm1457 = vmpackc.low %vm1425, %vm1425
      %vm1458 = vmpackc.low %vm1426, %vm1426
      %vm1459 = vmpackc.low %vm1427, %vm1427
      %vm1460 = vmpackc.low %vm1428, %vm1428
      %vm1461 = vmpackc.low %vm1429, %vm1429
      %vm1462 = vmpackc.low %vm1430, %vm1430
      %vm1463 = vmpackc.low %vm1431, %vm1431
      %vm1464 = vmpackc.low %vm1432, %vm1432
      %vm1465 = vmpackc.low %vm1433, %vm1433
      %vm1466 = vmpackc.low %vm1434, %vm1434
      %vm1467 = vmpackc.low %vm1435, %vm1435
      %vm1468 = vmpackc.low %vm1436, %vm1436
      %vm1469 = vmpackc.low %vm1437, %vm1437
      %vm1470 = vmpackc.low %vm1438, %vm1438
      %vm1471 = vmpackc.low %vm1439, %vm1439
      %vm1472 = vmpackc.low %vm1440, %vm1440
      %vm1473 = vmpackc.low %vm1441, %vm1441
      %v1474 = vsel %vm1442, 65537, 0
      %v1475 = vsel %vm1443, 65537, 0
      %v1476 = vsel %vm1444, 65537, 0
      %v1477 = vsel %vm1445, 65537, 0
      %v1478 = vsel %vm1446, 65537, 0
      %v1479 = vsel %vm1447, 65537, 0
      %v1480 = vsel %vm1448, 65537, 0
      %v1481 = vsel %vm1449, 65537, 0
      %v1482 = vsel %vm1450, 65537, 0
      %v1483 = vsel %vm1451, 65537, 0
      %v1484 = vsel %vm1452, 65537, 0
      %v1485 = vsel %vm1453, 65537, 0
      %v1486 = vsel %vm1454, 65537, 0
      %v1487 = vsel %vm1455, 65537, 0
      %v1488 = vsel %vm1456, 65537, 0
      %v1489 = vsel %vm1457, 65537, 0
      %v1490 = vsel %vm1458, 65537, 0
      %v1491 = vsel %vm1459, 65537, 0
      %v1492 = vsel %vm1460, 65537, 0
      %v1493 = vsel %vm1461, 65537, 0
      %v1494 = vsel %vm1462, 65537, 0
      %v1495 = vsel %vm1463, 65537, 0
      %v1496 = vsel %vm1464, 65537, 0
      %v1497 = vsel %vm1465, 65537, 0
      %v1498 = vsel %vm1466, 65537, 0
      %v1499 = vsel %vm1467, 65537, 0
      %v1500 = vsel %vm1468, 65537, 0
      %v1501 = vsel %vm1469, 65537, 0
      %v1502 = vsel %vm1470, 65537, 0
      %v1503 = vsel %vm1471, 65537, 0
      %v1504 = vsel %vm1472, 65537, 0
      %v1505 = vsel %vm1473, 65537, 0
      %v1506 = vunpack.c.l.b16 %v1474
      %v1507 = vunpack.c.l.b16 %v1475
      %v1508 = vunpack.c.l.b16 %v1476
      %v1509 = vunpack.c.l.b16 %v1477
      %v1510 = vunpack.c.l.b16 %v1478
      %v1511 = vunpack.c.l.b16 %v1479
      %v1512 = vunpack.c.l.b16 %v1480
      %v1513 = vunpack.c.l.b16 %v1481
      %v1514 = vunpack.c.l.b16 %v1482
      %v1515 = vunpack.c.l.b16 %v1483
      %v1516 = vunpack.c.l.b16 %v1484
      %v1517 = vunpack.c.l.b16 %v1485
      %v1518 = vunpack.c.l.b16 %v1486
      %v1519 = vunpack.c.l.b16 %v1487
      %v1520 = vunpack.c.l.b16 %v1488
      %v1521 = vunpack.c.l.b16 %v1489
      %v1522 = vunpack.c.l.b16 %v1490
      %v1523 = vunpack.c.l.b16 %v1491
      %v1524 = vunpack.c.l.b16 %v1492
      %v1525 = vunpack.c.l.b16 %v1493
      %v1526 = vunpack.c.l.b16 %v1494
      %v1527 = vunpack.c.l.b16 %v1495
      %v1528 = vunpack.c.l.b16 %v1496
      %v1529 = vunpack.c.l.b16 %v1497
      %v1530 = vunpack.c.l.b16 %v1498
      %v1531 = vunpack.c.l.b16 %v1499
      %v1532 = vunpack.c.l.b16 %v1500
      %v1533 = vunpack.c.l.b16 %v1501
      %v1534 = vunpack.c.l.b16 %v1502
      %v1535 = vunpack.c.l.b16 %v1503
      %v1536 = vunpack.c.l.b16 %v1504
      %v1537 = vunpack.c.l.b16 %v1505
      %v1538 = vpack.c.b16 %v1507, %v1506
      %v1539 = vpack.c.b16 %v1509, %v1508
      %v1540 = vpack.c.b16 %v1511, %v1510
      %v1541 = vpack.c.b16 %v1513, %v1512
      %v1542 = vpack.c.b16 %v1515, %v1514
      %v1543 = vpack.c.b16 %v1517, %v1516
      %v1544 = vpack.c.b16 %v1519, %v1518
      %v1545 = vpack.c.b16 %v1521, %v1520
      %v1546 = vpack.c.b16 %v1523, %v1522
      %v1547 = vpack.c.b16 %v1525, %v1524
      %v1548 = vpack.c.b16 %v1527, %v1526
      %v1549 = vpack.c.b16 %v1529, %v1528
      %v1550 = vpack.c.b16 %v1531, %v1530
      %v1551 = vpack.c.b16 %v1533, %v1532
      %v1552 = vpack.c.b16 %v1535, %v1534
      %v1553 = vpack.c.b16 %v1537, %v1536
      %vm1554 = vsmask.f32 4352
      %v1556 = vshrl.u32 %v1538, 16
      %v1558 = vrot.slane %v1556, 3
      %v1559 = vshll.u32 %v1538, 16
      %v1561 = vrot.slane %v1559, 4
      %v1562 = vor.u32 %v1558, %v1561
      %v1564 = vshrl.u32 %v1539, 16
      %v1566 = vrot.slane %v1564, 3
      %v1567 = vshll.u32 %v1539, 16
      %v1569 = vrot.slane %v1567, 4
      %v1570 = vor.u32 %v1566, %v1569
      %v1571 = vsel %vm1554, %v1562, %v1570
      %v1573 = vshrl.u32 %v1540, 16
      %v1575 = vrot.slane %v1573, 3
      %v1576 = vshll.u32 %v1540, 16
      %v1578 = vrot.slane %v1576, 4
      %v1579 = vor.u32 %v1575, %v1578
      %v1580 = vsel %vm1554, %v1570, %v1579
      %v1582 = vshrl.u32 %v1541, 16
      %v1584 = vrot.slane %v1582, 3
      %v1585 = vshll.u32 %v1541, 16
      %v1587 = vrot.slane %v1585, 4
      %v1588 = vor.u32 %v1584, %v1587
      %v1589 = vsel %vm1554, %v1579, %v1588
      %v1591 = vshrl.u32 %v1542, 16
      %v1593 = vrot.slane %v1591, 3
      %v1594 = vshll.u32 %v1542, 16
      %v1596 = vrot.slane %v1594, 4
      %v1597 = vor.u32 %v1593, %v1596
      %v1598 = vsel %vm1554, %v1588, %v1597
      %v1600 = vshrl.u32 %v1543, 16
      %v1602 = vrot.slane %v1600, 3
      %v1603 = vshll.u32 %v1543, 16
      %v1605 = vrot.slane %v1603, 4
      %v1606 = vor.u32 %v1602, %v1605
      %v1607 = vsel %vm1554, %v1597, %v1606
      %v1609 = vshrl.u32 %v1544, 16
      %v1611 = vrot.slane %v1609, 3
      %v1612 = vshll.u32 %v1544, 16
      %v1614 = vrot.slane %v1612, 4
      %v1615 = vor.u32 %v1611, %v1614
      %v1616 = vsel %vm1554, %v1606, %v1615
      %v1618 = vshrl.u32 %v1545, 16
      %v1620 = vrot.slane %v1618, 3
      %v1621 = vshll.u32 %v1545, 16
      %v1623 = vrot.slane %v1621, 4
      %v1624 = vor.u32 %v1620, %v1623
      %v1625 = vsel %vm1554, %v1615, %v1624
      %v1627 = vshrl.u32 %v1546, 16
      %v1629 = vrot.slane %v1627, 3
      %v1630 = vshll.u32 %v1546, 16
      %v1632 = vrot.slane %v1630, 4
      %v1633 = vor.u32 %v1629, %v1632
      %v1634 = vsel %vm1554, %v1624, %v1633
      %v1636 = vshrl.u32 %v1547, 16
      %v1638 = vrot.slane %v1636, 3
      %v1639 = vshll.u32 %v1547, 16
      %v1641 = vrot.slane %v1639, 4
      %v1642 = vor.u32 %v1638, %v1641
      %v1643 = vsel %vm1554, %v1633, %v1642
      %v1645 = vshrl.u32 %v1548, 16
      %v1647 = vrot.slane %v1645, 3
      %v1648 = vshll.u32 %v1548, 16
      %v1650 = vrot.slane %v1648, 4
      %v1651 = vor.u32 %v1647, %v1650
      %v1652 = vsel %vm1554, %v1642, %v1651
      %v1654 = vshrl.u32 %v1549, 16
      %v1656 = vrot.slane %v1654, 3
      %v1657 = vshll.u32 %v1549, 16
      %v1659 = vrot.slane %v1657, 4
      %v1660 = vor.u32 %v1656, %v1659
      %v1661 = vsel %vm1554, %v1651, %v1660
      %v1663 = vshrl.u32 %v1550, 16
      %v1665 = vrot.slane %v1663, 3
      %v1666 = vshll.u32 %v1550, 16
      %v1668 = vrot.slane %v1666, 4
      %v1669 = vor.u32 %v1665, %v1668
      %v1670 = vsel %vm1554, %v1660, %v1669
      %v1672 = vshrl.u32 %v1551, 16
      %v1674 = vrot.slane %v1672, 3
      %v1675 = vshll.u32 %v1551, 16
      %v1677 = vrot.slane %v1675, 4
      %v1678 = vor.u32 %v1674, %v1677
      %v1679 = vsel %vm1554, %v1669, %v1678
      %v1681 = vshrl.u32 %v1552, 16
      %v1683 = vrot.slane %v1681, 3
      %v1684 = vshll.u32 %v1552, 16
      %v1686 = vrot.slane %v1684, 4
      %v1687 = vor.u32 %v1683, %v1686
      %v1688 = vsel %vm1554, %v1678, %v1687
      %v1690 = vshrl.u32 %v1553, 16
      %v1692 = vrot.slane %v1690, 3
      %v1693 = vshll.u32 %v1553, 16
      %v1695 = vrot.slane %v1693, 4
      %v1696 = vor.u32 %v1692, %v1695
      %v1697 = vsel %vm1554, %v1687, %v1696
      %vm1698 = vcmp.ne.s16.totalorder %v1562, 0
      %vm1699 = vcmp.ne.s16.totalorder %v1571, 0
      %vm1700 = vcmp.ne.s16.totalorder %v1580, 0
      %vm1701 = vcmp.ne.s16.totalorder %v1589, 0
      %vm1702 = vcmp.ne.s16.totalorder %v1598, 0
      %vm1703 = vcmp.ne.s16.totalorder %v1607, 0
      %vm1704 = vcmp.ne.s16.totalorder %v1616, 0
      %vm1705 = vcmp.ne.s16.totalorder %v1625, 0
      %vm1706 = vcmp.ne.s16.totalorder %v1634, 0
      %vm1707 = vcmp.ne.s16.totalorder %v1643, 0
      %vm1708 = vcmp.ne.s16.totalorder %v1652, 0
      %vm1709 = vcmp.ne.s16.totalorder %v1661, 0
      %vm1710 = vcmp.ne.s16.totalorder %v1670, 0
      %vm1711 = vcmp.ne.s16.totalorder %v1679, 0
      %vm1712 = vcmp.ne.s16.totalorder %v1688, 0
      %vm1713 = vcmp.ne.s16.totalorder %v1697, 0
      %vm1714 = vcmp.ne.s16.totalorder %v1696, 0
      %v1715 = vsel %vm1698, %v1376, 0
      %v1716 = vsel %vm1699, %v1006, 0
      %v1717 = vsel %vm1700, %v1007, 0
      %v1718 = vsel %vm1701, %v1008, 0
      %v1719 = vsel %vm1702, %v1009, 0
      %v1720 = vsel %vm1703, %v1010, 0
      %v1721 = vsel %vm1704, %v1011, 0
      %v1722 = vsel %vm1705, %v1012, 0
      %v1723 = vsel %vm1706, %v1013, 0
      %v1724 = vsel %vm1707, %v1014, 0
      %v1725 = vsel %vm1708, %v1015, 0
      %v1726 = vsel %vm1709, %v1016, 0
      %v1727 = vsel %vm1710, %v1017, 0
      %v1728 = vsel %vm1711, %v1018, 0
      %v1729 = vsel %vm1712, %v1019, 0
      %v1730 = vsel %vm1713, %v1020, 0
      %v1731 = vsel %vm1714, %v1377, 0
      %v1732 = vld [vmem:[#allocation2 + $0x8] sm:$0xf8]
      %v1733 = vld [vmem:[#allocation2 + $0x80] sm:$0xff]
      %v1734 = vld [vmem:[#allocation2 + $0x88] sm:$0xf]
      %v1735 = vsel %vm1342, %v1732, 0
      %v1736 = vsel %vm1343, %v1007, 0
      %v1737 = vsel %vm1344, %v1008, 0
      %v1738 = vsel %vm1345, %v1009, 0
      %v1739 = vsel %vm1346, %v1010, 0
      %v1740 = vsel %vm1347, %v1011, 0
      %v1741 = vsel %vm1348, %v1012, 0
      %v1742 = vsel %vm1349, %v1013, 0
      %v1743 = vsel %vm1350, %v1014, 0
      %v1744 = vsel %vm1351, %v1015, 0
      %v1745 = vsel %vm1352, %v1016, 0
      %v1746 = vsel %vm1353, %v1017, 0
      %v1747 = vsel %vm1354, %v1018, 0
      %v1748 = vsel %vm1355, %v1019, 0
      %v1749 = vsel %vm1356, %v1020, 0
      %v1750 = vsel %vm1357, %v1733, 0
      %v1751 = vsel %vm1358, %v1734, 0
      %v1752 = vld [vmem:[#allocation2 + $0x8] sm:$0xf0]
      %v1753 = vld [vmem:[#allocation2 + $0x88] sm:$0x1f]
      %v1754 = vsel %vm1698, %v1752, 0
      %v1755 = vsel %vm1699, %v1007, 0
      %v1756 = vsel %vm1700, %v1008, 0
      %v1757 = vsel %vm1701, %v1009, 0
      %v1758 = vsel %vm1702, %v1010, 0
      %v1759 = vsel %vm1703, %v1011, 0
      %v1760 = vsel %vm1704, %v1012, 0
      %v1761 = vsel %vm1705, %v1013, 0
      %v1762 = vsel %vm1706, %v1014, 0
      %v1763 = vsel %vm1707, %v1015, 0
      %v1764 = vsel %vm1708, %v1016, 0
      %v1765 = vsel %vm1709, %v1017, 0
      %v1766 = vsel %vm1710, %v1018, 0
      %v1767 = vsel %vm1711, %v1019, 0
      %v1768 = vsel %vm1712, %v1020, 0
      %v1769 = vsel %vm1713, %v1733, 0
      %v1770 = vsel %vm1714, %v1753, 0
      %v1771 = vld [vmem:[#allocation2 + $0x10] sm:$0xf8]
      %v1772 = vld [vmem:[#allocation2 + $0x88] sm:$0xff]
      %v1773 = vld [vmem:[#allocation2 + $0x90] sm:$0xf]
      %v1774 = vsel %vm1342, %v1771, 0
      %v1775 = vsel %vm1343, %v1008, 0
      %v1776 = vsel %vm1344, %v1009, 0
      %v1777 = vsel %vm1345, %v1010, 0
      %v1778 = vsel %vm1346, %v1011, 0
      %v1779 = vsel %vm1347, %v1012, 0
      %v1780 = vsel %vm1348, %v1013, 0
      %v1781 = vsel %vm1349, %v1014, 0
      %v1782 = vsel %vm1350, %v1015, 0
      %v1783 = vsel %vm1351, %v1016, 0
      %v1784 = vsel %vm1352, %v1017, 0
      %v1785 = vsel %vm1353, %v1018, 0
      %v1786 = vsel %vm1354, %v1019, 0
      %v1787 = vsel %vm1355, %v1020, 0
      %v1788 = vsel %vm1356, %v1733, 0
      %v1789 = vsel %vm1357, %v1772, 0
      %v1790 = vsel %vm1358, %v1773, 0
      %v1791 = vld [vmem:[#allocation2 + $0x10] sm:$0xf0]
      %v1792 = vld [vmem:[#allocation2 + $0x90] sm:$0x1f]
      %v1793 = vsel %vm1698, %v1791, 0
      %v1794 = vsel %vm1699, %v1008, 0
      %v1795 = vsel %vm1700, %v1009, 0
      %v1796 = vsel %vm1701, %v1010, 0
      %v1797 = vsel %vm1702, %v1011, 0
      %v1798 = vsel %vm1703, %v1012, 0
      %v1799 = vsel %vm1704, %v1013, 0
      %v1800 = vsel %vm1705, %v1014, 0
      %v1801 = vsel %vm1706, %v1015, 0
      %v1802 = vsel %vm1707, %v1016, 0
      %v1803 = vsel %vm1708, %v1017, 0
      %v1804 = vsel %vm1709, %v1018, 0
      %v1805 = vsel %vm1710, %v1019, 0
      %v1806 = vsel %vm1711, %v1020, 0
      %v1807 = vsel %vm1712, %v1733, 0
      %v1808 = vsel %vm1713, %v1772, 0
      %v1809 = vsel %vm1714, %v1792, 0
      %v1810 = vld [vmem:[%s308] sm:$0xf]
      %v1811 = vld [vmem:[%s308 + $0x4] sm:$0xf]
      %vm1829 = vcmask 1043456
      %v1830 = vrot.slane %v1376, 4
      %v1831 = vrot.slane %v1006, 4
      %v1832 = vsel %vm1829, %v1830, %v1831
      %v1833 = vrot.slane %v1007, 4
      %v1834 = vsel %vm1829, %v1831, %v1833
      %v1835 = vrot.slane %v1008, 4
      %v1836 = vsel %vm1829, %v1833, %v1835
      %v1837 = vrot.slane %v1009, 4
      %v1838 = vsel %vm1829, %v1835, %v1837
      %v1839 = vrot.slane %v1010, 4
      %v1840 = vsel %vm1829, %v1837, %v1839
      %v1841 = vrot.slane %v1011, 4
      %v1842 = vsel %vm1829, %v1839, %v1841
      %v1843 = vrot.slane %v1012, 4
      %v1844 = vsel %vm1829, %v1841, %v1843
      %v1845 = vrot.slane %v1013, 4
      %v1846 = vsel %vm1829, %v1843, %v1845
      %v1847 = vrot.slane %v1014, 4
      %v1848 = vsel %vm1829, %v1845, %v1847
      %v1849 = vrot.slane %v1015, 4
      %v1850 = vsel %vm1829, %v1847, %v1849
      %v1851 = vrot.slane %v1016, 4
      %v1852 = vsel %vm1829, %v1849, %v1851
      %v1853 = vrot.slane %v1017, 4
      %v1854 = vsel %vm1829, %v1851, %v1853
      %v1855 = vrot.slane %v1018, 4
      %v1856 = vsel %vm1829, %v1853, %v1855
      %v1857 = vrot.slane %v1019, 4
      %v1858 = vsel %vm1829, %v1855, %v1857
      %v1859 = vrot.slane %v1020, 4
      %v1860 = vsel %vm1829, %v1857, %v1859
      %v1861 = vrot.slane %v1021, 4
      %v1862 = vsel %vm1829, %v1859, %v1861
      %vm1863 = vcmask 64512
      %v1865 = vsel %vm1863, %v1832, 0
      %v1868 = vsel %vm1863, %v1834, 0
      %v1871 = vsel %vm1863, %v1836, 0
      %v1874 = vsel %vm1863, %v1838, 0
      %v1877 = vsel %vm1863, %v1840, 0
      %v1880 = vsel %vm1863, %v1842, 0
      %v1883 = vsel %vm1863, %v1844, 0
      %v1886 = vsel %vm1863, %v1846, 0
      %v1889 = vsel %vm1863, %v1848, 0
      %v1892 = vsel %vm1863, %v1850, 0
      %v1895 = vsel %vm1863, %v1852, 0
      %v1898 = vsel %vm1863, %v1854, 0
      %v1901 = vsel %vm1863, %v1856, 0
      %v1904 = vsel %vm1863, %v1858, 0
      %v1907 = vsel %vm1863, %v1860, 0
      %v1910 = vsel %vm1863, %v1862, 0
      %vm1912 = vcmask 1043456
      %v1914 = vsel %vm1912, %v1811, 0
      %1916 = vmatprep.subr.bf16.mxu0 0
      %1917 = vmatpush1.bf16.msra.mxu0 %v1914
      %1918 = vmatprep.subr.bf16.mxu0 0
      %1919 = vmatpush1.bf16.msra.mxu0 0
      %1920 = vmatprep.subr.bf16.mxu0 0
      %1921 = vmatpush1.bf16.msra.mxu0 0
      %1922 = vmatprep.subr.bf16.mxu0 0
      %1923 = vmatpush1.bf16.msra.mxu0 0
      %1924 = vmatprep.subr.bf16.mxu0 0
      %1925 = vmatpush1.bf16.msra.mxu0 0
      %1926 = vmatprep.subr.bf16.mxu0 0
      %1927 = vmatpush1.bf16.msra.mxu0 0
      %1928 = vmatprep.subr.bf16.mxu0 0
      %1929 = vmatpush1.bf16.msra.mxu0 0
      %1930 = vmatprep.subr.bf16.mxu0 0
      %1931 = vmatpush1.bf16.msra.mxu0 0
      %1932 = vmatprep.subr.bf16.mxu0 0
      %1933 = vmatpush1.bf16.msra.mxu0 0
      %1934 = vmatprep.subr.bf16.mxu0 0
      %1935 = vmatpush1.bf16.msra.mxu0 0
      %1936 = vmatprep.subr.bf16.mxu0 0
      %1937 = vmatpush1.bf16.msra.mxu0 0
      %1938 = vmatprep.subr.bf16.mxu0 0
      %1939 = vmatpush1.bf16.msra.mxu0 0
      %1940 = vmatprep.subr.bf16.mxu0 0
      %1941 = vmatpush1.bf16.msra.mxu0 0
      %1942 = vmatprep.subr.bf16.mxu0 0
      %1943 = vmatpush1.bf16.msra.mxu0 0
      %1944 = vmatprep.subr.bf16.mxu0 0
      %1945 = vmatpush1.bf16.msra.mxu0 0
      %1946 = vmatprep.subr.bf16.mxu0 0
      %1947 = vmatpush1.bf16.msra.mxu0 0
      %1948 = vmatprep.mubr.bf16.mxu0 0
      %1949 = vmatmul.mubr.bf16.gmra.mrb[0].mxu0 %v1865
      %v1950 = vpop.f32.mrb[0].mxu0
      %v1951 = vadd.f32 0.0, %v1950
      %v1952 = vpop.f32.mrb[0].mxu0
      %v1953 = vpop.f32.mrb[0].mxu0
      %v1954 = vadd.f32 0.0, %v1953
      %v1955 = vpop.f32.mrb[0].mxu0
      %1956 = vmatprep.mubr.bf16.mxu0 0
      %1957 = vmatmul.mubr.bf16.gmra.mrb[0].mxu0 %v1868
      %v1958 = vpop.f32.mrb[0].mxu0
      %v1959 = vadd.f32 0.0, %v1958
      %v1960 = vpop.f32.mrb[0].mxu0
      %v1961 = vpop.f32.mrb[0].mxu0
      %v1962 = vadd.f32 0.0, %v1961
      %v1963 = vpop.f32.mrb[0].mxu0
      %1964 = vmatprep.mubr.bf16.mxu0 0
      %1965 = vmatmul.mubr.bf16.gmra.mrb[0].mxu0 %v1871
      %v1966 = vpop.f32.mrb[0].mxu0
      %v1967 = vadd.f32 0.0, %v1966
      %v1968 = vpop.f32.mrb[0].mxu0
      %v1969 = vpop.f32.mrb[0].mxu0
      %v1970 = vadd.f32 0.0, %v1969
      %v1971 = vpop.f32.mrb[0].mxu0
      %1972 = vmatprep.mubr.bf16.mxu0 0
      %1973 = vmatmul.mubr.bf16.gmra.mrb[0].mxu0 %v1874
      %v1974 = vpop.f32.mrb[0].mxu0
      %v1975 = vadd.f32 0.0, %v1974
      %v1976 = vpop.f32.mrb[0].mxu0
      %v1977 = vpop.f32.mrb[0].mxu0
      %v1978 = vadd.f32 0.0, %v1977
      %v1979 = vpop.f32.mrb[0].mxu0
      %1980 = vmatprep.mubr.bf16.mxu0 0
      %1981 = vmatmul.mubr.bf16.gmra.mrb[0].mxu0 %v1877
      %v1982 = vpop.f32.mrb[0].mxu0
      %v1983 = vadd.f32 0.0, %v1982
      %v1984 = vpop.f32.mrb[0].mxu0
      %v1985 = vpop.f32.mrb[0].mxu0
      %v1986 = vadd.f32 0.0, %v1985
      %v1987 = vpop.f32.mrb[0].mxu0
      %1988 = vmatprep.mubr.bf16.mxu0 0
      %1989 = vmatmul.mubr.bf16.gmra.mrb[0].mxu0 %v1880
      %v1990 = vpop.f32.mrb[0].mxu0
      %v1991 = vadd.f32 0.0, %v1990
      %v1992 = vpop.f32.mrb[0].mxu0
      %v1993 = vpop.f32.mrb[0].mxu0
      %v1994 = vadd.f32 0.0, %v1993
      %v1995 = vpop.f32.mrb[0].mxu0
      %1996 = vmatprep.mubr.bf16.mxu0 0
      %1997 = vmatmul.mubr.bf16.gmra.mrb[0].mxu0 %v1883
      %v1998 = vpop.f32.mrb[0].mxu0
      %v1999 = vadd.f32 0.0, %v1998
      %v2000 = vpop.f32.mrb[0].mxu0
      %v2001 = vpop.f32.mrb[0].mxu0
      %v2002 = vadd.f32 0.0, %v2001
      %v2003 = vpop.f32.mrb[0].mxu0
      %2004 = vmatprep.mubr.bf16.mxu0 0
      %2005 = vmatmul.mubr.bf16.gmra.mrb[0].mxu0 %v1886
      %v2006 = vpop.f32.mrb[0].mxu0
      %v2007 = vadd.f32 0.0, %v2006
      %v2008 = vpop.f32.mrb[0].mxu0
      %v2009 = vpop.f32.mrb[0].mxu0
      %v2010 = vadd.f32 0.0, %v2009
      %v2011 = vpop.f32.mrb[0].mxu0
      %2012 = vmatprep.mubr.bf16.mxu0 0
      %2013 = vmatmul.mubr.bf16.gmra.mrb[0].mxu0 %v1889
      %v2014 = vpop.f32.mrb[0].mxu0
      %v2015 = vadd.f32 0.0, %v2014
      %v2016 = vpop.f32.mrb[0].mxu0
      %v2017 = vpop.f32.mrb[0].mxu0
      %v2018 = vadd.f32 0.0, %v2017
      %v2019 = vpop.f32.mrb[0].mxu0
      %2020 = vmatprep.mubr.bf16.mxu0 0
      %2021 = vmatmul.mubr.bf16.gmra.mrb[0].mxu0 %v1892
      %v2022 = vpop.f32.mrb[0].mxu0
      %v2023 = vadd.f32 0.0, %v2022
      %v2024 = vpop.f32.mrb[0].mxu0
      %v2025 = vpop.f32.mrb[0].mxu0
      %v2026 = vadd.f32 0.0, %v2025
      %v2027 = vpop.f32.mrb[0].mxu0
      %2028 = vmatprep.mubr.bf16.mxu0 0
      %2029 = vmatmul.mubr.bf16.gmra.mrb[0].mxu0 %v1895
      %v2030 = vpop.f32.mrb[0].mxu0
      %v2031 = vadd.f32 0.0, %v2030
      %v2032 = vpop.f32.mrb[0].mxu0
      %v2033 = vpop.f32.mrb[0].mxu0
      %v2034 = vadd.f32 0.0, %v2033
      %v2035 = vpop.f32.mrb[0].mxu0
      %2036 = vmatprep.mubr.bf16.mxu0 0
      %2037 = vmatmul.mubr.bf16.gmra.mrb[0].mxu0 %v1898
      %v2038 = vpop.f32.mrb[0].mxu0
      %v2039 = vadd.f32 0.0, %v2038
      %v2040 = vpop.f32.mrb[0].mxu0
      %v2041 = vpop.f32.mrb[0].mxu0
      %v2042 = vadd.f32 0.0, %v2041
      %v2043 = vpop.f32.mrb[0].mxu0
      %2044 = vmatprep.mubr.bf16.mxu0 0
      %2045 = vmatmul.mubr.bf16.gmra.mrb[0].mxu0 %v1901
      %v2046 = vpop.f32.mrb[0].mxu0
      %v2047 = vadd.f32 0.0, %v2046
      %v2048 = vpop.f32.mrb[0].mxu0
      %v2049 = vpop.f32.mrb[0].mxu0
      %v2050 = vadd.f32 0.0, %v2049
      %v2051 = vpop.f32.mrb[0].mxu0
      %2052 = vmatprep.mubr.bf16.mxu0 0
      %2053 = vmatmul.mubr.bf16.gmra.mrb[0].mxu0 %v1904
      %v2054 = vpop.f32.mrb[0].mxu0
      %v2055 = vadd.f32 0.0, %v2054
      %v2056 = vpop.f32.mrb[0].mxu0
      %v2057 = vpop.f32.mrb[0].mxu0
      %v2058 = vadd.f32 0.0, %v2057
      %v2059 = vpop.f32.mrb[0].mxu0
      %2060 = vmatprep.mubr.bf16.mxu0 0
      %2061 = vmatmul.mubr.bf16.gmra.mrb[0].mxu0 %v1907
      %v2062 = vpop.f32.mrb[0].mxu0
      %v2063 = vadd.f32 0.0, %v2062
      %v2064 = vpop.f32.mrb[0].mxu0
      %v2065 = vpop.f32.mrb[0].mxu0
      %v2066 = vadd.f32 0.0, %v2065
      %v2067 = vpop.f32.mrb[0].mxu0
      %2068 = vmatprep.mubr.bf16.mxu0 0
      %2069 = vmatmul.mubr.bf16.gmra.mrb[0].mxu0 %v1910
      %v2070 = vpop.f32.mrb[0].mxu0
      %v2071 = vadd.f32 0.0, %v2070
      %v2072 = vpop.f32.mrb[0].mxu0
      %v2073 = vpop.f32.mrb[0].mxu0
      %v2074 = vadd.f32 0.0, %v2073
      %v2075 = vpop.f32.mrb[0].mxu0
      %2076 = vdwg.mxu0
      %v2078 = vshrl.u32 %v1359, 16
      %v2080 = vrot.slane %v2078, 3
      %v2081 = vshll.u32 %v1359, 16
      %v2083 = vrot.slane %v2081, 4
      %v2084 = vor.u32 %v2080, %v2083
      %v2086 = vshrl.u32 %v1360, 16
      %v2088 = vrot.slane %v2086, 3
      %v2089 = vshll.u32 %v1360, 16
      %v2091 = vrot.slane %v2089, 4
      %v2092 = vor.u32 %v2088, %v2091
      %v2093 = vsel %vm1554, %v2084, %v2092
      %v2095 = vshrl.u32 %v1361, 16
      %v2097 = vrot.slane %v2095, 3
      %v2098 = vshll.u32 %v1361, 16
      %v2100 = vrot.slane %v2098, 4
      %v2101 = vor.u32 %v2097, %v2100
      %v2102 = vsel %vm1554, %v2092, %v2101
      %v2104 = vshrl.u32 %v1362, 16
      %v2106 = vrot.slane %v2104, 3
      %v2107 = vshll.u32 %v1362, 16
      %v2109 = vrot.slane %v2107, 4
      %v2110 = vor.u32 %v2106, %v2109
      %v2111 = vsel %vm1554, %v2101, %v2110
      %v2113 = vshrl.u32 %v1363, 16
      %v2115 = vrot.slane %v2113, 3
      %v2116 = vshll.u32 %v1363, 16
      %v2118 = vrot.slane %v2116, 4
      %v2119 = vor.u32 %v2115, %v2118
      %v2120 = vsel %vm1554, %v2110, %v2119
      %v2122 = vshrl.u32 %v1364, 16
      %v2124 = vrot.slane %v2122, 3
      %v2125 = vshll.u32 %v1364, 16
      %v2127 = vrot.slane %v2125, 4
      %v2128 = vor.u32 %v2124, %v2127
      %v2129 = vsel %vm1554, %v2119, %v2128
      %v2131 = vshrl.u32 %v1365, 16
      %v2133 = vrot.slane %v2131, 3
      %v2134 = vshll.u32 %v1365, 16
      %v2136 = vrot.slane %v2134, 4
      %v2137 = vor.u32 %v2133, %v2136
      %v2138 = vsel %vm1554, %v2128, %v2137
      %v2140 = vshrl.u32 %v1366, 16
      %v2142 = vrot.slane %v2140, 3
      %v2143 = vshll.u32 %v1366, 16
      %v2145 = vrot.slane %v2143, 4
      %v2146 = vor.u32 %v2142, %v2145
      %v2147 = vsel %vm1554, %v2137, %v2146
      %v2149 = vshrl.u32 %v1367, 16
      %v2151 = vrot.slane %v2149, 3
      %v2152 = vshll.u32 %v1367, 16
      %v2154 = vrot.slane %v2152, 4
      %v2155 = vor.u32 %v2151, %v2154
      %v2156 = vsel %vm1554, %v2146, %v2155
      %v2158 = vshrl.u32 %v1368, 16
      %v2160 = vrot.slane %v2158, 3
      %v2161 = vshll.u32 %v1368, 16
      %v2163 = vrot.slane %v2161, 4
      %v2164 = vor.u32 %v2160, %v2163
      %v2165 = vsel %vm1554, %v2155, %v2164
      %v2167 = vshrl.u32 %v1369, 16
      %v2169 = vrot.slane %v2167, 3
      %v2170 = vshll.u32 %v1369, 16
      %v2172 = vrot.slane %v2170, 4
      %v2173 = vor.u32 %v2169, %v2172
      %v2174 = vsel %vm1554, %v2164, %v2173
      %v2176 = vshrl.u32 %v1370, 16
      %v2178 = vrot.slane %v2176, 3
      %v2179 = vshll.u32 %v1370, 16
      %v2181 = vrot.slane %v2179, 4
      %v2182 = vor.u32 %v2178, %v2181
      %v2183 = vsel %vm1554, %v2173, %v2182
      %v2185 = vshrl.u32 %v1371, 16
      %v2187 = vrot.slane %v2185, 3
      %v2188 = vshll.u32 %v1371, 16
      %v2190 = vrot.slane %v2188, 4
      %v2191 = vor.u32 %v2187, %v2190
      %v2192 = vsel %vm1554, %v2182, %v2191
      %v2194 = vshrl.u32 %v1372, 16
      %v2196 = vrot.slane %v2194, 3
      %v2197 = vshll.u32 %v1372, 16
      %v2199 = vrot.slane %v2197, 4
      %v2200 = vor.u32 %v2196, %v2199
      %v2201 = vsel %vm1554, %v2191, %v2200
      %v2203 = vshrl.u32 %v1373, 16
      %v2205 = vrot.slane %v2203, 3
      %v2206 = vshll.u32 %v1373, 16
      %v2208 = vrot.slane %v2206, 4
      %v2209 = vor.u32 %v2205, %v2208
      %v2210 = vsel %vm1554, %v2200, %v2209
      %v2212 = vshrl.u32 %v1374, 16
      %v2214 = vrot.slane %v2212, 3
      %v2215 = vshll.u32 %v1374, 16
      %v2217 = vrot.slane %v2215, 4
      %v2218 = vor.u32 %v2214, %v2217
      %v2219 = vsel %vm1554, %v2209, %v2218
      %v2221 = vshrl.u32 %v1375, 16
      %v2223 = vrot.slane %v2221, 3
      %v2224 = vshll.u32 %v1375, 16
      %v2226 = vrot.slane %v2224, 4
      %v2227 = vor.u32 %v2223, %v2226
      %v2228 = vsel %vm1554, %v2218, %v2227
      %v2230 = vsel %vm1863, %v2093, 0
      %v2233 = vsel %vm1863, %v2102, 0
      %v2236 = vsel %vm1863, %v2111, 0
      %v2239 = vsel %vm1863, %v2120, 0
      %v2242 = vsel %vm1863, %v2129, 0
      %v2245 = vsel %vm1863, %v2138, 0
      %v2248 = vsel %vm1863, %v2147, 0
      %v2251 = vsel %vm1863, %v2156, 0
      %v2254 = vsel %vm1863, %v2165, 0
      %v2257 = vsel %vm1863, %v2174, 0
      %v2260 = vsel %vm1863, %v2183, 0
      %v2263 = vsel %vm1863, %v2192, 0
      %v2266 = vsel %vm1863, %v2201, 0
      %v2269 = vsel %vm1863, %v2210, 0
      %v2272 = vsel %vm1863, %v2219, 0
      %v2275 = vsel %vm1863, %v2228, 0
      %v2278 = vsel %vm1912, %v1810, 0
      %2280 = vmatprep.subr.bf16.mxu0 0
      %2281 = vmatpush1.bf16.msra.mxu0 %v2278
      %2282 = vmatprep.subr.bf16.mxu0 0
      %2283 = vmatpush1.bf16.msra.mxu0 0
      %2284 = vmatprep.subr.bf16.mxu0 0
      %2285 = vmatpush1.bf16.msra.mxu0 0
      %2286 = vmatprep.subr.bf16.mxu0 0
      %2287 = vmatpush1.bf16.msra.mxu0 0
      %2288 = vmatprep.subr.bf16.mxu0 0
      %2289 = vmatpush1.bf16.msra.mxu0 0
      %2290 = vmatprep.subr.bf16.mxu0 0
      %2291 = vmatpush1.bf16.msra.mxu0 0
      %2292 = vmatprep.subr.bf16.mxu0 0
      %2293 = vmatpush1.bf16.msra.mxu0 0
      %2294 = vmatprep.subr.bf16.mxu0 0
      %2295 = vmatpush1.bf16.msra.mxu0 0
      %2296 = vmatprep.subr.bf16.mxu0 0
      %2297 = vmatpush1.bf16.msra.mxu0 0
      %2298 = vmatprep.subr.bf16.mxu0 0
      %2299 = vmatpush1.bf16.msra.mxu0 0
      %2300 = vmatprep.subr.bf16.mxu0 0
      %2301 = vmatpush1.bf16.msra.mxu0 0
      %2302 = vmatprep.subr.bf16.mxu0 0
      %2303 = vmatpush1.bf16.msra.mxu0 0
      %2304 = vmatprep.subr.bf16.mxu0 0
      %2305 = vmatpush1.bf16.msra.mxu0 0
      %2306 = vmatprep.subr.bf16.mxu0 0
      %2307 = vmatpush1.bf16.msra.mxu0 0
      %2308 = vmatprep.subr.bf16.mxu0 0
      %2309 = vmatpush1.bf16.msra.mxu0 0
      %2310 = vmatprep.subr.bf16.mxu0 0
      %2311 = vmatpush1.bf16.msra.mxu0 0
      %2312 = vmatprep.mubr.bf16.mxu0 0
      %2313 = vmatmul.mubr.bf16.gmra.mrb[0].mxu0 %v2230
      %v2314 = vpop.f32.mrb[0].mxu0
      %v2315 = vadd.f32 %v1951, %v2314
      %v2316 = vpop.f32.mrb[0].mxu0
      %v2317 = vpop.f32.mrb[0].mxu0
      %v2318 = vadd.f32 %v1954, %v2317
      %v2319 = vpop.f32.mrb[0].mxu0
      %2320 = vmatprep.mubr.bf16.mxu0 0
      %2321 = vmatmul.mubr.bf16.gmra.mrb[0].mxu0 %v2233
      %v2322 = vpop.f32.mrb[0].mxu0
      %v2323 = vadd.f32 %v1959, %v2322
      %v2324 = vpop.f32.mrb[0].mxu0
      %v2325 = vpop.f32.mrb[0].mxu0
      %v2326 = vadd.f32 %v1962, %v2325
      %v2327 = vpop.f32.mrb[0].mxu0
      %2328 = vmatprep.mubr.bf16.mxu0 0
      %2329 = vmatmul.mubr.bf16.gmra.mrb[0].mxu0 %v2236
      %v2330 = vpop.f32.mrb[0].mxu0
      %v2331 = vadd.f32 %v1967, %v2330
      %v2332 = vpop.f32.mrb[0].mxu0
      %v2333 = vpop.f32.mrb[0].mxu0
      %v2334 = vadd.f32 %v1970, %v2333
      %v2335 = vpop.f32.mrb[0].mxu0
      %2336 = vmatprep.mubr.bf16.mxu0 0
      %2337 = vmatmul.mubr.bf16.gmra.mrb[0].mxu0 %v2239
      %v2338 = vpop.f32.mrb[0].mxu0
      %v2339 = vadd.f32 %v1975, %v2338
      %v2340 = vpop.f32.mrb[0].mxu0
      %v2341 = vpop.f32.mrb[0].mxu0
      %v2342 = vadd.f32 %v1978, %v2341
      %v2343 = vpop.f32.mrb[0].mxu0
      %2344 = vmatprep.mubr.bf16.mxu0 0
      %2345 = vmatmul.mubr.bf16.gmra.mrb[0].mxu0 %v2242
      %v2346 = vpop.f32.mrb[0].mxu0
      %v2347 = vadd.f32 %v1983, %v2346
      %v2348 = vpop.f32.mrb[0].mxu0
      %v2349 = vpop.f32.mrb[0].mxu0
      %v2350 = vadd.f32 %v1986, %v2349
      %v2351 = vpop.f32.mrb[0].mxu0
      %2352 = vmatprep.mubr.bf16.mxu0 0
      %2353 = vmatmul.mubr.bf16.gmra.mrb[0].mxu0 %v2245
      %v2354 = vpop.f32.mrb[0].mxu0
      %v2355 = vadd.f32 %v1991, %v2354
      %v2356 = vpop.f32.mrb[0].mxu0
      %v2357 = vpop.f32.mrb[0].mxu0
      %v2358 = vadd.f32 %v1994, %v2357
      %v2359 = vpop.f32.mrb[0].mxu0
      %2360 = vmatprep.mubr.bf16.mxu0 0
      %2361 = vmatmul.mubr.bf16.gmra.mrb[0].mxu0 %v2248
      %v2362 = vpop.f32.mrb[0].mxu0
      %v2363 = vadd.f32 %v1999, %v2362
      %v2364 = vpop.f32.mrb[0].mxu0
      %v2365 = vpop.f32.mrb[0].mxu0
      %v2366 = vadd.f32 %v2002, %v2365
      %v2367 = vpop.f32.mrb[0].mxu0
      %2368 = vmatprep.mubr.bf16.mxu0 0
      %2369 = vmatmul.mubr.bf16.gmra.mrb[0].mxu0 %v2251
      %v2370 = vpop.f32.mrb[0].mxu0
      %v2371 = vadd.f32 %v2007, %v2370
      %v2372 = vpop.f32.mrb[0].mxu0
      %v2373 = vpop.f32.mrb[0].mxu0
      %v2374 = vadd.f32 %v2010, %v2373
      %v2375 = vpop.f32.mrb[0].mxu0
      %2376 = vmatprep.mubr.bf16.mxu0 0
      %2377 = vmatmul.mubr.bf16.gmra.mrb[0].mxu0 %v2254
      %v2378 = vpop.f32.mrb[0].mxu0
      %v2379 = vadd.f32 %v2015, %v2378
      %v2380 = vpop.f32.mrb[0].mxu0
      %v2381 = vpop.f32.mrb[0].mxu0
      %v2382 = vadd.f32 %v2018, %v2381
      %v2383 = vpop.f32.mrb[0].mxu0
      %2384 = vmatprep.mubr.bf16.mxu0 0
      %2385 = vmatmul.mubr.bf16.gmra.mrb[0].mxu0 %v2257
      %v2386 = vpop.f32.mrb[0].mxu0
      %v2387 = vadd.f32 %v2023, %v2386
      %v2388 = vpop.f32.mrb[0].mxu0
      %v2389 = vpop.f32.mrb[0].mxu0
      %v2390 = vadd.f32 %v2026, %v2389
      %v2391 = vpop.f32.mrb[0].mxu0
      %2392 = vmatprep.mubr.bf16.mxu0 0
      %2393 = vmatmul.mubr.bf16.gmra.mrb[0].mxu0 %v2260
      %v2394 = vpop.f32.mrb[0].mxu0
      %v2395 = vadd.f32 %v2031, %v2394
      %v2396 = vpop.f32.mrb[0].mxu0
      %v2397 = vpop.f32.mrb[0].mxu0
      %v2398 = vadd.f32 %v2034, %v2397
      %v2399 = vpop.f32.mrb[0].mxu0
      %2400 = vmatprep.mubr.bf16.mxu0 0
      %2401 = vmatmul.mubr.bf16.gmra.mrb[0].mxu0 %v2263
      %v2402 = vpop.f32.mrb[0].mxu0
      %v2403 = vadd.f32 %v2039, %v2402
      %v2404 = vpop.f32.mrb[0].mxu0
      %v2405 = vpop.f32.mrb[0].mxu0
      %v2406 = vadd.f32 %v2042, %v2405
      %v2407 = vpop.f32.mrb[0].mxu0
      %2408 = vmatprep.mubr.bf16.mxu0 0
      %2409 = vmatmul.mubr.bf16.gmra.mrb[0].mxu0 %v2266
      %v2410 = vpop.f32.mrb[0].mxu0
      %v2411 = vadd.f32 %v2047, %v2410
      %v2412 = vpop.f32.mrb[0].mxu0
      %v2413 = vpop.f32.mrb[0].mxu0
      %v2414 = vadd.f32 %v2050, %v2413
      %v2415 = vpop.f32.mrb[0].mxu0
      %2416 = vmatprep.mubr.bf16.mxu0 0
      %2417 = vmatmul.mubr.bf16.gmra.mrb[0].mxu0 %v2269
      %v2418 = vpop.f32.mrb[0].mxu0
      %v2419 = vadd.f32 %v2055, %v2418
      %v2420 = vpop.f32.mrb[0].mxu0
      %v2421 = vpop.f32.mrb[0].mxu0
      %v2422 = vadd.f32 %v2058, %v2421
      %v2423 = vpop.f32.mrb[0].mxu0
      %2424 = vmatprep.mubr.bf16.mxu0 0
      %2425 = vmatmul.mubr.bf16.gmra.mrb[0].mxu0 %v2272
      %v2426 = vpop.f32.mrb[0].mxu0
      %v2427 = vadd.f32 %v2063, %v2426
      %v2428 = vpop.f32.mrb[0].mxu0
      %v2429 = vpop.f32.mrb[0].mxu0
      %v2430 = vadd.f32 %v2066, %v2429
      %v2431 = vpop.f32.mrb[0].mxu0
      %2432 = vmatprep.mubr.bf16.mxu0 0
      %2433 = vmatmul.mubr.bf16.gmra.mrb[0].mxu0 %v2275
      %v2434 = vpop.f32.mrb[0].mxu0
      %v2435 = vadd.f32 %v2071, %v2434
      %v2436 = vpop.f32.mrb[0].mxu0
      %v2437 = vpop.f32.mrb[0].mxu0
      %v2438 = vadd.f32 %v2074, %v2437
      %v2439 = vpop.f32.mrb[0].mxu0
      %2440 = vdwg.mxu0
      %v2441 = vld [vmem:[%s308 + $0x8] sm:$0xf]
      %v2443 = vshrl.u32 %v1715, 16
      %v2445 = vrot.slane %v2443, 4
      %v2446 = vshll.u32 %v1715, 16
      %v2448 = vrot.slane %v2446, 5
      %v2449 = vor.u32 %v2445, %v2448
      %v2451 = vshrl.u32 %v1716, 16
      %v2453 = vrot.slane %v2451, 4
      %v2454 = vshll.u32 %v1716, 16
      %v2456 = vrot.slane %v2454, 5
      %v2457 = vor.u32 %v2453, %v2456
      %v2458 = vsel %vm1198, %v2449, %v2457
      %v2460 = vshrl.u32 %v1717, 16
      %v2462 = vrot.slane %v2460, 4
      %v2463 = vshll.u32 %v1717, 16
      %v2465 = vrot.slane %v2463, 5
      %v2466 = vor.u32 %v2462, %v2465
      %v2467 = vsel %vm1198, %v2457, %v2466
      %v2469 = vshrl.u32 %v1718, 16
      %v2471 = vrot.slane %v2469, 4
      %v2472 = vshll.u32 %v1718, 16
      %v2474 = vrot.slane %v2472, 5
      %v2475 = vor.u32 %v2471, %v2474
      %v2476 = vsel %vm1198, %v2466, %v2475
      %v2478 = vshrl.u32 %v1719, 16
      %v2480 = vrot.slane %v2478, 4
      %v2481 = vshll.u32 %v1719, 16
      %v2483 = vrot.slane %v2481, 5
      %v2484 = vor.u32 %v2480, %v2483
      %v2485 = vsel %vm1198, %v2475, %v2484
      %v2487 = vshrl.u32 %v1720, 16
      %v2489 = vrot.slane %v2487, 4
      %v2490 = vshll.u32 %v1720, 16
      %v2492 = vrot.slane %v2490, 5
      %v2493 = vor.u32 %v2489, %v2492
      %v2494 = vsel %vm1198, %v2484, %v2493
      %v2496 = vshrl.u32 %v1721, 16
      %v2498 = vrot.slane %v2496, 4
      %v2499 = vshll.u32 %v1721, 16
      %v2501 = vrot.slane %v2499, 5
      %v2502 = vor.u32 %v2498, %v2501
      %v2503 = vsel %vm1198, %v2493, %v2502
      %v2505 = vshrl.u32 %v1722, 16
      %v2507 = vrot.slane %v2505, 4
      %v2508 = vshll.u32 %v1722, 16
      %v2510 = vrot.slane %v2508, 5
      %v2511 = vor.u32 %v2507, %v2510
      %v2512 = vsel %vm1198, %v2502, %v2511
      %v2514 = vshrl.u32 %v1723, 16
      %v2516 = vrot.slane %v2514, 4
      %v2517 = vshll.u32 %v1723, 16
      %v2519 = vrot.slane %v2517, 5
      %v2520 = vor.u32 %v2516, %v2519
      %v2521 = vsel %vm1198, %v2511, %v2520
      %v2523 = vshrl.u32 %v1724, 16
      %v2525 = vrot.slane %v2523, 4
      %v2526 = vshll.u32 %v1724, 16
      %v2528 = vrot.slane %v2526, 5
      %v2529 = vor.u32 %v2525, %v2528
      %v2530 = vsel %vm1198, %v2520, %v2529
      %v2532 = vshrl.u32 %v1725, 16
      %v2534 = vrot.slane %v2532, 4
      %v2535 = vshll.u32 %v1725, 16
      %v2537 = vrot.slane %v2535, 5
      %v2538 = vor.u32 %v2534, %v2537
      %v2539 = vsel %vm1198, %v2529, %v2538
      %v2541 = vshrl.u32 %v1726, 16
      %v2543 = vrot.slane %v2541, 4
      %v2544 = vshll.u32 %v1726, 16
      %v2546 = vrot.slane %v2544, 5
      %v2547 = vor.u32 %v2543, %v2546
      %v2548 = vsel %vm1198, %v2538, %v2547
      %v2550 = vshrl.u32 %v1727, 16
      %v2552 = vrot.slane %v2550, 4
      %v2553 = vshll.u32 %v1727, 16
      %v2555 = vrot.slane %v2553, 5
      %v2556 = vor.u32 %v2552, %v2555
      %v2557 = vsel %vm1198, %v2547, %v2556
      %v2559 = vshrl.u32 %v1728, 16
      %v2561 = vrot.slane %v2559, 4
      %v2562 = vshll.u32 %v1728, 16
      %v2564 = vrot.slane %v2562, 5
      %v2565 = vor.u32 %v2561, %v2564
      %v2566 = vsel %vm1198, %v2556, %v2565
      %v2568 = vshrl.u32 %v1729, 16
      %v2570 = vrot.slane %v2568, 4
      %v2571 = vshll.u32 %v1729, 16
      %v2573 = vrot.slane %v2571, 5
      %v2574 = vor.u32 %v2570, %v2573
      %v2575 = vsel %vm1198, %v2565, %v2574
      %v2577 = vshrl.u32 %v1730, 16
      %v2579 = vrot.slane %v2577, 4
      %v2580 = vshll.u32 %v1730, 16
      %v2582 = vrot.slane %v2580, 5
      %v2583 = vor.u32 %v2579, %v2582
      %v2584 = vsel %vm1198, %v2574, %v2583
      %v2586 = vshrl.u32 %v1731, 16
      %v2588 = vrot.slane %v2586, 4
      %v2589 = vshll.u32 %v1731, 16
      %v2591 = vrot.slane %v2589, 5
      %v2592 = vor.u32 %v2588, %v2591
      %v2593 = vsel %vm1198, %v2583, %v2592
      %v2595 = vsel %vm1863, %v2458, 0
      %v2598 = vsel %vm1863, %v2467, 0
      %v2601 = vsel %vm1863, %v2476, 0
      %v2604 = vsel %vm1863, %v2485, 0
      %v2607 = vsel %vm1863, %v2494, 0
      %v2610 = vsel %vm1863, %v2503, 0
      %v2613 = vsel %vm1863, %v2512, 0
      %v2616 = vsel %vm1863, %v2521, 0
      %v2619 = vsel %vm1863, %v2530, 0
      %v2622 = vsel %vm1863, %v2539, 0
      %v2625 = vsel %vm1863, %v2548, 0
      %v2628 = vsel %vm1863, %v2557, 0
      %v2631 = vsel %vm1863, %v2566, 0
      %v2634 = vsel %vm1863, %v2575, 0
      %v2637 = vsel %vm1863, %v2584, 0
      %v2640 = vsel %vm1863, %v2593, 0
      %v2643 = vsel %vm1912, %v2441, 0
      %2645 = vmatprep.subr.bf16.mxu0 0
      %2646 = vmatpush1.bf16.msra.mxu0 %v2643
      %2647 = vmatprep.subr.bf16.mxu0 0
      %2648 = vmatpush1.bf16.msra.mxu0 0
      %2649 = vmatprep.subr.bf16.mxu0 0
      %2650 = vmatpush1.bf16.msra.mxu0 0
      %2651 = vmatprep.subr.bf16.mxu0 0
      %2652 = vmatpush1.bf16.msra.mxu0 0
      %2653 = vmatprep.subr.bf16.mxu0 0
      %2654 = vmatpush1.bf16.msra.mxu0 0
      %2655 = vmatprep.subr.bf16.mxu0 0
      %2656 = vmatpush1.bf16.msra.mxu0 0
      %2657 = vmatprep.subr.bf16.mxu0 0
      %2658 = vmatpush1.bf16.msra.mxu0 0
      %2659 = vmatprep.subr.bf16.mxu0 0
      %2660 = vmatpush1.bf16.msra.mxu0 0
      %2661 = vmatprep.subr.bf16.mxu0 0
      %2662 = vmatpush1.bf16.msra.mxu0 0
      %2663 = vmatprep.subr.bf16.mxu0 0
      %2664 = vmatpush1.bf16.msra.mxu0 0
      %2665 = vmatprep.subr.bf16.mxu0 0
      %2666 = vmatpush1.bf16.msra.mxu0 0
      %2667 = vmatprep.subr.bf16.mxu0 0
      %2668 = vmatpush1.bf16.msra.mxu0 0
      %2669 = vmatprep.subr.bf16.mxu0 0
      %2670 = vmatpush1.bf16.msra.mxu0 0
      %2671 = vmatprep.subr.bf16.mxu0 0
      %2672 = vmatpush1.bf16.msra.mxu0 0
      %2673 = vmatprep.subr.bf16.mxu0 0
      %2674 = vmatpush1.bf16.msra.mxu0 0
      %2675 = vmatprep.subr.bf16.mxu0 0
      %2676 = vmatpush1.bf16.msra.mxu0 0
      %2677 = vmatprep.mubr.bf16.mxu0 0
      %2678 = vmatmul.mubr.bf16.gmra.mrb[0].mxu0 %v2595
      %v2679 = vpop.f32.mrb[0].mxu0
      %v2680 = vadd.f32 0.0, %v2679
      %v2681 = vpop.f32.mrb[0].mxu0
      %v2682 = vpop.f32.mrb[0].mxu0
      %v2683 = vadd.f32 0.0, %v2682
      %v2684 = vpop.f32.mrb[0].mxu0
      %2685 = vmatprep.mubr.bf16.mxu0 0
      %2686 = vmatmul.mubr.bf16.gmra.mrb[0].mxu0 %v2598
      %v2687 = vpop.f32.mrb[0].mxu0
      %v2688 = vadd.f32 0.0, %v2687
      %v2689 = vpop.f32.mrb[0].mxu0
      %v2690 = vpop.f32.mrb[0].mxu0
      %v2691 = vadd.f32 0.0, %v2690
      %v2692 = vpop.f32.mrb[0].mxu0
      %2693 = vmatprep.mubr.bf16.mxu0 0
      %2694 = vmatmul.mubr.bf16.gmra.mrb[0].mxu0 %v2601
      %v2695 = vpop.f32.mrb[0].mxu0
      %v2696 = vadd.f32 0.0, %v2695
      %v2697 = vpop.f32.mrb[0].mxu0
      %v2698 = vpop.f32.mrb[0].mxu0
      %v2699 = vadd.f32 0.0, %v2698
      %v2700 = vpop.f32.mrb[0].mxu0
      %2701 = vmatprep.mubr.bf16.mxu0 0
      %2702 = vmatmul.mubr.bf16.gmra.mrb[0].mxu0 %v2604
      %v2703 = vpop.f32.mrb[0].mxu0
      %v2704 = vadd.f32 0.0, %v2703
      %v2705 = vpop.f32.mrb[0].mxu0
      %v2706 = vpop.f32.mrb[0].mxu0
      %v2707 = vadd.f32 0.0, %v2706
      %v2708 = vpop.f32.mrb[0].mxu0
      %2709 = vmatprep.mubr.bf16.mxu0 0
      %2710 = vmatmul.mubr.bf16.gmra.mrb[0].mxu0 %v2607
      %v2711 = vpop.f32.mrb[0].mxu0
      %v2712 = vadd.f32 0.0, %v2711
      %v2713 = vpop.f32.mrb[0].mxu0
      %v2714 = vpop.f32.mrb[0].mxu0
      %v2715 = vadd.f32 0.0, %v2714
      %v2716 = vpop.f32.mrb[0].mxu0
      %2717 = vmatprep.mubr.bf16.mxu0 0
      %2718 = vmatmul.mubr.bf16.gmra.mrb[0].mxu0 %v2610
      %v2719 = vpop.f32.mrb[0].mxu0
      %v2720 = vadd.f32 0.0, %v2719
      %v2721 = vpop.f32.mrb[0].mxu0
      %v2722 = vpop.f32.mrb[0].mxu0
      %v2723 = vadd.f32 0.0, %v2722
      %v2724 = vpop.f32.mrb[0].mxu0
      %2725 = vmatprep.mubr.bf16.mxu0 0
      %2726 = vmatmul.mubr.bf16.gmra.mrb[0].mxu0 %v2613
      %v2727 = vpop.f32.mrb[0].mxu0
      %v2728 = vadd.f32 0.0, %v2727
      %v2729 = vpop.f32.mrb[0].mxu0
      %v2730 = vpop.f32.mrb[0].mxu0
      %v2731 = vadd.f32 0.0, %v2730
      %v2732 = vpop.f32.mrb[0].mxu0
      %2733 = vmatprep.mubr.bf16.mxu0 0
      %2734 = vmatmul.mubr.bf16.gmra.mrb[0].mxu0 %v2616
      %v2735 = vpop.f32.mrb[0].mxu0
      %v2736 = vadd.f32 0.0, %v2735
      %v2737 = vpop.f32.mrb[0].mxu0
      %v2738 = vpop.f32.mrb[0].mxu0
      %v2739 = vadd.f32 0.0, %v2738
      %v2740 = vpop.f32.mrb[0].mxu0
      %2741 = vmatprep.mubr.bf16.mxu0 0
      %2742 = vmatmul.mubr.bf16.gmra.mrb[0].mxu0 %v2619
      %v2743 = vpop.f32.mrb[0].mxu0
      %v2744 = vadd.f32 0.0, %v2743
      %v2745 = vpop.f32.mrb[0].mxu0
      %v2746 = vpop.f32.mrb[0].mxu0
      %v2747 = vadd.f32 0.0, %v2746
      %v2748 = vpop.f32.mrb[0].mxu0
      %2749 = vmatprep.mubr.bf16.mxu0 0
      %2750 = vmatmul.mubr.bf16.gmra.mrb[0].mxu0 %v2622
      %v2751 = vpop.f32.mrb[0].mxu0
      %v2752 = vadd.f32 0.0, %v2751
      %v2753 = vpop.f32.mrb[0].mxu0
      %v2754 = vpop.f32.mrb[0].mxu0
      %v2755 = vadd.f32 0.0, %v2754
      %v2756 = vpop.f32.mrb[0].mxu0
      %2757 = vmatprep.mubr.bf16.mxu0 0
      %2758 = vmatmul.mubr.bf16.gmra.mrb[0].mxu0 %v2625
      %v2759 = vpop.f32.mrb[0].mxu0
      %v2760 = vadd.f32 0.0, %v2759
      %v2761 = vpop.f32.mrb[0].mxu0
      %v2762 = vpop.f32.mrb[0].mxu0
      %v2763 = vadd.f32 0.0, %v2762
      %v2764 = vpop.f32.mrb[0].mxu0
      %2765 = vmatprep.mubr.bf16.mxu0 0
      %2766 = vmatmul.mubr.bf16.gmra.mrb[0].mxu0 %v2628
      %v2767 = vpop.f32.mrb[0].mxu0
      %v2768 = vadd.f32 0.0, %v2767
      %v2769 = vpop.f32.mrb[0].mxu0
      %v2770 = vpop.f32.mrb[0].mxu0
      %v2771 = vadd.f32 0.0, %v2770
      %v2772 = vpop.f32.mrb[0].mxu0
      %2773 = vmatprep.mubr.bf16.mxu0 0
      %2774 = vmatmul.mubr.bf16.gmra.mrb[0].mxu0 %v2631
      %v2775 = vpop.f32.mrb[0].mxu0
      %v2776 = vadd.f32 0.0, %v2775
      %v2777 = vpop.f32.mrb[0].mxu0
      %v2778 = vpop.f32.mrb[0].mxu0
      %v2779 = vadd.f32 0.0, %v2778
      %v2780 = vpop.f32.mrb[0].mxu0
      %2781 = vmatprep.mubr.bf16.mxu0 0
      %2782 = vmatmul.mubr.bf16.gmra.mrb[0].mxu0 %v2634
      %v2783 = vpop.f32.mrb[0].mxu0
      %v2784 = vadd.f32 0.0, %v2783
      %v2785 = vpop.f32.mrb[0].mxu0
      %v2786 = vpop.f32.mrb[0].mxu0
      %v2787 = vadd.f32 0.0, %v2786
      %v2788 = vpop.f32.mrb[0].mxu0
      %2789 = vmatprep.mubr.bf16.mxu0 0
      %2790 = vmatmul.mubr.bf16.gmra.mrb[0].mxu0 %v2637
      %v2791 = vpop.f32.mrb[0].mxu0
      %v2792 = vadd.f32 0.0, %v2791
      %v2793 = vpop.f32.mrb[0].mxu0
      %v2794 = vpop.f32.mrb[0].mxu0
      %v2795 = vadd.f32 0.0, %v2794
      %v2796 = vpop.f32.mrb[0].mxu0
      %2797 = vmatprep.mubr.bf16.mxu0 0
      %2798 = vmatmul.mubr.bf16.gmra.mrb[0].mxu0 %v2640
      %v2799 = vpop.f32.mrb[0].mxu0
      %v2800 = vadd.f32 0.0, %v2799
      %v2801 = vpop.f32.mrb[0].mxu0
      %v2802 = vpop.f32.mrb[0].mxu0
      %v2803 = vadd.f32 0.0, %v2802
      %v2804 = vpop.f32.mrb[0].mxu0
      %2805 = vdwg.mxu0
      %v2806 = vadd.f32 %v2315, %v2680
      %v2807 = vadd.f32 %v2318, %v2683
      %v2808 = vadd.f32 %v2323, %v2688
      %v2809 = vadd.f32 %v2326, %v2691
      %v2810 = vadd.f32 %v2331, %v2696
      %v2811 = vadd.f32 %v2334, %v2699
      %v2812 = vadd.f32 %v2339, %v2704
      %v2813 = vadd.f32 %v2342, %v2707
      %v2814 = vadd.f32 %v2347, %v2712
      %v2815 = vadd.f32 %v2350, %v2715
      %v2816 = vadd.f32 %v2355, %v2720
      %v2817 = vadd.f32 %v2358, %v2723
      %v2818 = vadd.f32 %v2363, %v2728
      %v2819 = vadd.f32 %v2366, %v2731
      %v2820 = vadd.f32 %v2371, %v2736
      %v2821 = vadd.f32 %v2374, %v2739
      %v2822 = vadd.f32 %v2379, %v2744
      %v2823 = vadd.f32 %v2382, %v2747
      %v2824 = vadd.f32 %v2387, %v2752
      %v2825 = vadd.f32 %v2390, %v2755
      %v2826 = vadd.f32 %v2395, %v2760
      %v2827 = vadd.f32 %v2398, %v2763
      %v2828 = vadd.f32 %v2403, %v2768
      %v2829 = vadd.f32 %v2406, %v2771
      %v2830 = vadd.f32 %v2411, %v2776
      %v2831 = vadd.f32 %v2414, %v2779
      %v2832 = vadd.f32 %v2419, %v2784
      %v2833 = vadd.f32 %v2422, %v2787
      %v2834 = vadd.f32 %v2427, %v2792
      %v2835 = vadd.f32 %v2430, %v2795
      %v2836 = vadd.f32 %v2435, %v2800
      %v2837 = vadd.f32 %v2438, %v2803
      %v2838 = vld [vmem:[%s308 + $0xc] sm:$0xf]
      %v2840 = vshrl.u32 %v1735, 16
      %v2842 = vrot.slane %v2840, 3
      %v2843 = vshll.u32 %v1735, 16
      %v2845 = vrot.slane %v2843, 4
      %v2846 = vor.u32 %v2842, %v2845
      %v2848 = vshrl.u32 %v1736, 16
      %v2850 = vrot.slane %v2848, 3
      %v2851 = vshll.u32 %v1736, 16
      %v2853 = vrot.slane %v2851, 4
      %v2854 = vor.u32 %v2850, %v2853
      %v2855 = vsel %vm1554, %v2846, %v2854
      %v2857 = vshrl.u32 %v1737, 16
      %v2859 = vrot.slane %v2857, 3
      %v2860 = vshll.u32 %v1737, 16
      %v2862 = vrot.slane %v2860, 4
      %v2863 = vor.u32 %v2859, %v2862
      %v2864 = vsel %vm1554, %v2854, %v2863
      %v2866 = vshrl.u32 %v1738, 16
      %v2868 = vrot.slane %v2866, 3
      %v2869 = vshll.u32 %v1738, 16
      %v2871 = vrot.slane %v2869, 4
      %v2872 = vor.u32 %v2868, %v2871
      %v2873 = vsel %vm1554, %v2863, %v2872
      %v2875 = vshrl.u32 %v1739, 16
      %v2877 = vrot.slane %v2875, 3
      %v2878 = vshll.u32 %v1739, 16
      %v2880 = vrot.slane %v2878, 4
      %v2881 = vor.u32 %v2877, %v2880
      %v2882 = vsel %vm1554, %v2872, %v2881
      %v2884 = vshrl.u32 %v1740, 16
      %v2886 = vrot.slane %v2884, 3
      %v2887 = vshll.u32 %v1740, 16
      %v2889 = vrot.slane %v2887, 4
      %v2890 = vor.u32 %v2886, %v2889
      %v2891 = vsel %vm1554, %v2881, %v2890
      %v2893 = vshrl.u32 %v1741, 16
      %v2895 = vrot.slane %v2893, 3
      %v2896 = vshll.u32 %v1741, 16
      %v2898 = vrot.slane %v2896, 4
      %v2899 = vor.u32 %v2895, %v2898
      %v2900 = vsel %vm1554, %v2890, %v2899
      %v2902 = vshrl.u32 %v1742, 16
      %v2904 = vrot.slane %v2902, 3
      %v2905 = vshll.u32 %v1742, 16
      %v2907 = vrot.slane %v2905, 4
      %v2908 = vor.u32 %v2904, %v2907
      %v2909 = vsel %vm1554, %v2899, %v2908
      %v2911 = vshrl.u32 %v1743, 16
      %v2913 = vrot.slane %v2911, 3
      %v2914 = vshll.u32 %v1743, 16
      %v2916 = vrot.slane %v2914, 4
      %v2917 = vor.u32 %v2913, %v2916
      %v2918 = vsel %vm1554, %v2908, %v2917
      %v2920 = vshrl.u32 %v1744, 16
      %v2922 = vrot.slane %v2920, 3
      %v2923 = vshll.u32 %v1744, 16
      %v2925 = vrot.slane %v2923, 4
      %v2926 = vor.u32 %v2922, %v2925
      %v2927 = vsel %vm1554, %v2917, %v2926
      %v2929 = vshrl.u32 %v1745, 16
      %v2931 = vrot.slane %v2929, 3
      %v2932 = vshll.u32 %v1745, 16
      %v2934 = vrot.slane %v2932, 4
      %v2935 = vor.u32 %v2931, %v2934
      %v2936 = vsel %vm1554, %v2926, %v2935
      %v2938 = vshrl.u32 %v1746, 16
      %v2940 = vrot.slane %v2938, 3
      %v2941 = vshll.u32 %v1746, 16
      %v2943 = vrot.slane %v2941, 4
      %v2944 = vor.u32 %v2940, %v2943
      %v2945 = vsel %vm1554, %v2935, %v2944
      %v2947 = vshrl.u32 %v1747, 16
      %v2949 = vrot.slane %v2947, 3
      %v2950 = vshll.u32 %v1747, 16
      %v2952 = vrot.slane %v2950, 4
      %v2953 = vor.u32 %v2949, %v2952
      %v2954 = vsel %vm1554, %v2944, %v2953
      %v2956 = vshrl.u32 %v1748, 16
      %v2958 = vrot.slane %v2956, 3
      %v2959 = vshll.u32 %v1748, 16
      %v2961 = vrot.slane %v2959, 4
      %v2962 = vor.u32 %v2958, %v2961
      %v2963 = vsel %vm1554, %v2953, %v2962
      %v2965 = vshrl.u32 %v1749, 16
      %v2967 = vrot.slane %v2965, 3
      %v2968 = vshll.u32 %v1749, 16
      %v2970 = vrot.slane %v2968, 4
      %v2971 = vor.u32 %v2967, %v2970
      %v2972 = vsel %vm1554, %v2962, %v2971
      %v2974 = vshrl.u32 %v1750, 16
      %v2976 = vrot.slane %v2974, 3
      %v2977 = vshll.u32 %v1750, 16
      %v2979 = vrot.slane %v2977, 4
      %v2980 = vor.u32 %v2976, %v2979
      %v2981 = vsel %vm1554, %v2971, %v2980
      %v2983 = vshrl.u32 %v1751, 16
      %v2985 = vrot.slane %v2983, 3
      %v2986 = vshll.u32 %v1751, 16
      %v2988 = vrot.slane %v2986, 4
      %v2989 = vor.u32 %v2985, %v2988
      %v2990 = vsel %vm1554, %v2980, %v2989
      %v2992 = vsel %vm1863, %v2855, 0
      %v2995 = vsel %vm1863, %v2864, 0
      %v2998 = vsel %vm1863, %v2873, 0
      %v3001 = vsel %vm1863, %v2882, 0
      %v3004 = vsel %vm1863, %v2891, 0
      %v3007 = vsel %vm1863, %v2900, 0
      %v3010 = vsel %vm1863, %v2909, 0
      %v3013 = vsel %vm1863, %v2918, 0
      %v3016 = vsel %vm1863, %v2927, 0
      %v3019 = vsel %vm1863, %v2936, 0
      %v3022 = vsel %vm1863, %v2945, 0
      %v3025 = vsel %vm1863, %v2954, 0
      %v3028 = vsel %vm1863, %v2963, 0
      %v3031 = vsel %vm1863, %v2972, 0
      %v3034 = vsel %vm1863, %v2981, 0
      %v3037 = vsel %vm1863, %v2990, 0
      %v3040 = vsel %vm1912, %v2838, 0
      %3042 = vmatprep.subr.bf16.mxu0 0
      %3043 = vmatpush1.bf16.msra.mxu0 %v3040
      %3044 = vmatprep.subr.bf16.mxu0 0
      %3045 = vmatpush1.bf16.msra.mxu0 0
      %3046 = vmatprep.subr.bf16.mxu0 0
      %3047 = vmatpush1.bf16.msra.mxu0 0
      %3048 = vmatprep.subr.bf16.mxu0 0
      %3049 = vmatpush1.bf16.msra.mxu0 0
      %3050 = vmatprep.subr.bf16.mxu0 0
      %3051 = vmatpush1.bf16.msra.mxu0 0
      %3052 = vmatprep.subr.bf16.mxu0 0
      %3053 = vmatpush1.bf16.msra.mxu0 0
      %3054 = vmatprep.subr.bf16.mxu0 0
      %3055 = vmatpush1.bf16.msra.mxu0 0
      %3056 = vmatprep.subr.bf16.mxu0 0
      %3057 = vmatpush1.bf16.msra.mxu0 0
      %3058 = vmatprep.subr.bf16.mxu0 0
      %3059 = vmatpush1.bf16.msra.mxu0 0
      %3060 = vmatprep.subr.bf16.mxu0 0
      %3061 = vmatpush1.bf16.msra.mxu0 0
      %3062 = vmatprep.subr.bf16.mxu0 0
      %3063 = vmatpush1.bf16.msra.mxu0 0
      %3064 = vmatprep.subr.bf16.mxu0 0
      %3065 = vmatpush1.bf16.msra.mxu0 0
      %3066 = vmatprep.subr.bf16.mxu0 0
      %3067 = vmatpush1.bf16.msra.mxu0 0
      %3068 = vmatprep.subr.bf16.mxu0 0
      %3069 = vmatpush1.bf16.msra.mxu0 0
      %3070 = vmatprep.subr.bf16.mxu0 0
      %3071 = vmatpush1.bf16.msra.mxu0 0
      %3072 = vmatprep.subr.bf16.mxu0 0
      %3073 = vmatpush1.bf16.msra.mxu0 0
      %3074 = vmatprep.mubr.bf16.mxu0 0
      %3075 = vmatmul.mubr.bf16.gmra.mrb[0].mxu0 %v2992
      %v3076 = vpop.f32.mrb[0].mxu0
      %v3077 = vadd.f32 0.0, %v3076
      %v3078 = vpop.f32.mrb[0].mxu0
      %v3079 = vpop.f32.mrb[0].mxu0
      %v3080 = vadd.f32 0.0, %v3079
      %v3081 = vpop.f32.mrb[0].mxu0
      %3082 = vmatprep.mubr.bf16.mxu0 0
      %3083 = vmatmul.mubr.bf16.gmra.mrb[0].mxu0 %v2995
      %v3084 = vpop.f32.mrb[0].mxu0
      %v3085 = vadd.f32 0.0, %v3084
      %v3086 = vpop.f32.mrb[0].mxu0
      %v3087 = vpop.f32.mrb[0].mxu0
      %v3088 = vadd.f32 0.0, %v3087
      %v3089 = vpop.f32.mrb[0].mxu0
      %3090 = vmatprep.mubr.bf16.mxu0 0
      %3091 = vmatmul.mubr.bf16.gmra.mrb[0].mxu0 %v2998
      %v3092 = vpop.f32.mrb[0].mxu0
      %v3093 = vadd.f32 0.0, %v3092
      %v3094 = vpop.f32.mrb[0].mxu0
      %v3095 = vpop.f32.mrb[0].mxu0
      %v3096 = vadd.f32 0.0, %v3095
      %v3097 = vpop.f32.mrb[0].mxu0
      %3098 = vmatprep.mubr.bf16.mxu0 0
      %3099 = vmatmul.mubr.bf16.gmra.mrb[0].mxu0 %v3001
      %v3100 = vpop.f32.mrb[0].mxu0
      %v3101 = vadd.f32 0.0, %v3100
      %v3102 = vpop.f32.mrb[0].mxu0
      %v3103 = vpop.f32.mrb[0].mxu0
      %v3104 = vadd.f32 0.0, %v3103
      %v3105 = vpop.f32.mrb[0].mxu0
      %3106 = vmatprep.mubr.bf16.mxu0 0
      %3107 = vmatmul.mubr.bf16.gmra.mrb[0].mxu0 %v3004
      %v3108 = vpop.f32.mrb[0].mxu0
      %v3109 = vadd.f32 0.0, %v3108
      %v3110 = vpop.f32.mrb[0].mxu0
      %v3111 = vpop.f32.mrb[0].mxu0
      %v3112 = vadd.f32 0.0, %v3111
      %v3113 = vpop.f32.mrb[0].mxu0
      %3114 = vmatprep.mubr.bf16.mxu0 0
      %3115 = vmatmul.mubr.bf16.gmra.mrb[0].mxu0 %v3007
      %v3116 = vpop.f32.mrb[0].mxu0
      %v3117 = vadd.f32 0.0, %v3116
      %v3118 = vpop.f32.mrb[0].mxu0
      %v3119 = vpop.f32.mrb[0].mxu0
      %v3120 = vadd.f32 0.0, %v3119
      %v3121 = vpop.f32.mrb[0].mxu0
      %3122 = vmatprep.mubr.bf16.mxu0 0
      %3123 = vmatmul.mubr.bf16.gmra.mrb[0].mxu0 %v3010
      %v3124 = vpop.f32.mrb[0].mxu0
      %v3125 = vadd.f32 0.0, %v3124
      %v3126 = vpop.f32.mrb[0].mxu0
      %v3127 = vpop.f32.mrb[0].mxu0
      %v3128 = vadd.f32 0.0, %v3127
      %v3129 = vpop.f32.mrb[0].mxu0
      %3130 = vmatprep.mubr.bf16.mxu0 0
      %3131 = vmatmul.mubr.bf16.gmra.mrb[0].mxu0 %v3013
      %v3132 = vpop.f32.mrb[0].mxu0
      %v3133 = vadd.f32 0.0, %v3132
      %v3134 = vpop.f32.mrb[0].mxu0
      %v3135 = vpop.f32.mrb[0].mxu0
      %v3136 = vadd.f32 0.0, %v3135
      %v3137 = vpop.f32.mrb[0].mxu0
      %3138 = vmatprep.mubr.bf16.mxu0 0
      %3139 = vmatmul.mubr.bf16.gmra.mrb[0].mxu0 %v3016
      %v3140 = vpop.f32.mrb[0].mxu0
      %v3141 = vadd.f32 0.0, %v3140
      %v3142 = vpop.f32.mrb[0].mxu0
      %v3143 = vpop.f32.mrb[0].mxu0
      %v3144 = vadd.f32 0.0, %v3143
      %v3145 = vpop.f32.mrb[0].mxu0
      %3146 = vmatprep.mubr.bf16.mxu0 0
      %3147 = vmatmul.mubr.bf16.gmra.mrb[0].mxu0 %v3019
      %v3148 = vpop.f32.mrb[0].mxu0
      %v3149 = vadd.f32 0.0, %v3148
      %v3150 = vpop.f32.mrb[0].mxu0
      %v3151 = vpop.f32.mrb[0].mxu0
      %v3152 = vadd.f32 0.0, %v3151
      %v3153 = vpop.f32.mrb[0].mxu0
      %3154 = vmatprep.mubr.bf16.mxu0 0
      %3155 = vmatmul.mubr.bf16.gmra.mrb[0].mxu0 %v3022
      %v3156 = vpop.f32.mrb[0].mxu0
      %v3157 = vadd.f32 0.0, %v3156
      %v3158 = vpop.f32.mrb[0].mxu0
      %v3159 = vpop.f32.mrb[0].mxu0
      %v3160 = vadd.f32 0.0, %v3159
      %v3161 = vpop.f32.mrb[0].mxu0
      %3162 = vmatprep.mubr.bf16.mxu0 0
      %3163 = vmatmul.mubr.bf16.gmra.mrb[0].mxu0 %v3025
      %v3164 = vpop.f32.mrb[0].mxu0
      %v3165 = vadd.f32 0.0, %v3164
      %v3166 = vpop.f32.mrb[0].mxu0
      %v3167 = vpop.f32.mrb[0].mxu0
      %v3168 = vadd.f32 0.0, %v3167
      %v3169 = vpop.f32.mrb[0].mxu0
      %3170 = vmatprep.mubr.bf16.mxu0 0
      %3171 = vmatmul.mubr.bf16.gmra.mrb[0].mxu0 %v3028
      %v3172 = vpop.f32.mrb[0].mxu0
      %v3173 = vadd.f32 0.0, %v3172
      %v3174 = vpop.f32.mrb[0].mxu0
      %v3175 = vpop.f32.mrb[0].mxu0
      %v3176 = vadd.f32 0.0, %v3175
      %v3177 = vpop.f32.mrb[0].mxu0
      %3178 = vmatprep.mubr.bf16.mxu0 0
      %3179 = vmatmul.mubr.bf16.gmra.mrb[0].mxu0 %v3031
      %v3180 = vpop.f32.mrb[0].mxu0
      %v3181 = vadd.f32 0.0, %v3180
      %v3182 = vpop.f32.mrb[0].mxu0
      %v3183 = vpop.f32.mrb[0].mxu0
      %v3184 = vadd.f32 0.0, %v3183
      %v3185 = vpop.f32.mrb[0].mxu0
      %3186 = vmatprep.mubr.bf16.mxu0 0
      %3187 = vmatmul.mubr.bf16.gmra.mrb[0].mxu0 %v3034
      %v3188 = vpop.f32.mrb[0].mxu0
      %v3189 = vadd.f32 0.0, %v3188
      %v3190 = vpop.f32.mrb[0].mxu0
      %v3191 = vpop.f32.mrb[0].mxu0
      %v3192 = vadd.f32 0.0, %v3191
      %v3193 = vpop.f32.mrb[0].mxu0
      %3194 = vmatprep.mubr.bf16.mxu0 0
      %3195 = vmatmul.mubr.bf16.gmra.mrb[0].mxu0 %v3037
      %v3196 = vpop.f32.mrb[0].mxu0
      %v3197 = vadd.f32 0.0, %v3196
      %v3198 = vpop.f32.mrb[0].mxu0
      %v3199 = vpop.f32.mrb[0].mxu0
      %v3200 = vadd.f32 0.0, %v3199
      %v3201 = vpop.f32.mrb[0].mxu0
      %3202 = vdwg.mxu0
      %v3203 = vadd.f32 %v2806, %v3077
      %v3204 = vadd.f32 %v2807, %v3080
      %v3205 = vadd.f32 %v2808, %v3085
      %v3206 = vadd.f32 %v2809, %v3088
      %v3207 = vadd.f32 %v2810, %v3093
      %v3208 = vadd.f32 %v2811, %v3096
      %v3209 = vadd.f32 %v2812, %v3101
      %v3210 = vadd.f32 %v2813, %v3104
      %v3211 = vadd.f32 %v2814, %v3109
      %v3212 = vadd.f32 %v2815, %v3112
      %v3213 = vadd.f32 %v2816, %v3117
      %v3214 = vadd.f32 %v2817, %v3120
      %v3215 = vadd.f32 %v2818, %v3125
      %v3216 = vadd.f32 %v2819, %v3128
      %v3217 = vadd.f32 %v2820, %v3133
      %v3218 = vadd.f32 %v2821, %v3136
      %v3219 = vadd.f32 %v2822, %v3141
      %v3220 = vadd.f32 %v2823, %v3144
      %v3221 = vadd.f32 %v2824, %v3149
      %v3222 = vadd.f32 %v2825, %v3152
      %v3223 = vadd.f32 %v2826, %v3157
      %v3224 = vadd.f32 %v2827, %v3160
      %v3225 = vadd.f32 %v2828, %v3165
      %v3226 = vadd.f32 %v2829, %v3168
      %v3227 = vadd.f32 %v2830, %v3173
      %v3228 = vadd.f32 %v2831, %v3176
      %v3229 = vadd.f32 %v2832, %v3181
      %v3230 = vadd.f32 %v2833, %v3184
      %v3231 = vadd.f32 %v2834, %v3189
      %v3232 = vadd.f32 %v2835, %v3192
      %v3233 = vadd.f32 %v2836, %v3197
      %v3234 = vadd.f32 %v2837, %v3200
      %v3235 = vld [vmem:[%s308 + $0x10] sm:$0xf]
      %v3239 = vrot.slane %v1752, 4
      %v3240 = vsel %vm1829, %v3239, %v1833
      %v3241 = vrot.slane %v1733, 4
      %v3242 = vsel %vm1829, %v1859, %v3241
      %v3243 = vrot.slane %v1734, 4
      %v3244 = vsel %vm1829, %v3241, %v3243
      %v3246 = vsel %vm1863, %v3240, 0
      %v3249 = vsel %vm1863, %v3242, 0
      %v3252 = vsel %vm1863, %v3244, 0
      %v3255 = vsel %vm1912, %v3235, 0
      %3257 = vmatprep.subr.bf16.mxu0 0
      %3258 = vmatpush1.bf16.msra.mxu0 %v3255
      %3259 = vmatprep.subr.bf16.mxu0 0
      %3260 = vmatpush1.bf16.msra.mxu0 0
      %3261 = vmatprep.subr.bf16.mxu0 0
      %3262 = vmatpush1.bf16.msra.mxu0 0
      %3263 = vmatprep.subr.bf16.mxu0 0
      %3264 = vmatpush1.bf16.msra.mxu0 0
      %3265 = vmatprep.subr.bf16.mxu0 0
      %3266 = vmatpush1.bf16.msra.mxu0 0
      %3267 = vmatprep.subr.bf16.mxu0 0
      %3268 = vmatpush1.bf16.msra.mxu0 0
      %3269 = vmatprep.subr.bf16.mxu0 0
      %3270 = vmatpush1.bf16.msra.mxu0 0
      %3271 = vmatprep.subr.bf16.mxu0 0
      %3272 = vmatpush1.bf16.msra.mxu0 0
      %3273 = vmatprep.subr.bf16.mxu0 0
      %3274 = vmatpush1.bf16.msra.mxu0 0
      %3275 = vmatprep.subr.bf16.mxu0 0
      %3276 = vmatpush1.bf16.msra.mxu0 0
      %3277 = vmatprep.subr.bf16.mxu0 0
      %3278 = vmatpush1.bf16.msra.mxu0 0
      %3279 = vmatprep.subr.bf16.mxu0 0
      %3280 = vmatpush1.bf16.msra.mxu0 0
      %3281 = vmatprep.subr.bf16.mxu0 0
      %3282 = vmatpush1.bf16.msra.mxu0 0
      %3283 = vmatprep.subr.bf16.mxu0 0
      %3284 = vmatpush1.bf16.msra.mxu0 0
      %3285 = vmatprep.subr.bf16.mxu0 0
      %3286 = vmatpush1.bf16.msra.mxu0 0
      %3287 = vmatprep.subr.bf16.mxu0 0
      %3288 = vmatpush1.bf16.msra.mxu0 0
      %3289 = vmatprep.mubr.bf16.mxu0 0
      %3290 = vmatmul.mubr.bf16.gmra.mrb[0].mxu0 %v3246
      %v3291 = vpop.f32.mrb[0].mxu0
      %v3292 = vadd.f32 0.0, %v3291
      %v3293 = vpop.f32.mrb[0].mxu0
      %v3294 = vpop.f32.mrb[0].mxu0
      %v3295 = vadd.f32 0.0, %v3294
      %v3296 = vpop.f32.mrb[0].mxu0
      %3297 = vmatprep.mubr.bf16.mxu0 0
      %3298 = vmatmul.mubr.bf16.gmra.mrb[0].mxu0 %v1871
      %v3299 = vpop.f32.mrb[0].mxu0
      %v3300 = vadd.f32 0.0, %v3299
      %v3301 = vpop.f32.mrb[0].mxu0
      %v3302 = vpop.f32.mrb[0].mxu0
      %v3303 = vadd.f32 0.0, %v3302
      %v3304 = vpop.f32.mrb[0].mxu0
      %3305 = vmatprep.mubr.bf16.mxu0 0
      %3306 = vmatmul.mubr.bf16.gmra.mrb[0].mxu0 %v1874
      %v3307 = vpop.f32.mrb[0].mxu0
      %v3308 = vadd.f32 0.0, %v3307
      %v3309 = vpop.f32.mrb[0].mxu0
      %v3310 = vpop.f32.mrb[0].mxu0
      %v3311 = vadd.f32 0.0, %v3310
      %v3312 = vpop.f32.mrb[0].mxu0
      %3313 = vmatprep.mubr.bf16.mxu0 0
      %3314 = vmatmul.mubr.bf16.gmra.mrb[0].mxu0 %v1877
      %v3315 = vpop.f32.mrb[0].mxu0
      %v3316 = vadd.f32 0.0, %v3315
      %v3317 = vpop.f32.mrb[0].mxu0
      %v3318 = vpop.f32.mrb[0].mxu0
      %v3319 = vadd.f32 0.0, %v3318
      %v3320 = vpop.f32.mrb[0].mxu0
      %3321 = vmatprep.mubr.bf16.mxu0 0
      %3322 = vmatmul.mubr.bf16.gmra.mrb[0].mxu0 %v1880
      %v3323 = vpop.f32.mrb[0].mxu0
      %v3324 = vadd.f32 0.0, %v3323
      %v3325 = vpop.f32.mrb[0].mxu0
      %v3326 = vpop.f32.mrb[0].mxu0
      %v3327 = vadd.f32 0.0, %v3326
      %v3328 = vpop.f32.mrb[0].mxu0
      %3329 = vmatprep.mubr.bf16.mxu0 0
      %3330 = vmatmul.mubr.bf16.gmra.mrb[0].mxu0 %v1883
      %v3331 = vpop.f32.mrb[0].mxu0
      %v3332 = vadd.f32 0.0, %v3331
      %v3333 = vpop.f32.mrb[0].mxu0
      %v3334 = vpop.f32.mrb[0].mxu0
      %v3335 = vadd.f32 0.0, %v3334
      %v3336 = vpop.f32.mrb[0].mxu0
      %3337 = vmatprep.mubr.bf16.mxu0 0
      %3338 = vmatmul.mubr.bf16.gmra.mrb[0].mxu0 %v1886
      %v3339 = vpop.f32.mrb[0].mxu0
      %v3340 = vadd.f32 0.0, %v3339
      %v3341 = vpop.f32.mrb[0].mxu0
      %v3342 = vpop.f32.mrb[0].mxu0
      %v3343 = vadd.f32 0.0, %v3342
      %v3344 = vpop.f32.mrb[0].mxu0
      %3345 = vmatprep.mubr.bf16.mxu0 0
      %3346 = vmatmul.mubr.bf16.gmra.mrb[0].mxu0 %v1889
      %v3347 = vpop.f32.mrb[0].mxu0
      %v3348 = vadd.f32 0.0, %v3347
      %v3349 = vpop.f32.mrb[0].mxu0
      %v3350 = vpop.f32.mrb[0].mxu0
      %v3351 = vadd.f32 0.0, %v3350
      %v3352 = vpop.f32.mrb[0].mxu0
      %3353 = vmatprep.mubr.bf16.mxu0 0
      %3354 = vmatmul.mubr.bf16.gmra.mrb[0].mxu0 %v1892
      %v3355 = vpop.f32.mrb[0].mxu0
      %v3356 = vadd.f32 0.0, %v3355
      %v3357 = vpop.f32.mrb[0].mxu0
      %v3358 = vpop.f32.mrb[0].mxu0
      %v3359 = vadd.f32 0.0, %v3358
      %v3360 = vpop.f32.mrb[0].mxu0
      %3361 = vmatprep.mubr.bf16.mxu0 0
      %3362 = vmatmul.mubr.bf16.gmra.mrb[0].mxu0 %v1895
      %v3363 = vpop.f32.mrb[0].mxu0
      %v3364 = vadd.f32 0.0, %v3363
      %v3365 = vpop.f32.mrb[0].mxu0
      %v3366 = vpop.f32.mrb[0].mxu0
      %v3367 = vadd.f32 0.0, %v3366
      %v3368 = vpop.f32.mrb[0].mxu0
      %3369 = vmatprep.mubr.bf16.mxu0 0
      %3370 = vmatmul.mubr.bf16.gmra.mrb[0].mxu0 %v1898
      %v3371 = vpop.f32.mrb[0].mxu0
      %v3372 = vadd.f32 0.0, %v3371
      %v3373 = vpop.f32.mrb[0].mxu0
      %v3374 = vpop.f32.mrb[0].mxu0
      %v3375 = vadd.f32 0.0, %v3374
      %v3376 = vpop.f32.mrb[0].mxu0
      %3377 = vmatprep.mubr.bf16.mxu0 0
      %3378 = vmatmul.mubr.bf16.gmra.mrb[0].mxu0 %v1901
      %v3379 = vpop.f32.mrb[0].mxu0
      %v3380 = vadd.f32 0.0, %v3379
      %v3381 = vpop.f32.mrb[0].mxu0
      %v3382 = vpop.f32.mrb[0].mxu0
      %v3383 = vadd.f32 0.0, %v3382
      %v3384 = vpop.f32.mrb[0].mxu0
      %3385 = vmatprep.mubr.bf16.mxu0 0
      %3386 = vmatmul.mubr.bf16.gmra.mrb[0].mxu0 %v1904
      %v3387 = vpop.f32.mrb[0].mxu0
      %v3388 = vadd.f32 0.0, %v3387
      %v3389 = vpop.f32.mrb[0].mxu0
      %v3390 = vpop.f32.mrb[0].mxu0
      %v3391 = vadd.f32 0.0, %v3390
      %v3392 = vpop.f32.mrb[0].mxu0
      %3393 = vmatprep.mubr.bf16.mxu0 0
      %3394 = vmatmul.mubr.bf16.gmra.mrb[0].mxu0 %v1907
      %v3395 = vpop.f32.mrb[0].mxu0
      %v3396 = vadd.f32 0.0, %v3395
      %v3397 = vpop.f32.mrb[0].mxu0
      %v3398 = vpop.f32.mrb[0].mxu0
      %v3399 = vadd.f32 0.0, %v3398
      %v3400 = vpop.f32.mrb[0].mxu0
      %3401 = vmatprep.mubr.bf16.mxu0 0
      %3402 = vmatmul.mubr.bf16.gmra.mrb[0].mxu0 %v3249
      %v3403 = vpop.f32.mrb[0].mxu0
      %v3404 = vadd.f32 0.0, %v3403
      %v3405 = vpop.f32.mrb[0].mxu0
      %v3406 = vpop.f32.mrb[0].mxu0
      %v3407 = vadd.f32 0.0, %v3406
      %v3408 = vpop.f32.mrb[0].mxu0
      %3409 = vmatprep.mubr.bf16.mxu0 0
      %3410 = vmatmul.mubr.bf16.gmra.mrb[0].mxu0 %v3252
      %v3411 = vpop.f32.mrb[0].mxu0
      %v3412 = vadd.f32 0.0, %v3411
      %v3413 = vpop.f32.mrb[0].mxu0
      %v3414 = vpop.f32.mrb[0].mxu0
      %v3415 = vadd.f32 0.0, %v3414
      %v3416 = vpop.f32.mrb[0].mxu0
      %3417 = vdwg.mxu0
      %v3418 = vadd.f32 %v3203, %v3292
      %v3419 = vadd.f32 %v3204, %v3295
      %v3420 = vadd.f32 %v3205, %v3300
      %v3421 = vadd.f32 %v3206, %v3303
      %v3422 = vadd.f32 %v3207, %v3308
      %v3423 = vadd.f32 %v3208, %v3311
      %v3424 = vadd.f32 %v3209, %v3316
      %v3425 = vadd.f32 %v3210, %v3319
      %v3426 = vadd.f32 %v3211, %v3324
      %v3427 = vadd.f32 %v3212, %v3327
      %v3428 = vadd.f32 %v3213, %v3332
      %v3429 = vadd.f32 %v3214, %v3335
      %v3430 = vadd.f32 %v3215, %v3340
      %v3431 = vadd.f32 %v3216, %v3343
      %v3432 = vadd.f32 %v3217, %v3348
      %v3433 = vadd.f32 %v3218, %v3351
      %v3434 = vadd.f32 %v3219, %v3356
      %v3435 = vadd.f32 %v3220, %v3359
      %v3436 = vadd.f32 %v3221, %v3364
      %v3437 = vadd.f32 %v3222, %v3367
      %v3438 = vadd.f32 %v3223, %v3372
      %v3439 = vadd.f32 %v3224, %v3375
      %v3440 = vadd.f32 %v3225, %v3380
      %v3441 = vadd.f32 %v3226, %v3383
      %v3442 = vadd.f32 %v3227, %v3388
      %v3443 = vadd.f32 %v3228, %v3391
      %v3444 = vadd.f32 %v3229, %v3396
      %v3445 = vadd.f32 %v3230, %v3399
      %v3446 = vadd.f32 %v3231, %v3404
      %v3447 = vadd.f32 %v3232, %v3407
      %v3448 = vadd.f32 %v3233, %v3412
      %v3449 = vadd.f32 %v3234, %v3415
      %v3450 = vld [vmem:[%s308 + $0x14] sm:$0xf]
      %v3452 = vshrl.u32 %v1754, 16
      %v3454 = vrot.slane %v3452, 4
      %v3455 = vshll.u32 %v1754, 16
      %v3457 = vrot.slane %v3455, 5
      %v3458 = vor.u32 %v3454, %v3457
      %v3460 = vshrl.u32 %v1755, 16
      %v3462 = vrot.slane %v3460, 4
      %v3463 = vshll.u32 %v1755, 16
      %v3465 = vrot.slane %v3463, 5
      %v3466 = vor.u32 %v3462, %v3465
      %v3467 = vsel %vm1198, %v3458, %v3466
      %v3469 = vshrl.u32 %v1756, 16
      %v3471 = vrot.slane %v3469, 4
      %v3472 = vshll.u32 %v1756, 16
      %v3474 = vrot.slane %v3472, 5
      %v3475 = vor.u32 %v3471, %v3474
      %v3476 = vsel %vm1198, %v3466, %v3475
      %v3478 = vshrl.u32 %v1757, 16
      %v3480 = vrot.slane %v3478, 4
      %v3481 = vshll.u32 %v1757, 16
      %v3483 = vrot.slane %v3481, 5
      %v3484 = vor.u32 %v3480, %v3483
      %v3485 = vsel %vm1198, %v3475, %v3484
      %v3487 = vshrl.u32 %v1758, 16
      %v3489 = vrot.slane %v3487, 4
      %v3490 = vshll.u32 %v1758, 16
      %v3492 = vrot.slane %v3490, 5
      %v3493 = vor.u32 %v3489, %v3492
      %v3494 = vsel %vm1198, %v3484, %v3493
      %v3496 = vshrl.u32 %v1759, 16
      %v3498 = vrot.slane %v3496, 4
      %v3499 = vshll.u32 %v1759, 16
      %v3501 = vrot.slane %v3499, 5
      %v3502 = vor.u32 %v3498, %v3501
      %v3503 = vsel %vm1198, %v3493, %v3502
      %v3505 = vshrl.u32 %v1760, 16
      %v3507 = vrot.slane %v3505, 4
      %v3508 = vshll.u32 %v1760, 16
      %v3510 = vrot.slane %v3508, 5
      %v3511 = vor.u32 %v3507, %v3510
      %v3512 = vsel %vm1198, %v3502, %v3511
      %v3514 = vshrl.u32 %v1761, 16
      %v3516 = vrot.slane %v3514, 4
      %v3517 = vshll.u32 %v1761, 16
      %v3519 = vrot.slane %v3517, 5
      %v3520 = vor.u32 %v3516, %v3519
      %v3521 = vsel %vm1198, %v3511, %v3520
      %v3523 = vshrl.u32 %v1762, 16
      %v3525 = vrot.slane %v3523, 4
      %v3526 = vshll.u32 %v1762, 16
      %v3528 = vrot.slane %v3526, 5
      %v3529 = vor.u32 %v3525, %v3528
      %v3530 = vsel %vm1198, %v3520, %v3529
      %v3532 = vshrl.u32 %v1763, 16
      %v3534 = vrot.slane %v3532, 4
      %v3535 = vshll.u32 %v1763, 16
      %v3537 = vrot.slane %v3535, 5
      %v3538 = vor.u32 %v3534, %v3537
      %v3539 = vsel %vm1198, %v3529, %v3538
      %v3541 = vshrl.u32 %v1764, 16
      %v3543 = vrot.slane %v3541, 4
      %v3544 = vshll.u32 %v1764, 16
      %v3546 = vrot.slane %v3544, 5
      %v3547 = vor.u32 %v3543, %v3546
      %v3548 = vsel %vm1198, %v3538, %v3547
      %v3550 = vshrl.u32 %v1765, 16
      %v3552 = vrot.slane %v3550, 4
      %v3553 = vshll.u32 %v1765, 16
      %v3555 = vrot.slane %v3553, 5
      %v3556 = vor.u32 %v3552, %v3555
      %v3557 = vsel %vm1198, %v3547, %v3556
      %v3559 = vshrl.u32 %v1766, 16
      %v3561 = vrot.slane %v3559, 4
      %v3562 = vshll.u32 %v1766, 16
      %v3564 = vrot.slane %v3562, 5
      %v3565 = vor.u32 %v3561, %v3564
      %v3566 = vsel %vm1198, %v3556, %v3565
      %v3568 = vshrl.u32 %v1767, 16
      %v3570 = vrot.slane %v3568, 4
      %v3571 = vshll.u32 %v1767, 16
      %v3573 = vrot.slane %v3571, 5
      %v3574 = vor.u32 %v3570, %v3573
      %v3575 = vsel %vm1198, %v3565, %v3574
      %v3577 = vshrl.u32 %v1768, 16
      %v3579 = vrot.slane %v3577, 4
      %v3580 = vshll.u32 %v1768, 16
      %v3582 = vrot.slane %v3580, 5
      %v3583 = vor.u32 %v3579, %v3582
      %v3584 = vsel %vm1198, %v3574, %v3583
      %v3586 = vshrl.u32 %v1769, 16
      %v3588 = vrot.slane %v3586, 4
      %v3589 = vshll.u32 %v1769, 16
      %v3591 = vrot.slane %v3589, 5
      %v3592 = vor.u32 %v3588, %v3591
      %v3593 = vsel %vm1198, %v3583, %v3592
      %v3595 = vshrl.u32 %v1770, 16
      %v3597 = vrot.slane %v3595, 4
      %v3598 = vshll.u32 %v1770, 16
      %v3600 = vrot.slane %v3598, 5
      %v3601 = vor.u32 %v3597, %v3600
      %v3602 = vsel %vm1198, %v3592, %v3601
      %v3604 = vsel %vm1863, %v3467, 0
      %v3607 = vsel %vm1863, %v3476, 0
      %v3610 = vsel %vm1863, %v3485, 0
      %v3613 = vsel %vm1863, %v3494, 0
      %v3616 = vsel %vm1863, %v3503, 0
      %v3619 = vsel %vm1863, %v3512, 0
      %v3622 = vsel %vm1863, %v3521, 0
      %v3625 = vsel %vm1863, %v3530, 0
      %v3628 = vsel %vm1863, %v3539, 0
      %v3631 = vsel %vm1863, %v3548, 0
      %v3634 = vsel %vm1863, %v3557, 0
      %v3637 = vsel %vm1863, %v3566, 0
      %v3640 = vsel %vm1863, %v3575, 0
      %v3643 = vsel %vm1863, %v3584, 0
      %v3646 = vsel %vm1863, %v3593, 0
      %v3649 = vsel %vm1863, %v3602, 0
      %v3652 = vsel %vm1912, %v3450, 0
      %3654 = vmatprep.subr.bf16.mxu0 0
      %3655 = vmatpush1.bf16.msra.mxu0 %v3652
      %3656 = vmatprep.subr.bf16.mxu0 0
      %3657 = vmatpush1.bf16.msra.mxu0 0
      %3658 = vmatprep.subr.bf16.mxu0 0
      %3659 = vmatpush1.bf16.msra.mxu0 0
      %3660 = vmatprep.subr.bf16.mxu0 0
      %3661 = vmatpush1.bf16.msra.mxu0 0
      %3662 = vmatprep.subr.bf16.mxu0 0
      %3663 = vmatpush1.bf16.msra.mxu0 0
      %3664 = vmatprep.subr.bf16.mxu0 0
      %3665 = vmatpush1.bf16.msra.mxu0 0
      %3666 = vmatprep.subr.bf16.mxu0 0
      %3667 = vmatpush1.bf16.msra.mxu0 0
      %3668 = vmatprep.subr.bf16.mxu0 0
      %3669 = vmatpush1.bf16.msra.mxu0 0
      %3670 = vmatprep.subr.bf16.mxu0 0
      %3671 = vmatpush1.bf16.msra.mxu0 0
      %3672 = vmatprep.subr.bf16.mxu0 0
      %3673 = vmatpush1.bf16.msra.mxu0 0
      %3674 = vmatprep.subr.bf16.mxu0 0
      %3675 = vmatpush1.bf16.msra.mxu0 0
      %3676 = vmatprep.subr.bf16.mxu0 0
      %3677 = vmatpush1.bf16.msra.mxu0 0
      %3678 = vmatprep.subr.bf16.mxu0 0
      %3679 = vmatpush1.bf16.msra.mxu0 0
      %3680 = vmatprep.subr.bf16.mxu0 0
      %3681 = vmatpush1.bf16.msra.mxu0 0
      %3682 = vmatprep.subr.bf16.mxu0 0
      %3683 = vmatpush1.bf16.msra.mxu0 0
      %3684 = vmatprep.subr.bf16.mxu0 0
      %3685 = vmatpush1.bf16.msra.mxu0 0
      %3686 = vmatprep.mubr.bf16.mxu0 0
      %3687 = vmatmul.mubr.bf16.gmra.mrb[0].mxu0 %v3604
      %v3688 = vpop.f32.mrb[0].mxu0
      %v3689 = vadd.f32 0.0, %v3688
      %v3690 = vpop.f32.mrb[0].mxu0
      %v3691 = vpop.f32.mrb[0].mxu0
      %v3692 = vadd.f32 0.0, %v3691
      %v3693 = vpop.f32.mrb[0].mxu0
      %3694 = vmatprep.mubr.bf16.mxu0 0
      %3695 = vmatmul.mubr.bf16.gmra.mrb[0].mxu0 %v3607
      %v3696 = vpop.f32.mrb[0].mxu0
      %v3697 = vadd.f32 0.0, %v3696
      %v3698 = vpop.f32.mrb[0].mxu0
      %v3699 = vpop.f32.mrb[0].mxu0
      %v3700 = vadd.f32 0.0, %v3699
      %v3701 = vpop.f32.mrb[0].mxu0
      %3702 = vmatprep.mubr.bf16.mxu0 0
      %3703 = vmatmul.mubr.bf16.gmra.mrb[0].mxu0 %v3610
      %v3704 = vpop.f32.mrb[0].mxu0
      %v3705 = vadd.f32 0.0, %v3704
      %v3706 = vpop.f32.mrb[0].mxu0
      %v3707 = vpop.f32.mrb[0].mxu0
      %v3708 = vadd.f32 0.0, %v3707
      %v3709 = vpop.f32.mrb[0].mxu0
      %3710 = vmatprep.mubr.bf16.mxu0 0
      %3711 = vmatmul.mubr.bf16.gmra.mrb[0].mxu0 %v3613
      %v3712 = vpop.f32.mrb[0].mxu0
      %v3713 = vadd.f32 0.0, %v3712
      %v3714 = vpop.f32.mrb[0].mxu0
      %v3715 = vpop.f32.mrb[0].mxu0
      %v3716 = vadd.f32 0.0, %v3715
      %v3717 = vpop.f32.mrb[0].mxu0
      %3718 = vmatprep.mubr.bf16.mxu0 0
      %3719 = vmatmul.mubr.bf16.gmra.mrb[0].mxu0 %v3616
      %v3720 = vpop.f32.mrb[0].mxu0
      %v3721 = vadd.f32 0.0, %v3720
      %v3722 = vpop.f32.mrb[0].mxu0
      %v3723 = vpop.f32.mrb[0].mxu0
      %v3724 = vadd.f32 0.0, %v3723
      %v3725 = vpop.f32.mrb[0].mxu0
      %3726 = vmatprep.mubr.bf16.mxu0 0
      %3727 = vmatmul.mubr.bf16.gmra.mrb[0].mxu0 %v3619
      %v3728 = vpop.f32.mrb[0].mxu0
      %v3729 = vadd.f32 0.0, %v3728
      %v3730 = vpop.f32.mrb[0].mxu0
      %v3731 = vpop.f32.mrb[0].mxu0
      %v3732 = vadd.f32 0.0, %v3731
      %v3733 = vpop.f32.mrb[0].mxu0
      %3734 = vmatprep.mubr.bf16.mxu0 0
      %3735 = vmatmul.mubr.bf16.gmra.mrb[0].mxu0 %v3622
      %v3736 = vpop.f32.mrb[0].mxu0
      %v3737 = vadd.f32 0.0, %v3736
      %v3738 = vpop.f32.mrb[0].mxu0
      %v3739 = vpop.f32.mrb[0].mxu0
      %v3740 = vadd.f32 0.0, %v3739
      %v3741 = vpop.f32.mrb[0].mxu0
      %3742 = vmatprep.mubr.bf16.mxu0 0
      %3743 = vmatmul.mubr.bf16.gmra.mrb[0].mxu0 %v3625
      %v3744 = vpop.f32.mrb[0].mxu0
      %v3745 = vadd.f32 0.0, %v3744
      %v3746 = vpop.f32.mrb[0].mxu0
      %v3747 = vpop.f32.mrb[0].mxu0
      %v3748 = vadd.f32 0.0, %v3747
      %v3749 = vpop.f32.mrb[0].mxu0
      %3750 = vmatprep.mubr.bf16.mxu0 0
      %3751 = vmatmul.mubr.bf16.gmra.mrb[0].mxu0 %v3628
      %v3752 = vpop.f32.mrb[0].mxu0
      %v3753 = vadd.f32 0.0, %v3752
      %v3754 = vpop.f32.mrb[0].mxu0
      %v3755 = vpop.f32.mrb[0].mxu0
      %v3756 = vadd.f32 0.0, %v3755
      %v3757 = vpop.f32.mrb[0].mxu0
      %3758 = vmatprep.mubr.bf16.mxu0 0
      %3759 = vmatmul.mubr.bf16.gmra.mrb[0].mxu0 %v3631
      %v3760 = vpop.f32.mrb[0].mxu0
      %v3761 = vadd.f32 0.0, %v3760
      %v3762 = vpop.f32.mrb[0].mxu0
      %v3763 = vpop.f32.mrb[0].mxu0
      %v3764 = vadd.f32 0.0, %v3763
      %v3765 = vpop.f32.mrb[0].mxu0
      %3766 = vmatprep.mubr.bf16.mxu0 0
      %3767 = vmatmul.mubr.bf16.gmra.mrb[0].mxu0 %v3634
      %v3768 = vpop.f32.mrb[0].mxu0
      %v3769 = vadd.f32 0.0, %v3768
      %v3770 = vpop.f32.mrb[0].mxu0
      %v3771 = vpop.f32.mrb[0].mxu0
      %v3772 = vadd.f32 0.0, %v3771
      %v3773 = vpop.f32.mrb[0].mxu0
      %3774 = vmatprep.mubr.bf16.mxu0 0
      %3775 = vmatmul.mubr.bf16.gmra.mrb[0].mxu0 %v3637
      %v3776 = vpop.f32.mrb[0].mxu0
      %v3777 = vadd.f32 0.0, %v3776
      %v3778 = vpop.f32.mrb[0].mxu0
      %v3779 = vpop.f32.mrb[0].mxu0
      %v3780 = vadd.f32 0.0, %v3779
      %v3781 = vpop.f32.mrb[0].mxu0
      %3782 = vmatprep.mubr.bf16.mxu0 0
      %3783 = vmatmul.mubr.bf16.gmra.mrb[0].mxu0 %v3640
      %v3784 = vpop.f32.mrb[0].mxu0
      %v3785 = vadd.f32 0.0, %v3784
      %v3786 = vpop.f32.mrb[0].mxu0
      %v3787 = vpop.f32.mrb[0].mxu0
      %v3788 = vadd.f32 0.0, %v3787
      %v3789 = vpop.f32.mrb[0].mxu0
      %3790 = vmatprep.mubr.bf16.mxu0 0
      %3791 = vmatmul.mubr.bf16.gmra.mrb[0].mxu0 %v3643
      %v3792 = vpop.f32.mrb[0].mxu0
      %v3793 = vadd.f32 0.0, %v3792
      %v3794 = vpop.f32.mrb[0].mxu0
      %v3795 = vpop.f32.mrb[0].mxu0
      %v3796 = vadd.f32 0.0, %v3795
      %v3797 = vpop.f32.mrb[0].mxu0
      %3798 = vmatprep.mubr.bf16.mxu0 0
      %3799 = vmatmul.mubr.bf16.gmra.mrb[0].mxu0 %v3646
      %v3800 = vpop.f32.mrb[0].mxu0
      %v3801 = vadd.f32 0.0, %v3800
      %v3802 = vpop.f32.mrb[0].mxu0
      %v3803 = vpop.f32.mrb[0].mxu0
      %v3804 = vadd.f32 0.0, %v3803
      %v3805 = vpop.f32.mrb[0].mxu0
      %3806 = vmatprep.mubr.bf16.mxu0 0
      %3807 = vmatmul.mubr.bf16.gmra.mrb[0].mxu0 %v3649
      %v3808 = vpop.f32.mrb[0].mxu0
      %v3809 = vadd.f32 0.0, %v3808
      %v3810 = vpop.f32.mrb[0].mxu0
      %v3811 = vpop.f32.mrb[0].mxu0
      %v3812 = vadd.f32 0.0, %v3811
      %v3813 = vpop.f32.mrb[0].mxu0
      %3814 = vdwg.mxu0
      %v3815 = vadd.f32 %v3418, %v3689
      %v3816 = vadd.f32 %v3419, %v3692
      %v3817 = vadd.f32 %v3420, %v3697
      %v3818 = vadd.f32 %v3421, %v3700
      %v3819 = vadd.f32 %v3422, %v3705
      %v3820 = vadd.f32 %v3423, %v3708
      %v3821 = vadd.f32 %v3424, %v3713
      %v3822 = vadd.f32 %v3425, %v3716
      %v3823 = vadd.f32 %v3426, %v3721
      %v3824 = vadd.f32 %v3427, %v3724
      %v3825 = vadd.f32 %v3428, %v3729
      %v3826 = vadd.f32 %v3429, %v3732
      %v3827 = vadd.f32 %v3430, %v3737
      %v3828 = vadd.f32 %v3431, %v3740
      %v3829 = vadd.f32 %v3432, %v3745
      %v3830 = vadd.f32 %v3433, %v3748
      %v3831 = vadd.f32 %v3434, %v3753
      %v3832 = vadd.f32 %v3435, %v3756
      %v3833 = vadd.f32 %v3436, %v3761
      %v3834 = vadd.f32 %v3437, %v3764
      %v3835 = vadd.f32 %v3438, %v3769
      %v3836 = vadd.f32 %v3439, %v3772
      %v3837 = vadd.f32 %v3440, %v3777
      %v3838 = vadd.f32 %v3441, %v3780
      %v3839 = vadd.f32 %v3442, %v3785
      %v3840 = vadd.f32 %v3443, %v3788
      %v3841 = vadd.f32 %v3444, %v3793
      %v3842 = vadd.f32 %v3445, %v3796
      %v3843 = vadd.f32 %v3446, %v3801
      %v3844 = vadd.f32 %v3447, %v3804
      %v3845 = vadd.f32 %v3448, %v3809
      %v3846 = vadd.f32 %v3449, %v3812
      %v3847 = vld [vmem:[%s308 + $0x18] sm:$0xf]
      %v3849 = vshrl.u32 %v1774, 16
      %v3851 = vrot.slane %v3849, 3
      %v3852 = vshll.u32 %v1774, 16
      %v3854 = vrot.slane %v3852, 4
      %v3855 = vor.u32 %v3851, %v3854
      %v3857 = vshrl.u32 %v1775, 16
      %v3859 = vrot.slane %v3857, 3
      %v3860 = vshll.u32 %v1775, 16
      %v3862 = vrot.slane %v3860, 4
      %v3863 = vor.u32 %v3859, %v3862
      %v3864 = vsel %vm1554, %v3855, %v3863
      %v3866 = vshrl.u32 %v1776, 16
      %v3868 = vrot.slane %v3866, 3
      %v3869 = vshll.u32 %v1776, 16
      %v3871 = vrot.slane %v3869, 4
      %v3872 = vor.u32 %v3868, %v3871
      %v3873 = vsel %vm1554, %v3863, %v3872
      %v3875 = vshrl.u32 %v1777, 16
      %v3877 = vrot.slane %v3875, 3
      %v3878 = vshll.u32 %v1777, 16
      %v3880 = vrot.slane %v3878, 4
      %v3881 = vor.u32 %v3877, %v3880
      %v3882 = vsel %vm1554, %v3872, %v3881
      %v3884 = vshrl.u32 %v1778, 16
      %v3886 = vrot.slane %v3884, 3
      %v3887 = vshll.u32 %v1778, 16
      %v3889 = vrot.slane %v3887, 4
      %v3890 = vor.u32 %v3886, %v3889
      %v3891 = vsel %vm1554, %v3881, %v3890
      %v3893 = vshrl.u32 %v1779, 16
      %v3895 = vrot.slane %v3893, 3
      %v3896 = vshll.u32 %v1779, 16
      %v3898 = vrot.slane %v3896, 4
      %v3899 = vor.u32 %v3895, %v3898
      %v3900 = vsel %vm1554, %v3890, %v3899
      %v3902 = vshrl.u32 %v1780, 16
      %v3904 = vrot.slane %v3902, 3
      %v3905 = vshll.u32 %v1780, 16
      %v3907 = vrot.slane %v3905, 4
      %v3908 = vor.u32 %v3904, %v3907
      %v3909 = vsel %vm1554, %v3899, %v3908
      %v3911 = vshrl.u32 %v1781, 16
      %v3913 = vrot.slane %v3911, 3
      %v3914 = vshll.u32 %v1781, 16
      %v3916 = vrot.slane %v3914, 4
      %v3917 = vor.u32 %v3913, %v3916
      %v3918 = vsel %vm1554, %v3908, %v3917
      %v3920 = vshrl.u32 %v1782, 16
      %v3922 = vrot.slane %v3920, 3
      %v3923 = vshll.u32 %v1782, 16
      %v3925 = vrot.slane %v3923, 4
      %v3926 = vor.u32 %v3922, %v3925
      %v3927 = vsel %vm1554, %v3917, %v3926
      %v3929 = vshrl.u32 %v1783, 16
      %v3931 = vrot.slane %v3929, 3
      %v3932 = vshll.u32 %v1783, 16
      %v3934 = vrot.slane %v3932, 4
      %v3935 = vor.u32 %v3931, %v3934
      %v3936 = vsel %vm1554, %v3926, %v3935
      %v3938 = vshrl.u32 %v1784, 16
      %v3940 = vrot.slane %v3938, 3
      %v3941 = vshll.u32 %v1784, 16
      %v3943 = vrot.slane %v3941, 4
      %v3944 = vor.u32 %v3940, %v3943
      %v3945 = vsel %vm1554, %v3935, %v3944
      %v3947 = vshrl.u32 %v1785, 16
      %v3949 = vrot.slane %v3947, 3
      %v3950 = vshll.u32 %v1785, 16
      %v3952 = vrot.slane %v3950, 4
      %v3953 = vor.u32 %v3949, %v3952
      %v3954 = vsel %vm1554, %v3944, %v3953
      %v3956 = vshrl.u32 %v1786, 16
      %v3958 = vrot.slane %v3956, 3
      %v3959 = vshll.u32 %v1786, 16
      %v3961 = vrot.slane %v3959, 4
      %v3962 = vor.u32 %v3958, %v3961
      %v3963 = vsel %vm1554, %v3953, %v3962
      %v3965 = vshrl.u32 %v1787, 16
      %v3967 = vrot.slane %v3965, 3
      %v3968 = vshll.u32 %v1787, 16
      %v3970 = vrot.slane %v3968, 4
      %v3971 = vor.u32 %v3967, %v3970
      %v3972 = vsel %vm1554, %v3962, %v3971
      %v3974 = vshrl.u32 %v1788, 16
      %v3976 = vrot.slane %v3974, 3
      %v3977 = vshll.u32 %v1788, 16
      %v3979 = vrot.slane %v3977, 4
      %v3980 = vor.u32 %v3976, %v3979
      %v3981 = vsel %vm1554, %v3971, %v3980
      %v3983 = vshrl.u32 %v1789, 16
      %v3985 = vrot.slane %v3983, 3
      %v3986 = vshll.u32 %v1789, 16
      %v3988 = vrot.slane %v3986, 4
      %v3989 = vor.u32 %v3985, %v3988
      %v3990 = vsel %vm1554, %v3980, %v3989
      %v3992 = vshrl.u32 %v1790, 16
      %v3994 = vrot.slane %v3992, 3
      %v3995 = vshll.u32 %v1790, 16
      %v3997 = vrot.slane %v3995, 4
      %v3998 = vor.u32 %v3994, %v3997
      %v3999 = vsel %vm1554, %v3989, %v3998
      %v4001 = vsel %vm1863, %v3864, 0
      %v4004 = vsel %vm1863, %v3873, 0
      %v4007 = vsel %vm1863, %v3882, 0
      %v4010 = vsel %vm1863, %v3891, 0
      %v4013 = vsel %vm1863, %v3900, 0
      %v4016 = vsel %vm1863, %v3909, 0
      %v4019 = vsel %vm1863, %v3918, 0
      %v4022 = vsel %vm1863, %v3927, 0
      %v4025 = vsel %vm1863, %v3936, 0
      %v4028 = vsel %vm1863, %v3945, 0
      %v4031 = vsel %vm1863, %v3954, 0
      %v4034 = vsel %vm1863, %v3963, 0
      %v4037 = vsel %vm1863, %v3972, 0
      %v4040 = vsel %vm1863, %v3981, 0
      %v4043 = vsel %vm1863, %v3990, 0
      %v4046 = vsel %vm1863, %v3999, 0
      %v4049 = vsel %vm1912, %v3847, 0
      %4051 = vmatprep.subr.bf16.mxu0 0
      %4052 = vmatpush1.bf16.msra.mxu0 %v4049
      %4053 = vmatprep.subr.bf16.mxu0 0
      %4054 = vmatpush1.bf16.msra.mxu0 0
      %4055 = vmatprep.subr.bf16.mxu0 0
      %4056 = vmatpush1.bf16.msra.mxu0 0
      %4057 = vmatprep.subr.bf16.mxu0 0
      %4058 = vmatpush1.bf16.msra.mxu0 0
      %4059 = vmatprep.subr.bf16.mxu0 0
      %4060 = vmatpush1.bf16.msra.mxu0 0
      %4061 = vmatprep.subr.bf16.mxu0 0
      %4062 = vmatpush1.bf16.msra.mxu0 0
      %4063 = vmatprep.subr.bf16.mxu0 0
      %4064 = vmatpush1.bf16.msra.mxu0 0
      %4065 = vmatprep.subr.bf16.mxu0 0
      %4066 = vmatpush1.bf16.msra.mxu0 0
      %4067 = vmatprep.subr.bf16.mxu0 0
      %4068 = vmatpush1.bf16.msra.mxu0 0
      %4069 = vmatprep.subr.bf16.mxu0 0
      %4070 = vmatpush1.bf16.msra.mxu0 0
      %4071 = vmatprep.subr.bf16.mxu0 0
      %4072 = vmatpush1.bf16.msra.mxu0 0
      %4073 = vmatprep.subr.bf16.mxu0 0
      %4074 = vmatpush1.bf16.msra.mxu0 0
      %4075 = vmatprep.subr.bf16.mxu0 0
      %4076 = vmatpush1.bf16.msra.mxu0 0
      %4077 = vmatprep.subr.bf16.mxu0 0
      %4078 = vmatpush1.bf16.msra.mxu0 0
      %4079 = vmatprep.subr.bf16.mxu0 0
      %4080 = vmatpush1.bf16.msra.mxu0 0
      %4081 = vmatprep.subr.bf16.mxu0 0
      %4082 = vmatpush1.bf16.msra.mxu0 0
      %4083 = vmatprep.mubr.bf16.mxu0 0
      %4084 = vmatmul.mubr.bf16.gmra.mrb[0].mxu0 %v4001
      %v4085 = vpop.f32.mrb[0].mxu0
      %v4086 = vadd.f32 0.0, %v4085
      %v4087 = vpop.f32.mrb[0].mxu0
      %v4088 = vpop.f32.mrb[0].mxu0
      %v4089 = vadd.f32 0.0, %v4088
      %v4090 = vpop.f32.mrb[0].mxu0
      %4091 = vmatprep.mubr.bf16.mxu0 0
      %4092 = vmatmul.mubr.bf16.gmra.mrb[0].mxu0 %v4004
      %v4093 = vpop.f32.mrb[0].mxu0
      %v4094 = vadd.f32 0.0, %v4093
      %v4095 = vpop.f32.mrb[0].mxu0
      %v4096 = vpop.f32.mrb[0].mxu0
      %v4097 = vadd.f32 0.0, %v4096
      %v4098 = vpop.f32.mrb[0].mxu0
      %4099 = vmatprep.mubr.bf16.mxu0 0
      %4100 = vmatmul.mubr.bf16.gmra.mrb[0].mxu0 %v4007
      %v4101 = vpop.f32.mrb[0].mxu0
      %v4102 = vadd.f32 0.0, %v4101
      %v4103 = vpop.f32.mrb[0].mxu0
      %v4104 = vpop.f32.mrb[0].mxu0
      %v4105 = vadd.f32 0.0, %v4104
      %v4106 = vpop.f32.mrb[0].mxu0
      %4107 = vmatprep.mubr.bf16.mxu0 0
      %4108 = vmatmul.mubr.bf16.gmra.mrb[0].mxu0 %v4010
      %v4109 = vpop.f32.mrb[0].mxu0
      %v4110 = vadd.f32 0.0, %v4109
      %v4111 = vpop.f32.mrb[0].mxu0
      %v4112 = vpop.f32.mrb[0].mxu0
      %v4113 = vadd.f32 0.0, %v4112
      %v4114 = vpop.f32.mrb[0].mxu0
      %4115 = vmatprep.mubr.bf16.mxu0 0
      %4116 = vmatmul.mubr.bf16.gmra.mrb[0].mxu0 %v4013
      %v4117 = vpop.f32.mrb[0].mxu0
      %v4118 = vadd.f32 0.0, %v4117
      %v4119 = vpop.f32.mrb[0].mxu0
      %v4120 = vpop.f32.mrb[0].mxu0
      %v4121 = vadd.f32 0.0, %v4120
      %v4122 = vpop.f32.mrb[0].mxu0
      %4123 = vmatprep.mubr.bf16.mxu0 0
      %4124 = vmatmul.mubr.bf16.gmra.mrb[0].mxu0 %v4016
      %v4125 = vpop.f32.mrb[0].mxu0
      %v4126 = vadd.f32 0.0, %v4125
      %v4127 = vpop.f32.mrb[0].mxu0
      %v4128 = vpop.f32.mrb[0].mxu0
      %v4129 = vadd.f32 0.0, %v4128
      %v4130 = vpop.f32.mrb[0].mxu0
      %4131 = vmatprep.mubr.bf16.mxu0 0
      %4132 = vmatmul.mubr.bf16.gmra.mrb[0].mxu0 %v4019
      %v4133 = vpop.f32.mrb[0].mxu0
      %v4134 = vadd.f32 0.0, %v4133
      %v4135 = vpop.f32.mrb[0].mxu0
      %v4136 = vpop.f32.mrb[0].mxu0
      %v4137 = vadd.f32 0.0, %v4136
      %v4138 = vpop.f32.mrb[0].mxu0
      %4139 = vmatprep.mubr.bf16.mxu0 0
      %4140 = vmatmul.mubr.bf16.gmra.mrb[0].mxu0 %v4022
      %v4141 = vpop.f32.mrb[0].mxu0
      %v4142 = vadd.f32 0.0, %v4141
      %v4143 = vpop.f32.mrb[0].mxu0
      %v4144 = vpop.f32.mrb[0].mxu0
      %v4145 = vadd.f32 0.0, %v4144
      %v4146 = vpop.f32.mrb[0].mxu0
      %4147 = vmatprep.mubr.bf16.mxu0 0
      %4148 = vmatmul.mubr.bf16.gmra.mrb[0].mxu0 %v4025
      %v4149 = vpop.f32.mrb[0].mxu0
      %v4150 = vadd.f32 0.0, %v4149
      %v4151 = vpop.f32.mrb[0].mxu0
      %v4152 = vpop.f32.mrb[0].mxu0
      %v4153 = vadd.f32 0.0, %v4152
      %v4154 = vpop.f32.mrb[0].mxu0
      %4155 = vmatprep.mubr.bf16.mxu0 0
      %4156 = vmatmul.mubr.bf16.gmra.mrb[0].mxu0 %v4028
      %v4157 = vpop.f32.mrb[0].mxu0
      %v4158 = vadd.f32 0.0, %v4157
      %v4159 = vpop.f32.mrb[0].mxu0
      %v4160 = vpop.f32.mrb[0].mxu0
      %v4161 = vadd.f32 0.0, %v4160
      %v4162 = vpop.f32.mrb[0].mxu0
      %4163 = vmatprep.mubr.bf16.mxu0 0
      %4164 = vmatmul.mubr.bf16.gmra.mrb[0].mxu0 %v4031
      %v4165 = vpop.f32.mrb[0].mxu0
      %v4166 = vadd.f32 0.0, %v4165
      %v4167 = vpop.f32.mrb[0].mxu0
      %v4168 = vpop.f32.mrb[0].mxu0
      %v4169 = vadd.f32 0.0, %v4168
      %v4170 = vpop.f32.mrb[0].mxu0
      %4171 = vmatprep.mubr.bf16.mxu0 0
      %4172 = vmatmul.mubr.bf16.gmra.mrb[0].mxu0 %v4034
      %v4173 = vpop.f32.mrb[0].mxu0
      %v4174 = vadd.f32 0.0, %v4173
      %v4175 = vpop.f32.mrb[0].mxu0
      %v4176 = vpop.f32.mrb[0].mxu0
      %v4177 = vadd.f32 0.0, %v4176
      %v4178 = vpop.f32.mrb[0].mxu0
      %4179 = vmatprep.mubr.bf16.mxu0 0
      %4180 = vmatmul.mubr.bf16.gmra.mrb[0].mxu0 %v4037
      %v4181 = vpop.f32.mrb[0].mxu0
      %v4182 = vadd.f32 0.0, %v4181
      %v4183 = vpop.f32.mrb[0].mxu0
      %v4184 = vpop.f32.mrb[0].mxu0
      %v4185 = vadd.f32 0.0, %v4184
      %v4186 = vpop.f32.mrb[0].mxu0
      %4187 = vmatprep.mubr.bf16.mxu0 0
      %4188 = vmatmul.mubr.bf16.gmra.mrb[0].mxu0 %v4040
      %v4189 = vpop.f32.mrb[0].mxu0
      %v4190 = vadd.f32 0.0, %v4189
      %v4191 = vpop.f32.mrb[0].mxu0
      %v4192 = vpop.f32.mrb[0].mxu0
      %v4193 = vadd.f32 0.0, %v4192
      %v4194 = vpop.f32.mrb[0].mxu0
      %4195 = vmatprep.mubr.bf16.mxu0 0
      %4196 = vmatmul.mubr.bf16.gmra.mrb[0].mxu0 %v4043
      %v4197 = vpop.f32.mrb[0].mxu0
      %v4198 = vadd.f32 0.0, %v4197
      %v4199 = vpop.f32.mrb[0].mxu0
      %v4200 = vpop.f32.mrb[0].mxu0
      %v4201 = vadd.f32 0.0, %v4200
      %v4202 = vpop.f32.mrb[0].mxu0
      %4203 = vmatprep.mubr.bf16.mxu0 0
      %4204 = vmatmul.mubr.bf16.gmra.mrb[0].mxu0 %v4046
      %v4205 = vpop.f32.mrb[0].mxu0
      %v4206 = vadd.f32 0.0, %v4205
      %v4207 = vpop.f32.mrb[0].mxu0
      %v4208 = vpop.f32.mrb[0].mxu0
      %v4209 = vadd.f32 0.0, %v4208
      %v4210 = vpop.f32.mrb[0].mxu0
      %4211 = vdwg.mxu0
      %v4212 = vadd.f32 %v3815, %v4086
      %v4213 = vadd.f32 %v3816, %v4089
      %v4214 = vadd.f32 %v3817, %v4094
      %v4215 = vadd.f32 %v3818, %v4097
      %v4216 = vadd.f32 %v3819, %v4102
      %v4217 = vadd.f32 %v3820, %v4105
      %v4218 = vadd.f32 %v3821, %v4110
      %v4219 = vadd.f32 %v3822, %v4113
      %v4220 = vadd.f32 %v3823, %v4118
      %v4221 = vadd.f32 %v3824, %v4121
      %v4222 = vadd.f32 %v3825, %v4126
      %v4223 = vadd.f32 %v3826, %v4129
      %v4224 = vadd.f32 %v3827, %v4134
      %v4225 = vadd.f32 %v3828, %v4137
      %v4226 = vadd.f32 %v3829, %v4142
      %v4227 = vadd.f32 %v3830, %v4145
      %v4228 = vadd.f32 %v3831, %v4150
      %v4229 = vadd.f32 %v3832, %v4153
      %v4230 = vadd.f32 %v3833, %v4158
      %v4231 = vadd.f32 %v3834, %v4161
      %v4232 = vadd.f32 %v3835, %v4166
      %v4233 = vadd.f32 %v3836, %v4169
      %v4234 = vadd.f32 %v3837, %v4174
      %v4235 = vadd.f32 %v3838, %v4177
      %v4236 = vadd.f32 %v3839, %v4182
      %v4237 = vadd.f32 %v3840, %v4185
      %v4238 = vadd.f32 %v3841, %v4190
      %v4239 = vadd.f32 %v3842, %v4193
      %v4240 = vadd.f32 %v3843, %v4198
      %v4241 = vadd.f32 %v3844, %v4201
      %v4242 = vadd.f32 %v3845, %v4206
      %v4243 = vadd.f32 %v3846, %v4209
      %v4244 = vld [vmem:[%s308 + $0x1c] sm:$0xf]
      %v4248 = vrot.slane %v1791, 4
      %v4249 = vsel %vm1829, %v4248, %v1835
      %v4250 = vrot.slane %v1772, 4
      %v4251 = vsel %vm1829, %v3241, %v4250
      %v4252 = vrot.slane %v1773, 4
      %v4253 = vsel %vm1829, %v4250, %v4252
      %v4255 = vsel %vm1863, %v4249, 0
      %v4258 = vsel %vm1863, %v4251, 0
      %v4261 = vsel %vm1863, %v4253, 0
      %v4264 = vsel %vm1912, %v4244, 0
      %4266 = vmatprep.subr.bf16.mxu0 0
      %4267 = vmatpush1.bf16.msra.mxu0 %v4264
      %4268 = vmatprep.subr.bf16.mxu0 0
      %4269 = vmatpush1.bf16.msra.mxu0 0
      %4270 = vmatprep.subr.bf16.mxu0 0
      %4271 = vmatpush1.bf16.msra.mxu0 0
      %4272 = vmatprep.subr.bf16.mxu0 0
      %4273 = vmatpush1.bf16.msra.mxu0 0
      %4274 = vmatprep.subr.bf16.mxu0 0
      %4275 = vmatpush1.bf16.msra.mxu0 0
      %4276 = vmatprep.subr.bf16.mxu0 0
      %4277 = vmatpush1.bf16.msra.mxu0 0
      %4278 = vmatprep.subr.bf16.mxu0 0
      %4279 = vmatpush1.bf16.msra.mxu0 0
      %4280 = vmatprep.subr.bf16.mxu0 0
      %4281 = vmatpush1.bf16.msra.mxu0 0
      %4282 = vmatprep.subr.bf16.mxu0 0
      %4283 = vmatpush1.bf16.msra.mxu0 0
      %4284 = vmatprep.subr.bf16.mxu0 0
      %4285 = vmatpush1.bf16.msra.mxu0 0
      %4286 = vmatprep.subr.bf16.mxu0 0
      %4287 = vmatpush1.bf16.msra.mxu0 0
      %4288 = vmatprep.subr.bf16.mxu0 0
      %4289 = vmatpush1.bf16.msra.mxu0 0
      %4290 = vmatprep.subr.bf16.mxu0 0
      %4291 = vmatpush1.bf16.msra.mxu0 0
      %4292 = vmatprep.subr.bf16.mxu0 0
      %4293 = vmatpush1.bf16.msra.mxu0 0
      %4294 = vmatprep.subr.bf16.mxu0 0
      %4295 = vmatpush1.bf16.msra.mxu0 0
      %4296 = vmatprep.subr.bf16.mxu0 0
      %4297 = vmatpush1.bf16.msra.mxu0 0
      %4298 = vmatprep.mubr.bf16.mxu0 0
      %4299 = vmatmul.mubr.bf16.gmra.mrb[0].mxu0 %v4255
      %v4300 = vpop.f32.mrb[0].mxu0
      %v4301 = vadd.f32 0.0, %v4300
      %v4302 = vpop.f32.mrb[0].mxu0
      %v4303 = vpop.f32.mrb[0].mxu0
      %v4304 = vadd.f32 0.0, %v4303
      %v4305 = vpop.f32.mrb[0].mxu0
      %4306 = vmatprep.mubr.bf16.mxu0 0
      %4307 = vmatmul.mubr.bf16.gmra.mrb[0].mxu0 %v1874
      %v4308 = vpop.f32.mrb[0].mxu0
      %v4309 = vadd.f32 0.0, %v4308
      %v4310 = vpop.f32.mrb[0].mxu0
      %v4311 = vpop.f32.mrb[0].mxu0
      %v4312 = vadd.f32 0.0, %v4311
      %v4313 = vpop.f32.mrb[0].mxu0
      %4314 = vmatprep.mubr.bf16.mxu0 0
      %4315 = vmatmul.mubr.bf16.gmra.mrb[0].mxu0 %v1877
      %v4316 = vpop.f32.mrb[0].mxu0
      %v4317 = vadd.f32 0.0, %v4316
      %v4318 = vpop.f32.mrb[0].mxu0
      %v4319 = vpop.f32.mrb[0].mxu0
      %v4320 = vadd.f32 0.0, %v4319
      %v4321 = vpop.f32.mrb[0].mxu0
      %4322 = vmatprep.mubr.bf16.mxu0 0
      %4323 = vmatmul.mubr.bf16.gmra.mrb[0].mxu0 %v1880
      %v4324 = vpop.f32.mrb[0].mxu0
      %v4325 = vadd.f32 0.0, %v4324
      %v4326 = vpop.f32.mrb[0].mxu0
      %v4327 = vpop.f32.mrb[0].mxu0
      %v4328 = vadd.f32 0.0, %v4327
      %v4329 = vpop.f32.mrb[0].mxu0
      %4330 = vmatprep.mubr.bf16.mxu0 0
      %4331 = vmatmul.mubr.bf16.gmra.mrb[0].mxu0 %v1883
      %v4332 = vpop.f32.mrb[0].mxu0
      %v4333 = vadd.f32 0.0, %v4332
      %v4334 = vpop.f32.mrb[0].mxu0
      %v4335 = vpop.f32.mrb[0].mxu0
      %v4336 = vadd.f32 0.0, %v4335
      %v4337 = vpop.f32.mrb[0].mxu0
      %4338 = vmatprep.mubr.bf16.mxu0 0
      %4339 = vmatmul.mubr.bf16.gmra.mrb[0].mxu0 %v1886
      %v4340 = vpop.f32.mrb[0].mxu0
      %v4341 = vadd.f32 0.0, %v4340
      %v4342 = vpop.f32.mrb[0].mxu0
      %v4343 = vpop.f32.mrb[0].mxu0
      %v4344 = vadd.f32 0.0, %v4343
      %v4345 = vpop.f32.mrb[0].mxu0
      %4346 = vmatprep.mubr.bf16.mxu0 0
      %4347 = vmatmul.mubr.bf16.gmra.mrb[0].mxu0 %v1889
      %v4348 = vpop.f32.mrb[0].mxu0
      %v4349 = vadd.f32 0.0, %v4348
      %v4350 = vpop.f32.mrb[0].mxu0
      %v4351 = vpop.f32.mrb[0].mxu0
      %v4352 = vadd.f32 0.0, %v4351
      %v4353 = vpop.f32.mrb[0].mxu0
      %4354 = vmatprep.mubr.bf16.mxu0 0
      %4355 = vmatmul.mubr.bf16.gmra.mrb[0].mxu0 %v1892
      %v4356 = vpop.f32.mrb[0].mxu0
      %v4357 = vadd.f32 0.0, %v4356
      %v4358 = vpop.f32.mrb[0].mxu0
      %v4359 = vpop.f32.mrb[0].mxu0
      %v4360 = vadd.f32 0.0, %v4359
      %v4361 = vpop.f32.mrb[0].mxu0
      %4362 = vmatprep.mubr.bf16.mxu0 0
      %4363 = vmatmul.mubr.bf16.gmra.mrb[0].mxu0 %v1895
      %v4364 = vpop.f32.mrb[0].mxu0
      %v4365 = vadd.f32 0.0, %v4364
      %v4366 = vpop.f32.mrb[0].mxu0
      %v4367 = vpop.f32.mrb[0].mxu0
      %v4368 = vadd.f32 0.0, %v4367
      %v4369 = vpop.f32.mrb[0].mxu0
      %4370 = vmatprep.mubr.bf16.mxu0 0
      %4371 = vmatmul.mubr.bf16.gmra.mrb[0].mxu0 %v1898
      %v4372 = vpop.f32.mrb[0].mxu0
      %v4373 = vadd.f32 0.0, %v4372
      %v4374 = vpop.f32.mrb[0].mxu0
      %v4375 = vpop.f32.mrb[0].mxu0
      %v4376 = vadd.f32 0.0, %v4375
      %v4377 = vpop.f32.mrb[0].mxu0
      %4378 = vmatprep.mubr.bf16.mxu0 0
      %4379 = vmatmul.mubr.bf16.gmra.mrb[0].mxu0 %v1901
      %v4380 = vpop.f32.mrb[0].mxu0
      %v4381 = vadd.f32 0.0, %v4380
      %v4382 = vpop.f32.mrb[0].mxu0
      %v4383 = vpop.f32.mrb[0].mxu0
      %v4384 = vadd.f32 0.0, %v4383
      %v4385 = vpop.f32.mrb[0].mxu0
      %4386 = vmatprep.mubr.bf16.mxu0 0
      %4387 = vmatmul.mubr.bf16.gmra.mrb[0].mxu0 %v1904
      %v4388 = vpop.f32.mrb[0].mxu0
      %v4389 = vadd.f32 0.0, %v4388
      %v4390 = vpop.f32.mrb[0].mxu0
      %v4391 = vpop.f32.mrb[0].mxu0
      %v4392 = vadd.f32 0.0, %v4391
      %v4393 = vpop.f32.mrb[0].mxu0
      %4394 = vmatprep.mubr.bf16.mxu0 0
      %4395 = vmatmul.mubr.bf16.gmra.mrb[0].mxu0 %v1907
      %v4396 = vpop.f32.mrb[0].mxu0
      %v4397 = vadd.f32 0.0, %v4396
      %v4398 = vpop.f32.mrb[0].mxu0
      %v4399 = vpop.f32.mrb[0].mxu0
      %v4400 = vadd.f32 0.0, %v4399
      %v4401 = vpop.f32.mrb[0].mxu0
      %4402 = vmatprep.mubr.bf16.mxu0 0
      %4403 = vmatmul.mubr.bf16.gmra.mrb[0].mxu0 %v3249
      %v4404 = vpop.f32.mrb[0].mxu0
      %v4405 = vadd.f32 0.0, %v4404
      %v4406 = vpop.f32.mrb[0].mxu0
      %v4407 = vpop.f32.mrb[0].mxu0
      %v4408 = vadd.f32 0.0, %v4407
      %v4409 = vpop.f32.mrb[0].mxu0
      %4410 = vmatprep.mubr.bf16.mxu0 0
      %4411 = vmatmul.mubr.bf16.gmra.mrb[0].mxu0 %v4258
      %v4412 = vpop.f32.mrb[0].mxu0
      %v4413 = vadd.f32 0.0, %v4412
      %v4414 = vpop.f32.mrb[0].mxu0
      %v4415 = vpop.f32.mrb[0].mxu0
      %v4416 = vadd.f32 0.0, %v4415
      %v4417 = vpop.f32.mrb[0].mxu0
      %4418 = vmatprep.mubr.bf16.mxu0 0
      %4419 = vmatmul.mubr.bf16.gmra.mrb[0].mxu0 %v4261
      %v4420 = vpop.f32.mrb[0].mxu0
      %v4421 = vadd.f32 0.0, %v4420
      %v4422 = vpop.f32.mrb[0].mxu0
      %v4423 = vpop.f32.mrb[0].mxu0
      %v4424 = vadd.f32 0.0, %v4423
      %v4425 = vpop.f32.mrb[0].mxu0
      %4426 = vdwg.mxu0
      %v4427 = vadd.f32 %v4212, %v4301
      %v4428 = vadd.f32 %v4213, %v4304
      %v4429 = vadd.f32 %v4214, %v4309
      %v4430 = vadd.f32 %v4215, %v4312
      %v4431 = vadd.f32 %v4216, %v4317
      %v4432 = vadd.f32 %v4217, %v4320
      %v4433 = vadd.f32 %v4218, %v4325
      %v4434 = vadd.f32 %v4219, %v4328
      %v4435 = vadd.f32 %v4220, %v4333
      %v4436 = vadd.f32 %v4221, %v4336
      %v4437 = vadd.f32 %v4222, %v4341
      %v4438 = vadd.f32 %v4223, %v4344
      %v4439 = vadd.f32 %v4224, %v4349
      %v4440 = vadd.f32 %v4225, %v4352
      %v4441 = vadd.f32 %v4226, %v4357
      %v4442 = vadd.f32 %v4227, %v4360
      %v4443 = vadd.f32 %v4228, %v4365
      %v4444 = vadd.f32 %v4229, %v4368
      %v4445 = vadd.f32 %v4230, %v4373
      %v4446 = vadd.f32 %v4231, %v4376
      %v4447 = vadd.f32 %v4232, %v4381
      %v4448 = vadd.f32 %v4233, %v4384
      %v4449 = vadd.f32 %v4234, %v4389
      %v4450 = vadd.f32 %v4235, %v4392
      %v4451 = vadd.f32 %v4236, %v4397
      %v4452 = vadd.f32 %v4237, %v4400
      %v4453 = vadd.f32 %v4238, %v4405
      %v4454 = vadd.f32 %v4239, %v4408
      %v4455 = vadd.f32 %v4240, %v4413
      %v4456 = vadd.f32 %v4241, %v4416
      %v4457 = vadd.f32 %v4242, %v4421
      %v4458 = vadd.f32 %v4243, %v4424
      %v4459 = vld [vmem:[%s308 + $0x20] sm:$0xf]
      %v4461 = vshrl.u32 %v1793, 16
      %v4463 = vrot.slane %v4461, 4
      %v4464 = vshll.u32 %v1793, 16
      %v4466 = vrot.slane %v4464, 5
      %v4467 = vor.u32 %v4463, %v4466
      %v4469 = vshrl.u32 %v1794, 16
      %v4471 = vrot.slane %v4469, 4
      %v4472 = vshll.u32 %v1794, 16
      %v4474 = vrot.slane %v4472, 5
      %v4475 = vor.u32 %v4471, %v4474
      %v4476 = vsel %vm1198, %v4467, %v4475
      %v4478 = vshrl.u32 %v1795, 16
      %v4480 = vrot.slane %v4478, 4
      %v4481 = vshll.u32 %v1795, 16
      %v4483 = vrot.slane %v4481, 5
      %v4484 = vor.u32 %v4480, %v4483
      %v4485 = vsel %vm1198, %v4475, %v4484
      %v4487 = vshrl.u32 %v1796, 16
      %v4489 = vrot.slane %v4487, 4
      %v4490 = vshll.u32 %v1796, 16
      %v4492 = vrot.slane %v4490, 5
      %v4493 = vor.u32 %v4489, %v4492
      %v4494 = vsel %vm1198, %v4484, %v4493
      %v4496 = vshrl.u32 %v1797, 16
      %v4498 = vrot.slane %v4496, 4
      %v4499 = vshll.u32 %v1797, 16
      %v4501 = vrot.slane %v4499, 5
      %v4502 = vor.u32 %v4498, %v4501
      %v4503 = vsel %vm1198, %v4493, %v4502
      %v4505 = vshrl.u32 %v1798, 16
      %v4507 = vrot.slane %v4505, 4
      %v4508 = vshll.u32 %v1798, 16
      %v4510 = vrot.slane %v4508, 5
      %v4511 = vor.u32 %v4507, %v4510
      %v4512 = vsel %vm1198, %v4502, %v4511
      %v4514 = vshrl.u32 %v1799, 16
      %v4516 = vrot.slane %v4514, 4
      %v4517 = vshll.u32 %v1799, 16
      %v4519 = vrot.slane %v4517, 5
      %v4520 = vor.u32 %v4516, %v4519
      %v4521 = vsel %vm1198, %v4511, %v4520
      %v4523 = vshrl.u32 %v1800, 16
      %v4525 = vrot.slane %v4523, 4
      %v4526 = vshll.u32 %v1800, 16
      %v4528 = vrot.slane %v4526, 5
      %v4529 = vor.u32 %v4525, %v4528
      %v4530 = vsel %vm1198, %v4520, %v4529
      %v4532 = vshrl.u32 %v1801, 16
      %v4534 = vrot.slane %v4532, 4
      %v4535 = vshll.u32 %v1801, 16
      %v4537 = vrot.slane %v4535, 5
      %v4538 = vor.u32 %v4534, %v4537
      %v4539 = vsel %vm1198, %v4529, %v4538
      %v4541 = vshrl.u32 %v1802, 16
      %v4543 = vrot.slane %v4541, 4
      %v4544 = vshll.u32 %v1802, 16
      %v4546 = vrot.slane %v4544, 5
      %v4547 = vor.u32 %v4543, %v4546
      %v4548 = vsel %vm1198, %v4538, %v4547
      %v4550 = vshrl.u32 %v1803, 16
      %v4552 = vrot.slane %v4550, 4
      %v4553 = vshll.u32 %v1803, 16
      %v4555 = vrot.slane %v4553, 5
      %v4556 = vor.u32 %v4552, %v4555
      %v4557 = vsel %vm1198, %v4547, %v4556
      %v4559 = vshrl.u32 %v1804, 16
      %v4561 = vrot.slane %v4559, 4
      %v4562 = vshll.u32 %v1804, 16
      %v4564 = vrot.slane %v4562, 5
      %v4565 = vor.u32 %v4561, %v4564
      %v4566 = vsel %vm1198, %v4556, %v4565
      %v4568 = vshrl.u32 %v1805, 16
      %v4570 = vrot.slane %v4568, 4
      %v4571 = vshll.u32 %v1805, 16
      %v4573 = vrot.slane %v4571, 5
      %v4574 = vor.u32 %v4570, %v4573
      %v4575 = vsel %vm1198, %v4565, %v4574
      %v4577 = vshrl.u32 %v1806, 16
      %v4579 = vrot.slane %v4577, 4
      %v4580 = vshll.u32 %v1806, 16
      %v4582 = vrot.slane %v4580, 5
      %v4583 = vor.u32 %v4579, %v4582
      %v4584 = vsel %vm1198, %v4574, %v4583
      %v4586 = vshrl.u32 %v1807, 16
      %v4588 = vrot.slane %v4586, 4
      %v4589 = vshll.u32 %v1807, 16
      %v4591 = vrot.slane %v4589, 5
      %v4592 = vor.u32 %v4588, %v4591
      %v4593 = vsel %vm1198, %v4583, %v4592
      %v4595 = vshrl.u32 %v1808, 16
      %v4597 = vrot.slane %v4595, 4
      %v4598 = vshll.u32 %v1808, 16
      %v4600 = vrot.slane %v4598, 5
      %v4601 = vor.u32 %v4597, %v4600
      %v4602 = vsel %vm1198, %v4592, %v4601
      %v4604 = vshrl.u32 %v1809, 16
      %v4606 = vrot.slane %v4604, 4
      %v4607 = vshll.u32 %v1809, 16
      %v4609 = vrot.slane %v4607, 5
      %v4610 = vor.u32 %v4606, %v4609
      %v4611 = vsel %vm1198, %v4601, %v4610
      %v4613 = vsel %vm1863, %v4476, 0
      %v4616 = vsel %vm1863, %v4485, 0
      %v4619 = vsel %vm1863, %v4494, 0
      %v4622 = vsel %vm1863, %v4503, 0
      %v4625 = vsel %vm1863, %v4512, 0
      %v4628 = vsel %vm1863, %v4521, 0
      %v4631 = vsel %vm1863, %v4530, 0
      %v4634 = vsel %vm1863, %v4539, 0
      %v4637 = vsel %vm1863, %v4548, 0
      %v4640 = vsel %vm1863, %v4557, 0
      %v4643 = vsel %vm1863, %v4566, 0
      %v4646 = vsel %vm1863, %v4575, 0
      %v4649 = vsel %vm1863, %v4584, 0
      %v4652 = vsel %vm1863, %v4593, 0
      %v4655 = vsel %vm1863, %v4602, 0
      %v4658 = vsel %vm1863, %v4611, 0
      %v4661 = vsel %vm1912, %v4459, 0
      %4663 = vmatprep.subr.bf16.mxu0 0
      %4664 = vmatpush1.bf16.msra.mxu0 %v4661
      %4665 = vmatprep.subr.bf16.mxu0 0
      %4666 = vmatpush1.bf16.msra.mxu0 0
      %4667 = vmatprep.subr.bf16.mxu0 0
      %4668 = vmatpush1.bf16.msra.mxu0 0
      %4669 = vmatprep.subr.bf16.mxu0 0
      %4670 = vmatpush1.bf16.msra.mxu0 0
      %4671 = vmatprep.subr.bf16.mxu0 0
      %4672 = vmatpush1.bf16.msra.mxu0 0
      %4673 = vmatprep.subr.bf16.mxu0 0
      %4674 = vmatpush1.bf16.msra.mxu0 0
      %4675 = vmatprep.subr.bf16.mxu0 0
      %4676 = vmatpush1.bf16.msra.mxu0 0
      %4677 = vmatprep.subr.bf16.mxu0 0
      %4678 = vmatpush1.bf16.msra.mxu0 0
      %4679 = vmatprep.subr.bf16.mxu0 0
      %4680 = vmatpush1.bf16.msra.mxu0 0
      %4681 = vmatprep.subr.bf16.mxu0 0
      %4682 = vmatpush1.bf16.msra.mxu0 0
      %4683 = vmatprep.subr.bf16.mxu0 0
      %4684 = vmatpush1.bf16.msra.mxu0 0
      %4685 = vmatprep.subr.bf16.mxu0 0
      %4686 = vmatpush1.bf16.msra.mxu0 0
      %4687 = vmatprep.subr.bf16.mxu0 0
      %4688 = vmatpush1.bf16.msra.mxu0 0
      %4689 = vmatprep.subr.bf16.mxu0 0
      %4690 = vmatpush1.bf16.msra.mxu0 0
      %4691 = vmatprep.subr.bf16.mxu0 0
      %4692 = vmatpush1.bf16.msra.mxu0 0
      %4693 = vmatprep.subr.bf16.mxu0 0
      %4694 = vmatpush1.bf16.msra.mxu0 0
      %4695 = vmatprep.mubr.bf16.mxu0 0
      %4696 = vmatmul.mubr.bf16.gmra.mrb[0].mxu0 %v4613
      %v4697 = vpop.f32.mrb[0].mxu0
      %v4698 = vadd.f32 0.0, %v4697
      %v4699 = vpop.f32.mrb[0].mxu0
      %v4700 = vpop.f32.mrb[0].mxu0
      %v4701 = vadd.f32 0.0, %v4700
      %v4702 = vpop.f32.mrb[0].mxu0
      %4703 = vmatprep.mubr.bf16.mxu0 0
      %4704 = vmatmul.mubr.bf16.gmra.mrb[0].mxu0 %v4616
      %v4705 = vpop.f32.mrb[0].mxu0
      %v4706 = vadd.f32 0.0, %v4705
      %v4707 = vpop.f32.mrb[0].mxu0
      %v4708 = vpop.f32.mrb[0].mxu0
      %v4709 = vadd.f32 0.0, %v4708
      %v4710 = vpop.f32.mrb[0].mxu0
      %4711 = vmatprep.mubr.bf16.mxu0 0
      %4712 = vmatmul.mubr.bf16.gmra.mrb[0].mxu0 %v4619
      %v4713 = vpop.f32.mrb[0].mxu0
      %v4714 = vadd.f32 0.0, %v4713
      %v4715 = vpop.f32.mrb[0].mxu0
      %v4716 = vpop.f32.mrb[0].mxu0
      %v4717 = vadd.f32 0.0, %v4716
      %v4718 = vpop.f32.mrb[0].mxu0
      %4719 = vmatprep.mubr.bf16.mxu0 0
      %4720 = vmatmul.mubr.bf16.gmra.mrb[0].mxu0 %v4622
      %v4721 = vpop.f32.mrb[0].mxu0
      %v4722 = vadd.f32 0.0, %v4721
      %v4723 = vpop.f32.mrb[0].mxu0
      %v4724 = vpop.f32.mrb[0].mxu0
      %v4725 = vadd.f32 0.0, %v4724
      %v4726 = vpop.f32.mrb[0].mxu0
      %4727 = vmatprep.mubr.bf16.mxu0 0
      %4728 = vmatmul.mubr.bf16.gmra.mrb[0].mxu0 %v4625
      %v4729 = vpop.f32.mrb[0].mxu0
      %v4730 = vadd.f32 0.0, %v4729
      %v4731 = vpop.f32.mrb[0].mxu0
      %v4732 = vpop.f32.mrb[0].mxu0
      %v4733 = vadd.f32 0.0, %v4732
      %v4734 = vpop.f32.mrb[0].mxu0
      %4735 = vmatprep.mubr.bf16.mxu0 0
      %4736 = vmatmul.mubr.bf16.gmra.mrb[0].mxu0 %v4628
      %v4737 = vpop.f32.mrb[0].mxu0
      %v4738 = vadd.f32 0.0, %v4737
      %v4739 = vpop.f32.mrb[0].mxu0
      %v4740 = vpop.f32.mrb[0].mxu0
      %v4741 = vadd.f32 0.0, %v4740
      %v4742 = vpop.f32.mrb[0].mxu0
      %4743 = vmatprep.mubr.bf16.mxu0 0
      %4744 = vmatmul.mubr.bf16.gmra.mrb[0].mxu0 %v4631
      %v4745 = vpop.f32.mrb[0].mxu0
      %v4746 = vadd.f32 0.0, %v4745
      %v4747 = vpop.f32.mrb[0].mxu0
      %v4748 = vpop.f32.mrb[0].mxu0
      %v4749 = vadd.f32 0.0, %v4748
      %v4750 = vpop.f32.mrb[0].mxu0
      %4751 = vmatprep.mubr.bf16.mxu0 0
      %4752 = vmatmul.mubr.bf16.gmra.mrb[0].mxu0 %v4634
      %v4753 = vpop.f32.mrb[0].mxu0
      %v4754 = vadd.f32 0.0, %v4753
      %v4755 = vpop.f32.mrb[0].mxu0
      %v4756 = vpop.f32.mrb[0].mxu0
      %v4757 = vadd.f32 0.0, %v4756
      %v4758 = vpop.f32.mrb[0].mxu0
      %4759 = vmatprep.mubr.bf16.mxu0 0
      %4760 = vmatmul.mubr.bf16.gmra.mrb[0].mxu0 %v4637
      %v4761 = vpop.f32.mrb[0].mxu0
      %v4762 = vadd.f32 0.0, %v4761
      %v4763 = vpop.f32.mrb[0].mxu0
      %v4764 = vpop.f32.mrb[0].mxu0
      %v4765 = vadd.f32 0.0, %v4764
      %v4766 = vpop.f32.mrb[0].mxu0
      %4767 = vmatprep.mubr.bf16.mxu0 0
      %4768 = vmatmul.mubr.bf16.gmra.mrb[0].mxu0 %v4640
      %v4769 = vpop.f32.mrb[0].mxu0
      %v4770 = vadd.f32 0.0, %v4769
      %v4771 = vpop.f32.mrb[0].mxu0
      %v4772 = vpop.f32.mrb[0].mxu0
      %v4773 = vadd.f32 0.0, %v4772
      %v4774 = vpop.f32.mrb[0].mxu0
      %4775 = vmatprep.mubr.bf16.mxu0 0
      %4776 = vmatmul.mubr.bf16.gmra.mrb[0].mxu0 %v4643
      %v4777 = vpop.f32.mrb[0].mxu0
      %v4778 = vadd.f32 0.0, %v4777
      %v4779 = vpop.f32.mrb[0].mxu0
      %v4780 = vpop.f32.mrb[0].mxu0
      %v4781 = vadd.f32 0.0, %v4780
      %v4782 = vpop.f32.mrb[0].mxu0
      %4783 = vmatprep.mubr.bf16.mxu0 0
      %4784 = vmatmul.mubr.bf16.gmra.mrb[0].mxu0 %v4646
      %v4785 = vpop.f32.mrb[0].mxu0
      %v4786 = vadd.f32 0.0, %v4785
      %v4787 = vpop.f32.mrb[0].mxu0
      %v4788 = vpop.f32.mrb[0].mxu0
      %v4789 = vadd.f32 0.0, %v4788
      %v4790 = vpop.f32.mrb[0].mxu0
      %4791 = vmatprep.mubr.bf16.mxu0 0
      %4792 = vmatmul.mubr.bf16.gmra.mrb[0].mxu0 %v4649
      %v4793 = vpop.f32.mrb[0].mxu0
      %v4794 = vadd.f32 0.0, %v4793
      %v4795 = vpop.f32.mrb[0].mxu0
      %v4796 = vpop.f32.mrb[0].mxu0
      %v4797 = vadd.f32 0.0, %v4796
      %v4798 = vpop.f32.mrb[0].mxu0
      %4799 = vmatprep.mubr.bf16.mxu0 0
      %4800 = vmatmul.mubr.bf16.gmra.mrb[0].mxu0 %v4652
      %v4801 = vpop.f32.mrb[0].mxu0
      %v4802 = vadd.f32 0.0, %v4801
      %v4803 = vpop.f32.mrb[0].mxu0
      %v4804 = vpop.f32.mrb[0].mxu0
      %v4805 = vadd.f32 0.0, %v4804
      %v4806 = vpop.f32.mrb[0].mxu0
      %4807 = vmatprep.mubr.bf16.mxu0 0
      %4808 = vmatmul.mubr.bf16.gmra.mrb[0].mxu0 %v4655
      %v4809 = vpop.f32.mrb[0].mxu0
      %v4810 = vadd.f32 0.0, %v4809
      %v4811 = vpop.f32.mrb[0].mxu0
      %v4812 = vpop.f32.mrb[0].mxu0
      %v4813 = vadd.f32 0.0, %v4812
      %v4814 = vpop.f32.mrb[0].mxu0
      %4815 = vmatprep.mubr.bf16.mxu0 0
      %4816 = vmatmul.mubr.bf16.gmra.mrb[0].mxu0 %v4658
      %v4817 = vpop.f32.mrb[0].mxu0
      %v4818 = vadd.f32 0.0, %v4817
      %v4819 = vpop.f32.mrb[0].mxu0
      %v4820 = vpop.f32.mrb[0].mxu0
      %v4821 = vadd.f32 0.0, %v4820
      %v4822 = vpop.f32.mrb[0].mxu0
      %4823 = vdwg.mxu0
      %v4824 = vadd.f32 %v4427, %v4698
      %v4825 = vadd.f32 %v4428, %v4701
      %v4826 = vadd.f32 %v4429, %v4706
      %v4827 = vadd.f32 %v4430, %v4709
      %v4828 = vadd.f32 %v4431, %v4714
      %v4829 = vadd.f32 %v4432, %v4717
      %v4830 = vadd.f32 %v4433, %v4722
      %v4831 = vadd.f32 %v4434, %v4725
      %v4832 = vadd.f32 %v4435, %v4730
      %v4833 = vadd.f32 %v4436, %v4733
      %v4834 = vadd.f32 %v4437, %v4738
      %v4835 = vadd.f32 %v4438, %v4741
      %v4836 = vadd.f32 %v4439, %v4746
      %v4837 = vadd.f32 %v4440, %v4749
      %v4838 = vadd.f32 %v4441, %v4754
      %v4839 = vadd.f32 %v4442, %v4757
      %v4840 = vadd.f32 %v4443, %v4762
      %v4841 = vadd.f32 %v4444, %v4765
      %v4842 = vadd.f32 %v4445, %v4770
      %v4843 = vadd.f32 %v4446, %v4773
      %v4844 = vadd.f32 %v4447, %v4778
      %v4845 = vadd.f32 %v4448, %v4781
      %v4846 = vadd.f32 %v4449, %v4786
      %v4847 = vadd.f32 %v4450, %v4789
      %v4848 = vadd.f32 %v4451, %v4794
      %v4849 = vadd.f32 %v4452, %v4797
      %v4850 = vadd.f32 %v4453, %v4802
      %v4851 = vadd.f32 %v4454, %v4805
      %v4852 = vadd.f32 %v4455, %v4810
      %v4853 = vadd.f32 %v4456, %v4813
      %v4854 = vadd.f32 %v4457, %v4818
      %v4855 = vadd.f32 %v4458, %v4821
      %v4856 = vld [vmem:[%s311] sm:$0x1]
      %v4858 = vlaneseq
      %v4859 = vshrl.u32 %v4858, 7
      %v4860 = vsub.s32 0, %v4859
      %v4861 = vrot.slane %v4856, %v4860
      %v4863 = vadd.f32 %v4824, %v4861
      %v4864 = vadd.f32 %v4825, %v4861
      %v4865 = vadd.f32 %v4826, %v4861
      %v4866 = vadd.f32 %v4827, %v4861
      %v4867 = vadd.f32 %v4828, %v4861
      %v4868 = vadd.f32 %v4829, %v4861
      %v4869 = vadd.f32 %v4830, %v4861
      %v4870 = vadd.f32 %v4831, %v4861
      %v4871 = vadd.f32 %v4832, %v4861
      %v4872 = vadd.f32 %v4833, %v4861
      %v4873 = vadd.f32 %v4834, %v4861
      %v4874 = vadd.f32 %v4835, %v4861
      %v4875 = vadd.f32 %v4836, %v4861
      %v4876 = vadd.f32 %v4837, %v4861
      %v4877 = vadd.f32 %v4838, %v4861
      %v4878 = vadd.f32 %v4839, %v4861
      %v4879 = vadd.f32 %v4840, %v4861
      %v4880 = vadd.f32 %v4841, %v4861
      %v4881 = vadd.f32 %v4842, %v4861
      %v4882 = vadd.f32 %v4843, %v4861
      %v4883 = vadd.f32 %v4844, %v4861
      %v4884 = vadd.f32 %v4845, %v4861
      %v4885 = vadd.f32 %v4846, %v4861
      %v4886 = vadd.f32 %v4847, %v4861
      %v4887 = vadd.f32 %v4848, %v4861
      %v4888 = vadd.f32 %v4849, %v4861
      %v4889 = vadd.f32 %v4850, %v4861
      %v4890 = vadd.f32 %v4851, %v4861
      %v4891 = vadd.f32 %v4852, %v4861
      %v4892 = vadd.f32 %v4853, %v4861
      %v4893 = vadd.f32 %v4854, %v4861
      %v4894 = vadd.f32 %v4855, %v4861
      %4895 = vmatprep.subr.mxu0 0.0
      %4896 = vmatpush1.msra.mxu0 %v4863
      %4897 = vmatprep.subr.mxu0 0.0
      %4898 = vmatpush1.msra.mxu0 %v4864
      %4899 = vmatprep.subr.mxu0 0.0
      %4900 = vmatpush1.msra.mxu0 %v4865
      %4901 = vmatprep.subr.mxu0 0.0
      %4902 = vmatpush1.msra.mxu0 %v4866
      %4903 = vmatprep.subr.mxu0 0.0
      %4904 = vmatpush1.msra.mxu0 %v4867
      %4905 = vmatprep.subr.mxu0 0.0
      %4906 = vmatpush1.msra.mxu0 %v4868
      %4907 = vmatprep.subr.mxu0 0.0
      %4908 = vmatpush1.msra.mxu0 %v4869
      %4909 = vmatprep.subr.mxu0 0.0
      %4910 = vmatpush1.msra.mxu0 %v4870
      %4911 = vmatprep.subr.mxu0 0.0
      %4912 = vmatpush1.msra.mxu0 %v4871
      %4913 = vmatprep.subr.mxu0 0.0
      %4914 = vmatpush1.msra.mxu0 %v4872
      %4915 = vmatprep.subr.mxu0 0.0
      %4916 = vmatpush1.msra.mxu0 %v4873
      %4917 = vmatprep.subr.mxu0 0.0
      %4918 = vmatpush1.msra.mxu0 %v4874
      %4919 = vmatprep.subr.mxu0 0.0
      %4920 = vmatpush1.msra.mxu0 %v4875
      %4921 = vmatprep.subr.mxu0 0.0
      %4922 = vmatpush1.msra.mxu0 %v4876
      %4923 = vmatprep.subr.mxu0 0.0
      %4924 = vmatpush1.msra.mxu0 %v4877
      %4925 = vmatprep.subr.mxu0 0.0
      %4926 = vmatpush1.msra.mxu0 %v4878
      %4927 = vmatprep.subr.mxu0 0.0
      %4928 = vmatpush1.msra.mxu0 %v4879
      %4929 = vmatprep.subr.mxu0 0.0
      %4930 = vmatpush1.msra.mxu0 %v4880
      %4931 = vmatprep.subr.mxu0 0.0
      %4932 = vmatpush1.msra.mxu0 %v4881
      %4933 = vmatprep.subr.mxu0 0.0
      %4934 = vmatpush1.msra.mxu0 %v4882
      %4935 = vmatprep.subr.mxu0 0.0
      %4936 = vmatpush1.msra.mxu0 %v4883
      %4937 = vmatprep.subr.mxu0 0.0
      %4938 = vmatpush1.msra.mxu0 %v4884
      %4939 = vmatprep.subr.mxu0 0.0
      %4940 = vmatpush1.msra.mxu0 %v4885
      %4941 = vmatprep.subr.mxu0 0.0
      %4942 = vmatpush1.msra.mxu0 %v4886
      %4943 = vmatprep.subr.mxu0 0.0
      %4944 = vmatpush1.msra.mxu0 %v4887
      %4945 = vmatprep.subr.mxu0 0.0
      %4946 = vmatpush1.msra.mxu0 %v4888
      %4947 = vmatprep.subr.mxu0 0.0
      %4948 = vmatpush1.msra.mxu0 %v4889
      %4949 = vmatprep.subr.mxu0 0.0
      %4950 = vmatpush1.msra.mxu0 %v4890
      %4951 = vmatprep.subr.mxu0 0.0
      %4952 = vmatpush1.msra.mxu0 %v4891
      %4953 = vmatprep.subr.mxu0 0.0
      %4954 = vmatpush1.msra.mxu0 %v4892
      %4955 = vmatprep.subr.mxu0 0.0
      %4956 = vmatpush1.msra.mxu0 %v4893
      %4957 = vmatprep.subr.mxu0 0.0
      %4958 = vmatpush1.msra.mxu0 %v4894
      %4959 = vmatprep.mubr.f32.mxu0 1.0
      %4960 = vmatmul.mubr.f32.gmra.mrb[0].mxu0 1.0
      %v4961 = vpop.f32.mrb[0].mxu0
      %v4962 = vadd.f32 0.0, %v4961
      %v4963 = vpop.f32.mrb[0].mxu0
      %4964 = vdwg.mxu0
      %vm4965 = vcmask 57344
      %4966 = vst.msk [vmem:[%s333] sm:$0x1] %vm4965, %v4962
      %v4967 = vmul.f32 %v4863, %v4863
      %v4968 = vmul.f32 %v4864, %v4864
      %v4969 = vmul.f32 %v4865, %v4865
      %v4970 = vmul.f32 %v4866, %v4866
      %v4971 = vmul.f32 %v4867, %v4867
      %v4972 = vmul.f32 %v4868, %v4868
      %v4973 = vmul.f32 %v4869, %v4869
      %v4974 = vmul.f32 %v4870, %v4870
      %v4975 = vmul.f32 %v4871, %v4871
      %v4976 = vmul.f32 %v4872, %v4872
      %v4977 = vmul.f32 %v4873, %v4873
      %v4978 = vmul.f32 %v4874, %v4874
      %v4979 = vmul.f32 %v4875, %v4875
      %v4980 = vmul.f32 %v4876, %v4876
      %v4981 = vmul.f32 %v4877, %v4877
      %v4982 = vmul.f32 %v4878, %v4878
      %v4983 = vmul.f32 %v4879, %v4879
      %v4984 = vmul.f32 %v4880, %v4880
      %v4985 = vmul.f32 %v4881, %v4881
      %v4986 = vmul.f32 %v4882, %v4882
      %v4987 = vmul.f32 %v4883, %v4883
      %v4988 = vmul.f32 %v4884, %v4884
      %v4989 = vmul.f32 %v4885, %v4885
      %v4990 = vmul.f32 %v4886, %v4886
      %v4991 = vmul.f32 %v4887, %v4887
      %v4992 = vmul.f32 %v4888, %v4888
      %v4993 = vmul.f32 %v4889, %v4889
      %v4994 = vmul.f32 %v4890, %v4890
      %v4995 = vmul.f32 %v4891, %v4891
      %v4996 = vmul.f32 %v4892, %v4892
      %v4997 = vmul.f32 %v4893, %v4893
      %v4998 = vmul.f32 %v4894, %v4894
      %4999 = vmatprep.subr.mxu0 0.0
      %5000 = vmatpush1.msra.mxu0 %v4967
      %5001 = vmatprep.subr.mxu0 0.0
      %5002 = vmatpush1.msra.mxu0 %v4968
      %5003 = vmatprep.subr.mxu0 0.0
      %5004 = vmatpush1.msra.mxu0 %v4969
      %5005 = vmatprep.subr.mxu0 0.0
      %5006 = vmatpush1.msra.mxu0 %v4970
      %5007 = vmatprep.subr.mxu0 0.0
      %5008 = vmatpush1.msra.mxu0 %v4971
      %5009 = vmatprep.subr.mxu0 0.0
      %5010 = vmatpush1.msra.mxu0 %v4972
      %5011 = vmatprep.subr.mxu0 0.0
      %5012 = vmatpush1.msra.mxu0 %v4973
      %5013 = vmatprep.subr.mxu0 0.0
      %5014 = vmatpush1.msra.mxu0 %v4974
      %5015 = vmatprep.subr.mxu0 0.0
      %5016 = vmatpush1.msra.mxu0 %v4975
      %5017 = vmatprep.subr.mxu0 0.0
      %5018 = vmatpush1.msra.mxu0 %v4976
      %5019 = vmatprep.subr.mxu0 0.0
      %5020 = vmatpush1.msra.mxu0 %v4977
      %5021 = vmatprep.subr.mxu0 0.0
      %5022 = vmatpush1.msra.mxu0 %v4978
      %5023 = vmatprep.subr.mxu0 0.0
      %5024 = vmatpush1.msra.mxu0 %v4979
      %5025 = vmatprep.subr.mxu0 0.0
      %5026 = vmatpush1.msra.mxu0 %v4980
      %5027 = vmatprep.subr.mxu0 0.0
      %5028 = vmatpush1.msra.mxu0 %v4981
      %5029 = vmatprep.subr.mxu0 0.0
      %5030 = vmatpush1.msra.mxu0 %v4982
      %5031 = vmatprep.subr.mxu0 0.0
      %5032 = vmatpush1.msra.mxu0 %v4983
      %5033 = vmatprep.subr.mxu0 0.0
      %5034 = vmatpush1.msra.mxu0 %v4984
      %5035 = vmatprep.subr.mxu0 0.0
      %5036 = vmatpush1.msra.mxu0 %v4985
      %5037 = vmatprep.subr.mxu0 0.0
      %5038 = vmatpush1.msra.mxu0 %v4986
      %5039 = vmatprep.subr.mxu0 0.0
      %5040 = vmatpush1.msra.mxu0 %v4987
      %5041 = vmatprep.subr.mxu0 0.0
      %5042 = vmatpush1.msra.mxu0 %v4988
      %5043 = vmatprep.subr.mxu0 0.0
      %5044 = vmatpush1.msra.mxu0 %v4989
      %5045 = vmatprep.subr.mxu0 0.0
      %5046 = vmatpush1.msra.mxu0 %v4990
      %5047 = vmatprep.subr.mxu0 0.0
      %5048 = vmatpush1.msra.mxu0 %v4991
      %5049 = vmatprep.subr.mxu0 0.0
      %5050 = vmatpush1.msra.mxu0 %v4992
      %5051 = vmatprep.subr.mxu0 0.0
      %5052 = vmatpush1.msra.mxu0 %v4993
      %5053 = vmatprep.subr.mxu0 0.0
      %5054 = vmatpush1.msra.mxu0 %v4994
      %5055 = vmatprep.subr.mxu0 0.0
      %5056 = vmatpush1.msra.mxu0 %v4995
      %5057 = vmatprep.subr.mxu0 0.0
      %5058 = vmatpush1.msra.mxu0 %v4996
      %5059 = vmatprep.subr.mxu0 0.0
      %5060 = vmatpush1.msra.mxu0 %v4997
      %5061 = vmatprep.subr.mxu0 0.0
      %5062 = vmatpush1.msra.mxu0 %v4998
      %5063 = vmatprep.mubr.f32.mxu0 1.0
      %5064 = vmatmul.mubr.f32.gmra.mrb[0].mxu0 1.0
      %v5065 = vpop.f32.mrb[0].mxu0
      %v5066 = vadd.f32 0.0, %v5065
      %v5067 = vpop.f32.mrb[0].mxu0
      %5068 = vdwg.mxu0
      %5069 = vst.msk [vmem:[%s342] sm:$0x1] %vm4965, %v5066
      %v5070 = vpack.c.bf16 %v4864, %v4863
      %v5071 = vpack.c.bf16 %v4866, %v4865
      %v5072 = vpack.c.bf16 %v4868, %v4867
      %v5073 = vpack.c.bf16 %v4870, %v4869
      %v5074 = vpack.c.bf16 %v4872, %v4871
      %v5075 = vpack.c.bf16 %v4874, %v4873
      %v5076 = vpack.c.bf16 %v4876, %v4875
      %v5077 = vpack.c.bf16 %v4878, %v4877
      %v5078 = vpack.c.bf16 %v4880, %v4879
      %v5079 = vpack.c.bf16 %v4882, %v4881
      %v5080 = vpack.c.bf16 %v4884, %v4883
      %v5081 = vpack.c.bf16 %v4886, %v4885
      %v5082 = vpack.c.bf16 %v4888, %v4887
      %v5083 = vpack.c.bf16 %v4890, %v4889
      %v5084 = vpack.c.bf16 %v4892, %v4891
      %v5085 = vpack.c.bf16 %v4894, %v4893
      %v5102 = vunpack.c.l.b16 %v5070
      %v5103 = vunpack.c.h.b16 %v5070
      %v5104 = vunpack.c.l.b16 %v5071
      %v5105 = vunpack.c.h.b16 %v5071
      %v5106 = vunpack.c.l.b16 %v5072
      %v5107 = vunpack.c.h.b16 %v5072
      %v5108 = vunpack.c.l.b16 %v5073
      %v5109 = vunpack.c.h.b16 %v5073
      %v5110 = vunpack.c.l.b16 %v5074
      %v5111 = vunpack.c.h.b16 %v5074
      %v5112 = vunpack.c.l.b16 %v5075
      %v5113 = vunpack.c.h.b16 %v5075
      %v5114 = vunpack.c.l.b16 %v5076
      %v5115 = vunpack.c.h.b16 %v5076
      %v5116 = vunpack.c.l.b16 %v5077
      %v5117 = vunpack.c.h.b16 %v5077
      %v5118 = vunpack.c.l.b16 %v5078
      %v5119 = vunpack.c.h.b16 %v5078
      %v5120 = vunpack.c.l.b16 %v5079
      %v5121 = vunpack.c.h.b16 %v5079
      %v5122 = vunpack.c.l.b16 %v5080
      %v5123 = vunpack.c.h.b16 %v5080
      %v5124 = vunpack.c.l.b16 %v5081
      %v5125 = vunpack.c.h.b16 %v5081
      %v5126 = vunpack.c.l.b16 %v5082
      %v5127 = vunpack.c.h.b16 %v5082
      %v5128 = vunpack.c.l.b16 %v5083
      %v5129 = vunpack.c.h.b16 %v5083
      %v5130 = vunpack.c.l.b16 %v5084
      %v5131 = vunpack.c.h.b16 %v5084
      %v5132 = vunpack.c.l.b16 %v5085
      %v5133 = vunpack.c.h.b16 %v5085
      %v5134 = vpack.c.b16 %v5102, %v5102
      %v5135 = vpack.c.b16 %v5103, %v5103
      %v5136 = vpack.c.b16 %v5104, %v5104
      %v5137 = vpack.c.b16 %v5105, %v5105
      %v5138 = vpack.c.b16 %v5106, %v5106
      %v5139 = vpack.c.b16 %v5107, %v5107
      %v5140 = vpack.c.b16 %v5108, %v5108
      %v5141 = vpack.c.b16 %v5109, %v5109
      %v5142 = vpack.c.b16 %v5110, %v5110
      %v5143 = vpack.c.b16 %v5111, %v5111
      %v5144 = vpack.c.b16 %v5112, %v5112
      %v5145 = vpack.c.b16 %v5113, %v5113
      %v5146 = vpack.c.b16 %v5114, %v5114
      %v5147 = vpack.c.b16 %v5115, %v5115
      %v5148 = vpack.c.b16 %v5116, %v5116
      %v5149 = vpack.c.b16 %v5117, %v5117
      %v5150 = vpack.c.b16 %v5118, %v5118
      %v5151 = vpack.c.b16 %v5119, %v5119
      %v5152 = vpack.c.b16 %v5120, %v5120
      %v5153 = vpack.c.b16 %v5121, %v5121
      %v5154 = vpack.c.b16 %v5122, %v5122
      %v5155 = vpack.c.b16 %v5123, %v5123
      %v5156 = vpack.c.b16 %v5124, %v5124
      %v5157 = vpack.c.b16 %v5125, %v5125
      %v5158 = vpack.c.b16 %v5126, %v5126
      %v5159 = vpack.c.b16 %v5127, %v5127
      %v5160 = vpack.c.b16 %v5128, %v5128
      %v5161 = vpack.c.b16 %v5129, %v5129
      %v5162 = vpack.c.b16 %v5130, %v5130
      %v5163 = vpack.c.b16 %v5131, %v5131
      %v5164 = vpack.c.b16 %v5132, %v5132
      %v5165 = vpack.c.b16 %v5133, %v5133
      %vm5198 = vcmask 60416
      %5199 = vst.msk [vmem:[%s323] sm:$0xf] %vm5198, %v5134
      %5200 = vst.msk [vmem:[%s323 + $0x4] sm:$0xf] %vm5198, %v5135
      %5201 = vst.msk [vmem:[%s323 + $0x8] sm:$0xf] %vm5198, %v5136
      %5202 = vst.msk [vmem:[%s323 + $0xc] sm:$0xf] %vm5198, %v5137
      %5203 = vst.msk [vmem:[%s323 + $0x10] sm:$0xf] %vm5198, %v5138
      %5204 = vst.msk [vmem:[%s323 + $0x14] sm:$0xf] %vm5198, %v5139
      %5205 = vst.msk [vmem:[%s323 + $0x18] sm:$0xf] %vm5198, %v5140
      %5206 = vst.msk [vmem:[%s323 + $0x1c] sm:$0xf] %vm5198, %v5141
      %5207 = vst.msk [vmem:[%s323 + $0x20] sm:$0xf] %vm5198, %v5142
      %5208 = vst.msk [vmem:[%s323 + $0x24] sm:$0xf] %vm5198, %v5143
      %5209 = vst.msk [vmem:[%s323 + $0x28] sm:$0xf] %vm5198, %v5144
      %5210 = vst.msk [vmem:[%s323 + $0x2c] sm:$0xf] %vm5198, %v5145
      %5211 = vst.msk [vmem:[%s323 + $0x30] sm:$0xf] %vm5198, %v5146
      %5212 = vst.msk [vmem:[%s323 + $0x34] sm:$0xf] %vm5198, %v5147
      %5213 = vst.msk [vmem:[%s323 + $0x38] sm:$0xf] %vm5198, %v5148
      %5214 = vst.msk [vmem:[%s323 + $0x3c] sm:$0xf] %vm5198, %v5149
      %5215 = vst.msk [vmem:[%s323 + $0x40] sm:$0xf] %vm5198, %v5150
      %5216 = vst.msk [vmem:[%s323 + $0x44] sm:$0xf] %vm5198, %v5151
      %5217 = vst.msk [vmem:[%s323 + $0x48] sm:$0xf] %vm5198, %v5152
      %5218 = vst.msk [vmem:[%s323 + $0x4c] sm:$0xf] %vm5198, %v5153
      %5219 = vst.msk [vmem:[%s323 + $0x50] sm:$0xf] %vm5198, %v5154
      %5220 = vst.msk [vmem:[%s323 + $0x54] sm:$0xf] %vm5198, %v5155
      %5221 = vst.msk [vmem:[%s323 + $0x58] sm:$0xf] %vm5198, %v5156
      %5222 = vst.msk [vmem:[%s323 + $0x5c] sm:$0xf] %vm5198, %v5157
      %5223 = vst.msk [vmem:[%s323 + $0x60] sm:$0xf] %vm5198, %v5158
      %5224 = vst.msk [vmem:[%s323 + $0x64] sm:$0xf] %vm5198, %v5159
      %5225 = vst.msk [vmem:[%s323 + $0x68] sm:$0xf] %vm5198, %v5160
      %5226 = vst.msk [vmem:[%s323 + $0x6c] sm:$0xf] %vm5198, %v5161
      %5227 = vst.msk [vmem:[%s323 + $0x70] sm:$0xf] %vm5198, %v5162
      %5228 = vst.msk [vmem:[%s323 + $0x74] sm:$0xf] %vm5198, %v5163
      %5229 = vst.msk [vmem:[%s323 + $0x78] sm:$0xf] %vm5198, %v5164
      %5230 = vst.msk [vmem:[%s323 + $0x7c] sm:$0xf] %vm5198, %v5165
      %s5231 = smul.u32 32, %s23
      %p5232 = scmp.lt.s32.totalorder %s22, 1
      %s5233 = scalar_select %p5232, %s22, 1
      %p5234 = scmp.lt.s32.totalorder %s5231, 31
      %s5235 = scalar_select %p5234, %s5231, 31
      %p5236 = scmp.lt.s32.totalorder %s24, 0
      %s5237 = scalar_select %p5236, %s24, 0
      %s5238 = sadd.s32 %s5237, %s5235
      %s5239 = smul.addr %s5233, 32
      %s5240 = sadd.s32 %s5238, %s5239
      %s5241 = smul.addr %s5240, 4
      %s5242 = scalar_lea.vmem %s3, %s5241
      %p5243 = scmp.lt.s32.totalorder %s22, 1
      %s5244 = scalar_select %p5243, %s22, 1
      %p5245 = scmp.lt.s32.totalorder %s23, 0
      %s5246 = scalar_select %p5245, %s23, 0
      %p5247 = scmp.lt.s32.totalorder %s24, 0
      %s5248 = scalar_select %p5247, %s24, 0
      %s5249 = sadd.s32 %s5248, %s5246
      %s5250 = sadd.s32 %s5249, %s5244
      %s5251 = scalar_lea.vmem %s4, %s5250
      %p5252 = scmp.lt.s32.totalorder %s22, 1
      %s5253 = scalar_select %p5252, %s22, 1
      %p5254 = scmp.lt.s32.totalorder %s23, 0
      %s5255 = scalar_select %p5254, %s23, 0
      %p5256 = scmp.lt.s32.totalorder %s24, 0
      %s5257 = scalar_select %p5256, %s24, 0
      %s5258 = sadd.s32 %s5257, %s5255
      %s5259 = sadd.s32 %s5258, %s5253
      %s5260 = scalar_lea.vmem %s5, %s5259
      // Predicated region
      $region53: #{double_conv.3} parent=31 // pred_check
        %p5261 = pneg %p136
      $region54: #{double_conv.3} parent=31 // pred_check_branch
        %5263 = sbr.rel (%p5261) target = $region56
      $region55: #{double_conv.3} parent=31 // pred_region
        %s5264 = smul.u32 32, %s23
      $region56: #{double_conv.3} parent=31 // pred_fallthru
        _
      // Predicated region
      $region57: #{double_conv.3} parent=31 // pred_check
        %p5265 = pneg %p166
      $region58: #{double_conv.3} parent=31 // pred_check_branch
        %5267 = sbr.rel (%p5265) target = $region60
      $region59: #{double_conv.3} parent=31 // pred_region
        _
      $region60: #{double_conv.3} parent=31 // pred_fallthru
        _
      // Predicated region
      $region61: #{double_conv.3} parent=31 // pred_check
        %p5268 = pneg %p196
      $region62: #{double_conv.3} parent=31 // pred_check_branch
        %5270 = sbr.rel (%p5268) target = $region64
      $region63: #{double_conv.3} parent=31 // pred_region
        _
      $region64: #{double_conv.3} parent=31 // pred_fallthru
        _
    $region32: #{double_conv.3} parent=5 // pred_fallthru
      _
    %p5271 = scmp.le.s32.totalorder 2, %s12
    // Predicated region
    $region65: #{double_conv.3} parent=5 // pred_check
      %p5272 = pneg %p5271
    $region66: #{double_conv.3} parent=5 // pred_check_branch
      %5274 = sbr.rel (%p5272) target = $region68
    $region67: #{double_conv.3} parent=5 // pred_region
      %s5275 = ssub.s32 %s12, 2
      // Predicated region
      $region69: #{double_conv.3} parent=67 // pred_check
        %p5276 = pneg %p142
      $region70: #{double_conv.3} parent=67 // pred_check_branch
        %5278 = sbr.rel (%p5276) target = $region72
      $region71: #{double_conv.3} parent=67 // pred_region
        %s5279 = smul.u32 32, %s26
        %p5280 = scmp.lt.s32.totalorder %s25, 1
        %s5281 = scalar_select %p5280, %s25, 1
        %p5282 = scmp.lt.s32.totalorder %s5279, 31
        %s5283 = scalar_select %p5282, %s5279, 31
        %p5284 = scmp.lt.s32.totalorder %s27, 0
        %s5285 = scalar_select %p5284, %s27, 0
        %s5286 = sadd.s32 %s5285, %s5283
        %s5287 = smul.addr %s5281, 32
        %s5288 = sadd.s32 %s5286, %s5287
        %s5289 = smul.addr %s5288, 4
        %s5290 = scalar_lea.vmem %s3, %s5289
      $region72: #{double_conv.3} parent=67 // pred_fallthru
        _
      // Predicated region
      $region73: #{double_conv.3} parent=67 // pred_check
        %p5291 = pneg %p172
      $region74: #{double_conv.3} parent=67 // pred_check_branch
        %5293 = sbr.rel (%p5291) target = $region76
      $region75: #{double_conv.3} parent=67 // pred_region
        %p5294 = scmp.lt.s32.totalorder %s25, 1
        %s5295 = scalar_select %p5294, %s25, 1
        %p5296 = scmp.lt.s32.totalorder %s26, 0
        %s5297 = scalar_select %p5296, %s26, 0
        %p5298 = scmp.lt.s32.totalorder %s27, 0
        %s5299 = scalar_select %p5298, %s27, 0
        %s5300 = sadd.s32 %s5299, %s5297
        %s5301 = sadd.s32 %s5300, %s5295
        %s5302 = scalar_lea.vmem %s4, %s5301
      $region76: #{double_conv.3} parent=67 // pred_fallthru
        _
      // Predicated region
      $region77: #{double_conv.3} parent=67 // pred_check
        %p5303 = pneg %p202
      $region78: #{double_conv.3} parent=67 // pred_check_branch
        %5305 = sbr.rel (%p5303) target = $region80
      $region79: #{double_conv.3} parent=67 // pred_region
        %p5306 = scmp.lt.s32.totalorder %s25, 1
        %s5307 = scalar_select %p5306, %s25, 1
        %p5308 = scmp.lt.s32.totalorder %s26, 0
        %s5309 = scalar_select %p5308, %s26, 0
        %p5310 = scmp.lt.s32.totalorder %s27, 0
        %s5311 = scalar_select %p5310, %s27, 0
        %s5312 = sadd.s32 %s5311, %s5309
        %s5313 = sadd.s32 %s5312, %s5307
        %s5314 = scalar_lea.vmem %s5, %s5313
      $region80: #{double_conv.3} parent=67 // pred_fallthru
        _
    $region68: #{double_conv.3} parent=5 // pred_fallthru
      _
  $region6: #{double_conv.3} parent=0 // loop_footer
    %s16 = sadd.s32 1, %s12
  $region7: #{double_conv.3} parent=0 // loop_footer_branch
    %11 = sbr.rel target = $region3
  $region8: #{double_conv.3} parent=0 // loop_exit
    _

// kernel: double_conv.4
$region0: #{double_conv.4}
  #allocation0 [shape = 'u32[]', space=smem, size = 0x4, offset = 0x4, fixed_abs, tag = 'smem constant byte address 0x4 - core index']
  #allocation1 [shape = 'u32[144,128]{1,0:T(1,128)}', space=vmem, size = 0x12000, scoped, tag = 'internal scratch']
  #allocation2 [shape = 'bf16[304,8]{1,0:T(16,128)(2,1)}', space=vmem, size = 0x13000, scoped, tag = 'scratch operand']
  %s0 = inlined_call_operand.vmem [shape: bf16[2,256,8], index: 0, kind: input, shape index: {}]
  %s1 = inlined_call_operand.vmem [shape: bf16[72,8], index: 1, kind: input, shape index: {}]
  %s2 = inlined_call_operand.vmem [shape: f32[1,8], index: 2, kind: input, shape index: {}]
  %s3 = inlined_call_operand.vmem [shape: f32[1,8], index: 3, kind: input, shape index: {}]
  %s4 = inlined_call_operand.vmem [shape: f32[1,8], index: 4, kind: input, shape index: {}]
  %s5 = inlined_call_operand.vmem [shape: bf16[2,256,8], index: 5, kind: output, shape index: {0}]
  %s6 = inlined_call_operand.vmem [shape: f32[2,1,1,8], index: 6, kind: output, shape index: {1}]
  %s7 = inlined_call_operand.vmem [shape: f32[2,1,1,8], index: 7, kind: output, shape index: {2}]
  %8 = xla_tuple %s5, %s6, %s7
  %s9 = sld [smem:[#allocation0]]
  $region89: #{double_conv.4} parent=0
    _
  %s11 = ssub.s32 1, %s9
  %s12 = scalar_select 0, %s11, %s9
  loop: start=0, step=1, limit=4
  $region2: #{double_conv.4} parent=0 // loop_pre_header
    _
  $region3: #{double_conv.4} parent=0 // loop_header
    %s14 = sphi 0, %s18
    %p15 = scmp.ge.s32.totalorder %s14, 4
    %s21 = sphi 0, %s40
    %s22 = sphi 0, %s36
    %s23 = sphi 0, %s32
    %s24 = sphi 0, %s21
    %s25 = sphi 0, %s22
    %s26 = sphi 0, %s23
    %s27 = sphi 0, %s24
    %s28 = sphi 0, %s25
    %s29 = sphi 0, %s26
    %s43 = sphi 0, %s45
    %s46 = sphi 0, %s43
    %s47 = sphi 0, %s46
    %s63 = sphi 0, %s47
    %s69 = sphi 0, %s71
    %s72 = sphi 0, %s69
    %s73 = sphi 0, %s72
    %s89 = sphi 0, %s73
    %s95 = sphi 0, %s97
    %s98 = sphi 0, %s95
    %s99 = sphi 0, %s98
    %s115 = sphi 0, %s99
    %s119 = sphi 0, %s119
    %s121 = sphi 0, %s119
    %s122 = sphi 0, %s121
    %s136 = sphi 0, %s122
    %s140 = sphi 0, %s140
    %s142 = sphi 0, %s140
    %s143 = sphi 0, %s142
    %s157 = sphi 0, %s143
    %s167 = sphi 0, %s169
    %s170 = sphi 0, %s167
    %s171 = sphi 0, %s170
    %s187 = sphi 0, %s171
    %s197 = sphi 0, %s199
    %s200 = sphi 0, %s197
    %s201 = sphi 0, %s200
    %s217 = sphi 0, %s201
    %s227 = sphi 0, %s229
    %s230 = sphi 0, %s227
    %s231 = sphi 0, %s230
    %s247 = sphi 0, %s231
  $region4: #{double_conv.4} parent=0 // loop_header_branch
    %17 = sbr.rel (%p15) target = $region8
  $region5: #{double_conv.4} parent=0 // loop_body
    %s19 = ssub.s32 %s14, 1
    %s20 = ssub.s32 %s14, 2
    %s30 = sadd.s32 1, %s23
    %p31 = scmp.ge.s32.totalorder %s30, 1
    %s32 = scalar_select %p31, 0, %s30
    %s33 = sadd.s32 1, %s22
    %s34 = scalar_select %p31, %s33, %s22
    %p35 = scmp.ge.s32.totalorder %s34, 1
    %s36 = scalar_select %p35, 0, %s34
    %s37 = sadd.s32 1, %s21
    %s38 = scalar_select %p35, %s37, %s21
    %p39 = scmp.ge.s32.totalorder %s38, 2
    %s40 = scalar_select %p39, 0, %s38
    %s41 = ssub.s32 %s21, %s40
    %p42 = scmp.eq.s32.totalorder %s41, 0
    %s44 = sadd.s32 %s43, 1
    %s45 = scalar_select %p42, %s43, %s44
    %p48 = pneg %p42
    %p49 = scmp.eq.s32.totalorder %s14, 1
    %p50 = por %p48, %p49
    %p51 = scmp.ne.s32.totalorder %s43, %s46
    %p52 = scmp.eq.s32.totalorder %s14, 0
    %p53 = por %p51, %p52
    %p54 = scmp.ne.s32.totalorder %s43, %s46
    %p55 = scmp.eq.s32.totalorder %s19, 1
    %p56 = por %p54, %p55
    %p57 = scmp.ne.s32.totalorder %s46, %s47
    %p58 = scmp.eq.s32.totalorder %s19, 0
    %p59 = por %p57, %p58
    %p60 = scmp.ne.s32.totalorder %s46, %s47
    %p61 = scmp.eq.s32.totalorder %s20, 1
    %p62 = por %p60, %p61
    %p64 = scmp.ne.s32.totalorder %s47, %s63
    %p65 = scmp.eq.s32.totalorder %s20, 0
    %p66 = por %p64, %p65
    %s67 = ssub.s32 %s23, %s32
    %p68 = scmp.eq.s32.totalorder %s67, 0
    %s70 = sadd.s32 %s69, 1
    %s71 = scalar_select %p68, %s69, %s70
    %p74 = pneg %p68
    %p75 = scmp.eq.s32.totalorder %s14, 1
    %p76 = por %p74, %p75
    %p77 = scmp.ne.s32.totalorder %s69, %s72
    %p78 = scmp.eq.s32.totalorder %s14, 0
    %p79 = por %p77, %p78
    %p80 = scmp.ne.s32.totalorder %s69, %s72
    %p81 = scmp.eq.s32.totalorder %s19, 1
    %p82 = por %p80, %p81
    %p83 = scmp.ne.s32.totalorder %s72, %s73
    %p84 = scmp.eq.s32.totalorder %s19, 0
    %p85 = por %p83, %p84
    %p86 = scmp.ne.s32.totalorder %s72, %s73
    %p87 = scmp.eq.s32.totalorder %s20, 1
    %p88 = por %p86, %p87
    %p90 = scmp.ne.s32.totalorder %s73, %s89
    %p91 = scmp.eq.s32.totalorder %s20, 0
    %p92 = por %p90, %p91
    %s93 = ssub.s32 %s23, %s32
    %p94 = scmp.eq.s32.totalorder %s93, 0
    %s96 = sadd.s32 %s95, 1
    %s97 = scalar_select %p94, %s95, %s96
    %p100 = pneg %p94
    %p101 = scmp.eq.s32.totalorder %s14, 1
    %p102 = por %p100, %p101
    %p103 = scmp.ne.s32.totalorder %s95, %s98
    %p104 = scmp.eq.s32.totalorder %s14, 0
    %p105 = por %p103, %p104
    %p106 = scmp.ne.s32.totalorder %s95, %s98
    %p107 = scmp.eq.s32.totalorder %s19, 1
    %p108 = por %p106, %p107
    %p109 = scmp.ne.s32.totalorder %s98, %s99
    %p110 = scmp.eq.s32.totalorder %s19, 0
    %p111 = por %p109, %p110
    %p112 = scmp.ne.s32.totalorder %s98, %s99
    %p113 = scmp.eq.s32.totalorder %s20, 1
    %p114 = por %p112, %p113
    %p116 = scmp.ne.s32.totalorder %s99, %s115
    %p117 = scmp.eq.s32.totalorder %s20, 0
    %p118 = por %p116, %p117
    %s120 = sadd.s32 %s119, 1
    %p123 = scmp.eq.s32.totalorder %s14, 1
    %p124 = scmp.ne.s32.totalorder %s119, %s121
    %p125 = scmp.eq.s32.totalorder %s14, 0
    %p126 = por %p124, %p125
    %p127 = scmp.ne.s32.totalorder %s119, %s121
    %p128 = scmp.eq.s32.totalorder %s19, 1
    %p129 = por %p127, %p128
    %p130 = scmp.ne.s32.totalorder %s121, %s122
    %p131 = scmp.eq.s32.totalorder %s19, 0
    %p132 = por %p130, %p131
    %p133 = scmp.ne.s32.totalorder %s121, %s122
    %p134 = scmp.eq.s32.totalorder %s20, 1
    %p135 = por %p133, %p134
    %p137 = scmp.ne.s32.totalorder %s122, %s136
    %p138 = scmp.eq.s32.totalorder %s20, 0
    %p139 = por %p137, %p138
    %s141 = sadd.s32 %s140, 1
    %p144 = scmp.eq.s32.totalorder %s14, 1
    %p145 = scmp.ne.s32.totalorder %s140, %s142
    %p146 = scmp.eq.s32.totalorder %s14, 0
    %p147 = por %p145, %p146
    %p148 = scmp.ne.s32.totalorder %s140, %s142
    %p149 = scmp.eq.s32.totalorder %s19, 1
    %p150 = por %p148, %p149
    %p151 = scmp.ne.s32.totalorder %s142, %s143
    %p152 = scmp.eq.s32.totalorder %s19, 0
    %p153 = por %p151, %p152
    %p154 = scmp.ne.s32.totalorder %s142, %s143
    %p155 = scmp.eq.s32.totalorder %s20, 1
    %p156 = por %p154, %p155
    %p158 = scmp.ne.s32.totalorder %s143, %s157
    %p159 = scmp.eq.s32.totalorder %s20, 0
    %p160 = por %p158, %p159
    %s161 = ssub.s32 %s21, %s40
    %s162 = ssub.s32 %s22, %s36
    %s163 = sor.u32 %s161, %s162
    %s164 = ssub.s32 %s23, %s32
    %s165 = sor.u32 %s163, %s164
    %p166 = scmp.eq.s32.totalorder %s165, 0
    %s168 = sadd.s32 %s167, 1
    %s169 = scalar_select %p166, %s167, %s168
    %p172 = pneg %p166
    %p173 = scmp.eq.s32.totalorder %s14, 1
    %p174 = por %p172, %p173
    %p175 = scmp.ne.s32.totalorder %s167, %s170
    %p176 = scmp.eq.s32.totalorder %s14, 0
    %p177 = por %p175, %p176
    %p178 = scmp.ne.s32.totalorder %s167, %s170
    %p179 = scmp.eq.s32.totalorder %s19, 1
    %p180 = por %p178, %p179
    %p181 = scmp.ne.s32.totalorder %s170, %s171
    %p182 = scmp.eq.s32.totalorder %s19, 0
    %p183 = por %p181, %p182
    %p184 = scmp.ne.s32.totalorder %s170, %s171
    %p185 = scmp.eq.s32.totalorder %s20, 1
    %p186 = por %p184, %p185
    %p188 = scmp.ne.s32.totalorder %s171, %s187
    %p189 = scmp.eq.s32.totalorder %s20, 0
    %p190 = por %p188, %p189
    %s191 = ssub.s32 %s21, %s40
    %s192 = ssub.s32 %s22, %s36
    %s193 = sor.u32 %s191, %s192
    %s194 = ssub.s32 %s23, %s32
    %s195 = sor.u32 %s193, %s194
    %p196 = scmp.eq.s32.totalorder %s195, 0
    %s198 = sadd.s32 %s197, 1
    %s199 = scalar_select %p196, %s197, %s198
    %p202 = pneg %p196
    %p203 = scmp.eq.s32.totalorder %s14, 1
    %p204 = por %p202, %p203
    %p205 = scmp.ne.s32.totalorder %s197, %s200
    %p206 = scmp.eq.s32.totalorder %s14, 0
    %p207 = por %p205, %p206
    %p208 = scmp.ne.s32.totalorder %s197, %s200
    %p209 = scmp.eq.s32.totalorder %s19, 1
    %p210 = por %p208, %p209
    %p211 = scmp.ne.s32.totalorder %s200, %s201
    %p212 = scmp.eq.s32.totalorder %s19, 0
    %p213 = por %p211, %p212
    %p214 = scmp.ne.s32.totalorder %s200, %s201
    %p215 = scmp.eq.s32.totalorder %s20, 1
    %p216 = por %p214, %p215
    %p218 = scmp.ne.s32.totalorder %s201, %s217
    %p219 = scmp.eq.s32.totalorder %s20, 0
    %p220 = por %p218, %p219
    %s221 = ssub.s32 %s21, %s40
    %s222 = ssub.s32 %s22, %s36
    %s223 = sor.u32 %s221, %s222
    %s224 = ssub.s32 %s23, %s32
    %s225 = sor.u32 %s223, %s224
    %p226 = scmp.eq.s32.totalorder %s225, 0
    %s228 = sadd.s32 %s227, 1
    %s229 = scalar_select %p226, %s227, %s228
    %p232 = pneg %p226
    %p233 = scmp.eq.s32.totalorder %s14, 1
    %p234 = por %p232, %p233
    %p235 = scmp.ne.s32.totalorder %s227, %s230
    %p236 = scmp.eq.s32.totalorder %s14, 0
    %p237 = por %p235, %p236
    %p238 = scmp.ne.s32.totalorder %s227, %s230
    %p239 = scmp.eq.s32.totalorder %s19, 1
    %p240 = por %p238, %p239
    %p241 = scmp.ne.s32.totalorder %s230, %s231
    %p242 = scmp.eq.s32.totalorder %s19, 0
    %p243 = por %p241, %p242
    %p244 = scmp.ne.s32.totalorder %s230, %s231
    %p245 = scmp.eq.s32.totalorder %s20, 1
    %p246 = por %p244, %p245
    %p248 = scmp.ne.s32.totalorder %s231, %s247
    %p249 = scmp.eq.s32.totalorder %s20, 0
    %p250 = por %p248, %p249
    %p251 = scmp.le.s32.totalorder 1, %s14
    %p252 = scmp.lt.s32.totalorder %s14, 3
    %p253 = pnand %p251, %p252
    %p254 = pneg %p253
    // Predicated region
    $region9: #{double_conv.4} parent=5 // pred_check
      _
    $region10: #{double_conv.4} parent=5 // pred_check_branch
      %256 = sbr.rel (%p253) target = $region12
    $region11: #{double_conv.4} parent=5 // pred_region
      %s257 = ssub.s32 %s14, 1
      // Predicated region
      $region13: #{double_conv.4} parent=11 // pred_check
        %p258 = pneg %p85
      $region14: #{double_conv.4} parent=11 // pred_check_branch
        %260 = sbr.rel (%p258) target = $region16
      $region15: #{double_conv.4} parent=11 // pred_region
        %p261 = scmp.lt.s32.totalorder %s26, 0
        %s262 = scalar_select %p261, %s26, 0
        %s263 = smul.addr %s262, 4
        %s264 = scalar_lea.vmem %s1, %s263
      $region16: #{double_conv.4} parent=11 // pred_fallthru
        _
      // Predicated region
      $region17: #{double_conv.4} parent=11 // pred_check
        %p265 = pneg %p111
      $region18: #{double_conv.4} parent=11 // pred_check_branch
        %267 = sbr.rel (%p265) target = $region20
      $region19: #{double_conv.4} parent=11 // pred_region
        %p268 = scmp.lt.s32.totalorder %s26, 0
        %s269 = scalar_select %p268, %s26, 0
        %s270 = scalar_lea.vmem %s2, %s269
      $region20: #{double_conv.4} parent=11 // pred_fallthru
        _
      // Predicated region
      $region21: #{double_conv.4} parent=11 // pred_check
        %p271 = pneg %p132
      $region22: #{double_conv.4} parent=11 // pred_check_branch
        %273 = sbr.rel (%p271) target = $region24
      $region23: #{double_conv.4} parent=11 // pred_region
        _
      $region24: #{double_conv.4} parent=11 // pred_fallthru
        _
      // Predicated region
      $region25: #{double_conv.4} parent=11 // pred_check
        %p274 = pneg %p153
      $region26: #{double_conv.4} parent=11 // pred_check_branch
        %276 = sbr.rel (%p274) target = $region28
      $region27: #{double_conv.4} parent=11 // pred_region
        _
      $region28: #{double_conv.4} parent=11 // pred_fallthru
        _
    $region12: #{double_conv.4} parent=5 // pred_fallthru
      _
    %p277 = scmp.lt.s32.totalorder %s14, 2
    // Predicated region
    $region29: #{double_conv.4} parent=5 // pred_check
      %p278 = pneg %p277
    $region30: #{double_conv.4} parent=5 // pred_check_branch
      %280 = sbr.rel (%p278) target = $region32
    $region31: #{double_conv.4} parent=5 // pred_region
      // Predicated region
      $region33: #{double_conv.4} parent=31 // pred_check
        %p281 = pneg %p53
      $region34: #{double_conv.4} parent=31 // pred_check_branch
        %283 = sbr.rel (%p281) target = $region36
      $region35: #{double_conv.4} parent=31 // pred_region
        %p284 = scmp.lt.s32.totalorder %s21, 1
        %s285 = scalar_select %p284, %s21, 1
        %s286 = smul.addr %s285, 32
        %s287 = smul.addr %s286, 4
        %s288 = scalar_lea.vmem %s0, %s287
      $region36: #{double_conv.4} parent=31 // pred_fallthru
        _
    $region32: #{double_conv.4} parent=5 // pred_fallthru
      _
    %p289 = scmp.le.s32.totalorder 1, %s14
    %p290 = scmp.lt.s32.totalorder %s14, 3
    %p291 = pnand %p289, %p290
    %p292 = pneg %p291
    // Predicated region
    $region37: #{double_conv.4} parent=5 // pred_check
      _
    $region38: #{double_conv.4} parent=5 // pred_check_branch
      %294 = sbr.rel (%p291) target = $region40
    $region39: #{double_conv.4} parent=5 // pred_region
      %s295 = ssub.s32 %s14, 1
      %p296 = scmp.lt.s32.totalorder %s24, 1
      %s297 = scalar_select %p296, %s24, 1
      %s298 = smul.addr %s297, 32
      %s299 = smul.addr %s298, 4
      %s300 = scalar_lea.vmem %s0, %s299
      %p301 = pneg %p59
      %p302 = pneg %p56
      %p303 = scmp.lt.s32.totalorder %s26, 0
      %s304 = scalar_select %p303, %s26, 0
      %s305 = smul.addr %s304, 4
      %s306 = scalar_lea.vmem %s1, %s305
      %p307 = pneg %p85
      %p308 = pneg %p82
      %p309 = scmp.lt.s32.totalorder %s26, 0
      %s310 = scalar_select %p309, %s26, 0
      %s311 = scalar_lea.vmem %s2, %s310
      %p312 = pneg %p111
      %p313 = pneg %p108
      %p314 = pneg %p132
      %p315 = pneg %p129
      %p316 = pneg %p153
      %p317 = pneg %p150
      %p318 = pneg %p183
      %p319 = pneg %p180
      %s320 = smul.u32 32, %s25
      %p321 = scmp.lt.s32.totalorder %s24, 1
      %s322 = scalar_select %p321, %s24, 1
      %p323 = scmp.lt.s32.totalorder %s320, 31
      %s324 = scalar_select %p323, %s320, 31
      %p325 = scmp.lt.s32.totalorder %s26, 0
      %s326 = scalar_select %p325, %s26, 0
      %s327 = sadd.s32 %s326, %s324
      %s328 = smul.addr %s322, 32
      %s329 = sadd.s32 %s327, %s328
      %s330 = smul.addr %s329, 4
      %s331 = scalar_lea.vmem %s5, %s330
      %p332 = pneg %p213
      %p333 = pneg %p210
      %p334 = scmp.lt.s32.totalorder %s24, 1
      %s335 = scalar_select %p334, %s24, 1
      %p336 = scmp.lt.s32.totalorder %s25, 0
      %s337 = scalar_select %p336, %s25, 0
      %p338 = scmp.lt.s32.totalorder %s26, 0
      %s339 = scalar_select %p338, %s26, 0
      %s340 = sadd.s32 %s339, %s337
      %s341 = sadd.s32 %s340, %s335
      %s342 = scalar_lea.vmem %s6, %s341
      %p343 = pneg %p243
      %p344 = pneg %p240
      %p345 = scmp.lt.s32.totalorder %s24, 1
      %s346 = scalar_select %p345, %s24, 1
      %p347 = scmp.lt.s32.totalorder %s25, 0
      %s348 = scalar_select %p347, %s25, 0
      %p349 = scmp.lt.s32.totalorder %s26, 0
      %s350 = scalar_select %p349, %s26, 0
      %s351 = sadd.s32 %s350, %s348
      %s352 = sadd.s32 %s351, %s346
      %s353 = scalar_lea.vmem %s7, %s352
      %p354 = scmp.lt.s32.totalorder %s24, 1
      %s355 = scalar_select %p354, %s24, 1
      %s356 = smul.addr %s355, 32
      %s357 = smul.addr %s356, 4
      %s358 = scalar_lea.vmem %s0, %s357
      %p359 = scmp.lt.s32.totalorder %s26, 0
      %s360 = scalar_select %p359, %s26, 0
      %s361 = smul.addr %s360, 4
      %s362 = scalar_lea.vmem %s1, %s361
      %p363 = scmp.lt.s32.totalorder %s26, 0
      %s364 = scalar_select %p363, %s26, 0
      %s365 = scalar_lea.vmem %s2, %s364
      %s366 = smul.u32 32, %s25
      %p367 = scmp.lt.s32.totalorder %s24, 1
      %s368 = scalar_select %p367, %s24, 1
      %p369 = scmp.lt.s32.totalorder %s366, 31
      %s370 = scalar_select %p369, %s366, 31
      %p371 = scmp.lt.s32.totalorder %s26, 0
      %s372 = scalar_select %p371, %s26, 0
      %s373 = sadd.s32 %s372, %s370
      %s374 = smul.addr %s368, 32
      %s375 = sadd.s32 %s373, %s374
      %s376 = smul.addr %s375, 4
      %s377 = scalar_lea.vmem %s5, %s376
      %s378 = smul.u32 32, %s25
      %p379 = scmp.lt.s32.totalorder %s24, 1
      %s380 = scalar_select %p379, %s24, 1
      %p381 = scmp.lt.s32.totalorder %s25, 0
      %s382 = scalar_select %p381, %s25, 0
      %p383 = scmp.lt.s32.totalorder %s26, 0
      %s384 = scalar_select %p383, %s26, 0
      %s385 = sadd.s32 %s384, %s382
      %s386 = sadd.s32 %s385, %s380
      %s387 = scalar_lea.vmem %s6, %s386
      %p388 = scmp.lt.s32.totalorder %s24, 1
      %s389 = scalar_select %p388, %s24, 1
      %p390 = scmp.lt.s32.totalorder %s25, 0
      %s391 = scalar_select %p390, %s25, 0
      %p392 = scmp.lt.s32.totalorder %s26, 0
      %s393 = scalar_select %p392, %s26, 0
      %s394 = sadd.s32 %s393, %s391
      %s395 = sadd.s32 %s394, %s389
      %s396 = scalar_lea.vmem %s7, %s395
      %p400 = scmp.eq.s32.totalorder %s26, 0
      // Predicated region
      $region41: #{double_conv.4} parent=39 // pred_check
        %p401 = pneg %p400
      $region42: #{double_conv.4} parent=39 // pred_check_branch
        %403 = sbr.rel (%p401) target = $region44
      $region43: #{double_conv.4} parent=39 // pred_region
        %s404 = smul.u32 %s25, 256
        %s405 = sshra.s32 %s404, 3
        %s406 = sand.u32 %s404, 7
        %s407 = smul.addr %s405, 4
        %s408 = scalar_lea.vmem %s358, %s407
        %v409 = vld [vmem:[%s408] sm:$0xf]
        %v410 = vld [vmem:[%s408 + $0x4] sm:$0xf]
        %v411 = vld [vmem:[%s408 + $0x8] sm:$0xf]
        %v412 = vld [vmem:[%s408 + $0xc] sm:$0xf]
        %v413 = vld [vmem:[%s408 + $0x10] sm:$0xf]
        %v414 = vld [vmem:[%s408 + $0x14] sm:$0xf]
        %v415 = vld [vmem:[%s408 + $0x18] sm:$0xf]
        %v416 = vld [vmem:[%s408 + $0x1c] sm:$0xf]
        %v417 = vld [vmem:[%s408 + $0x20] sm:$0xf]
        %v418 = vld [vmem:[%s408 + $0x24] sm:$0xf]
        %v419 = vld [vmem:[%s408 + $0x28] sm:$0xf]
        %v420 = vld [vmem:[%s408 + $0x2c] sm:$0xf]
        %v421 = vld [vmem:[%s408 + $0x30] sm:$0xf]
        %v422 = vld [vmem:[%s408 + $0x34] sm:$0xf]
        %v423 = vld [vmem:[%s408 + $0x38] sm:$0xf]
        %v424 = vld [vmem:[%s408 + $0x3c] sm:$0xf]
        %v425 = vld [vmem:[%s408 + $0x40] sm:$0xf]
        %v426 = vld [vmem:[%s408 + $0x44] sm:$0xf]
        %v427 = vld [vmem:[%s408 + $0x48] sm:$0xf]
        %v428 = vld [vmem:[%s408 + $0x4c] sm:$0xf]
        %v429 = vld [vmem:[%s408 + $0x50] sm:$0xf]
        %v430 = vld [vmem:[%s408 + $0x54] sm:$0xf]
        %v431 = vld [vmem:[%s408 + $0x58] sm:$0xf]
        %v432 = vld [vmem:[%s408 + $0x5c] sm:$0xf]
        %v433 = vld [vmem:[%s408 + $0x60] sm:$0xf]
        %v434 = vld [vmem:[%s408 + $0x64] sm:$0xf]
        %v435 = vld [vmem:[%s408 + $0x68] sm:$0xf]
        %v436 = vld [vmem:[%s408 + $0x6c] sm:$0xf]
        %v437 = vld [vmem:[%s408 + $0x70] sm:$0xf]
        %v438 = vld [vmem:[%s408 + $0x74] sm:$0xf]
        %v439 = vld [vmem:[%s408 + $0x78] sm:$0xf]
        %v440 = vld [vmem:[%s408 + $0x7c] sm:$0xf]
        %v441 = vunpack.c.l.bf16 %v409
        %v442 = vunpack.c.l.bf16 %v410
        %v443 = vunpack.c.l.bf16 %v411
        %v444 = vunpack.c.l.bf16 %v412
        %v445 = vunpack.c.l.bf16 %v413
        %v446 = vunpack.c.l.bf16 %v414
        %v447 = vunpack.c.l.bf16 %v415
        %v448 = vunpack.c.l.bf16 %v416
        %v449 = vunpack.c.l.bf16 %v417
        %v450 = vunpack.c.l.bf16 %v418
        %v451 = vunpack.c.l.bf16 %v419
        %v452 = vunpack.c.l.bf16 %v420
        %v453 = vunpack.c.l.bf16 %v421
        %v454 = vunpack.c.l.bf16 %v422
        %v455 = vunpack.c.l.bf16 %v423
        %v456 = vunpack.c.l.bf16 %v424
        %v457 = vunpack.c.l.bf16 %v425
        %v458 = vunpack.c.l.bf16 %v426
        %v459 = vunpack.c.l.bf16 %v427
        %v460 = vunpack.c.l.bf16 %v428
        %v461 = vunpack.c.l.bf16 %v429
        %v462 = vunpack.c.l.bf16 %v430
        %v463 = vunpack.c.l.bf16 %v431
        %v464 = vunpack.c.l.bf16 %v432
        %v465 = vunpack.c.l.bf16 %v433
        %v466 = vunpack.c.l.bf16 %v434
        %v467 = vunpack.c.l.bf16 %v435
        %v468 = vunpack.c.l.bf16 %v436
        %v469 = vunpack.c.l.bf16 %v437
        %v470 = vunpack.c.l.bf16 %v438
        %v471 = vunpack.c.l.bf16 %v439
        %v472 = vunpack.c.l.bf16 %v440
        %v473 = vld [vmem:[%s3] sm:$0x1]
        %v475 = vlaneseq
        %v476 = vshrl.u32 %v475, 7
        %v477 = vsub.s32 0, %v476
        %v478 = vrot.slane %v473, %v477
        %v480 = vmul.f32 %v441, %v478
        %v481 = vmul.f32 %v442, %v478
        %v482 = vmul.f32 %v443, %v478
        %v483 = vmul.f32 %v444, %v478
        %v484 = vmul.f32 %v445, %v478
        %v485 = vmul.f32 %v446, %v478
        %v486 = vmul.f32 %v447, %v478
        %v487 = vmul.f32 %v448, %v478
        %v488 = vmul.f32 %v449, %v478
        %v489 = vmul.f32 %v450, %v478
        %v490 = vmul.f32 %v451, %v478
        %v491 = vmul.f32 %v452, %v478
        %v492 = vmul.f32 %v453, %v478
        %v493 = vmul.f32 %v454, %v478
        %v494 = vmul.f32 %v455, %v478
        %v495 = vmul.f32 %v456, %v478
        %v496 = vmul.f32 %v457, %v478
        %v497 = vmul.f32 %v458, %v478
        %v498 = vmul.f32 %v459, %v478
        %v499 = vmul.f32 %v460, %v478
        %v500 = vmul.f32 %v461, %v478
        %v501 = vmul.f32 %v462, %v478
        %v502 = vmul.f32 %v463, %v478
        %v503 = vmul.f32 %v464, %v478
        %v504 = vmul.f32 %v465, %v478
        %v505 = vmul.f32 %v466, %v478
        %v506 = vmul.f32 %v467, %v478
        %v507 = vmul.f32 %v468, %v478
        %v508 = vmul.f32 %v469, %v478
        %v509 = vmul.f32 %v470, %v478
        %v510 = vmul.f32 %v471, %v478
        %v511 = vmul.f32 %v472, %v478
        %v512 = vld [vmem:[%s4] sm:$0x1]
        %v514 = vlaneseq
        %v515 = vshrl.u32 %v514, 7
        %v516 = vsub.s32 0, %v515
        %v517 = vrot.slane %v512, %v516
        %v519 = vadd.f32 %v480, %v517
        %v520 = vadd.f32 %v481, %v517
        %v521 = vadd.f32 %v482, %v517
        %v522 = vadd.f32 %v483, %v517
        %v523 = vadd.f32 %v484, %v517
        %v524 = vadd.f32 %v485, %v517
        %v525 = vadd.f32 %v486, %v517
        %v526 = vadd.f32 %v487, %v517
        %v527 = vadd.f32 %v488, %v517
        %v528 = vadd.f32 %v489, %v517
        %v529 = vadd.f32 %v490, %v517
        %v530 = vadd.f32 %v491, %v517
        %v531 = vadd.f32 %v492, %v517
        %v532 = vadd.f32 %v493, %v517
        %v533 = vadd.f32 %v494, %v517
        %v534 = vadd.f32 %v495, %v517
        %v535 = vadd.f32 %v496, %v517
        %v536 = vadd.f32 %v497, %v517
        %v537 = vadd.f32 %v498, %v517
        %v538 = vadd.f32 %v499, %v517
        %v539 = vadd.f32 %v500, %v517
        %v540 = vadd.f32 %v501, %v517
        %v541 = vadd.f32 %v502, %v517
        %v542 = vadd.f32 %v503, %v517
        %v543 = vadd.f32 %v504, %v517
        %v544 = vadd.f32 %v505, %v517
        %v545 = vadd.f32 %v506, %v517
        %v546 = vadd.f32 %v507, %v517
        %v547 = vadd.f32 %v508, %v517
        %v548 = vadd.f32 %v509, %v517
        %v549 = vadd.f32 %v510, %v517
        %v550 = vadd.f32 %v511, %v517
        %v551 = vmax.f32 %v519, 0.0
        %v552 = vmax.f32 %v520, 0.0
        %v553 = vmax.f32 %v521, 0.0
        %v554 = vmax.f32 %v522, 0.0
        %v555 = vmax.f32 %v523, 0.0
        %v556 = vmax.f32 %v524, 0.0
        %v557 = vmax.f32 %v525, 0.0
        %v558 = vmax.f32 %v526, 0.0
        %v559 = vmax.f32 %v527, 0.0
        %v560 = vmax.f32 %v528, 0.0
        %v561 = vmax.f32 %v529, 0.0
        %v562 = vmax.f32 %v530, 0.0
        %v563 = vmax.f32 %v531, 0.0
        %v564 = vmax.f32 %v532, 0.0
        %v565 = vmax.f32 %v533, 0.0
        %v566 = vmax.f32 %v534, 0.0
        %v567 = vmax.f32 %v535, 0.0
        %v568 = vmax.f32 %v536, 0.0
        %v569 = vmax.f32 %v537, 0.0
        %v570 = vmax.f32 %v538, 0.0
        %v571 = vmax.f32 %v539, 0.0
        %v572 = vmax.f32 %v540, 0.0
        %v573 = vmax.f32 %v541, 0.0
        %v574 = vmax.f32 %v542, 0.0
        %v575 = vmax.f32 %v543, 0.0
        %v576 = vmax.f32 %v544, 0.0
        %v577 = vmax.f32 %v545, 0.0
        %v578 = vmax.f32 %v546, 0.0
        %v579 = vmax.f32 %v547, 0.0
        %v580 = vmax.f32 %v548, 0.0
        %v581 = vmax.f32 %v549, 0.0
        %v582 = vmax.f32 %v550, 0.0
        %v583 = vpack.c.bf16 %v552, %v551
        %v584 = vpack.c.bf16 %v554, %v553
        %v585 = vpack.c.bf16 %v556, %v555
        %v586 = vpack.c.bf16 %v558, %v557
        %v587 = vpack.c.bf16 %v560, %v559
        %v588 = vpack.c.bf16 %v562, %v561
        %v589 = vpack.c.bf16 %v564, %v563
        %v590 = vpack.c.bf16 %v566, %v565
        %v591 = vpack.c.bf16 %v568, %v567
        %v592 = vpack.c.bf16 %v570, %v569
        %v593 = vpack.c.bf16 %v572, %v571
        %v594 = vpack.c.bf16 %v574, %v573
        %v595 = vpack.c.bf16 %v576, %v575
        %v596 = vpack.c.bf16 %v578, %v577
        %v597 = vpack.c.bf16 %v580, %v579
        %v598 = vpack.c.bf16 %v582, %v581
        %vm615 = vcmask 1043456
        %v616 = vrot.slane %v583, 4
        %v617 = vrot.slane %v584, 4
        %v618 = vsel %vm615, %v616, %v617
        %v619 = vrot.slane %v585, 4
        %v620 = vsel %vm615, %v617, %v619
        %v621 = vrot.slane %v586, 4
        %v622 = vsel %vm615, %v619, %v621
        %v623 = vrot.slane %v587, 4
        %v624 = vsel %vm615, %v621, %v623
        %v625 = vrot.slane %v588, 4
        %v626 = vsel %vm615, %v623, %v625
        %v627 = vrot.slane %v589, 4
        %v628 = vsel %vm615, %v625, %v627
        %v629 = vrot.slane %v590, 4
        %v630 = vsel %vm615, %v627, %v629
        %v631 = vrot.slane %v591, 4
        %v632 = vsel %vm615, %v629, %v631
        %v633 = vrot.slane %v592, 4
        %v634 = vsel %vm615, %v631, %v633
        %v635 = vrot.slane %v593, 4
        %v636 = vsel %vm615, %v633, %v635
        %v637 = vrot.slane %v594, 4
        %v638 = vsel %vm615, %v635, %v637
        %v639 = vrot.slane %v595, 4
        %v640 = vsel %vm615, %v637, %v639
        %v641 = vrot.slane %v596, 4
        %v642 = vsel %vm615, %v639, %v641
        %v643 = vrot.slane %v597, 4
        %v644 = vsel %vm615, %v641, %v643
        %v645 = vrot.slane %v598, 4
        %v646 = vsel %vm615, %v643, %v645
        %vm664 = vcmask 64516
        %665 = vst.msk [vmem:[#allocation2 + $0x8] sm:$0xf0] %vm664, %v616
        %vm666 = vcmask 64512
        %667 = vst.msk [vmem:[#allocation2 + $0x10] sm:$0xff] %vm666, %v618
        %668 = vst.msk [vmem:[#allocation2 + $0x18] sm:$0xff] %vm666, %v620
        %669 = vst.msk [vmem:[#allocation2 + $0x20] sm:$0xff] %vm666, %v622
        %670 = vst.msk [vmem:[#allocation2 + $0x28] sm:$0xff] %vm666, %v624
        %671 = vst.msk [vmem:[#allocation2 + $0x30] sm:$0xff] %vm666, %v626
        %672 = vst.msk [vmem:[#allocation2 + $0x38] sm:$0xff] %vm666, %v628
        %673 = vst.msk [vmem:[#allocation2 + $0x40] sm:$0xff] %vm666, %v630
        %674 = vst.msk [vmem:[#allocation2 + $0x48] sm:$0xff] %vm666, %v632
        %675 = vst.msk [vmem:[#allocation2 + $0x50] sm:$0xff] %vm666, %v634
        %676 = vst.msk [vmem:[#allocation2 + $0x58] sm:$0xff] %vm666, %v636
        %677 = vst.msk [vmem:[#allocation2 + $0x60] sm:$0xff] %vm666, %v638
        %678 = vst.msk [vmem:[#allocation2 + $0x68] sm:$0xff] %vm666, %v640
        %679 = vst.msk [vmem:[#allocation2 + $0x70] sm:$0xff] %vm666, %v642
        %680 = vst.msk [vmem:[#allocation2 + $0x78] sm:$0xff] %vm666, %v644
        %681 = vst.msk [vmem:[#allocation2 + $0x80] sm:$0xff] %vm666, %v646
        %vm682 = vcmask 60416
        %683 = vst.msk [vmem:[#allocation2 + $0x88] sm:$0xf] %vm682, %v645
        %p684 = scmp.eq.s32.totalorder %s25, 0
        // Predicated region
        $region45: #{double_conv.4} parent=43 // pred_check
          %p685 = pneg %p684
        $region46: #{double_conv.4} parent=43 // pred_check_branch
          %687 = sbr.rel (%p685) target = $region48
        $region47: #{double_conv.4} parent=43 // pred_region
          %688 = vst.msk [vmem:[#allocation2] sm:$0xf0] %vm664, 0
          %689 = vst.msk [vmem:[#allocation2 + $0x8] sm:$0xf] %vm682, 0
        $region48: #{double_conv.4} parent=43 // pred_fallthru
          _
        %p690 = scmp.gt.s32.totalorder %s25, 0
        // Predicated region
        $region49: #{double_conv.4} parent=43 // pred_check
          %p691 = pneg %p690
        $region50: #{double_conv.4} parent=43 // pred_check_branch
          %693 = sbr.rel (%p691) target = $region52
        $region51: #{double_conv.4} parent=43 // pred_region
          %s694 = ssub.s32 %s404, 16
          %s695 = sshra.s32 %s694, 3
          %s696 = sand.u32 %s694, 7
          %s697 = smul.addr %s695, 4
          %s698 = scalar_lea.vmem %s358, %s697
          %v699 = vld [vmem:[%s698] sm:$0xf]
          %v700 = vld [vmem:[%s698 + $0x4] sm:$0xf]
          %v701 = vunpack.c.l.bf16 %v699
          %v702 = vunpack.c.l.bf16 %v700
          %v703 = vld [vmem:[%s3] sm:$0x1]
          %v705 = vlaneseq
          %v706 = vshrl.u32 %v705, 7
          %v707 = vsub.s32 0, %v706
          %v708 = vrot.slane %v703, %v707
          %v710 = vmul.f32 %v701, %v708
          %v711 = vmul.f32 %v702, %v708
          %v712 = vld [vmem:[%s4] sm:$0x1]
          %v714 = vlaneseq
          %v715 = vshrl.u32 %v714, 7
          %v716 = vsub.s32 0, %v715
          %v717 = vrot.slane %v712, %v716
          %v719 = vadd.f32 %v710, %v717
          %v720 = vadd.f32 %v711, %v717
          %v721 = vmax.f32 %v719, 0.0
          %v722 = vmax.f32 %v720, 0.0
          %v723 = vpack.c.bf16 %v722, %v721
          %v725 = vrot.slane %v723, 4
          %727 = vst.msk [vmem:[#allocation2] sm:$0xf0] %vm664, %v725
          %728 = vst.msk [vmem:[#allocation2 + $0x8] sm:$0xf] %vm682, %v725
        $region52: #{double_conv.4} parent=43 // pred_fallthru
          _
        // Predicated region
        $region53: #{double_conv.4} parent=43 // pred_check
          %p729 = pneg %p684
        $region54: #{double_conv.4} parent=43 // pred_check_branch
          %731 = sbr.rel (%p729) target = $region56
        $region55: #{double_conv.4} parent=43 // pred_region
          %732 = vst.msk [vmem:[#allocation2 + $0x88] sm:$0xf0] %vm664, 0
          %733 = vst.msk [vmem:[#allocation2 + $0x90] sm:$0xf] %vm682, 0
        $region56: #{double_conv.4} parent=43 // pred_fallthru
          _
        %p734 = scmp.lt.s32.totalorder %s25, 0
        // Predicated region
        $region57: #{double_conv.4} parent=43 // pred_check
          %p735 = pneg %p734
        $region58: #{double_conv.4} parent=43 // pred_check_branch
          %737 = sbr.rel (%p735) target = $region60
        $region59: #{double_conv.4} parent=43 // pred_region
          %s738 = sadd.s32 %s404, 256
          %s739 = sshra.s32 %s738, 3
          %s740 = sand.u32 %s738, 7
          %s741 = smul.addr %s739, 4
          %s742 = scalar_lea.vmem %s358, %s741
          %v743 = vld [vmem:[%s742] sm:$0xf]
          %v744 = vld [vmem:[%s742 + $0x4] sm:$0xf]
          %v745 = vunpack.c.l.bf16 %v743
          %v746 = vunpack.c.l.bf16 %v744
          %v747 = vld [vmem:[%s3] sm:$0x1]
          %v749 = vlaneseq
          %v750 = vshrl.u32 %v749, 7
          %v751 = vsub.s32 0, %v750
          %v752 = vrot.slane %v747, %v751
          %v754 = vmul.f32 %v745, %v752
          %v755 = vmul.f32 %v746, %v752
          %v756 = vld [vmem:[%s4] sm:$0x1]
          %v758 = vlaneseq
          %v759 = vshrl.u32 %v758, 7
          %v760 = vsub.s32 0, %v759
          %v761 = vrot.slane %v756, %v760
          %v763 = vadd.f32 %v754, %v761
          %v764 = vadd.f32 %v755, %v761
          %v765 = vmax.f32 %v763, 0.0
          %v766 = vmax.f32 %v764, 0.0
          %v767 = vpack.c.bf16 %v766, %v765
          %v769 = vrot.slane %v767, 4
          %771 = vst.msk [vmem:[#allocation2 + $0x88] sm:$0xf0] %vm664, %v769
          %772 = vst.msk [vmem:[#allocation2 + $0x90] sm:$0xf] %vm682, %v769
        $region60: #{double_conv.4} parent=43 // pred_fallthru
          _
      $region44: #{double_conv.4} parent=39 // pred_fallthru
        _
      %v773 = vlaneseq
      %v774 = vshrl.u32 %v773, 7
      %v775 = vadd.s32 %v774, 8
      %v776 = vadd.s32 %v774, 16
      %v777 = vadd.s32 %v774, 24
      %v778 = vadd.s32 %v774, 32
      %v779 = vadd.s32 %v774, 40
      %v780 = vadd.s32 %v774, 48
      %v781 = vadd.s32 %v774, 56
      %v782 = vadd.s32 %v774, 64
      %v783 = vadd.s32 %v774, 72
      %v784 = vadd.s32 %v774, 80
      %v785 = vadd.s32 %v774, 88
      %v786 = vadd.s32 %v774, 96
      %v787 = vadd.s32 %v774, 104
      %v788 = vadd.s32 %v774, 112
      %v789 = vadd.s32 %v774, 120
      %v790 = vadd.s32 %v774, 128
      %v791 = vadd.s32 %v774, 136
      %v792 = vadd.s32 %v774, 144
      %v793 = vadd.s32 %v774, 152
      %v794 = vadd.s32 %v774, 160
      %v795 = vadd.s32 %v774, 168
      %v796 = vadd.s32 %v774, 176
      %v797 = vadd.s32 %v774, 184
      %v798 = vadd.s32 %v774, 192
      %v799 = vadd.s32 %v774, 200
      %v800 = vadd.s32 %v774, 208
      %v801 = vadd.s32 %v774, 216
      %v802 = vadd.s32 %v774, 224
      %v803 = vadd.s32 %v774, 232
      %v804 = vadd.s32 %v774, 240
      %v805 = vadd.s32 %v774, 248
      %vm806 = vcmp.lt.s32.totalorder %v774, 0
      %v807 = vsub.s32 0, %v774
      %v808 = vsel %vm806, %v807, %v774
      %v809 = vshrl.u32 %v808, 4
      %v810 = vand.u32 %v808, 15
      %v811 = vsub.s32 0, %v810
      %v812 = vsel %vm806, %v811, %v810
      %vm813 = vcmp.lt.s32.totalorder %v775, 0
      %v814 = vsub.s32 0, %v775
      %v815 = vsel %vm813, %v814, %v775
      %v816 = vshrl.u32 %v815, 4
      %v817 = vand.u32 %v815, 15
      %v818 = vsub.s32 0, %v817
      %v819 = vsel %vm813, %v818, %v817
      %vm820 = vcmp.lt.s32.totalorder %v776, 0
      %v821 = vsub.s32 0, %v776
      %v822 = vsel %vm820, %v821, %v776
      %v823 = vshrl.u32 %v822, 4
      %v824 = vand.u32 %v822, 15
      %v825 = vsub.s32 0, %v824
      %v826 = vsel %vm820, %v825, %v824
      %vm827 = vcmp.lt.s32.totalorder %v777, 0
      %v828 = vsub.s32 0, %v777
      %v829 = vsel %vm827, %v828, %v777
      %v830 = vshrl.u32 %v829, 4
      %v831 = vand.u32 %v829, 15
      %v832 = vsub.s32 0, %v831
      %v833 = vsel %vm827, %v832, %v831
      %vm834 = vcmp.lt.s32.totalorder %v778, 0
      %v835 = vsub.s32 0, %v778
      %v836 = vsel %vm834, %v835, %v778
      %v837 = vshrl.u32 %v836, 4
      %v838 = vand.u32 %v836, 15
      %v839 = vsub.s32 0, %v838
      %v840 = vsel %vm834, %v839, %v838
      %vm841 = vcmp.lt.s32.totalorder %v779, 0
      %v842 = vsub.s32 0, %v779
      %v843 = vsel %vm841, %v842, %v779
      %v844 = vshrl.u32 %v843, 4
      %v845 = vand.u32 %v843, 15
      %v846 = vsub.s32 0, %v845
      %v847 = vsel %vm841, %v846, %v845
      %vm848 = vcmp.lt.s32.totalorder %v780, 0
      %v849 = vsub.s32 0, %v780
      %v850 = vsel %vm848, %v849, %v780
      %v851 = vshrl.u32 %v850, 4
      %v852 = vand.u32 %v850, 15
      %v853 = vsub.s32 0, %v852
      %v854 = vsel %vm848, %v853, %v852
      %vm855 = vcmp.lt.s32.totalorder %v781, 0
      %v856 = vsub.s32 0, %v781
      %v857 = vsel %vm855, %v856, %v781
      %v858 = vshrl.u32 %v857, 4
      %v859 = vand.u32 %v857, 15
      %v860 = vsub.s32 0, %v859
      %v861 = vsel %vm855, %v860, %v859
      %vm862 = vcmp.lt.s32.totalorder %v782, 0
      %v863 = vsub.s32 0, %v782
      %v864 = vsel %vm862, %v863, %v782
      %v865 = vshrl.u32 %v864, 4
      %v866 = vand.u32 %v864, 15
      %v867 = vsub.s32 0, %v866
      %v868 = vsel %vm862, %v867, %v866
      %vm869 = vcmp.lt.s32.totalorder %v783, 0
      %v870 = vsub.s32 0, %v783
      %v871 = vsel %vm869, %v870, %v783
      %v872 = vshrl.u32 %v871, 4
      %v873 = vand.u32 %v871, 15
      %v874 = vsub.s32 0, %v873
      %v875 = vsel %vm869, %v874, %v873
      %vm876 = vcmp.lt.s32.totalorder %v784, 0
      %v877 = vsub.s32 0, %v784
      %v878 = vsel %vm876, %v877, %v784
      %v879 = vshrl.u32 %v878, 4
      %v880 = vand.u32 %v878, 15
      %v881 = vsub.s32 0, %v880
      %v882 = vsel %vm876, %v881, %v880
      %vm883 = vcmp.lt.s32.totalorder %v785, 0
      %v884 = vsub.s32 0, %v785
      %v885 = vsel %vm883, %v884, %v785
      %v886 = vshrl.u32 %v885, 4
      %v887 = vand.u32 %v885, 15
      %v888 = vsub.s32 0, %v887
      %v889 = vsel %vm883, %v888, %v887
      %vm890 = vcmp.lt.s32.totalorder %v786, 0
      %v891 = vsub.s32 0, %v786
      %v892 = vsel %vm890, %v891, %v786
      %v893 = vshrl.u32 %v892, 4
      %v894 = vand.u32 %v892, 15
      %v895 = vsub.s32 0, %v894
      %v896 = vsel %vm890, %v895, %v894
      %vm897 = vcmp.lt.s32.totalorder %v787, 0
      %v898 = vsub.s32 0, %v787
      %v899 = vsel %vm897, %v898, %v787
      %v900 = vshrl.u32 %v899, 4
      %v901 = vand.u32 %v899, 15
      %v902 = vsub.s32 0, %v901
      %v903 = vsel %vm897, %v902, %v901
      %vm904 = vcmp.lt.s32.totalorder %v788, 0
      %v905 = vsub.s32 0, %v788
      %v906 = vsel %vm904, %v905, %v788
      %v907 = vshrl.u32 %v906, 4
      %v908 = vand.u32 %v906, 15
      %v909 = vsub.s32 0, %v908
      %v910 = vsel %vm904, %v909, %v908
      %vm911 = vcmp.lt.s32.totalorder %v789, 0
      %v912 = vsub.s32 0, %v789
      %v913 = vsel %vm911, %v912, %v789
      %v914 = vshrl.u32 %v913, 4
      %v915 = vand.u32 %v913, 15
      %v916 = vsub.s32 0, %v915
      %v917 = vsel %vm911, %v916, %v915
      %vm918 = vcmp.lt.s32.totalorder %v790, 0
      %v919 = vsub.s32 0, %v790
      %v920 = vsel %vm918, %v919, %v790
      %v921 = vshrl.u32 %v920, 4
      %v922 = vand.u32 %v920, 15
      %v923 = vsub.s32 0, %v922
      %v924 = vsel %vm918, %v923, %v922
      %vm925 = vcmp.lt.s32.totalorder %v791, 0
      %v926 = vsub.s32 0, %v791
      %v927 = vsel %vm925, %v926, %v791
      %v928 = vshrl.u32 %v927, 4
      %v929 = vand.u32 %v927, 15
      %v930 = vsub.s32 0, %v929
      %v931 = vsel %vm925, %v930, %v929
      %vm932 = vcmp.lt.s32.totalorder %v792, 0
      %v933 = vsub.s32 0, %v792
      %v934 = vsel %vm932, %v933, %v792
      %v935 = vshrl.u32 %v934, 4
      %v936 = vand.u32 %v934, 15
      %v937 = vsub.s32 0, %v936
      %v938 = vsel %vm932, %v937, %v936
      %vm939 = vcmp.lt.s32.totalorder %v793, 0
      %v940 = vsub.s32 0, %v793
      %v941 = vsel %vm939, %v940, %v793
      %v942 = vshrl.u32 %v941, 4
      %v943 = vand.u32 %v941, 15
      %v944 = vsub.s32 0, %v943
      %v945 = vsel %vm939, %v944, %v943
      %vm946 = vcmp.lt.s32.totalorder %v794, 0
      %v947 = vsub.s32 0, %v794
      %v948 = vsel %vm946, %v947, %v794
      %v949 = vshrl.u32 %v948, 4
      %v950 = vand.u32 %v948, 15
      %v951 = vsub.s32 0, %v950
      %v952 = vsel %vm946, %v951, %v950
      %vm953 = vcmp.lt.s32.totalorder %v795, 0
      %v954 = vsub.s32 0, %v795
      %v955 = vsel %vm953, %v954, %v795
      %v956 = vshrl.u32 %v955, 4
      %v957 = vand.u32 %v955, 15
      %v958 = vsub.s32 0, %v957
      %v959 = vsel %vm953, %v958, %v957
      %vm960 = vcmp.lt.s32.totalorder %v796, 0
      %v961 = vsub.s32 0, %v796
      %v962 = vsel %vm960, %v961, %v796
      %v963 = vshrl.u32 %v962, 4
      %v964 = vand.u32 %v962, 15
      %v965 = vsub.s32 0, %v964
      %v966 = vsel %vm960, %v965, %v964
      %vm967 = vcmp.lt.s32.totalorder %v797, 0
      %v968 = vsub.s32 0, %v797
      %v969 = vsel %vm967, %v968, %v797
      %v970 = vshrl.u32 %v969, 4
      %v971 = vand.u32 %v969, 15
      %v972 = vsub.s32 0, %v971
      %v973 = vsel %vm967, %v972, %v971
      %vm974 = vcmp.lt.s32.totalorder %v798, 0
      %v975 = vsub.s32 0, %v798
      %v976 = vsel %vm974, %v975, %v798
      %v977 = vshrl.u32 %v976, 4
      %v978 = vand.u32 %v976, 15
      %v979 = vsub.s32 0, %v978
      %v980 = vsel %vm974, %v979, %v978
      %vm981 = vcmp.lt.s32.totalorder %v799, 0
      %v982 = vsub.s32 0, %v799
      %v983 = vsel %vm981, %v982, %v799
      %v984 = vshrl.u32 %v983, 4
      %v985 = vand.u32 %v983, 15
      %v986 = vsub.s32 0, %v985
      %v987 = vsel %vm981, %v986, %v985
      %vm988 = vcmp.lt.s32.totalorder %v800, 0
      %v989 = vsub.s32 0, %v800
      %v990 = vsel %vm988, %v989, %v800
      %v991 = vshrl.u32 %v990, 4
      %v992 = vand.u32 %v990, 15
      %v993 = vsub.s32 0, %v992
      %v994 = vsel %vm988, %v993, %v992
      %vm995 = vcmp.lt.s32.totalorder %v801, 0
      %v996 = vsub.s32 0, %v801
      %v997 = vsel %vm995, %v996, %v801
      %v998 = vshrl.u32 %v997, 4
      %v999 = vand.u32 %v997, 15
      %v1000 = vsub.s32 0, %v999
      %v1001 = vsel %vm995, %v1000, %v999
      %vm1002 = vcmp.lt.s32.totalorder %v802, 0
      %v1003 = vsub.s32 0, %v802
      %v1004 = vsel %vm1002, %v1003, %v802
      %v1005 = vshrl.u32 %v1004, 4
      %v1006 = vand.u32 %v1004, 15
      %v1007 = vsub.s32 0, %v1006
      %v1008 = vsel %vm1002, %v1007, %v1006
      %vm1009 = vcmp.lt.s32.totalorder %v803, 0
      %v1010 = vsub.s32 0, %v803
      %v1011 = vsel %vm1009, %v1010, %v803
      %v1012 = vshrl.u32 %v1011, 4
      %v1013 = vand.u32 %v1011, 15
      %v1014 = vsub.s32 0, %v1013
      %v1015 = vsel %vm1009, %v1014, %v1013
      %vm1016 = vcmp.lt.s32.totalorder %v804, 0
      %v1017 = vsub.s32 0, %v804
      %v1018 = vsel %vm1016, %v1017, %v804
      %v1019 = vshrl.u32 %v1018, 4
      %v1020 = vand.u32 %v1018, 15
      %v1021 = vsub.s32 0, %v1020
      %v1022 = vsel %vm1016, %v1021, %v1020
      %vm1023 = vcmp.lt.s32.totalorder %v805, 0
      %v1024 = vsub.s32 0, %v805
      %v1025 = vsel %vm1023, %v1024, %v805
      %v1026 = vshrl.u32 %v1025, 4
      %v1027 = vand.u32 %v1025, 15
      %v1028 = vsub.s32 0, %v1027
      %v1029 = vsel %vm1023, %v1028, %v1027
      %vm1030 = vcmp.ne.s32.totalorder %v812, 0
      %vm1031 = vcmp.ne.s32.totalorder %v819, 0
      %vm1032 = vcmp.ne.s32.totalorder %v826, 0
      %vm1033 = vcmp.ne.s32.totalorder %v833, 0
      %vm1034 = vcmp.ne.s32.totalorder %v840, 0
      %vm1035 = vcmp.ne.s32.totalorder %v847, 0
      %vm1036 = vcmp.ne.s32.totalorder %v854, 0
      %vm1037 = vcmp.ne.s32.totalorder %v861, 0
      %vm1038 = vcmp.ne.s32.totalorder %v868, 0
      %vm1039 = vcmp.ne.s32.totalorder %v875, 0
      %vm1040 = vcmp.ne.s32.totalorder %v882, 0
      %vm1041 = vcmp.ne.s32.totalorder %v889, 0
      %vm1042 = vcmp.ne.s32.totalorder %v896, 0
      %vm1043 = vcmp.ne.s32.totalorder %v903, 0
      %vm1044 = vcmp.ne.s32.totalorder %v910, 0
      %vm1045 = vcmp.ne.s32.totalorder %v917, 0
      %vm1046 = vcmp.ne.s32.totalorder %v924, 0
      %vm1047 = vcmp.ne.s32.totalorder %v931, 0
      %vm1048 = vcmp.ne.s32.totalorder %v938, 0
      %vm1049 = vcmp.ne.s32.totalorder %v945, 0
      %vm1050 = vcmp.ne.s32.totalorder %v952, 0
      %vm1051 = vcmp.ne.s32.totalorder %v959, 0
      %vm1052 = vcmp.ne.s32.totalorder %v966, 0
      %vm1053 = vcmp.ne.s32.totalorder %v973, 0
      %vm1054 = vcmp.ne.s32.totalorder %v980, 0
      %vm1055 = vcmp.ne.s32.totalorder %v987, 0
      %vm1056 = vcmp.ne.s32.totalorder %v994, 0
      %vm1057 = vcmp.ne.s32.totalorder %v1001, 0
      %vm1058 = vcmp.ne.s32.totalorder %v1008, 0
      %vm1059 = vcmp.ne.s32.totalorder %v1015, 0
      %vm1060 = vcmp.ne.s32.totalorder %v1022, 0
      %vm1061 = vcmp.ne.s32.totalorder %v1029, 0
      %vm1062 = vcmp.lt.s32.totalorder %v812, 0
      %vm1063 = vcmp.lt.s32.totalorder %v819, 0
      %vm1064 = vcmp.lt.s32.totalorder %v826, 0
      %vm1065 = vcmp.lt.s32.totalorder %v833, 0
      %vm1066 = vcmp.lt.s32.totalorder %v840, 0
      %vm1067 = vcmp.lt.s32.totalorder %v847, 0
      %vm1068 = vcmp.lt.s32.totalorder %v854, 0
      %vm1069 = vcmp.lt.s32.totalorder %v861, 0
      %vm1070 = vcmp.lt.s32.totalorder %v868, 0
      %vm1071 = vcmp.lt.s32.totalorder %v875, 0
      %vm1072 = vcmp.lt.s32.totalorder %v882, 0
      %vm1073 = vcmp.lt.s32.totalorder %v889, 0
      %vm1074 = vcmp.lt.s32.totalorder %v896, 0
      %vm1075 = vcmp.lt.s32.totalorder %v903, 0
      %vm1076 = vcmp.lt.s32.totalorder %v910, 0
      %vm1077 = vcmp.lt.s32.totalorder %v917, 0
      %vm1078 = vcmp.lt.s32.totalorder %v924, 0
      %vm1079 = vcmp.lt.s32.totalorder %v931, 0
      %vm1080 = vcmp.lt.s32.totalorder %v938, 0
      %vm1081 = vcmp.lt.s32.totalorder %v945, 0
      %vm1082 = vcmp.lt.s32.totalorder %v952, 0
      %vm1083 = vcmp.lt.s32.totalorder %v959, 0
      %vm1084 = vcmp.lt.s32.totalorder %v966, 0
      %vm1085 = vcmp.lt.s32.totalorder %v973, 0
      %vm1086 = vcmp.lt.s32.totalorder %v980, 0
      %vm1087 = vcmp.lt.s32.totalorder %v987, 0
      %vm1088 = vcmp.lt.s32.totalorder %v994, 0
      %vm1089 = vcmp.lt.s32.totalorder %v1001, 0
      %vm1090 = vcmp.lt.s32.totalorder %v1008, 0
      %vm1091 = vcmp.lt.s32.totalorder %v1015, 0
      %vm1092 = vcmp.lt.s32.totalorder %v1022, 0
      %vm1093 = vcmp.lt.s32.totalorder %v1029, 0
      %vm1094 = vmand %vm1062, %vm1030
      %vm1095 = vmand %vm1063, %vm1031
      %vm1096 = vmand %vm1064, %vm1032
      %vm1097 = vmand %vm1065, %vm1033
      %vm1098 = vmand %vm1066, %vm1034
      %vm1099 = vmand %vm1067, %vm1035
      %vm1100 = vmand %vm1068, %vm1036
      %vm1101 = vmand %vm1069, %vm1037
      %vm1102 = vmand %vm1070, %vm1038
      %vm1103 = vmand %vm1071, %vm1039
      %vm1104 = vmand %vm1072, %vm1040
      %vm1105 = vmand %vm1073, %vm1041
      %vm1106 = vmand %vm1074, %vm1042
      %vm1107 = vmand %vm1075, %vm1043
      %vm1108 = vmand %vm1076, %vm1044
      %vm1109 = vmand %vm1077, %vm1045
      %vm1110 = vmand %vm1078, %vm1046
      %vm1111 = vmand %vm1079, %vm1047
      %vm1112 = vmand %vm1080, %vm1048
      %vm1113 = vmand %vm1081, %vm1049
      %vm1114 = vmand %vm1082, %vm1050
      %vm1115 = vmand %vm1083, %vm1051
      %vm1116 = vmand %vm1084, %vm1052
      %vm1117 = vmand %vm1085, %vm1053
      %vm1118 = vmand %vm1086, %vm1054
      %vm1119 = vmand %vm1087, %vm1055
      %vm1120 = vmand %vm1088, %vm1056
      %vm1121 = vmand %vm1089, %vm1057
      %vm1122 = vmand %vm1090, %vm1058
      %vm1123 = vmand %vm1091, %vm1059
      %vm1124 = vmand %vm1092, %vm1060
      %vm1125 = vmand %vm1093, %vm1061
      %v1126 = vadd.s32 %v812, 16
      %v1127 = vadd.s32 %v819, 16
      %v1128 = vadd.s32 %v826, 16
      %v1129 = vadd.s32 %v833, 16
      %v1130 = vadd.s32 %v840, 16
      %v1131 = vadd.s32 %v847, 16
      %v1132 = vadd.s32 %v854, 16
      %v1133 = vadd.s32 %v861, 16
      %v1134 = vadd.s32 %v868, 16
      %v1135 = vadd.s32 %v875, 16
      %v1136 = vadd.s32 %v882, 16
      %v1137 = vadd.s32 %v889, 16
      %v1138 = vadd.s32 %v896, 16
      %v1139 = vadd.s32 %v903, 16
      %v1140 = vadd.s32 %v910, 16
      %v1141 = vadd.s32 %v917, 16
      %v1142 = vadd.s32 %v924, 16
      %v1143 = vadd.s32 %v931, 16
      %v1144 = vadd.s32 %v938, 16
      %v1145 = vadd.s32 %v945, 16
      %v1146 = vadd.s32 %v952, 16
      %v1147 = vadd.s32 %v959, 16
      %v1148 = vadd.s32 %v966, 16
      %v1149 = vadd.s32 %v973, 16
      %v1150 = vadd.s32 %v980, 16
      %v1151 = vadd.s32 %v987, 16
      %v1152 = vadd.s32 %v994, 16
      %v1153 = vadd.s32 %v1001, 16
      %v1154 = vadd.s32 %v1008, 16
      %v1155 = vadd.s32 %v1015, 16
      %v1156 = vadd.s32 %v1022, 16
      %v1157 = vadd.s32 %v1029, 16
      %v1158 = vsel %vm1094, %v1126, %v812
      %v1159 = vsel %vm1095, %v1127, %v819
      %v1160 = vsel %vm1096, %v1128, %v826
      %v1161 = vsel %vm1097, %v1129, %v833
      %v1162 = vsel %vm1098, %v1130, %v840
      %v1163 = vsel %vm1099, %v1131, %v847
      %v1164 = vsel %vm1100, %v1132, %v854
      %v1165 = vsel %vm1101, %v1133, %v861
      %v1166 = vsel %vm1102, %v1134, %v868
      %v1167 = vsel %vm1103, %v1135, %v875
      %v1168 = vsel %vm1104, %v1136, %v882
      %v1169 = vsel %vm1105, %v1137, %v889
      %v1170 = vsel %vm1106, %v1138, %v896
      %v1171 = vsel %vm1107, %v1139, %v903
      %v1172 = vsel %vm1108, %v1140, %v910
      %v1173 = vsel %vm1109, %v1141, %v917
      %v1174 = vsel %vm1110, %v1142, %v924
      %v1175 = vsel %vm1111, %v1143, %v931
      %v1176 = vsel %vm1112, %v1144, %v938
      %v1177 = vsel %vm1113, %v1145, %v945
      %v1178 = vsel %vm1114, %v1146, %v952
      %v1179 = vsel %vm1115, %v1147, %v959
      %v1180 = vsel %vm1116, %v1148, %v966
      %v1181 = vsel %vm1117, %v1149, %v973
      %v1182 = vsel %vm1118, %v1150, %v980
      %v1183 = vsel %vm1119, %v1151, %v987
      %v1184 = vsel %vm1120, %v1152, %v994
      %v1185 = vsel %vm1121, %v1153, %v1001
      %v1186 = vsel %vm1122, %v1154, %v1008
      %v1187 = vsel %vm1123, %v1155, %v1015
      %v1188 = vsel %vm1124, %v1156, %v1022
      %v1189 = vsel %vm1125, %v1157, %v1029
      %vm1190 = vcmp.ne.s32.totalorder %v1158, 0
      %vm1191 = vcmp.ne.s32.totalorder %v1159, 0
      %vm1192 = vcmp.ne.s32.totalorder %v1160, 0
      %vm1193 = vcmp.ne.s32.totalorder %v1161, 0
      %vm1194 = vcmp.ne.s32.totalorder %v1162, 0
      %vm1195 = vcmp.ne.s32.totalorder %v1163, 0
      %vm1196 = vcmp.ne.s32.totalorder %v1164, 0
      %vm1197 = vcmp.ne.s32.totalorder %v1165, 0
      %vm1198 = vcmp.ne.s32.totalorder %v1166, 0
      %vm1199 = vcmp.ne.s32.totalorder %v1167, 0
      %vm1200 = vcmp.ne.s32.totalorder %v1168, 0
      %vm1201 = vcmp.ne.s32.totalorder %v1169, 0
      %vm1202 = vcmp.ne.s32.totalorder %v1170, 0
      %vm1203 = vcmp.ne.s32.totalorder %v1171, 0
      %vm1204 = vcmp.ne.s32.totalorder %v1172, 0
      %vm1205 = vcmp.ne.s32.totalorder %v1173, 0
      %vm1206 = vcmp.ne.s32.totalorder %v1174, 0
      %vm1207 = vcmp.ne.s32.totalorder %v1175, 0
      %vm1208 = vcmp.ne.s32.totalorder %v1176, 0
      %vm1209 = vcmp.ne.s32.totalorder %v1177, 0
      %vm1210 = vcmp.ne.s32.totalorder %v1178, 0
      %vm1211 = vcmp.ne.s32.totalorder %v1179, 0
      %vm1212 = vcmp.ne.s32.totalorder %v1180, 0
      %vm1213 = vcmp.ne.s32.totalorder %v1181, 0
      %vm1214 = vcmp.ne.s32.totalorder %v1182, 0
      %vm1215 = vcmp.ne.s32.totalorder %v1183, 0
      %vm1216 = vcmp.ne.s32.totalorder %v1184, 0
      %vm1217 = vcmp.ne.s32.totalorder %v1185, 0
      %vm1218 = vcmp.ne.s32.totalorder %v1186, 0
      %vm1219 = vcmp.ne.s32.totalorder %v1187, 0
      %vm1220 = vcmp.ne.s32.totalorder %v1188, 0
      %vm1221 = vcmp.ne.s32.totalorder %v1189, 0
      %vm1222 = vcmp.ne.s32.totalorder %v1158, 15
      %vm1223 = vcmp.ne.s32.totalorder %v1159, 15
      %vm1224 = vcmp.ne.s32.totalorder %v1160, 15
      %vm1225 = vcmp.ne.s32.totalorder %v1161, 15
      %vm1226 = vcmp.ne.s32.totalorder %v1162, 15
      %vm1227 = vcmp.ne.s32.totalorder %v1163, 15
      %vm1228 = vcmp.ne.s32.totalorder %v1164, 15
      %vm1229 = vcmp.ne.s32.totalorder %v1165, 15
      %vm1230 = vcmp.ne.s32.totalorder %v1166, 15
      %vm1231 = vcmp.ne.s32.totalorder %v1167, 15
      %vm1232 = vcmp.ne.s32.totalorder %v1168, 15
      %vm1233 = vcmp.ne.s32.totalorder %v1169, 15
      %vm1234 = vcmp.ne.s32.totalorder %v1170, 15
      %vm1235 = vcmp.ne.s32.totalorder %v1171, 15
      %vm1236 = vcmp.ne.s32.totalorder %v1172, 15
      %vm1237 = vcmp.ne.s32.totalorder %v1173, 15
      %vm1238 = vcmp.ne.s32.totalorder %v1174, 15
      %vm1239 = vcmp.ne.s32.totalorder %v1175, 15
      %vm1240 = vcmp.ne.s32.totalorder %v1176, 15
      %vm1241 = vcmp.ne.s32.totalorder %v1177, 15
      %vm1242 = vcmp.ne.s32.totalorder %v1178, 15
      %vm1243 = vcmp.ne.s32.totalorder %v1179, 15
      %vm1244 = vcmp.ne.s32.totalorder %v1180, 15
      %vm1245 = vcmp.ne.s32.totalorder %v1181, 15
      %vm1246 = vcmp.ne.s32.totalorder %v1182, 15
      %vm1247 = vcmp.ne.s32.totalorder %v1183, 15
      %vm1248 = vcmp.ne.s32.totalorder %v1184, 15
      %vm1249 = vcmp.ne.s32.totalorder %v1185, 15
      %vm1250 = vcmp.ne.s32.totalorder %v1186, 15
      %vm1251 = vcmp.ne.s32.totalorder %v1187, 15
      %vm1252 = vcmp.ne.s32.totalorder %v1188, 15
      %vm1253 = vcmp.ne.s32.totalorder %v1189, 15
      %v1254 = vld [vmem:[#allocation2] sm:$0xf8]
      %v1255 = vld [vmem:[#allocation2 + $0x8] sm:$0xff]
      %v1256 = vld [vmem:[#allocation2 + $0x10] sm:$0xff]
      %v1257 = vld [vmem:[#allocation2 + $0x18] sm:$0xff]
      %v1258 = vld [vmem:[#allocation2 + $0x20] sm:$0xff]
      %v1259 = vld [vmem:[#allocation2 + $0x28] sm:$0xff]
      %v1260 = vld [vmem:[#allocation2 + $0x30] sm:$0xff]
      %v1261 = vld [vmem:[#allocation2 + $0x38] sm:$0xff]
      %v1262 = vld [vmem:[#allocation2 + $0x40] sm:$0xff]
      %v1263 = vld [vmem:[#allocation2 + $0x48] sm:$0xff]
      %v1264 = vld [vmem:[#allocation2 + $0x50] sm:$0xff]
      %v1265 = vld [vmem:[#allocation2 + $0x58] sm:$0xff]
      %v1266 = vld [vmem:[#allocation2 + $0x60] sm:$0xff]
      %v1267 = vld [vmem:[#allocation2 + $0x68] sm:$0xff]
      %v1268 = vld [vmem:[#allocation2 + $0x70] sm:$0xff]
      %v1269 = vld [vmem:[#allocation2 + $0x78] sm:$0xff]
      %v1270 = vld [vmem:[#allocation2 + $0x80] sm:$0xf]
      %v1271 = vsel %vm1190, 1, 0
      %v1272 = vsel %vm1191, 1, 0
      %v1273 = vsel %vm1192, 1, 0
      %v1274 = vsel %vm1193, 1, 0
      %v1275 = vsel %vm1194, 1, 0
      %v1276 = vsel %vm1195, 1, 0
      %v1277 = vsel %vm1196, 1, 0
      %v1278 = vsel %vm1197, 1, 0
      %v1279 = vsel %vm1198, 1, 0
      %v1280 = vsel %vm1199, 1, 0
      %v1281 = vsel %vm1200, 1, 0
      %v1282 = vsel %vm1201, 1, 0
      %v1283 = vsel %vm1202, 1, 0
      %v1284 = vsel %vm1203, 1, 0
      %v1285 = vsel %vm1204, 1, 0
      %v1286 = vsel %vm1205, 1, 0
      %v1287 = vsel %vm1206, 1, 0
      %v1288 = vsel %vm1207, 1, 0
      %v1289 = vsel %vm1208, 1, 0
      %v1290 = vsel %vm1209, 1, 0
      %v1291 = vsel %vm1210, 1, 0
      %v1292 = vsel %vm1211, 1, 0
      %v1293 = vsel %vm1212, 1, 0
      %v1294 = vsel %vm1213, 1, 0
      %v1295 = vsel %vm1214, 1, 0
      %v1296 = vsel %vm1215, 1, 0
      %v1297 = vsel %vm1216, 1, 0
      %v1298 = vsel %vm1217, 1, 0
      %v1299 = vsel %vm1218, 1, 0
      %v1300 = vsel %vm1219, 1, 0
      %v1301 = vsel %vm1220, 1, 0
      %v1302 = vsel %vm1221, 1, 0
      %vm1303 = vcmp.eq.s32.totalorder %v1271, 1
      %vm1304 = vcmp.eq.s32.totalorder %v1272, 1
      %vm1305 = vcmp.eq.s32.totalorder %v1273, 1
      %vm1306 = vcmp.eq.s32.totalorder %v1274, 1
      %vm1307 = vcmp.eq.s32.totalorder %v1275, 1
      %vm1308 = vcmp.eq.s32.totalorder %v1276, 1
      %vm1309 = vcmp.eq.s32.totalorder %v1277, 1
      %vm1310 = vcmp.eq.s32.totalorder %v1278, 1
      %vm1311 = vcmp.eq.s32.totalorder %v1279, 1
      %vm1312 = vcmp.eq.s32.totalorder %v1280, 1
      %vm1313 = vcmp.eq.s32.totalorder %v1281, 1
      %vm1314 = vcmp.eq.s32.totalorder %v1282, 1
      %vm1315 = vcmp.eq.s32.totalorder %v1283, 1
      %vm1316 = vcmp.eq.s32.totalorder %v1284, 1
      %vm1317 = vcmp.eq.s32.totalorder %v1285, 1
      %vm1318 = vcmp.eq.s32.totalorder %v1286, 1
      %vm1319 = vcmp.eq.s32.totalorder %v1287, 1
      %vm1320 = vcmp.eq.s32.totalorder %v1288, 1
      %vm1321 = vcmp.eq.s32.totalorder %v1289, 1
      %vm1322 = vcmp.eq.s32.totalorder %v1290, 1
      %vm1323 = vcmp.eq.s32.totalorder %v1291, 1
      %vm1324 = vcmp.eq.s32.totalorder %v1292, 1
      %vm1325 = vcmp.eq.s32.totalorder %v1293, 1
      %vm1326 = vcmp.eq.s32.totalorder %v1294, 1
      %vm1327 = vcmp.eq.s32.totalorder %v1295, 1
      %vm1328 = vcmp.eq.s32.totalorder %v1296, 1
      %vm1329 = vcmp.eq.s32.totalorder %v1297, 1
      %vm1330 = vcmp.eq.s32.totalorder %v1298, 1
      %vm1331 = vcmp.eq.s32.totalorder %v1299, 1
      %vm1332 = vcmp.eq.s32.totalorder %v1300, 1
      %vm1333 = vcmp.eq.s32.totalorder %v1301, 1
      %vm1334 = vcmp.eq.s32.totalorder %v1302, 1
      %vm1335 = vmpackc.low %vm1303, %vm1303
      %vm1336 = vmpackc.low %vm1304, %vm1304
      %vm1337 = vmpackc.low %vm1305, %vm1305
      %vm1338 = vmpackc.low %vm1306, %vm1306
      %vm1339 = vmpackc.low %vm1307, %vm1307
      %vm1340 = vmpackc.low %vm1308, %vm1308
      %vm1341 = vmpackc.low %vm1309, %vm1309
      %vm1342 = vmpackc.low %vm1310, %vm1310
      %vm1343 = vmpackc.low %vm1311, %vm1311
      %vm1344 = vmpackc.low %vm1312, %vm1312
      %vm1345 = vmpackc.low %vm1313, %vm1313
      %vm1346 = vmpackc.low %vm1314, %vm1314
      %vm1347 = vmpackc.low %vm1315, %vm1315
      %vm1348 = vmpackc.low %vm1316, %vm1316
      %vm1349 = vmpackc.low %vm1317, %vm1317
      %vm1350 = vmpackc.low %vm1318, %vm1318
      %vm1351 = vmpackc.low %vm1319, %vm1319
      %vm1352 = vmpackc.low %vm1320, %vm1320
      %vm1353 = vmpackc.low %vm1321, %vm1321
      %vm1354 = vmpackc.low %vm1322, %vm1322
      %vm1355 = vmpackc.low %vm1323, %vm1323
      %vm1356 = vmpackc.low %vm1324, %vm1324
      %vm1357 = vmpackc.low %vm1325, %vm1325
      %vm1358 = vmpackc.low %vm1326, %vm1326
      %vm1359 = vmpackc.low %vm1327, %vm1327
      %vm1360 = vmpackc.low %vm1328, %vm1328
      %vm1361 = vmpackc.low %vm1329, %vm1329
      %vm1362 = vmpackc.low %vm1330, %vm1330
      %vm1363 = vmpackc.low %vm1331, %vm1331
      %vm1364 = vmpackc.low %vm1332, %vm1332
      %vm1365 = vmpackc.low %vm1333, %vm1333
      %vm1366 = vmpackc.low %vm1334, %vm1334
      %v1367 = vsel %vm1335, 65537, 0
      %v1368 = vsel %vm1336, 65537, 0
      %v1369 = vsel %vm1337, 65537, 0
      %v1370 = vsel %vm1338, 65537, 0
      %v1371 = vsel %vm1339, 65537, 0
      %v1372 = vsel %vm1340, 65537, 0
      %v1373 = vsel %vm1341, 65537, 0
      %v1374 = vsel %vm1342, 65537, 0
      %v1375 = vsel %vm1343, 65537, 0
      %v1376 = vsel %vm1344, 65537, 0
      %v1377 = vsel %vm1345, 65537, 0
      %v1378 = vsel %vm1346, 65537, 0
      %v1379 = vsel %vm1347, 65537, 0
      %v1380 = vsel %vm1348, 65537, 0
      %v1381 = vsel %vm1349, 65537, 0
      %v1382 = vsel %vm1350, 65537, 0
      %v1383 = vsel %vm1351, 65537, 0
      %v1384 = vsel %vm1352, 65537, 0
      %v1385 = vsel %vm1353, 65537, 0
      %v1386 = vsel %vm1354, 65537, 0
      %v1387 = vsel %vm1355, 65537, 0
      %v1388 = vsel %vm1356, 65537, 0
      %v1389 = vsel %vm1357, 65537, 0
      %v1390 = vsel %vm1358, 65537, 0
      %v1391 = vsel %vm1359, 65537, 0
      %v1392 = vsel %vm1360, 65537, 0
      %v1393 = vsel %vm1361, 65537, 0
      %v1394 = vsel %vm1362, 65537, 0
      %v1395 = vsel %vm1363, 65537, 0
      %v1396 = vsel %vm1364, 65537, 0
      %v1397 = vsel %vm1365, 65537, 0
      %v1398 = vsel %vm1366, 65537, 0
      %v1399 = vunpack.c.l.b16 %v1367
      %v1400 = vunpack.c.l.b16 %v1368
      %v1401 = vunpack.c.l.b16 %v1369
      %v1402 = vunpack.c.l.b16 %v1370
      %v1403 = vunpack.c.l.b16 %v1371
      %v1404 = vunpack.c.l.b16 %v1372
      %v1405 = vunpack.c.l.b16 %v1373
      %v1406 = vunpack.c.l.b16 %v1374
      %v1407 = vunpack.c.l.b16 %v1375
      %v1408 = vunpack.c.l.b16 %v1376
      %v1409 = vunpack.c.l.b16 %v1377
      %v1410 = vunpack.c.l.b16 %v1378
      %v1411 = vunpack.c.l.b16 %v1379
      %v1412 = vunpack.c.l.b16 %v1380
      %v1413 = vunpack.c.l.b16 %v1381
      %v1414 = vunpack.c.l.b16 %v1382
      %v1415 = vunpack.c.l.b16 %v1383
      %v1416 = vunpack.c.l.b16 %v1384
      %v1417 = vunpack.c.l.b16 %v1385
      %v1418 = vunpack.c.l.b16 %v1386
      %v1419 = vunpack.c.l.b16 %v1387
      %v1420 = vunpack.c.l.b16 %v1388
      %v1421 = vunpack.c.l.b16 %v1389
      %v1422 = vunpack.c.l.b16 %v1390
      %v1423 = vunpack.c.l.b16 %v1391
      %v1424 = vunpack.c.l.b16 %v1392
      %v1425 = vunpack.c.l.b16 %v1393
      %v1426 = vunpack.c.l.b16 %v1394
      %v1427 = vunpack.c.l.b16 %v1395
      %v1428 = vunpack.c.l.b16 %v1396
      %v1429 = vunpack.c.l.b16 %v1397
      %v1430 = vunpack.c.l.b16 %v1398
      %v1431 = vpack.c.b16 %v1400, %v1399
      %v1432 = vpack.c.b16 %v1402, %v1401
      %v1433 = vpack.c.b16 %v1404, %v1403
      %v1434 = vpack.c.b16 %v1406, %v1405
      %v1435 = vpack.c.b16 %v1408, %v1407
      %v1436 = vpack.c.b16 %v1410, %v1409
      %v1437 = vpack.c.b16 %v1412, %v1411
      %v1438 = vpack.c.b16 %v1414, %v1413
      %v1439 = vpack.c.b16 %v1416, %v1415
      %v1440 = vpack.c.b16 %v1418, %v1417
      %v1441 = vpack.c.b16 %v1420, %v1419
      %v1442 = vpack.c.b16 %v1422, %v1421
      %v1443 = vpack.c.b16 %v1424, %v1423
      %v1444 = vpack.c.b16 %v1426, %v1425
      %v1445 = vpack.c.b16 %v1428, %v1427
      %v1446 = vpack.c.b16 %v1430, %v1429
      %vm1447 = vsmask.f32 3328
      %v1449 = vshrl.u32 %v1431, 16
      %v1451 = vrot.slane %v1449, 4
      %v1452 = vshll.u32 %v1431, 16
      %v1454 = vrot.slane %v1452, 5
      %v1455 = vor.u32 %v1451, %v1454
      %v1457 = vshrl.u32 %v1432, 16
      %v1459 = vrot.slane %v1457, 4
      %v1460 = vshll.u32 %v1432, 16
      %v1462 = vrot.slane %v1460, 5
      %v1463 = vor.u32 %v1459, %v1462
      %v1464 = vsel %vm1447, %v1455, %v1463
      %v1466 = vshrl.u32 %v1433, 16
      %v1468 = vrot.slane %v1466, 4
      %v1469 = vshll.u32 %v1433, 16
      %v1471 = vrot.slane %v1469, 5
      %v1472 = vor.u32 %v1468, %v1471
      %v1473 = vsel %vm1447, %v1463, %v1472
      %v1475 = vshrl.u32 %v1434, 16
      %v1477 = vrot.slane %v1475, 4
      %v1478 = vshll.u32 %v1434, 16
      %v1480 = vrot.slane %v1478, 5
      %v1481 = vor.u32 %v1477, %v1480
      %v1482 = vsel %vm1447, %v1472, %v1481
      %v1484 = vshrl.u32 %v1435, 16
      %v1486 = vrot.slane %v1484, 4
      %v1487 = vshll.u32 %v1435, 16
      %v1489 = vrot.slane %v1487, 5
      %v1490 = vor.u32 %v1486, %v1489
      %v1491 = vsel %vm1447, %v1481, %v1490
      %v1493 = vshrl.u32 %v1436, 16
      %v1495 = vrot.slane %v1493, 4
      %v1496 = vshll.u32 %v1436, 16
      %v1498 = vrot.slane %v1496, 5
      %v1499 = vor.u32 %v1495, %v1498
      %v1500 = vsel %vm1447, %v1490, %v1499
      %v1502 = vshrl.u32 %v1437, 16
      %v1504 = vrot.slane %v1502, 4
      %v1505 = vshll.u32 %v1437, 16
      %v1507 = vrot.slane %v1505, 5
      %v1508 = vor.u32 %v1504, %v1507
      %v1509 = vsel %vm1447, %v1499, %v1508
      %v1511 = vshrl.u32 %v1438, 16
      %v1513 = vrot.slane %v1511, 4
      %v1514 = vshll.u32 %v1438, 16
      %v1516 = vrot.slane %v1514, 5
      %v1517 = vor.u32 %v1513, %v1516
      %v1518 = vsel %vm1447, %v1508, %v1517
      %v1520 = vshrl.u32 %v1439, 16
      %v1522 = vrot.slane %v1520, 4
      %v1523 = vshll.u32 %v1439, 16
      %v1525 = vrot.slane %v1523, 5
      %v1526 = vor.u32 %v1522, %v1525
      %v1527 = vsel %vm1447, %v1517, %v1526
      %v1529 = vshrl.u32 %v1440, 16
      %v1531 = vrot.slane %v1529, 4
      %v1532 = vshll.u32 %v1440, 16
      %v1534 = vrot.slane %v1532, 5
      %v1535 = vor.u32 %v1531, %v1534
      %v1536 = vsel %vm1447, %v1526, %v1535
      %v1538 = vshrl.u32 %v1441, 16
      %v1540 = vrot.slane %v1538, 4
      %v1541 = vshll.u32 %v1441, 16
      %v1543 = vrot.slane %v1541, 5
      %v1544 = vor.u32 %v1540, %v1543
      %v1545 = vsel %vm1447, %v1535, %v1544
      %v1547 = vshrl.u32 %v1442, 16
      %v1549 = vrot.slane %v1547, 4
      %v1550 = vshll.u32 %v1442, 16
      %v1552 = vrot.slane %v1550, 5
      %v1553 = vor.u32 %v1549, %v1552
      %v1554 = vsel %vm1447, %v1544, %v1553
      %v1556 = vshrl.u32 %v1443, 16
      %v1558 = vrot.slane %v1556, 4
      %v1559 = vshll.u32 %v1443, 16
      %v1561 = vrot.slane %v1559, 5
      %v1562 = vor.u32 %v1558, %v1561
      %v1563 = vsel %vm1447, %v1553, %v1562
      %v1565 = vshrl.u32 %v1444, 16
      %v1567 = vrot.slane %v1565, 4
      %v1568 = vshll.u32 %v1444, 16
      %v1570 = vrot.slane %v1568, 5
      %v1571 = vor.u32 %v1567, %v1570
      %v1572 = vsel %vm1447, %v1562, %v1571
      %v1574 = vshrl.u32 %v1445, 16
      %v1576 = vrot.slane %v1574, 4
      %v1577 = vshll.u32 %v1445, 16
      %v1579 = vrot.slane %v1577, 5
      %v1580 = vor.u32 %v1576, %v1579
      %v1581 = vsel %vm1447, %v1571, %v1580
      %v1583 = vshrl.u32 %v1446, 16
      %v1585 = vrot.slane %v1583, 4
      %v1586 = vshll.u32 %v1446, 16
      %v1588 = vrot.slane %v1586, 5
      %v1589 = vor.u32 %v1585, %v1588
      %v1590 = vsel %vm1447, %v1580, %v1589
      %vm1591 = vcmp.ne.s16.totalorder %v1455, 0
      %vm1592 = vcmp.ne.s16.totalorder %v1464, 0
      %vm1593 = vcmp.ne.s16.totalorder %v1473, 0
      %vm1594 = vcmp.ne.s16.totalorder %v1482, 0
      %vm1595 = vcmp.ne.s16.totalorder %v1491, 0
      %vm1596 = vcmp.ne.s16.totalorder %v1500, 0
      %vm1597 = vcmp.ne.s16.totalorder %v1509, 0
      %vm1598 = vcmp.ne.s16.totalorder %v1518, 0
      %vm1599 = vcmp.ne.s16.totalorder %v1527, 0
      %vm1600 = vcmp.ne.s16.totalorder %v1536, 0
      %vm1601 = vcmp.ne.s16.totalorder %v1545, 0
      %vm1602 = vcmp.ne.s16.totalorder %v1554, 0
      %vm1603 = vcmp.ne.s16.totalorder %v1563, 0
      %vm1604 = vcmp.ne.s16.totalorder %v1572, 0
      %vm1605 = vcmp.ne.s16.totalorder %v1581, 0
      %vm1606 = vcmp.ne.s16.totalorder %v1590, 0
      %vm1607 = vcmp.ne.s16.totalorder %v1589, 0
      %v1608 = vsel %vm1591, %v1254, 0
      %v1609 = vsel %vm1592, %v1255, 0
      %v1610 = vsel %vm1593, %v1256, 0
      %v1611 = vsel %vm1594, %v1257, 0
      %v1612 = vsel %vm1595, %v1258, 0
      %v1613 = vsel %vm1596, %v1259, 0
      %v1614 = vsel %vm1597, %v1260, 0
      %v1615 = vsel %vm1598, %v1261, 0
      %v1616 = vsel %vm1599, %v1262, 0
      %v1617 = vsel %vm1600, %v1263, 0
      %v1618 = vsel %vm1601, %v1264, 0
      %v1619 = vsel %vm1602, %v1265, 0
      %v1620 = vsel %vm1603, %v1266, 0
      %v1621 = vsel %vm1604, %v1267, 0
      %v1622 = vsel %vm1605, %v1268, 0
      %v1623 = vsel %vm1606, %v1269, 0
      %v1624 = vsel %vm1607, %v1270, 0
      %v1625 = vld [vmem:[#allocation2] sm:$0xf0]
      %v1626 = vld [vmem:[#allocation2 + $0x80] sm:$0x1f]
      %v1627 = vsel %vm1222, 1, 0
      %v1628 = vsel %vm1223, 1, 0
      %v1629 = vsel %vm1224, 1, 0
      %v1630 = vsel %vm1225, 1, 0
      %v1631 = vsel %vm1226, 1, 0
      %v1632 = vsel %vm1227, 1, 0
      %v1633 = vsel %vm1228, 1, 0
      %v1634 = vsel %vm1229, 1, 0
      %v1635 = vsel %vm1230, 1, 0
      %v1636 = vsel %vm1231, 1, 0
      %v1637 = vsel %vm1232, 1, 0
      %v1638 = vsel %vm1233, 1, 0
      %v1639 = vsel %vm1234, 1, 0
      %v1640 = vsel %vm1235, 1, 0
      %v1641 = vsel %vm1236, 1, 0
      %v1642 = vsel %vm1237, 1, 0
      %v1643 = vsel %vm1238, 1, 0
      %v1644 = vsel %vm1239, 1, 0
      %v1645 = vsel %vm1240, 1, 0
      %v1646 = vsel %vm1241, 1, 0
      %v1647 = vsel %vm1242, 1, 0
      %v1648 = vsel %vm1243, 1, 0
      %v1649 = vsel %vm1244, 1, 0
      %v1650 = vsel %vm1245, 1, 0
      %v1651 = vsel %vm1246, 1, 0
      %v1652 = vsel %vm1247, 1, 0
      %v1653 = vsel %vm1248, 1, 0
      %v1654 = vsel %vm1249, 1, 0
      %v1655 = vsel %vm1250, 1, 0
      %v1656 = vsel %vm1251, 1, 0
      %v1657 = vsel %vm1252, 1, 0
      %v1658 = vsel %vm1253, 1, 0
      %vm1659 = vcmp.eq.s32.totalorder %v1627, 1
      %vm1660 = vcmp.eq.s32.totalorder %v1628, 1
      %vm1661 = vcmp.eq.s32.totalorder %v1629, 1
      %vm1662 = vcmp.eq.s32.totalorder %v1630, 1
      %vm1663 = vcmp.eq.s32.totalorder %v1631, 1
      %vm1664 = vcmp.eq.s32.totalorder %v1632, 1
      %vm1665 = vcmp.eq.s32.totalorder %v1633, 1
      %vm1666 = vcmp.eq.s32.totalorder %v1634, 1
      %vm1667 = vcmp.eq.s32.totalorder %v1635, 1
      %vm1668 = vcmp.eq.s32.totalorder %v1636, 1
      %vm1669 = vcmp.eq.s32.totalorder %v1637, 1
      %vm1670 = vcmp.eq.s32.totalorder %v1638, 1
      %vm1671 = vcmp.eq.s32.totalorder %v1639, 1
      %vm1672 = vcmp.eq.s32.totalorder %v1640, 1
      %vm1673 = vcmp.eq.s32.totalorder %v1641, 1
      %vm1674 = vcmp.eq.s32.totalorder %v1642, 1
      %vm1675 = vcmp.eq.s32.totalorder %v1643, 1
      %vm1676 = vcmp.eq.s32.totalorder %v1644, 1
      %vm1677 = vcmp.eq.s32.totalorder %v1645, 1
      %vm1678 = vcmp.eq.s32.totalorder %v1646, 1
      %vm1679 = vcmp.eq.s32.totalorder %v1647, 1
      %vm1680 = vcmp.eq.s32.totalorder %v1648, 1
      %vm1681 = vcmp.eq.s32.totalorder %v1649, 1
      %vm1682 = vcmp.eq.s32.totalorder %v1650, 1
      %vm1683 = vcmp.eq.s32.totalorder %v1651, 1
      %vm1684 = vcmp.eq.s32.totalorder %v1652, 1
      %vm1685 = vcmp.eq.s32.totalorder %v1653, 1
      %vm1686 = vcmp.eq.s32.totalorder %v1654, 1
      %vm1687 = vcmp.eq.s32.totalorder %v1655, 1
      %vm1688 = vcmp.eq.s32.totalorder %v1656, 1
      %vm1689 = vcmp.eq.s32.totalorder %v1657, 1
      %vm1690 = vcmp.eq.s32.totalorder %v1658, 1
      %vm1691 = vmpackc.low %vm1659, %vm1659
      %vm1692 = vmpackc.low %vm1660, %vm1660
      %vm1693 = vmpackc.low %vm1661, %vm1661
      %vm1694 = vmpackc.low %vm1662, %vm1662
      %vm1695 = vmpackc.low %vm1663, %vm1663
      %vm1696 = vmpackc.low %vm1664, %vm1664
      %vm1697 = vmpackc.low %vm1665, %vm1665
      %vm1698 = vmpackc.low %vm1666, %vm1666
      %vm1699 = vmpackc.low %vm1667, %vm1667
      %vm1700 = vmpackc.low %vm1668, %vm1668
      %vm1701 = vmpackc.low %vm1669, %vm1669
      %vm1702 = vmpackc.low %vm1670, %vm1670
      %vm1703 = vmpackc.low %vm1671, %vm1671
      %vm1704 = vmpackc.low %vm1672, %vm1672
      %vm1705 = vmpackc.low %vm1673, %vm1673
      %vm1706 = vmpackc.low %vm1674, %vm1674
      %vm1707 = vmpackc.low %vm1675, %vm1675
      %vm1708 = vmpackc.low %vm1676, %vm1676
      %vm1709 = vmpackc.low %vm1677, %vm1677
      %vm1710 = vmpackc.low %vm1678, %vm1678
      %vm1711 = vmpackc.low %vm1679, %vm1679
      %vm1712 = vmpackc.low %vm1680, %vm1680
      %vm1713 = vmpackc.low %vm1681, %vm1681
      %vm1714 = vmpackc.low %vm1682, %vm1682
      %vm1715 = vmpackc.low %vm1683, %vm1683
      %vm1716 = vmpackc.low %vm1684, %vm1684
      %vm1717 = vmpackc.low %vm1685, %vm1685
      %vm1718 = vmpackc.low %vm1686, %vm1686
      %vm1719 = vmpackc.low %vm1687, %vm1687
      %vm1720 = vmpackc.low %vm1688, %vm1688
      %vm1721 = vmpackc.low %vm1689, %vm1689
      %vm1722 = vmpackc.low %vm1690, %vm1690
      %v1723 = vsel %vm1691, 65537, 0
      %v1724 = vsel %vm1692, 65537, 0
      %v1725 = vsel %vm1693, 65537, 0
      %v1726 = vsel %vm1694, 65537, 0
      %v1727 = vsel %vm1695, 65537, 0
      %v1728 = vsel %vm1696, 65537, 0
      %v1729 = vsel %vm1697, 65537, 0
      %v1730 = vsel %vm1698, 65537, 0
      %v1731 = vsel %vm1699, 65537, 0
      %v1732 = vsel %vm1700, 65537, 0
      %v1733 = vsel %vm1701, 65537, 0
      %v1734 = vsel %vm1702, 65537, 0
      %v1735 = vsel %vm1703, 65537, 0
      %v1736 = vsel %vm1704, 65537, 0
      %v1737 = vsel %vm1705, 65537, 0
      %v1738 = vsel %vm1706, 65537, 0
      %v1739 = vsel %vm1707, 65537, 0
      %v1740 = vsel %vm1708, 65537, 0
      %v1741 = vsel %vm1709, 65537, 0
      %v1742 = vsel %vm1710, 65537, 0
      %v1743 = vsel %vm1711, 65537, 0
      %v1744 = vsel %vm1712, 65537, 0
      %v1745 = vsel %vm1713, 65537, 0
      %v1746 = vsel %vm1714, 65537, 0
      %v1747 = vsel %vm1715, 65537, 0
      %v1748 = vsel %vm1716, 65537, 0
      %v1749 = vsel %vm1717, 65537, 0
      %v1750 = vsel %vm1718, 65537, 0
      %v1751 = vsel %vm1719, 65537, 0
      %v1752 = vsel %vm1720, 65537, 0
      %v1753 = vsel %vm1721, 65537, 0
      %v1754 = vsel %vm1722, 65537, 0
      %v1755 = vunpack.c.l.b16 %v1723
      %v1756 = vunpack.c.l.b16 %v1724
      %v1757 = vunpack.c.l.b16 %v1725
      %v1758 = vunpack.c.l.b16 %v1726
      %v1759 = vunpack.c.l.b16 %v1727
      %v1760 = vunpack.c.l.b16 %v1728
      %v1761 = vunpack.c.l.b16 %v1729
      %v1762 = vunpack.c.l.b16 %v1730
      %v1763 = vunpack.c.l.b16 %v1731
      %v1764 = vunpack.c.l.b16 %v1732
      %v1765 = vunpack.c.l.b16 %v1733
      %v1766 = vunpack.c.l.b16 %v1734
      %v1767 = vunpack.c.l.b16 %v1735
      %v1768 = vunpack.c.l.b16 %v1736
      %v1769 = vunpack.c.l.b16 %v1737
      %v1770 = vunpack.c.l.b16 %v1738
      %v1771 = vunpack.c.l.b16 %v1739
      %v1772 = vunpack.c.l.b16 %v1740
      %v1773 = vunpack.c.l.b16 %v1741
      %v1774 = vunpack.c.l.b16 %v1742
      %v1775 = vunpack.c.l.b16 %v1743
      %v1776 = vunpack.c.l.b16 %v1744
      %v1777 = vunpack.c.l.b16 %v1745
      %v1778 = vunpack.c.l.b16 %v1746
      %v1779 = vunpack.c.l.b16 %v1747
      %v1780 = vunpack.c.l.b16 %v1748
      %v1781 = vunpack.c.l.b16 %v1749
      %v1782 = vunpack.c.l.b16 %v1750
      %v1783 = vunpack.c.l.b16 %v1751
      %v1784 = vunpack.c.l.b16 %v1752
      %v1785 = vunpack.c.l.b16 %v1753
      %v1786 = vunpack.c.l.b16 %v1754
      %v1787 = vpack.c.b16 %v1756, %v1755
      %v1788 = vpack.c.b16 %v1758, %v1757
      %v1789 = vpack.c.b16 %v1760, %v1759
      %v1790 = vpack.c.b16 %v1762, %v1761
      %v1791 = vpack.c.b16 %v1764, %v1763
      %v1792 = vpack.c.b16 %v1766, %v1765
      %v1793 = vpack.c.b16 %v1768, %v1767
      %v1794 = vpack.c.b16 %v1770, %v1769
      %v1795 = vpack.c.b16 %v1772, %v1771
      %v1796 = vpack.c.b16 %v1774, %v1773
      %v1797 = vpack.c.b16 %v1776, %v1775
      %v1798 = vpack.c.b16 %v1778, %v1777
      %v1799 = vpack.c.b16 %v1780, %v1779
      %v1800 = vpack.c.b16 %v1782, %v1781
      %v1801 = vpack.c.b16 %v1784, %v1783
      %v1802 = vpack.c.b16 %v1786, %v1785
      %vm1803 = vsmask.f32 4352
      %v1805 = vshrl.u32 %v1787, 16
      %v1807 = vrot.slane %v1805, 3
      %v1808 = vshll.u32 %v1787, 16
      %v1810 = vrot.slane %v1808, 4
      %v1811 = vor.u32 %v1807, %v1810
      %v1813 = vshrl.u32 %v1788, 16
      %v1815 = vrot.slane %v1813, 3
      %v1816 = vshll.u32 %v1788, 16
      %v1818 = vrot.slane %v1816, 4
      %v1819 = vor.u32 %v1815, %v1818
      %v1820 = vsel %vm1803, %v1811, %v1819
      %v1822 = vshrl.u32 %v1789, 16
      %v1824 = vrot.slane %v1822, 3
      %v1825 = vshll.u32 %v1789, 16
      %v1827 = vrot.slane %v1825, 4
      %v1828 = vor.u32 %v1824, %v1827
      %v1829 = vsel %vm1803, %v1819, %v1828
      %v1831 = vshrl.u32 %v1790, 16
      %v1833 = vrot.slane %v1831, 3
      %v1834 = vshll.u32 %v1790, 16
      %v1836 = vrot.slane %v1834, 4
      %v1837 = vor.u32 %v1833, %v1836
      %v1838 = vsel %vm1803, %v1828, %v1837
      %v1840 = vshrl.u32 %v1791, 16
      %v1842 = vrot.slane %v1840, 3
      %v1843 = vshll.u32 %v1791, 16
      %v1845 = vrot.slane %v1843, 4
      %v1846 = vor.u32 %v1842, %v1845
      %v1847 = vsel %vm1803, %v1837, %v1846
      %v1849 = vshrl.u32 %v1792, 16
      %v1851 = vrot.slane %v1849, 3
      %v1852 = vshll.u32 %v1792, 16
      %v1854 = vrot.slane %v1852, 4
      %v1855 = vor.u32 %v1851, %v1854
      %v1856 = vsel %vm1803, %v1846, %v1855
      %v1858 = vshrl.u32 %v1793, 16
      %v1860 = vrot.slane %v1858, 3
      %v1861 = vshll.u32 %v1793, 16
      %v1863 = vrot.slane %v1861, 4
      %v1864 = vor.u32 %v1860, %v1863
      %v1865 = vsel %vm1803, %v1855, %v1864
      %v1867 = vshrl.u32 %v1794, 16
      %v1869 = vrot.slane %v1867, 3
      %v1870 = vshll.u32 %v1794, 16
      %v1872 = vrot.slane %v1870, 4
      %v1873 = vor.u32 %v1869, %v1872
      %v1874 = vsel %vm1803, %v1864, %v1873
      %v1876 = vshrl.u32 %v1795, 16
      %v1878 = vrot.slane %v1876, 3
      %v1879 = vshll.u32 %v1795, 16
      %v1881 = vrot.slane %v1879, 4
      %v1882 = vor.u32 %v1878, %v1881
      %v1883 = vsel %vm1803, %v1873, %v1882
      %v1885 = vshrl.u32 %v1796, 16
      %v1887 = vrot.slane %v1885, 3
      %v1888 = vshll.u32 %v1796, 16
      %v1890 = vrot.slane %v1888, 4
      %v1891 = vor.u32 %v1887, %v1890
      %v1892 = vsel %vm1803, %v1882, %v1891
      %v1894 = vshrl.u32 %v1797, 16
      %v1896 = vrot.slane %v1894, 3
      %v1897 = vshll.u32 %v1797, 16
      %v1899 = vrot.slane %v1897, 4
      %v1900 = vor.u32 %v1896, %v1899
      %v1901 = vsel %vm1803, %v1891, %v1900
      %v1903 = vshrl.u32 %v1798, 16
      %v1905 = vrot.slane %v1903, 3
      %v1906 = vshll.u32 %v1798, 16
      %v1908 = vrot.slane %v1906, 4
      %v1909 = vor.u32 %v1905, %v1908
      %v1910 = vsel %vm1803, %v1900, %v1909
      %v1912 = vshrl.u32 %v1799, 16
      %v1914 = vrot.slane %v1912, 3
      %v1915 = vshll.u32 %v1799, 16
      %v1917 = vrot.slane %v1915, 4
      %v1918 = vor.u32 %v1914, %v1917
      %v1919 = vsel %vm1803, %v1909, %v1918
      %v1921 = vshrl.u32 %v1800, 16
      %v1923 = vrot.slane %v1921, 3
      %v1924 = vshll.u32 %v1800, 16
      %v1926 = vrot.slane %v1924, 4
      %v1927 = vor.u32 %v1923, %v1926
      %v1928 = vsel %vm1803, %v1918, %v1927
      %v1930 = vshrl.u32 %v1801, 16
      %v1932 = vrot.slane %v1930, 3
      %v1933 = vshll.u32 %v1801, 16
      %v1935 = vrot.slane %v1933, 4
      %v1936 = vor.u32 %v1932, %v1935
      %v1937 = vsel %vm1803, %v1927, %v1936
      %v1939 = vshrl.u32 %v1802, 16
      %v1941 = vrot.slane %v1939, 3
      %v1942 = vshll.u32 %v1802, 16
      %v1944 = vrot.slane %v1942, 4
      %v1945 = vor.u32 %v1941, %v1944
      %v1946 = vsel %vm1803, %v1936, %v1945
      %vm1947 = vcmp.ne.s16.totalorder %v1811, 0
      %vm1948 = vcmp.ne.s16.totalorder %v1820, 0
      %vm1949 = vcmp.ne.s16.totalorder %v1829, 0
      %vm1950 = vcmp.ne.s16.totalorder %v1838, 0
      %vm1951 = vcmp.ne.s16.totalorder %v1847, 0
      %vm1952 = vcmp.ne.s16.totalorder %v1856, 0
      %vm1953 = vcmp.ne.s16.totalorder %v1865, 0
      %vm1954 = vcmp.ne.s16.totalorder %v1874, 0
      %vm1955 = vcmp.ne.s16.totalorder %v1883, 0
      %vm1956 = vcmp.ne.s16.totalorder %v1892, 0
      %vm1957 = vcmp.ne.s16.totalorder %v1901, 0
      %vm1958 = vcmp.ne.s16.totalorder %v1910, 0
      %vm1959 = vcmp.ne.s16.totalorder %v1919, 0
      %vm1960 = vcmp.ne.s16.totalorder %v1928, 0
      %vm1961 = vcmp.ne.s16.totalorder %v1937, 0
      %vm1962 = vcmp.ne.s16.totalorder %v1946, 0
      %vm1963 = vcmp.ne.s16.totalorder %v1945, 0
      %v1964 = vsel %vm1947, %v1625, 0
      %v1965 = vsel %vm1948, %v1255, 0
      %v1966 = vsel %vm1949, %v1256, 0
      %v1967 = vsel %vm1950, %v1257, 0
      %v1968 = vsel %vm1951, %v1258, 0
      %v1969 = vsel %vm1952, %v1259, 0
      %v1970 = vsel %vm1953, %v1260, 0
      %v1971 = vsel %vm1954, %v1261, 0
      %v1972 = vsel %vm1955, %v1262, 0
      %v1973 = vsel %vm1956, %v1263, 0
      %v1974 = vsel %vm1957, %v1264, 0
      %v1975 = vsel %vm1958, %v1265, 0
      %v1976 = vsel %vm1959, %v1266, 0
      %v1977 = vsel %vm1960, %v1267, 0
      %v1978 = vsel %vm1961, %v1268, 0
      %v1979 = vsel %vm1962, %v1269, 0
      %v1980 = vsel %vm1963, %v1626, 0
      %v1981 = vld [vmem:[#allocation2 + $0x8] sm:$0xf8]
      %v1982 = vld [vmem:[#allocation2 + $0x80] sm:$0xff]
      %v1983 = vld [vmem:[#allocation2 + $0x88] sm:$0xf]
      %v1984 = vsel %vm1591, %v1981, 0
      %v1985 = vsel %vm1592, %v1256, 0
      %v1986 = vsel %vm1593, %v1257, 0
      %v1987 = vsel %vm1594, %v1258, 0
      %v1988 = vsel %vm1595, %v1259, 0
      %v1989 = vsel %vm1596, %v1260, 0
      %v1990 = vsel %vm1597, %v1261, 0
      %v1991 = vsel %vm1598, %v1262, 0
      %v1992 = vsel %vm1599, %v1263, 0
      %v1993 = vsel %vm1600, %v1264, 0
      %v1994 = vsel %vm1601, %v1265, 0
      %v1995 = vsel %vm1602, %v1266, 0
      %v1996 = vsel %vm1603, %v1267, 0
      %v1997 = vsel %vm1604, %v1268, 0
      %v1998 = vsel %vm1605, %v1269, 0
      %v1999 = vsel %vm1606, %v1982, 0
      %v2000 = vsel %vm1607, %v1983, 0
      %v2001 = vld [vmem:[#allocation2 + $0x8] sm:$0xf0]
      %v2002 = vld [vmem:[#allocation2 + $0x88] sm:$0x1f]
      %v2003 = vsel %vm1947, %v2001, 0
      %v2004 = vsel %vm1948, %v1256, 0
      %v2005 = vsel %vm1949, %v1257, 0
      %v2006 = vsel %vm1950, %v1258, 0
      %v2007 = vsel %vm1951, %v1259, 0
      %v2008 = vsel %vm1952, %v1260, 0
      %v2009 = vsel %vm1953, %v1261, 0
      %v2010 = vsel %vm1954, %v1262, 0
      %v2011 = vsel %vm1955, %v1263, 0
      %v2012 = vsel %vm1956, %v1264, 0
      %v2013 = vsel %vm1957, %v1265, 0
      %v2014 = vsel %vm1958, %v1266, 0
      %v2015 = vsel %vm1959, %v1267, 0
      %v2016 = vsel %vm1960, %v1268, 0
      %v2017 = vsel %vm1961, %v1269, 0
      %v2018 = vsel %vm1962, %v1982, 0
      %v2019 = vsel %vm1963, %v2002, 0
      %v2020 = vld [vmem:[#allocation2 + $0x10] sm:$0xf8]
      %v2021 = vld [vmem:[#allocation2 + $0x88] sm:$0xff]
      %v2022 = vld [vmem:[#allocation2 + $0x90] sm:$0xf]
      %v2023 = vsel %vm1591, %v2020, 0
      %v2024 = vsel %vm1592, %v1257, 0
      %v2025 = vsel %vm1593, %v1258, 0
      %v2026 = vsel %vm1594, %v1259, 0
      %v2027 = vsel %vm1595, %v1260, 0
      %v2028 = vsel %vm1596, %v1261, 0
      %v2029 = vsel %vm1597, %v1262, 0
      %v2030 = vsel %vm1598, %v1263, 0
      %v2031 = vsel %vm1599, %v1264, 0
      %v2032 = vsel %vm1600, %v1265, 0
      %v2033 = vsel %vm1601, %v1266, 0
      %v2034 = vsel %vm1602, %v1267, 0
      %v2035 = vsel %vm1603, %v1268, 0
      %v2036 = vsel %vm1604, %v1269, 0
      %v2037 = vsel %vm1605, %v1982, 0
      %v2038 = vsel %vm1606, %v2021, 0
      %v2039 = vsel %vm1607, %v2022, 0
      %v2040 = vld [vmem:[#allocation2 + $0x10] sm:$0xf0]
      %v2041 = vld [vmem:[#allocation2 + $0x90] sm:$0x1f]
      %v2042 = vsel %vm1947, %v2040, 0
      %v2043 = vsel %vm1948, %v1257, 0
      %v2044 = vsel %vm1949, %v1258, 0
      %v2045 = vsel %vm1950, %v1259, 0
      %v2046 = vsel %vm1951, %v1260, 0
      %v2047 = vsel %vm1952, %v1261, 0
      %v2048 = vsel %vm1953, %v1262, 0
      %v2049 = vsel %vm1954, %v1263, 0
      %v2050 = vsel %vm1955, %v1264, 0
      %v2051 = vsel %vm1956, %v1265, 0
      %v2052 = vsel %vm1957, %v1266, 0
      %v2053 = vsel %vm1958, %v1267, 0
      %v2054 = vsel %vm1959, %v1268, 0
      %v2055 = vsel %vm1960, %v1269, 0
      %v2056 = vsel %vm1961, %v1982, 0
      %v2057 = vsel %vm1962, %v2021, 0
      %v2058 = vsel %vm1963, %v2041, 0
      %v2059 = vld [vmem:[%s362] sm:$0xf]
      %v2060 = vld [vmem:[%s362 + $0x4] sm:$0xf]
      %vm2078 = vcmask 1043456
      %v2079 = vrot.slane %v1625, 4
      %v2080 = vrot.slane %v1255, 4
      %v2081 = vsel %vm2078, %v2079, %v2080
      %v2082 = vrot.slane %v1256, 4
      %v2083 = vsel %vm2078, %v2080, %v2082
      %v2084 = vrot.slane %v1257, 4
      %v2085 = vsel %vm2078, %v2082, %v2084
      %v2086 = vrot.slane %v1258, 4
      %v2087 = vsel %vm2078, %v2084, %v2086
      %v2088 = vrot.slane %v1259, 4
      %v2089 = vsel %vm2078, %v2086, %v2088
      %v2090 = vrot.slane %v1260, 4
      %v2091 = vsel %vm2078, %v2088, %v2090
      %v2092 = vrot.slane %v1261, 4
      %v2093 = vsel %vm2078, %v2090, %v2092
      %v2094 = vrot.slane %v1262, 4
      %v2095 = vsel %vm2078, %v2092, %v2094
      %v2096 = vrot.slane %v1263, 4
      %v2097 = vsel %vm2078, %v2094, %v2096
      %v2098 = vrot.slane %v1264, 4
      %v2099 = vsel %vm2078, %v2096, %v2098
      %v2100 = vrot.slane %v1265, 4
      %v2101 = vsel %vm2078, %v2098, %v2100
      %v2102 = vrot.slane %v1266, 4
      %v2103 = vsel %vm2078, %v2100, %v2102
      %v2104 = vrot.slane %v1267, 4
      %v2105 = vsel %vm2078, %v2102, %v2104
      %v2106 = vrot.slane %v1268, 4
      %v2107 = vsel %vm2078, %v2104, %v2106
      %v2108 = vrot.slane %v1269, 4
      %v2109 = vsel %vm2078, %v2106, %v2108
      %v2110 = vrot.slane %v1270, 4
      %v2111 = vsel %vm2078, %v2108, %v2110
      %vm2112 = vcmask 64512
      %v2114 = vsel %vm2112, %v2081, 0
      %v2117 = vsel %vm2112, %v2083, 0
      %v2120 = vsel %vm2112, %v2085, 0
      %v2123 = vsel %vm2112, %v2087, 0
      %v2126 = vsel %vm2112, %v2089, 0
      %v2129 = vsel %vm2112, %v2091, 0
      %v2132 = vsel %vm2112, %v2093, 0
      %v2135 = vsel %vm2112, %v2095, 0
      %v2138 = vsel %vm2112, %v2097, 0
      %v2141 = vsel %vm2112, %v2099, 0
      %v2144 = vsel %vm2112, %v2101, 0
      %v2147 = vsel %vm2112, %v2103, 0
      %v2150 = vsel %vm2112, %v2105, 0
      %v2153 = vsel %vm2112, %v2107, 0
      %v2156 = vsel %vm2112, %v2109, 0
      %v2159 = vsel %vm2112, %v2111, 0
      %vm2161 = vcmask 1043456
      %v2163 = vsel %vm2161, %v2060, 0
      %2165 = vmatprep.subr.bf16.mxu0 0
      %2166 = vmatpush1.bf16.msra.mxu0 %v2163
      %2167 = vmatprep.subr.bf16.mxu0 0
      %2168 = vmatpush1.bf16.msra.mxu0 0
      %2169 = vmatprep.subr.bf16.mxu0 0
      %2170 = vmatpush1.bf16.msra.mxu0 0
      %2171 = vmatprep.subr.bf16.mxu0 0
      %2172 = vmatpush1.bf16.msra.mxu0 0
      %2173 = vmatprep.subr.bf16.mxu0 0
      %2174 = vmatpush1.bf16.msra.mxu0 0
      %2175 = vmatprep.subr.bf16.mxu0 0
      %2176 = vmatpush1.bf16.msra.mxu0 0
      %2177 = vmatprep.subr.bf16.mxu0 0
      %2178 = vmatpush1.bf16.msra.mxu0 0
      %2179 = vmatprep.subr.bf16.mxu0 0
      %2180 = vmatpush1.bf16.msra.mxu0 0
      %2181 = vmatprep.subr.bf16.mxu0 0
      %2182 = vmatpush1.bf16.msra.mxu0 0
      %2183 = vmatprep.subr.bf16.mxu0 0
      %2184 = vmatpush1.bf16.msra.mxu0 0
      %2185 = vmatprep.subr.bf16.mxu0 0
      %2186 = vmatpush1.bf16.msra.mxu0 0
      %2187 = vmatprep.subr.bf16.mxu0 0
      %2188 = vmatpush1.bf16.msra.mxu0 0
      %2189 = vmatprep.subr.bf16.mxu0 0
      %2190 = vmatpush1.bf16.msra.mxu0 0
      %2191 = vmatprep.subr.bf16.mxu0 0
      %2192 = vmatpush1.bf16.msra.mxu0 0
      %2193 = vmatprep.subr.bf16.mxu0 0
      %2194 = vmatpush1.bf16.msra.mxu0 0
      %2195 = vmatprep.subr.bf16.mxu0 0
      %2196 = vmatpush1.bf16.msra.mxu0 0
      %2197 = vmatprep.mubr.bf16.mxu0 0
      %2198 = vmatmul.mubr.bf16.gmra.mrb[0].mxu0 %v2114
      %v2199 = vpop.f32.mrb[0].mxu0
      %v2200 = vadd.f32 0.0, %v2199
      %v2201 = vpop.f32.mrb[0].mxu0
      %v2202 = vpop.f32.mrb[0].mxu0
      %v2203 = vadd.f32 0.0, %v2202
      %v2204 = vpop.f32.mrb[0].mxu0
      %2205 = vmatprep.mubr.bf16.mxu0 0
      %2206 = vmatmul.mubr.bf16.gmra.mrb[0].mxu0 %v2117
      %v2207 = vpop.f32.mrb[0].mxu0
      %v2208 = vadd.f32 0.0, %v2207
      %v2209 = vpop.f32.mrb[0].mxu0
      %v2210 = vpop.f32.mrb[0].mxu0
      %v2211 = vadd.f32 0.0, %v2210
      %v2212 = vpop.f32.mrb[0].mxu0
      %2213 = vmatprep.mubr.bf16.mxu0 0
      %2214 = vmatmul.mubr.bf16.gmra.mrb[0].mxu0 %v2120
      %v2215 = vpop.f32.mrb[0].mxu0
      %v2216 = vadd.f32 0.0, %v2215
      %v2217 = vpop.f32.mrb[0].mxu0
      %v2218 = vpop.f32.mrb[0].mxu0
      %v2219 = vadd.f32 0.0, %v2218
      %v2220 = vpop.f32.mrb[0].mxu0
      %2221 = vmatprep.mubr.bf16.mxu0 0
      %2222 = vmatmul.mubr.bf16.gmra.mrb[0].mxu0 %v2123
      %v2223 = vpop.f32.mrb[0].mxu0
      %v2224 = vadd.f32 0.0, %v2223
      %v2225 = vpop.f32.mrb[0].mxu0
      %v2226 = vpop.f32.mrb[0].mxu0
      %v2227 = vadd.f32 0.0, %v2226
      %v2228 = vpop.f32.mrb[0].mxu0
      %2229 = vmatprep.mubr.bf16.mxu0 0
      %2230 = vmatmul.mubr.bf16.gmra.mrb[0].mxu0 %v2126
      %v2231 = vpop.f32.mrb[0].mxu0
      %v2232 = vadd.f32 0.0, %v2231
      %v2233 = vpop.f32.mrb[0].mxu0
      %v2234 = vpop.f32.mrb[0].mxu0
      %v2235 = vadd.f32 0.0, %v2234
      %v2236 = vpop.f32.mrb[0].mxu0
      %2237 = vmatprep.mubr.bf16.mxu0 0
      %2238 = vmatmul.mubr.bf16.gmra.mrb[0].mxu0 %v2129
      %v2239 = vpop.f32.mrb[0].mxu0
      %v2240 = vadd.f32 0.0, %v2239
      %v2241 = vpop.f32.mrb[0].mxu0
      %v2242 = vpop.f32.mrb[0].mxu0
      %v2243 = vadd.f32 0.0, %v2242
      %v2244 = vpop.f32.mrb[0].mxu0
      %2245 = vmatprep.mubr.bf16.mxu0 0
      %2246 = vmatmul.mubr.bf16.gmra.mrb[0].mxu0 %v2132
      %v2247 = vpop.f32.mrb[0].mxu0
      %v2248 = vadd.f32 0.0, %v2247
      %v2249 = vpop.f32.mrb[0].mxu0
      %v2250 = vpop.f32.mrb[0].mxu0
      %v2251 = vadd.f32 0.0, %v2250
      %v2252 = vpop.f32.mrb[0].mxu0
      %2253 = vmatprep.mubr.bf16.mxu0 0
      %2254 = vmatmul.mubr.bf16.gmra.mrb[0].mxu0 %v2135
      %v2255 = vpop.f32.mrb[0].mxu0
      %v2256 = vadd.f32 0.0, %v2255
      %v2257 = vpop.f32.mrb[0].mxu0
      %v2258 = vpop.f32.mrb[0].mxu0
      %v2259 = vadd.f32 0.0, %v2258
      %v2260 = vpop.f32.mrb[0].mxu0
      %2261 = vmatprep.mubr.bf16.mxu0 0
      %2262 = vmatmul.mubr.bf16.gmra.mrb[0].mxu0 %v2138
      %v2263 = vpop.f32.mrb[0].mxu0
      %v2264 = vadd.f32 0.0, %v2263
      %v2265 = vpop.f32.mrb[0].mxu0
      %v2266 = vpop.f32.mrb[0].mxu0
      %v2267 = vadd.f32 0.0, %v2266
      %v2268 = vpop.f32.mrb[0].mxu0
      %2269 = vmatprep.mubr.bf16.mxu0 0
      %2270 = vmatmul.mubr.bf16.gmra.mrb[0].mxu0 %v2141
      %v2271 = vpop.f32.mrb[0].mxu0
      %v2272 = vadd.f32 0.0, %v2271
      %v2273 = vpop.f32.mrb[0].mxu0
      %v2274 = vpop.f32.mrb[0].mxu0
      %v2275 = vadd.f32 0.0, %v2274
      %v2276 = vpop.f32.mrb[0].mxu0
      %2277 = vmatprep.mubr.bf16.mxu0 0
      %2278 = vmatmul.mubr.bf16.gmra.mrb[0].mxu0 %v2144
      %v2279 = vpop.f32.mrb[0].mxu0
      %v2280 = vadd.f32 0.0, %v2279
      %v2281 = vpop.f32.mrb[0].mxu0
      %v2282 = vpop.f32.mrb[0].mxu0
      %v2283 = vadd.f32 0.0, %v2282
      %v2284 = vpop.f32.mrb[0].mxu0
      %2285 = vmatprep.mubr.bf16.mxu0 0
      %2286 = vmatmul.mubr.bf16.gmra.mrb[0].mxu0 %v2147
      %v2287 = vpop.f32.mrb[0].mxu0
      %v2288 = vadd.f32 0.0, %v2287
      %v2289 = vpop.f32.mrb[0].mxu0
      %v2290 = vpop.f32.mrb[0].mxu0
      %v2291 = vadd.f32 0.0, %v2290
      %v2292 = vpop.f32.mrb[0].mxu0
      %2293 = vmatprep.mubr.bf16.mxu0 0
      %2294 = vmatmul.mubr.bf16.gmra.mrb[0].mxu0 %v2150
      %v2295 = vpop.f32.mrb[0].mxu0
      %v2296 = vadd.f32 0.0, %v2295
      %v2297 = vpop.f32.mrb[0].mxu0
      %v2298 = vpop.f32.mrb[0].mxu0
      %v2299 = vadd.f32 0.0, %v2298
      %v2300 = vpop.f32.mrb[0].mxu0
      %2301 = vmatprep.mubr.bf16.mxu0 0
      %2302 = vmatmul.mubr.bf16.gmra.mrb[0].mxu0 %v2153
      %v2303 = vpop.f32.mrb[0].mxu0
      %v2304 = vadd.f32 0.0, %v2303
      %v2305 = vpop.f32.mrb[0].mxu0
      %v2306 = vpop.f32.mrb[0].mxu0
      %v2307 = vadd.f32 0.0, %v2306
      %v2308 = vpop.f32.mrb[0].mxu0
      %2309 = vmatprep.mubr.bf16.mxu0 0
      %2310 = vmatmul.mubr.bf16.gmra.mrb[0].mxu0 %v2156
      %v2311 = vpop.f32.mrb[0].mxu0
      %v2312 = vadd.f32 0.0, %v2311
      %v2313 = vpop.f32.mrb[0].mxu0
      %v2314 = vpop.f32.mrb[0].mxu0
      %v2315 = vadd.f32 0.0, %v2314
      %v2316 = vpop.f32.mrb[0].mxu0
      %2317 = vmatprep.mubr.bf16.mxu0 0
      %2318 = vmatmul.mubr.bf16.gmra.mrb[0].mxu0 %v2159
      %v2319 = vpop.f32.mrb[0].mxu0
      %v2320 = vadd.f32 0.0, %v2319
      %v2321 = vpop.f32.mrb[0].mxu0
      %v2322 = vpop.f32.mrb[0].mxu0
      %v2323 = vadd.f32 0.0, %v2322
      %v2324 = vpop.f32.mrb[0].mxu0
      %2325 = vdwg.mxu0
      %v2327 = vshrl.u32 %v1608, 16
      %v2329 = vrot.slane %v2327, 3
      %v2330 = vshll.u32 %v1608, 16
      %v2332 = vrot.slane %v2330, 4
      %v2333 = vor.u32 %v2329, %v2332
      %v2335 = vshrl.u32 %v1609, 16
      %v2337 = vrot.slane %v2335, 3
      %v2338 = vshll.u32 %v1609, 16
      %v2340 = vrot.slane %v2338, 4
      %v2341 = vor.u32 %v2337, %v2340
      %v2342 = vsel %vm1803, %v2333, %v2341
      %v2344 = vshrl.u32 %v1610, 16
      %v2346 = vrot.slane %v2344, 3
      %v2347 = vshll.u32 %v1610, 16
      %v2349 = vrot.slane %v2347, 4
      %v2350 = vor.u32 %v2346, %v2349
      %v2351 = vsel %vm1803, %v2341, %v2350
      %v2353 = vshrl.u32 %v1611, 16
      %v2355 = vrot.slane %v2353, 3
      %v2356 = vshll.u32 %v1611, 16
      %v2358 = vrot.slane %v2356, 4
      %v2359 = vor.u32 %v2355, %v2358
      %v2360 = vsel %vm1803, %v2350, %v2359
      %v2362 = vshrl.u32 %v1612, 16
      %v2364 = vrot.slane %v2362, 3
      %v2365 = vshll.u32 %v1612, 16
      %v2367 = vrot.slane %v2365, 4
      %v2368 = vor.u32 %v2364, %v2367
      %v2369 = vsel %vm1803, %v2359, %v2368
      %v2371 = vshrl.u32 %v1613, 16
      %v2373 = vrot.slane %v2371, 3
      %v2374 = vshll.u32 %v1613, 16
      %v2376 = vrot.slane %v2374, 4
      %v2377 = vor.u32 %v2373, %v2376
      %v2378 = vsel %vm1803, %v2368, %v2377
      %v2380 = vshrl.u32 %v1614, 16
      %v2382 = vrot.slane %v2380, 3
      %v2383 = vshll.u32 %v1614, 16
      %v2385 = vrot.slane %v2383, 4
      %v2386 = vor.u32 %v2382, %v2385
      %v2387 = vsel %vm1803, %v2377, %v2386
      %v2389 = vshrl.u32 %v1615, 16
      %v2391 = vrot.slane %v2389, 3
      %v2392 = vshll.u32 %v1615, 16
      %v2394 = vrot.slane %v2392, 4
      %v2395 = vor.u32 %v2391, %v2394
      %v2396 = vsel %vm1803, %v2386, %v2395
      %v2398 = vshrl.u32 %v1616, 16
      %v2400 = vrot.slane %v2398, 3
      %v2401 = vshll.u32 %v1616, 16
      %v2403 = vrot.slane %v2401, 4
      %v2404 = vor.u32 %v2400, %v2403
      %v2405 = vsel %vm1803, %v2395, %v2404
      %v2407 = vshrl.u32 %v1617, 16
      %v2409 = vrot.slane %v2407, 3
      %v2410 = vshll.u32 %v1617, 16
      %v2412 = vrot.slane %v2410, 4
      %v2413 = vor.u32 %v2409, %v2412
      %v2414 = vsel %vm1803, %v2404, %v2413
      %v2416 = vshrl.u32 %v1618, 16
      %v2418 = vrot.slane %v2416, 3
      %v2419 = vshll.u32 %v1618, 16
      %v2421 = vrot.slane %v2419, 4
      %v2422 = vor.u32 %v2418, %v2421
      %v2423 = vsel %vm1803, %v2413, %v2422
      %v2425 = vshrl.u32 %v1619, 16
      %v2427 = vrot.slane %v2425, 3
      %v2428 = vshll.u32 %v1619, 16
      %v2430 = vrot.slane %v2428, 4
      %v2431 = vor.u32 %v2427, %v2430
      %v2432 = vsel %vm1803, %v2422, %v2431
      %v2434 = vshrl.u32 %v1620, 16
      %v2436 = vrot.slane %v2434, 3
      %v2437 = vshll.u32 %v1620, 16
      %v2439 = vrot.slane %v2437, 4
      %v2440 = vor.u32 %v2436, %v2439
      %v2441 = vsel %vm1803, %v2431, %v2440
      %v2443 = vshrl.u32 %v1621, 16
      %v2445 = vrot.slane %v2443, 3
      %v2446 = vshll.u32 %v1621, 16
      %v2448 = vrot.slane %v2446, 4
      %v2449 = vor.u32 %v2445, %v2448
      %v2450 = vsel %vm1803, %v2440, %v2449
      %v2452 = vshrl.u32 %v1622, 16
      %v2454 = vrot.slane %v2452, 3
      %v2455 = vshll.u32 %v1622, 16
      %v2457 = vrot.slane %v2455, 4
      %v2458 = vor.u32 %v2454, %v2457
      %v2459 = vsel %vm1803, %v2449, %v2458
      %v2461 = vshrl.u32 %v1623, 16
      %v2463 = vrot.slane %v2461, 3
      %v2464 = vshll.u32 %v1623, 16
      %v2466 = vrot.slane %v2464, 4
      %v2467 = vor.u32 %v2463, %v2466
      %v2468 = vsel %vm1803, %v2458, %v2467
      %v2470 = vshrl.u32 %v1624, 16
      %v2472 = vrot.slane %v2470, 3
      %v2473 = vshll.u32 %v1624, 16
      %v2475 = vrot.slane %v2473, 4
      %v2476 = vor.u32 %v2472, %v2475
      %v2477 = vsel %vm1803, %v2467, %v2476
      %v2479 = vsel %vm2112, %v2342, 0
      %v2482 = vsel %vm2112, %v2351, 0
      %v2485 = vsel %vm2112, %v2360, 0
      %v2488 = vsel %vm2112, %v2369, 0
      %v2491 = vsel %vm2112, %v2378, 0
      %v2494 = vsel %vm2112, %v2387, 0
      %v2497 = vsel %vm2112, %v2396, 0
      %v2500 = vsel %vm2112, %v2405, 0
      %v2503 = vsel %vm2112, %v2414, 0
      %v2506 = vsel %vm2112, %v2423, 0
      %v2509 = vsel %vm2112, %v2432, 0
      %v2512 = vsel %vm2112, %v2441, 0
      %v2515 = vsel %vm2112, %v2450, 0
      %v2518 = vsel %vm2112, %v2459, 0
      %v2521 = vsel %vm2112, %v2468, 0
      %v2524 = vsel %vm2112, %v2477, 0
      %v2527 = vsel %vm2161, %v2059, 0
      %2529 = vmatprep.subr.bf16.mxu0 0
      %2530 = vmatpush1.bf16.msra.mxu0 %v2527
      %2531 = vmatprep.subr.bf16.mxu0 0
      %2532 = vmatpush1.bf16.msra.mxu0 0
      %2533 = vmatprep.subr.bf16.mxu0 0
      %2534 = vmatpush1.bf16.msra.mxu0 0
      %2535 = vmatprep.subr.bf16.mxu0 0
      %2536 = vmatpush1.bf16.msra.mxu0 0
      %2537 = vmatprep.subr.bf16.mxu0 0
      %2538 = vmatpush1.bf16.msra.mxu0 0
      %2539 = vmatprep.subr.bf16.mxu0 0
      %2540 = vmatpush1.bf16.msra.mxu0 0
      %2541 = vmatprep.subr.bf16.mxu0 0
      %2542 = vmatpush1.bf16.msra.mxu0 0
      %2543 = vmatprep.subr.bf16.mxu0 0
      %2544 = vmatpush1.bf16.msra.mxu0 0
      %2545 = vmatprep.subr.bf16.mxu0 0
      %2546 = vmatpush1.bf16.msra.mxu0 0
      %2547 = vmatprep.subr.bf16.mxu0 0
      %2548 = vmatpush1.bf16.msra.mxu0 0
      %2549 = vmatprep.subr.bf16.mxu0 0
      %2550 = vmatpush1.bf16.msra.mxu0 0
      %2551 = vmatprep.subr.bf16.mxu0 0
      %2552 = vmatpush1.bf16.msra.mxu0 0
      %2553 = vmatprep.subr.bf16.mxu0 0
      %2554 = vmatpush1.bf16.msra.mxu0 0
      %2555 = vmatprep.subr.bf16.mxu0 0
      %2556 = vmatpush1.bf16.msra.mxu0 0
      %2557 = vmatprep.subr.bf16.mxu0 0
      %2558 = vmatpush1.bf16.msra.mxu0 0
      %2559 = vmatprep.subr.bf16.mxu0 0
      %2560 = vmatpush1.bf16.msra.mxu0 0
      %2561 = vmatprep.mubr.bf16.mxu0 0
      %2562 = vmatmul.mubr.bf16.gmra.mrb[0].mxu0 %v2479
      %v2563 = vpop.f32.mrb[0].mxu0
      %v2564 = vadd.f32 %v2200, %v2563
      %v2565 = vpop.f32.mrb[0].mxu0
      %v2566 = vpop.f32.mrb[0].mxu0
      %v2567 = vadd.f32 %v2203, %v2566
      %v2568 = vpop.f32.mrb[0].mxu0
      %2569 = vmatprep.mubr.bf16.mxu0 0
      %2570 = vmatmul.mubr.bf16.gmra.mrb[0].mxu0 %v2482
      %v2571 = vpop.f32.mrb[0].mxu0
      %v2572 = vadd.f32 %v2208, %v2571
      %v2573 = vpop.f32.mrb[0].mxu0
      %v2574 = vpop.f32.mrb[0].mxu0
      %v2575 = vadd.f32 %v2211, %v2574
      %v2576 = vpop.f32.mrb[0].mxu0
      %2577 = vmatprep.mubr.bf16.mxu0 0
      %2578 = vmatmul.mubr.bf16.gmra.mrb[0].mxu0 %v2485
      %v2579 = vpop.f32.mrb[0].mxu0
      %v2580 = vadd.f32 %v2216, %v2579
      %v2581 = vpop.f32.mrb[0].mxu0
      %v2582 = vpop.f32.mrb[0].mxu0
      %v2583 = vadd.f32 %v2219, %v2582
      %v2584 = vpop.f32.mrb[0].mxu0
      %2585 = vmatprep.mubr.bf16.mxu0 0
      %2586 = vmatmul.mubr.bf16.gmra.mrb[0].mxu0 %v2488
      %v2587 = vpop.f32.mrb[0].mxu0
      %v2588 = vadd.f32 %v2224, %v2587
      %v2589 = vpop.f32.mrb[0].mxu0
      %v2590 = vpop.f32.mrb[0].mxu0
      %v2591 = vadd.f32 %v2227, %v2590
      %v2592 = vpop.f32.mrb[0].mxu0
      %2593 = vmatprep.mubr.bf16.mxu0 0
      %2594 = vmatmul.mubr.bf16.gmra.mrb[0].mxu0 %v2491
      %v2595 = vpop.f32.mrb[0].mxu0
      %v2596 = vadd.f32 %v2232, %v2595
      %v2597 = vpop.f32.mrb[0].mxu0
      %v2598 = vpop.f32.mrb[0].mxu0
      %v2599 = vadd.f32 %v2235, %v2598
      %v2600 = vpop.f32.mrb[0].mxu0
      %2601 = vmatprep.mubr.bf16.mxu0 0
      %2602 = vmatmul.mubr.bf16.gmra.mrb[0].mxu0 %v2494
      %v2603 = vpop.f32.mrb[0].mxu0
      %v2604 = vadd.f32 %v2240, %v2603
      %v2605 = vpop.f32.mrb[0].mxu0
      %v2606 = vpop.f32.mrb[0].mxu0
      %v2607 = vadd.f32 %v2243, %v2606
      %v2608 = vpop.f32.mrb[0].mxu0
      %2609 = vmatprep.mubr.bf16.mxu0 0
      %2610 = vmatmul.mubr.bf16.gmra.mrb[0].mxu0 %v2497
      %v2611 = vpop.f32.mrb[0].mxu0
      %v2612 = vadd.f32 %v2248, %v2611
      %v2613 = vpop.f32.mrb[0].mxu0
      %v2614 = vpop.f32.mrb[0].mxu0
      %v2615 = vadd.f32 %v2251, %v2614
      %v2616 = vpop.f32.mrb[0].mxu0
      %2617 = vmatprep.mubr.bf16.mxu0 0
      %2618 = vmatmul.mubr.bf16.gmra.mrb[0].mxu0 %v2500
      %v2619 = vpop.f32.mrb[0].mxu0
      %v2620 = vadd.f32 %v2256, %v2619
      %v2621 = vpop.f32.mrb[0].mxu0
      %v2622 = vpop.f32.mrb[0].mxu0
      %v2623 = vadd.f32 %v2259, %v2622
      %v2624 = vpop.f32.mrb[0].mxu0
      %2625 = vmatprep.mubr.bf16.mxu0 0
      %2626 = vmatmul.mubr.bf16.gmra.mrb[0].mxu0 %v2503
      %v2627 = vpop.f32.mrb[0].mxu0
      %v2628 = vadd.f32 %v2264, %v2627
      %v2629 = vpop.f32.mrb[0].mxu0
      %v2630 = vpop.f32.mrb[0].mxu0
      %v2631 = vadd.f32 %v2267, %v2630
      %v2632 = vpop.f32.mrb[0].mxu0
      %2633 = vmatprep.mubr.bf16.mxu0 0
      %2634 = vmatmul.mubr.bf16.gmra.mrb[0].mxu0 %v2506
      %v2635 = vpop.f32.mrb[0].mxu0
      %v2636 = vadd.f32 %v2272, %v2635
      %v2637 = vpop.f32.mrb[0].mxu0
      %v2638 = vpop.f32.mrb[0].mxu0
      %v2639 = vadd.f32 %v2275, %v2638
      %v2640 = vpop.f32.mrb[0].mxu0
      %2641 = vmatprep.mubr.bf16.mxu0 0
      %2642 = vmatmul.mubr.bf16.gmra.mrb[0].mxu0 %v2509
      %v2643 = vpop.f32.mrb[0].mxu0
      %v2644 = vadd.f32 %v2280, %v2643
      %v2645 = vpop.f32.mrb[0].mxu0
      %v2646 = vpop.f32.mrb[0].mxu0
      %v2647 = vadd.f32 %v2283, %v2646
      %v2648 = vpop.f32.mrb[0].mxu0
      %2649 = vmatprep.mubr.bf16.mxu0 0
      %2650 = vmatmul.mubr.bf16.gmra.mrb[0].mxu0 %v2512
      %v2651 = vpop.f32.mrb[0].mxu0
      %v2652 = vadd.f32 %v2288, %v2651
      %v2653 = vpop.f32.mrb[0].mxu0
      %v2654 = vpop.f32.mrb[0].mxu0
      %v2655 = vadd.f32 %v2291, %v2654
      %v2656 = vpop.f32.mrb[0].mxu0
      %2657 = vmatprep.mubr.bf16.mxu0 0
      %2658 = vmatmul.mubr.bf16.gmra.mrb[0].mxu0 %v2515
      %v2659 = vpop.f32.mrb[0].mxu0
      %v2660 = vadd.f32 %v2296, %v2659
      %v2661 = vpop.f32.mrb[0].mxu0
      %v2662 = vpop.f32.mrb[0].mxu0
      %v2663 = vadd.f32 %v2299, %v2662
      %v2664 = vpop.f32.mrb[0].mxu0
      %2665 = vmatprep.mubr.bf16.mxu0 0
      %2666 = vmatmul.mubr.bf16.gmra.mrb[0].mxu0 %v2518
      %v2667 = vpop.f32.mrb[0].mxu0
      %v2668 = vadd.f32 %v2304, %v2667
      %v2669 = vpop.f32.mrb[0].mxu0
      %v2670 = vpop.f32.mrb[0].mxu0
      %v2671 = vadd.f32 %v2307, %v2670
      %v2672 = vpop.f32.mrb[0].mxu0
      %2673 = vmatprep.mubr.bf16.mxu0 0
      %2674 = vmatmul.mubr.bf16.gmra.mrb[0].mxu0 %v2521
      %v2675 = vpop.f32.mrb[0].mxu0
      %v2676 = vadd.f32 %v2312, %v2675
      %v2677 = vpop.f32.mrb[0].mxu0
      %v2678 = vpop.f32.mrb[0].mxu0
      %v2679 = vadd.f32 %v2315, %v2678
      %v2680 = vpop.f32.mrb[0].mxu0
      %2681 = vmatprep.mubr.bf16.mxu0 0
      %2682 = vmatmul.mubr.bf16.gmra.mrb[0].mxu0 %v2524
      %v2683 = vpop.f32.mrb[0].mxu0
      %v2684 = vadd.f32 %v2320, %v2683
      %v2685 = vpop.f32.mrb[0].mxu0
      %v2686 = vpop.f32.mrb[0].mxu0
      %v2687 = vadd.f32 %v2323, %v2686
      %v2688 = vpop.f32.mrb[0].mxu0
      %2689 = vdwg.mxu0
      %v2690 = vld [vmem:[%s362 + $0x8] sm:$0xf]
      %v2692 = vshrl.u32 %v1964, 16
      %v2694 = vrot.slane %v2692, 4
      %v2695 = vshll.u32 %v1964, 16
      %v2697 = vrot.slane %v2695, 5
      %v2698 = vor.u32 %v2694, %v2697
      %v2700 = vshrl.u32 %v1965, 16
      %v2702 = vrot.slane %v2700, 4
      %v2703 = vshll.u32 %v1965, 16
      %v2705 = vrot.slane %v2703, 5
      %v2706 = vor.u32 %v2702, %v2705
      %v2707 = vsel %vm1447, %v2698, %v2706
      %v2709 = vshrl.u32 %v1966, 16
      %v2711 = vrot.slane %v2709, 4
      %v2712 = vshll.u32 %v1966, 16
      %v2714 = vrot.slane %v2712, 5
      %v2715 = vor.u32 %v2711, %v2714
      %v2716 = vsel %vm1447, %v2706, %v2715
      %v2718 = vshrl.u32 %v1967, 16
      %v2720 = vrot.slane %v2718, 4
      %v2721 = vshll.u32 %v1967, 16
      %v2723 = vrot.slane %v2721, 5
      %v2724 = vor.u32 %v2720, %v2723
      %v2725 = vsel %vm1447, %v2715, %v2724
      %v2727 = vshrl.u32 %v1968, 16
      %v2729 = vrot.slane %v2727, 4
      %v2730 = vshll.u32 %v1968, 16
      %v2732 = vrot.slane %v2730, 5
      %v2733 = vor.u32 %v2729, %v2732
      %v2734 = vsel %vm1447, %v2724, %v2733
      %v2736 = vshrl.u32 %v1969, 16
      %v2738 = vrot.slane %v2736, 4
      %v2739 = vshll.u32 %v1969, 16
      %v2741 = vrot.slane %v2739, 5
      %v2742 = vor.u32 %v2738, %v2741
      %v2743 = vsel %vm1447, %v2733, %v2742
      %v2745 = vshrl.u32 %v1970, 16
      %v2747 = vrot.slane %v2745, 4
      %v2748 = vshll.u32 %v1970, 16
      %v2750 = vrot.slane %v2748, 5
      %v2751 = vor.u32 %v2747, %v2750
      %v2752 = vsel %vm1447, %v2742, %v2751
      %v2754 = vshrl.u32 %v1971, 16
      %v2756 = vrot.slane %v2754, 4
      %v2757 = vshll.u32 %v1971, 16
      %v2759 = vrot.slane %v2757, 5
      %v2760 = vor.u32 %v2756, %v2759
      %v2761 = vsel %vm1447, %v2751, %v2760
      %v2763 = vshrl.u32 %v1972, 16
      %v2765 = vrot.slane %v2763, 4
      %v2766 = vshll.u32 %v1972, 16
      %v2768 = vrot.slane %v2766, 5
      %v2769 = vor.u32 %v2765, %v2768
      %v2770 = vsel %vm1447, %v2760, %v2769
      %v2772 = vshrl.u32 %v1973, 16
      %v2774 = vrot.slane %v2772, 4
      %v2775 = vshll.u32 %v1973, 16
      %v2777 = vrot.slane %v2775, 5
      %v2778 = vor.u32 %v2774, %v2777
      %v2779 = vsel %vm1447, %v2769, %v2778
      %v2781 = vshrl.u32 %v1974, 16
      %v2783 = vrot.slane %v2781, 4
      %v2784 = vshll.u32 %v1974, 16
      %v2786 = vrot.slane %v2784, 5
      %v2787 = vor.u32 %v2783, %v2786
      %v2788 = vsel %vm1447, %v2778, %v2787
      %v2790 = vshrl.u32 %v1975, 16
      %v2792 = vrot.slane %v2790, 4
      %v2793 = vshll.u32 %v1975, 16
      %v2795 = vrot.slane %v2793, 5
      %v2796 = vor.u32 %v2792, %v2795
      %v2797 = vsel %vm1447, %v2787, %v2796
      %v2799 = vshrl.u32 %v1976, 16
      %v2801 = vrot.slane %v2799, 4
      %v2802 = vshll.u32 %v1976, 16
      %v2804 = vrot.slane %v2802, 5
      %v2805 = vor.u32 %v2801, %v2804
      %v2806 = vsel %vm1447, %v2796, %v2805
      %v2808 = vshrl.u32 %v1977, 16
      %v2810 = vrot.slane %v2808, 4
      %v2811 = vshll.u32 %v1977, 16
      %v2813 = vrot.slane %v2811, 5
      %v2814 = vor.u32 %v2810, %v2813
      %v2815 = vsel %vm1447, %v2805, %v2814
      %v2817 = vshrl.u32 %v1978, 16
      %v2819 = vrot.slane %v2817, 4
      %v2820 = vshll.u32 %v1978, 16
      %v2822 = vrot.slane %v2820, 5
      %v2823 = vor.u32 %v2819, %v2822
      %v2824 = vsel %vm1447, %v2814, %v2823
      %v2826 = vshrl.u32 %v1979, 16
      %v2828 = vrot.slane %v2826, 4
      %v2829 = vshll.u32 %v1979, 16
      %v2831 = vrot.slane %v2829, 5
      %v2832 = vor.u32 %v2828, %v2831
      %v2833 = vsel %vm1447, %v2823, %v2832
      %v2835 = vshrl.u32 %v1980, 16
      %v2837 = vrot.slane %v2835, 4
      %v2838 = vshll.u32 %v1980, 16
      %v2840 = vrot.slane %v2838, 5
      %v2841 = vor.u32 %v2837, %v2840
      %v2842 = vsel %vm1447, %v2832, %v2841
      %v2844 = vsel %vm2112, %v2707, 0
      %v2847 = vsel %vm2112, %v2716, 0
      %v2850 = vsel %vm2112, %v2725, 0
      %v2853 = vsel %vm2112, %v2734, 0
      %v2856 = vsel %vm2112, %v2743, 0
      %v2859 = vsel %vm2112, %v2752, 0
      %v2862 = vsel %vm2112, %v2761, 0
      %v2865 = vsel %vm2112, %v2770, 0
      %v2868 = vsel %vm2112, %v2779, 0
      %v2871 = vsel %vm2112, %v2788, 0
      %v2874 = vsel %vm2112, %v2797, 0
      %v2877 = vsel %vm2112, %v2806, 0
      %v2880 = vsel %vm2112, %v2815, 0
      %v2883 = vsel %vm2112, %v2824, 0
      %v2886 = vsel %vm2112, %v2833, 0
      %v2889 = vsel %vm2112, %v2842, 0
      %v2892 = vsel %vm2161, %v2690, 0
      %2894 = vmatprep.subr.bf16.mxu0 0
      %2895 = vmatpush1.bf16.msra.mxu0 %v2892
      %2896 = vmatprep.subr.bf16.mxu0 0
      %2897 = vmatpush1.bf16.msra.mxu0 0
      %2898 = vmatprep.subr.bf16.mxu0 0
      %2899 = vmatpush1.bf16.msra.mxu0 0
      %2900 = vmatprep.subr.bf16.mxu0 0
      %2901 = vmatpush1.bf16.msra.mxu0 0
      %2902 = vmatprep.subr.bf16.mxu0 0
      %2903 = vmatpush1.bf16.msra.mxu0 0
      %2904 = vmatprep.subr.bf16.mxu0 0
      %2905 = vmatpush1.bf16.msra.mxu0 0
      %2906 = vmatprep.subr.bf16.mxu0 0
      %2907 = vmatpush1.bf16.msra.mxu0 0
      %2908 = vmatprep.subr.bf16.mxu0 0
      %2909 = vmatpush1.bf16.msra.mxu0 0
      %2910 = vmatprep.subr.bf16.mxu0 0
      %2911 = vmatpush1.bf16.msra.mxu0 0
      %2912 = vmatprep.subr.bf16.mxu0 0
      %2913 = vmatpush1.bf16.msra.mxu0 0
      %2914 = vmatprep.subr.bf16.mxu0 0
      %2915 = vmatpush1.bf16.msra.mxu0 0
      %2916 = vmatprep.subr.bf16.mxu0 0
      %2917 = vmatpush1.bf16.msra.mxu0 0
      %2918 = vmatprep.subr.bf16.mxu0 0
      %2919 = vmatpush1.bf16.msra.mxu0 0
      %2920 = vmatprep.subr.bf16.mxu0 0
      %2921 = vmatpush1.bf16.msra.mxu0 0
      %2922 = vmatprep.subr.bf16.mxu0 0
      %2923 = vmatpush1.bf16.msra.mxu0 0
      %2924 = vmatprep.subr.bf16.mxu0 0
      %2925 = vmatpush1.bf16.msra.mxu0 0
      %2926 = vmatprep.mubr.bf16.mxu0 0
      %2927 = vmatmul.mubr.bf16.gmra.mrb[0].mxu0 %v2844
      %v2928 = vpop.f32.mrb[0].mxu0
      %v2929 = vadd.f32 0.0, %v2928
      %v2930 = vpop.f32.mrb[0].mxu0
      %v2931 = vpop.f32.mrb[0].mxu0
      %v2932 = vadd.f32 0.0, %v2931
      %v2933 = vpop.f32.mrb[0].mxu0
      %2934 = vmatprep.mubr.bf16.mxu0 0
      %2935 = vmatmul.mubr.bf16.gmra.mrb[0].mxu0 %v2847
      %v2936 = vpop.f32.mrb[0].mxu0
      %v2937 = vadd.f32 0.0, %v2936
      %v2938 = vpop.f32.mrb[0].mxu0
      %v2939 = vpop.f32.mrb[0].mxu0
      %v2940 = vadd.f32 0.0, %v2939
      %v2941 = vpop.f32.mrb[0].mxu0
      %2942 = vmatprep.mubr.bf16.mxu0 0
      %2943 = vmatmul.mubr.bf16.gmra.mrb[0].mxu0 %v2850
      %v2944 = vpop.f32.mrb[0].mxu0
      %v2945 = vadd.f32 0.0, %v2944
      %v2946 = vpop.f32.mrb[0].mxu0
      %v2947 = vpop.f32.mrb[0].mxu0
      %v2948 = vadd.f32 0.0, %v2947
      %v2949 = vpop.f32.mrb[0].mxu0
      %2950 = vmatprep.mubr.bf16.mxu0 0
      %2951 = vmatmul.mubr.bf16.gmra.mrb[0].mxu0 %v2853
      %v2952 = vpop.f32.mrb[0].mxu0
      %v2953 = vadd.f32 0.0, %v2952
      %v2954 = vpop.f32.mrb[0].mxu0
      %v2955 = vpop.f32.mrb[0].mxu0
      %v2956 = vadd.f32 0.0, %v2955
      %v2957 = vpop.f32.mrb[0].mxu0
      %2958 = vmatprep.mubr.bf16.mxu0 0
      %2959 = vmatmul.mubr.bf16.gmra.mrb[0].mxu0 %v2856
      %v2960 = vpop.f32.mrb[0].mxu0
      %v2961 = vadd.f32 0.0, %v2960
      %v2962 = vpop.f32.mrb[0].mxu0
      %v2963 = vpop.f32.mrb[0].mxu0
      %v2964 = vadd.f32 0.0, %v2963
      %v2965 = vpop.f32.mrb[0].mxu0
      %2966 = vmatprep.mubr.bf16.mxu0 0
      %2967 = vmatmul.mubr.bf16.gmra.mrb[0].mxu0 %v2859
      %v2968 = vpop.f32.mrb[0].mxu0
      %v2969 = vadd.f32 0.0, %v2968
      %v2970 = vpop.f32.mrb[0].mxu0
      %v2971 = vpop.f32.mrb[0].mxu0
      %v2972 = vadd.f32 0.0, %v2971
      %v2973 = vpop.f32.mrb[0].mxu0
      %2974 = vmatprep.mubr.bf16.mxu0 0
      %2975 = vmatmul.mubr.bf16.gmra.mrb[0].mxu0 %v2862
      %v2976 = vpop.f32.mrb[0].mxu0
      %v2977 = vadd.f32 0.0, %v2976
      %v2978 = vpop.f32.mrb[0].mxu0
      %v2979 = vpop.f32.mrb[0].mxu0
      %v2980 = vadd.f32 0.0, %v2979
      %v2981 = vpop.f32.mrb[0].mxu0
      %2982 = vmatprep.mubr.bf16.mxu0 0
      %2983 = vmatmul.mubr.bf16.gmra.mrb[0].mxu0 %v2865
      %v2984 = vpop.f32.mrb[0].mxu0
      %v2985 = vadd.f32 0.0, %v2984
      %v2986 = vpop.f32.mrb[0].mxu0
      %v2987 = vpop.f32.mrb[0].mxu0
      %v2988 = vadd.f32 0.0, %v2987
      %v2989 = vpop.f32.mrb[0].mxu0
      %2990 = vmatprep.mubr.bf16.mxu0 0
      %2991 = vmatmul.mubr.bf16.gmra.mrb[0].mxu0 %v2868
      %v2992 = vpop.f32.mrb[0].mxu0
      %v2993 = vadd.f32 0.0, %v2992
      %v2994 = vpop.f32.mrb[0].mxu0
      %v2995 = vpop.f32.mrb[0].mxu0
      %v2996 = vadd.f32 0.0, %v2995
      %v2997 = vpop.f32.mrb[0].mxu0
      %2998 = vmatprep.mubr.bf16.mxu0 0
      %2999 = vmatmul.mubr.bf16.gmra.mrb[0].mxu0 %v2871
      %v3000 = vpop.f32.mrb[0].mxu0
      %v3001 = vadd.f32 0.0, %v3000
      %v3002 = vpop.f32.mrb[0].mxu0
      %v3003 = vpop.f32.mrb[0].mxu0
      %v3004 = vadd.f32 0.0, %v3003
      %v3005 = vpop.f32.mrb[0].mxu0
      %3006 = vmatprep.mubr.bf16.mxu0 0
      %3007 = vmatmul.mubr.bf16.gmra.mrb[0].mxu0 %v2874
      %v3008 = vpop.f32.mrb[0].mxu0
      %v3009 = vadd.f32 0.0, %v3008
      %v3010 = vpop.f32.mrb[0].mxu0
      %v3011 = vpop.f32.mrb[0].mxu0
      %v3012 = vadd.f32 0.0, %v3011
      %v3013 = vpop.f32.mrb[0].mxu0
      %3014 = vmatprep.mubr.bf16.mxu0 0
      %3015 = vmatmul.mubr.bf16.gmra.mrb[0].mxu0 %v2877
      %v3016 = vpop.f32.mrb[0].mxu0
      %v3017 = vadd.f32 0.0, %v3016
      %v3018 = vpop.f32.mrb[0].mxu0
      %v3019 = vpop.f32.mrb[0].mxu0
      %v3020 = vadd.f32 0.0, %v3019
      %v3021 = vpop.f32.mrb[0].mxu0
      %3022 = vmatprep.mubr.bf16.mxu0 0
      %3023 = vmatmul.mubr.bf16.gmra.mrb[0].mxu0 %v2880
      %v3024 = vpop.f32.mrb[0].mxu0
      %v3025 = vadd.f32 0.0, %v3024
      %v3026 = vpop.f32.mrb[0].mxu0
      %v3027 = vpop.f32.mrb[0].mxu0
      %v3028 = vadd.f32 0.0, %v3027
      %v3029 = vpop.f32.mrb[0].mxu0
      %3030 = vmatprep.mubr.bf16.mxu0 0
      %3031 = vmatmul.mubr.bf16.gmra.mrb[0].mxu0 %v2883
      %v3032 = vpop.f32.mrb[0].mxu0
      %v3033 = vadd.f32 0.0, %v3032
      %v3034 = vpop.f32.mrb[0].mxu0
      %v3035 = vpop.f32.mrb[0].mxu0
      %v3036 = vadd.f32 0.0, %v3035
      %v3037 = vpop.f32.mrb[0].mxu0
      %3038 = vmatprep.mubr.bf16.mxu0 0
      %3039 = vmatmul.mubr.bf16.gmra.mrb[0].mxu0 %v2886
      %v3040 = vpop.f32.mrb[0].mxu0
      %v3041 = vadd.f32 0.0, %v3040
      %v3042 = vpop.f32.mrb[0].mxu0
      %v3043 = vpop.f32.mrb[0].mxu0
      %v3044 = vadd.f32 0.0, %v3043
      %v3045 = vpop.f32.mrb[0].mxu0
      %3046 = vmatprep.mubr.bf16.mxu0 0
      %3047 = vmatmul.mubr.bf16.gmra.mrb[0].mxu0 %v2889
      %v3048 = vpop.f32.mrb[0].mxu0
      %v3049 = vadd.f32 0.0, %v3048
      %v3050 = vpop.f32.mrb[0].mxu0
      %v3051 = vpop.f32.mrb[0].mxu0
      %v3052 = vadd.f32 0.0, %v3051
      %v3053 = vpop.f32.mrb[0].mxu0
      %3054 = vdwg.mxu0
      %v3055 = vadd.f32 %v2564, %v2929
      %v3056 = vadd.f32 %v2567, %v2932
      %v3057 = vadd.f32 %v2572, %v2937
      %v3058 = vadd.f32 %v2575, %v2940
      %v3059 = vadd.f32 %v2580, %v2945
      %v3060 = vadd.f32 %v2583, %v2948
      %v3061 = vadd.f32 %v2588, %v2953
      %v3062 = vadd.f32 %v2591, %v2956
      %v3063 = vadd.f32 %v2596, %v2961
      %v3064 = vadd.f32 %v2599, %v2964
      %v3065 = vadd.f32 %v2604, %v2969
      %v3066 = vadd.f32 %v2607, %v2972
      %v3067 = vadd.f32 %v2612, %v2977
      %v3068 = vadd.f32 %v2615, %v2980
      %v3069 = vadd.f32 %v2620, %v2985
      %v3070 = vadd.f32 %v2623, %v2988
      %v3071 = vadd.f32 %v2628, %v2993
      %v3072 = vadd.f32 %v2631, %v2996
      %v3073 = vadd.f32 %v2636, %v3001
      %v3074 = vadd.f32 %v2639, %v3004
      %v3075 = vadd.f32 %v2644, %v3009
      %v3076 = vadd.f32 %v2647, %v3012
      %v3077 = vadd.f32 %v2652, %v3017
      %v3078 = vadd.f32 %v2655, %v3020
      %v3079 = vadd.f32 %v2660, %v3025
      %v3080 = vadd.f32 %v2663, %v3028
      %v3081 = vadd.f32 %v2668, %v3033
      %v3082 = vadd.f32 %v2671, %v3036
      %v3083 = vadd.f32 %v2676, %v3041
      %v3084 = vadd.f32 %v2679, %v3044
      %v3085 = vadd.f32 %v2684, %v3049
      %v3086 = vadd.f32 %v2687, %v3052
      %v3087 = vld [vmem:[%s362 + $0xc] sm:$0xf]
      %v3089 = vshrl.u32 %v1984, 16
      %v3091 = vrot.slane %v3089, 3
      %v3092 = vshll.u32 %v1984, 16
      %v3094 = vrot.slane %v3092, 4
      %v3095 = vor.u32 %v3091, %v3094
      %v3097 = vshrl.u32 %v1985, 16
      %v3099 = vrot.slane %v3097, 3
      %v3100 = vshll.u32 %v1985, 16
      %v3102 = vrot.slane %v3100, 4
      %v3103 = vor.u32 %v3099, %v3102
      %v3104 = vsel %vm1803, %v3095, %v3103
      %v3106 = vshrl.u32 %v1986, 16
      %v3108 = vrot.slane %v3106, 3
      %v3109 = vshll.u32 %v1986, 16
      %v3111 = vrot.slane %v3109, 4
      %v3112 = vor.u32 %v3108, %v3111
      %v3113 = vsel %vm1803, %v3103, %v3112
      %v3115 = vshrl.u32 %v1987, 16
      %v3117 = vrot.slane %v3115, 3
      %v3118 = vshll.u32 %v1987, 16
      %v3120 = vrot.slane %v3118, 4
      %v3121 = vor.u32 %v3117, %v3120
      %v3122 = vsel %vm1803, %v3112, %v3121
      %v3124 = vshrl.u32 %v1988, 16
      %v3126 = vrot.slane %v3124, 3
      %v3127 = vshll.u32 %v1988, 16
      %v3129 = vrot.slane %v3127, 4
      %v3130 = vor.u32 %v3126, %v3129
      %v3131 = vsel %vm1803, %v3121, %v3130
      %v3133 = vshrl.u32 %v1989, 16
      %v3135 = vrot.slane %v3133, 3
      %v3136 = vshll.u32 %v1989, 16
      %v3138 = vrot.slane %v3136, 4
      %v3139 = vor.u32 %v3135, %v3138
      %v3140 = vsel %vm1803, %v3130, %v3139
      %v3142 = vshrl.u32 %v1990, 16
      %v3144 = vrot.slane %v3142, 3
      %v3145 = vshll.u32 %v1990, 16
      %v3147 = vrot.slane %v3145, 4
      %v3148 = vor.u32 %v3144, %v3147
      %v3149 = vsel %vm1803, %v3139, %v3148
      %v3151 = vshrl.u32 %v1991, 16
      %v3153 = vrot.slane %v3151, 3
      %v3154 = vshll.u32 %v1991, 16
      %v3156 = vrot.slane %v3154, 4
      %v3157 = vor.u32 %v3153, %v3156
      %v3158 = vsel %vm1803, %v3148, %v3157
      %v3160 = vshrl.u32 %v1992, 16
      %v3162 = vrot.slane %v3160, 3
      %v3163 = vshll.u32 %v1992, 16
      %v3165 = vrot.slane %v3163, 4
      %v3166 = vor.u32 %v3162, %v3165
      %v3167 = vsel %vm1803, %v3157, %v3166
      %v3169 = vshrl.u32 %v1993, 16
      %v3171 = vrot.slane %v3169, 3
      %v3172 = vshll.u32 %v1993, 16
      %v3174 = vrot.slane %v3172, 4
      %v3175 = vor.u32 %v3171, %v3174
      %v3176 = vsel %vm1803, %v3166, %v3175
      %v3178 = vshrl.u32 %v1994, 16
      %v3180 = vrot.slane %v3178, 3
      %v3181 = vshll.u32 %v1994, 16
      %v3183 = vrot.slane %v3181, 4
      %v3184 = vor.u32 %v3180, %v3183
      %v3185 = vsel %vm1803, %v3175, %v3184
      %v3187 = vshrl.u32 %v1995, 16
      %v3189 = vrot.slane %v3187, 3
      %v3190 = vshll.u32 %v1995, 16
      %v3192 = vrot.slane %v3190, 4
      %v3193 = vor.u32 %v3189, %v3192
      %v3194 = vsel %vm1803, %v3184, %v3193
      %v3196 = vshrl.u32 %v1996, 16
      %v3198 = vrot.slane %v3196, 3
      %v3199 = vshll.u32 %v1996, 16
      %v3201 = vrot.slane %v3199, 4
      %v3202 = vor.u32 %v3198, %v3201
      %v3203 = vsel %vm1803, %v3193, %v3202
      %v3205 = vshrl.u32 %v1997, 16
      %v3207 = vrot.slane %v3205, 3
      %v3208 = vshll.u32 %v1997, 16
      %v3210 = vrot.slane %v3208, 4
      %v3211 = vor.u32 %v3207, %v3210
      %v3212 = vsel %vm1803, %v3202, %v3211
      %v3214 = vshrl.u32 %v1998, 16
      %v3216 = vrot.slane %v3214, 3
      %v3217 = vshll.u32 %v1998, 16
      %v3219 = vrot.slane %v3217, 4
      %v3220 = vor.u32 %v3216, %v3219
      %v3221 = vsel %vm1803, %v3211, %v3220
      %v3223 = vshrl.u32 %v1999, 16
      %v3225 = vrot.slane %v3223, 3
      %v3226 = vshll.u32 %v1999, 16
      %v3228 = vrot.slane %v3226, 4
      %v3229 = vor.u32 %v3225, %v3228
      %v3230 = vsel %vm1803, %v3220, %v3229
      %v3232 = vshrl.u32 %v2000, 16
      %v3234 = vrot.slane %v3232, 3
      %v3235 = vshll.u32 %v2000, 16
      %v3237 = vrot.slane %v3235, 4
      %v3238 = vor.u32 %v3234, %v3237
      %v3239 = vsel %vm1803, %v3229, %v3238
      %v3241 = vsel %vm2112, %v3104, 0
      %v3244 = vsel %vm2112, %v3113, 0
      %v3247 = vsel %vm2112, %v3122, 0
      %v3250 = vsel %vm2112, %v3131, 0
      %v3253 = vsel %vm2112, %v3140, 0
      %v3256 = vsel %vm2112, %v3149, 0
      %v3259 = vsel %vm2112, %v3158, 0
      %v3262 = vsel %vm2112, %v3167, 0
      %v3265 = vsel %vm2112, %v3176, 0
      %v3268 = vsel %vm2112, %v3185, 0
      %v3271 = vsel %vm2112, %v3194, 0
      %v3274 = vsel %vm2112, %v3203, 0
      %v3277 = vsel %vm2112, %v3212, 0
      %v3280 = vsel %vm2112, %v3221, 0
      %v3283 = vsel %vm2112, %v3230, 0
      %v3286 = vsel %vm2112, %v3239, 0
      %v3289 = vsel %vm2161, %v3087, 0
      %3291 = vmatprep.subr.bf16.mxu0 0
      %3292 = vmatpush1.bf16.msra.mxu0 %v3289
      %3293 = vmatprep.subr.bf16.mxu0 0
      %3294 = vmatpush1.bf16.msra.mxu0 0
      %3295 = vmatprep.subr.bf16.mxu0 0
      %3296 = vmatpush1.bf16.msra.mxu0 0
      %3297 = vmatprep.subr.bf16.mxu0 0
      %3298 = vmatpush1.bf16.msra.mxu0 0
      %3299 = vmatprep.subr.bf16.mxu0 0
      %3300 = vmatpush1.bf16.msra.mxu0 0
      %3301 = vmatprep.subr.bf16.mxu0 0
      %3302 = vmatpush1.bf16.msra.mxu0 0
      %3303 = vmatprep.subr.bf16.mxu0 0
      %3304 = vmatpush1.bf16.msra.mxu0 0
      %3305 = vmatprep.subr.bf16.mxu0 0
      %3306 = vmatpush1.bf16.msra.mxu0 0
      %3307 = vmatprep.subr.bf16.mxu0 0
      %3308 = vmatpush1.bf16.msra.mxu0 0
      %3309 = vmatprep.subr.bf16.mxu0 0
      %3310 = vmatpush1.bf16.msra.mxu0 0
      %3311 = vmatprep.subr.bf16.mxu0 0
      %3312 = vmatpush1.bf16.msra.mxu0 0
      %3313 = vmatprep.subr.bf16.mxu0 0
      %3314 = vmatpush1.bf16.msra.mxu0 0
      %3315 = vmatprep.subr.bf16.mxu0 0
      %3316 = vmatpush1.bf16.msra.mxu0 0
      %3317 = vmatprep.subr.bf16.mxu0 0
      %3318 = vmatpush1.bf16.msra.mxu0 0
      %3319 = vmatprep.subr.bf16.mxu0 0
      %3320 = vmatpush1.bf16.msra.mxu0 0
      %3321 = vmatprep.subr.bf16.mxu0 0
      %3322 = vmatpush1.bf16.msra.mxu0 0
      %3323 = vmatprep.mubr.bf16.mxu0 0
      %3324 = vmatmul.mubr.bf16.gmra.mrb[0].mxu0 %v3241
      %v3325 = vpop.f32.mrb[0].mxu0
      %v3326 = vadd.f32 0.0, %v3325
      %v3327 = vpop.f32.mrb[0].mxu0
      %v3328 = vpop.f32.mrb[0].mxu0
      %v3329 = vadd.f32 0.0, %v3328
      %v3330 = vpop.f32.mrb[0].mxu0
      %3331 = vmatprep.mubr.bf16.mxu0 0
      %3332 = vmatmul.mubr.bf16.gmra.mrb[0].mxu0 %v3244
      %v3333 = vpop.f32.mrb[0].mxu0
      %v3334 = vadd.f32 0.0, %v3333
      %v3335 = vpop.f32.mrb[0].mxu0
      %v3336 = vpop.f32.mrb[0].mxu0
      %v3337 = vadd.f32 0.0, %v3336
      %v3338 = vpop.f32.mrb[0].mxu0
      %3339 = vmatprep.mubr.bf16.mxu0 0
      %3340 = vmatmul.mubr.bf16.gmra.mrb[0].mxu0 %v3247
      %v3341 = vpop.f32.mrb[0].mxu0
      %v3342 = vadd.f32 0.0, %v3341
      %v3343 = vpop.f32.mrb[0].mxu0
      %v3344 = vpop.f32.mrb[0].mxu0
      %v3345 = vadd.f32 0.0, %v3344
      %v3346 = vpop.f32.mrb[0].mxu0
      %3347 = vmatprep.mubr.bf16.mxu0 0
      %3348 = vmatmul.mubr.bf16.gmra.mrb[0].mxu0 %v3250
      %v3349 = vpop.f32.mrb[0].mxu0
      %v3350 = vadd.f32 0.0, %v3349
      %v3351 = vpop.f32.mrb[0].mxu0
      %v3352 = vpop.f32.mrb[0].mxu0
      %v3353 = vadd.f32 0.0, %v3352
      %v3354 = vpop.f32.mrb[0].mxu0
      %3355 = vmatprep.mubr.bf16.mxu0 0
      %3356 = vmatmul.mubr.bf16.gmra.mrb[0].mxu0 %v3253
      %v3357 = vpop.f32.mrb[0].mxu0
      %v3358 = vadd.f32 0.0, %v3357
      %v3359 = vpop.f32.mrb[0].mxu0
      %v3360 = vpop.f32.mrb[0].mxu0
      %v3361 = vadd.f32 0.0, %v3360
      %v3362 = vpop.f32.mrb[0].mxu0
      %3363 = vmatprep.mubr.bf16.mxu0 0
      %3364 = vmatmul.mubr.bf16.gmra.mrb[0].mxu0 %v3256
      %v3365 = vpop.f32.mrb[0].mxu0
      %v3366 = vadd.f32 0.0, %v3365
      %v3367 = vpop.f32.mrb[0].mxu0
      %v3368 = vpop.f32.mrb[0].mxu0
      %v3369 = vadd.f32 0.0, %v3368
      %v3370 = vpop.f32.mrb[0].mxu0
      %3371 = vmatprep.mubr.bf16.mxu0 0
      %3372 = vmatmul.mubr.bf16.gmra.mrb[0].mxu0 %v3259
      %v3373 = vpop.f32.mrb[0].mxu0
      %v3374 = vadd.f32 0.0, %v3373
      %v3375 = vpop.f32.mrb[0].mxu0
      %v3376 = vpop.f32.mrb[0].mxu0
      %v3377 = vadd.f32 0.0, %v3376
      %v3378 = vpop.f32.mrb[0].mxu0
      %3379 = vmatprep.mubr.bf16.mxu0 0
      %3380 = vmatmul.mubr.bf16.gmra.mrb[0].mxu0 %v3262
      %v3381 = vpop.f32.mrb[0].mxu0
      %v3382 = vadd.f32 0.0, %v3381
      %v3383 = vpop.f32.mrb[0].mxu0
      %v3384 = vpop.f32.mrb[0].mxu0
      %v3385 = vadd.f32 0.0, %v3384
      %v3386 = vpop.f32.mrb[0].mxu0
      %3387 = vmatprep.mubr.bf16.mxu0 0
      %3388 = vmatmul.mubr.bf16.gmra.mrb[0].mxu0 %v3265
      %v3389 = vpop.f32.mrb[0].mxu0
      %v3390 = vadd.f32 0.0, %v3389
      %v3391 = vpop.f32.mrb[0].mxu0
      %v3392 = vpop.f32.mrb[0].mxu0
      %v3393 = vadd.f32 0.0, %v3392
      %v3394 = vpop.f32.mrb[0].mxu0
      %3395 = vmatprep.mubr.bf16.mxu0 0
      %3396 = vmatmul.mubr.bf16.gmra.mrb[0].mxu0 %v3268
      %v3397 = vpop.f32.mrb[0].mxu0
      %v3398 = vadd.f32 0.0, %v3397
      %v3399 = vpop.f32.mrb[0].mxu0
      %v3400 = vpop.f32.mrb[0].mxu0
      %v3401 = vadd.f32 0.0, %v3400
      %v3402 = vpop.f32.mrb[0].mxu0
      %3403 = vmatprep.mubr.bf16.mxu0 0
      %3404 = vmatmul.mubr.bf16.gmra.mrb[0].mxu0 %v3271
      %v3405 = vpop.f32.mrb[0].mxu0
      %v3406 = vadd.f32 0.0, %v3405
      %v3407 = vpop.f32.mrb[0].mxu0
      %v3408 = vpop.f32.mrb[0].mxu0
      %v3409 = vadd.f32 0.0, %v3408
      %v3410 = vpop.f32.mrb[0].mxu0
      %3411 = vmatprep.mubr.bf16.mxu0 0
      %3412 = vmatmul.mubr.bf16.gmra.mrb[0].mxu0 %v3274
      %v3413 = vpop.f32.mrb[0].mxu0
      %v3414 = vadd.f32 0.0, %v3413
      %v3415 = vpop.f32.mrb[0].mxu0
      %v3416 = vpop.f32.mrb[0].mxu0
      %v3417 = vadd.f32 0.0, %v3416
      %v3418 = vpop.f32.mrb[0].mxu0
      %3419 = vmatprep.mubr.bf16.mxu0 0
      %3420 = vmatmul.mubr.bf16.gmra.mrb[0].mxu0 %v3277
      %v3421 = vpop.f32.mrb[0].mxu0
      %v3422 = vadd.f32 0.0, %v3421
      %v3423 = vpop.f32.mrb[0].mxu0
      %v3424 = vpop.f32.mrb[0].mxu0
      %v3425 = vadd.f32 0.0, %v3424
      %v3426 = vpop.f32.mrb[0].mxu0
      %3427 = vmatprep.mubr.bf16.mxu0 0
      %3428 = vmatmul.mubr.bf16.gmra.mrb[0].mxu0 %v3280
      %v3429 = vpop.f32.mrb[0].mxu0
      %v3430 = vadd.f32 0.0, %v3429
      %v3431 = vpop.f32.mrb[0].mxu0
      %v3432 = vpop.f32.mrb[0].mxu0
      %v3433 = vadd.f32 0.0, %v3432
      %v3434 = vpop.f32.mrb[0].mxu0
      %3435 = vmatprep.mubr.bf16.mxu0 0
      %3436 = vmatmul.mubr.bf16.gmra.mrb[0].mxu0 %v3283
      %v3437 = vpop.f32.mrb[0].mxu0
      %v3438 = vadd.f32 0.0, %v3437
      %v3439 = vpop.f32.mrb[0].mxu0
      %v3440 = vpop.f32.mrb[0].mxu0
      %v3441 = vadd.f32 0.0, %v3440
      %v3442 = vpop.f32.mrb[0].mxu0
      %3443 = vmatprep.mubr.bf16.mxu0 0
      %3444 = vmatmul.mubr.bf16.gmra.mrb[0].mxu0 %v3286
      %v3445 = vpop.f32.mrb[0].mxu0
      %v3446 = vadd.f32 0.0, %v3445
      %v3447 = vpop.f32.mrb[0].mxu0
      %v3448 = vpop.f32.mrb[0].mxu0
      %v3449 = vadd.f32 0.0, %v3448
      %v3450 = vpop.f32.mrb[0].mxu0
      %3451 = vdwg.mxu0
      %v3452 = vadd.f32 %v3055, %v3326
      %v3453 = vadd.f32 %v3056, %v3329
      %v3454 = vadd.f32 %v3057, %v3334
      %v3455 = vadd.f32 %v3058, %v3337
      %v3456 = vadd.f32 %v3059, %v3342
      %v3457 = vadd.f32 %v3060, %v3345
      %v3458 = vadd.f32 %v3061, %v3350
      %v3459 = vadd.f32 %v3062, %v3353
      %v3460 = vadd.f32 %v3063, %v3358
      %v3461 = vadd.f32 %v3064, %v3361
      %v3462 = vadd.f32 %v3065, %v3366
      %v3463 = vadd.f32 %v3066, %v3369
      %v3464 = vadd.f32 %v3067, %v3374
      %v3465 = vadd.f32 %v3068, %v3377
      %v3466 = vadd.f32 %v3069, %v3382
      %v3467 = vadd.f32 %v3070, %v3385
      %v3468 = vadd.f32 %v3071, %v3390
      %v3469 = vadd.f32 %v3072, %v3393
      %v3470 = vadd.f32 %v3073, %v3398
      %v3471 = vadd.f32 %v3074, %v3401
      %v3472 = vadd.f32 %v3075, %v3406
      %v3473 = vadd.f32 %v3076, %v3409
      %v3474 = vadd.f32 %v3077, %v3414
      %v3475 = vadd.f32 %v3078, %v3417
      %v3476 = vadd.f32 %v3079, %v3422
      %v3477 = vadd.f32 %v3080, %v3425
      %v3478 = vadd.f32 %v3081, %v3430
      %v3479 = vadd.f32 %v3082, %v3433
      %v3480 = vadd.f32 %v3083, %v3438
      %v3481 = vadd.f32 %v3084, %v3441
      %v3482 = vadd.f32 %v3085, %v3446
      %v3483 = vadd.f32 %v3086, %v3449
      %v3484 = vld [vmem:[%s362 + $0x10] sm:$0xf]
      %v3488 = vrot.slane %v2001, 4
      %v3489 = vsel %vm2078, %v3488, %v2082
      %v3490 = vrot.slane %v1982, 4
      %v3491 = vsel %vm2078, %v2108, %v3490
      %v3492 = vrot.slane %v1983, 4
      %v3493 = vsel %vm2078, %v3490, %v3492
      %v3495 = vsel %vm2112, %v3489, 0
      %v3498 = vsel %vm2112, %v3491, 0
      %v3501 = vsel %vm2112, %v3493, 0
      %v3504 = vsel %vm2161, %v3484, 0
      %3506 = vmatprep.subr.bf16.mxu0 0
      %3507 = vmatpush1.bf16.msra.mxu0 %v3504
      %3508 = vmatprep.subr.bf16.mxu0 0
      %3509 = vmatpush1.bf16.msra.mxu0 0
      %3510 = vmatprep.subr.bf16.mxu0 0
      %3511 = vmatpush1.bf16.msra.mxu0 0
      %3512 = vmatprep.subr.bf16.mxu0 0
      %3513 = vmatpush1.bf16.msra.mxu0 0
      %3514 = vmatprep.subr.bf16.mxu0 0
      %3515 = vmatpush1.bf16.msra.mxu0 0
      %3516 = vmatprep.subr.bf16.mxu0 0
      %3517 = vmatpush1.bf16.msra.mxu0 0
      %3518 = vmatprep.subr.bf16.mxu0 0
      %3519 = vmatpush1.bf16.msra.mxu0 0
      %3520 = vmatprep.subr.bf16.mxu0 0
      %3521 = vmatpush1.bf16.msra.mxu0 0
      %3522 = vmatprep.subr.bf16.mxu0 0
      %3523 = vmatpush1.bf16.msra.mxu0 0
      %3524 = vmatprep.subr.bf16.mxu0 0
      %3525 = vmatpush1.bf16.msra.mxu0 0
      %3526 = vmatprep.subr.bf16.mxu0 0
      %3527 = vmatpush1.bf16.msra.mxu0 0
      %3528 = vmatprep.subr.bf16.mxu0 0
      %3529 = vmatpush1.bf16.msra.mxu0 0
      %3530 = vmatprep.subr.bf16.mxu0 0
      %3531 = vmatpush1.bf16.msra.mxu0 0
      %3532 = vmatprep.subr.bf16.mxu0 0
      %3533 = vmatpush1.bf16.msra.mxu0 0
      %3534 = vmatprep.subr.bf16.mxu0 0
      %3535 = vmatpush1.bf16.msra.mxu0 0
      %3536 = vmatprep.subr.bf16.mxu0 0
      %3537 = vmatpush1.bf16.msra.mxu0 0
      %3538 = vmatprep.mubr.bf16.mxu0 0
      %3539 = vmatmul.mubr.bf16.gmra.mrb[0].mxu0 %v3495
      %v3540 = vpop.f32.mrb[0].mxu0
      %v3541 = vadd.f32 0.0, %v3540
      %v3542 = vpop.f32.mrb[0].mxu0
      %v3543 = vpop.f32.mrb[0].mxu0
      %v3544 = vadd.f32 0.0, %v3543
      %v3545 = vpop.f32.mrb[0].mxu0
      %3546 = vmatprep.mubr.bf16.mxu0 0
      %3547 = vmatmul.mubr.bf16.gmra.mrb[0].mxu0 %v2120
      %v3548 = vpop.f32.mrb[0].mxu0
      %v3549 = vadd.f32 0.0, %v3548
      %v3550 = vpop.f32.mrb[0].mxu0
      %v3551 = vpop.f32.mrb[0].mxu0
      %v3552 = vadd.f32 0.0, %v3551
      %v3553 = vpop.f32.mrb[0].mxu0
      %3554 = vmatprep.mubr.bf16.mxu0 0
      %3555 = vmatmul.mubr.bf16.gmra.mrb[0].mxu0 %v2123
      %v3556 = vpop.f32.mrb[0].mxu0
      %v3557 = vadd.f32 0.0, %v3556
      %v3558 = vpop.f32.mrb[0].mxu0
      %v3559 = vpop.f32.mrb[0].mxu0
      %v3560 = vadd.f32 0.0, %v3559
      %v3561 = vpop.f32.mrb[0].mxu0
      %3562 = vmatprep.mubr.bf16.mxu0 0
      %3563 = vmatmul.mubr.bf16.gmra.mrb[0].mxu0 %v2126
      %v3564 = vpop.f32.mrb[0].mxu0
      %v3565 = vadd.f32 0.0, %v3564
      %v3566 = vpop.f32.mrb[0].mxu0
      %v3567 = vpop.f32.mrb[0].mxu0
      %v3568 = vadd.f32 0.0, %v3567
      %v3569 = vpop.f32.mrb[0].mxu0
      %3570 = vmatprep.mubr.bf16.mxu0 0
      %3571 = vmatmul.mubr.bf16.gmra.mrb[0].mxu0 %v2129
      %v3572 = vpop.f32.mrb[0].mxu0
      %v3573 = vadd.f32 0.0, %v3572
      %v3574 = vpop.f32.mrb[0].mxu0
      %v3575 = vpop.f32.mrb[0].mxu0
      %v3576 = vadd.f32 0.0, %v3575
      %v3577 = vpop.f32.mrb[0].mxu0
      %3578 = vmatprep.mubr.bf16.mxu0 0
      %3579 = vmatmul.mubr.bf16.gmra.mrb[0].mxu0 %v2132
      %v3580 = vpop.f32.mrb[0].mxu0
      %v3581 = vadd.f32 0.0, %v3580
      %v3582 = vpop.f32.mrb[0].mxu0
      %v3583 = vpop.f32.mrb[0].mxu0
      %v3584 = vadd.f32 0.0, %v3583
      %v3585 = vpop.f32.mrb[0].mxu0
      %3586 = vmatprep.mubr.bf16.mxu0 0
      %3587 = vmatmul.mubr.bf16.gmra.mrb[0].mxu0 %v2135
      %v3588 = vpop.f32.mrb[0].mxu0
      %v3589 = vadd.f32 0.0, %v3588
      %v3590 = vpop.f32.mrb[0].mxu0
      %v3591 = vpop.f32.mrb[0].mxu0
      %v3592 = vadd.f32 0.0, %v3591
      %v3593 = vpop.f32.mrb[0].mxu0
      %3594 = vmatprep.mubr.bf16.mxu0 0
      %3595 = vmatmul.mubr.bf16.gmra.mrb[0].mxu0 %v2138
      %v3596 = vpop.f32.mrb[0].mxu0
      %v3597 = vadd.f32 0.0, %v3596
      %v3598 = vpop.f32.mrb[0].mxu0
      %v3599 = vpop.f32.mrb[0].mxu0
      %v3600 = vadd.f32 0.0, %v3599
      %v3601 = vpop.f32.mrb[0].mxu0
      %3602 = vmatprep.mubr.bf16.mxu0 0
      %3603 = vmatmul.mubr.bf16.gmra.mrb[0].mxu0 %v2141
      %v3604 = vpop.f32.mrb[0].mxu0
      %v3605 = vadd.f32 0.0, %v3604
      %v3606 = vpop.f32.mrb[0].mxu0
      %v3607 = vpop.f32.mrb[0].mxu0
      %v3608 = vadd.f32 0.0, %v3607
      %v3609 = vpop.f32.mrb[0].mxu0
      %3610 = vmatprep.mubr.bf16.mxu0 0
      %3611 = vmatmul.mubr.bf16.gmra.mrb[0].mxu0 %v2144
      %v3612 = vpop.f32.mrb[0].mxu0
      %v3613 = vadd.f32 0.0, %v3612
      %v3614 = vpop.f32.mrb[0].mxu0
      %v3615 = vpop.f32.mrb[0].mxu0
      %v3616 = vadd.f32 0.0, %v3615
      %v3617 = vpop.f32.mrb[0].mxu0
      %3618 = vmatprep.mubr.bf16.mxu0 0
      %3619 = vmatmul.mubr.bf16.gmra.mrb[0].mxu0 %v2147
      %v3620 = vpop.f32.mrb[0].mxu0
      %v3621 = vadd.f32 0.0, %v3620
      %v3622 = vpop.f32.mrb[0].mxu0
      %v3623 = vpop.f32.mrb[0].mxu0
      %v3624 = vadd.f32 0.0, %v3623
      %v3625 = vpop.f32.mrb[0].mxu0
      %3626 = vmatprep.mubr.bf16.mxu0 0
      %3627 = vmatmul.mubr.bf16.gmra.mrb[0].mxu0 %v2150
      %v3628 = vpop.f32.mrb[0].mxu0
      %v3629 = vadd.f32 0.0, %v3628
      %v3630 = vpop.f32.mrb[0].mxu0
      %v3631 = vpop.f32.mrb[0].mxu0
      %v3632 = vadd.f32 0.0, %v3631
      %v3633 = vpop.f32.mrb[0].mxu0
      %3634 = vmatprep.mubr.bf16.mxu0 0
      %3635 = vmatmul.mubr.bf16.gmra.mrb[0].mxu0 %v2153
      %v3636 = vpop.f32.mrb[0].mxu0
      %v3637 = vadd.f32 0.0, %v3636
      %v3638 = vpop.f32.mrb[0].mxu0
      %v3639 = vpop.f32.mrb[0].mxu0
      %v3640 = vadd.f32 0.0, %v3639
      %v3641 = vpop.f32.mrb[0].mxu0
      %3642 = vmatprep.mubr.bf16.mxu0 0
      %3643 = vmatmul.mubr.bf16.gmra.mrb[0].mxu0 %v2156
      %v3644 = vpop.f32.mrb[0].mxu0
      %v3645 = vadd.f32 0.0, %v3644
      %v3646 = vpop.f32.mrb[0].mxu0
      %v3647 = vpop.f32.mrb[0].mxu0
      %v3648 = vadd.f32 0.0, %v3647
      %v3649 = vpop.f32.mrb[0].mxu0
      %3650 = vmatprep.mubr.bf16.mxu0 0
      %3651 = vmatmul.mubr.bf16.gmra.mrb[0].mxu0 %v3498
      %v3652 = vpop.f32.mrb[0].mxu0
      %v3653 = vadd.f32 0.0, %v3652
      %v3654 = vpop.f32.mrb[0].mxu0
      %v3655 = vpop.f32.mrb[0].mxu0
      %v3656 = vadd.f32 0.0, %v3655
      %v3657 = vpop.f32.mrb[0].mxu0
      %3658 = vmatprep.mubr.bf16.mxu0 0
      %3659 = vmatmul.mubr.bf16.gmra.mrb[0].mxu0 %v3501
      %v3660 = vpop.f32.mrb[0].mxu0
      %v3661 = vadd.f32 0.0, %v3660
      %v3662 = vpop.f32.mrb[0].mxu0
      %v3663 = vpop.f32.mrb[0].mxu0
      %v3664 = vadd.f32 0.0, %v3663
      %v3665 = vpop.f32.mrb[0].mxu0
      %3666 = vdwg.mxu0
      %v3667 = vadd.f32 %v3452, %v3541
      %v3668 = vadd.f32 %v3453, %v3544
      %v3669 = vadd.f32 %v3454, %v3549
      %v3670 = vadd.f32 %v3455, %v3552
      %v3671 = vadd.f32 %v3456, %v3557
      %v3672 = vadd.f32 %v3457, %v3560
      %v3673 = vadd.f32 %v3458, %v3565
      %v3674 = vadd.f32 %v3459, %v3568
      %v3675 = vadd.f32 %v3460, %v3573
      %v3676 = vadd.f32 %v3461, %v3576
      %v3677 = vadd.f32 %v3462, %v3581
      %v3678 = vadd.f32 %v3463, %v3584
      %v3679 = vadd.f32 %v3464, %v3589
      %v3680 = vadd.f32 %v3465, %v3592
      %v3681 = vadd.f32 %v3466, %v3597
      %v3682 = vadd.f32 %v3467, %v3600
      %v3683 = vadd.f32 %v3468, %v3605
      %v3684 = vadd.f32 %v3469, %v3608
      %v3685 = vadd.f32 %v3470, %v3613
      %v3686 = vadd.f32 %v3471, %v3616
      %v3687 = vadd.f32 %v3472, %v3621
      %v3688 = vadd.f32 %v3473, %v3624
      %v3689 = vadd.f32 %v3474, %v3629
      %v3690 = vadd.f32 %v3475, %v3632
      %v3691 = vadd.f32 %v3476, %v3637
      %v3692 = vadd.f32 %v3477, %v3640
      %v3693 = vadd.f32 %v3478, %v3645
      %v3694 = vadd.f32 %v3479, %v3648
      %v3695 = vadd.f32 %v3480, %v3653
      %v3696 = vadd.f32 %v3481, %v3656
      %v3697 = vadd.f32 %v3482, %v3661
      %v3698 = vadd.f32 %v3483, %v3664
      %v3699 = vld [vmem:[%s362 + $0x14] sm:$0xf]
      %v3701 = vshrl.u32 %v2003, 16
      %v3703 = vrot.slane %v3701, 4
      %v3704 = vshll.u32 %v2003, 16
      %v3706 = vrot.slane %v3704, 5
      %v3707 = vor.u32 %v3703, %v3706
      %v3709 = vshrl.u32 %v2004, 16
      %v3711 = vrot.slane %v3709, 4
      %v3712 = vshll.u32 %v2004, 16
      %v3714 = vrot.slane %v3712, 5
      %v3715 = vor.u32 %v3711, %v3714
      %v3716 = vsel %vm1447, %v3707, %v3715
      %v3718 = vshrl.u32 %v2005, 16
      %v3720 = vrot.slane %v3718, 4
      %v3721 = vshll.u32 %v2005, 16
      %v3723 = vrot.slane %v3721, 5
      %v3724 = vor.u32 %v3720, %v3723
      %v3725 = vsel %vm1447, %v3715, %v3724
      %v3727 = vshrl.u32 %v2006, 16
      %v3729 = vrot.slane %v3727, 4
      %v3730 = vshll.u32 %v2006, 16
      %v3732 = vrot.slane %v3730, 5
      %v3733 = vor.u32 %v3729, %v3732
      %v3734 = vsel %vm1447, %v3724, %v3733
      %v3736 = vshrl.u32 %v2007, 16
      %v3738 = vrot.slane %v3736, 4
      %v3739 = vshll.u32 %v2007, 16
      %v3741 = vrot.slane %v3739, 5
      %v3742 = vor.u32 %v3738, %v3741
      %v3743 = vsel %vm1447, %v3733, %v3742
      %v3745 = vshrl.u32 %v2008, 16
      %v3747 = vrot.slane %v3745, 4
      %v3748 = vshll.u32 %v2008, 16
      %v3750 = vrot.slane %v3748, 5
      %v3751 = vor.u32 %v3747, %v3750
      %v3752 = vsel %vm1447, %v3742, %v3751
      %v3754 = vshrl.u32 %v2009, 16
      %v3756 = vrot.slane %v3754, 4
      %v3757 = vshll.u32 %v2009, 16
      %v3759 = vrot.slane %v3757, 5
      %v3760 = vor.u32 %v3756, %v3759
      %v3761 = vsel %vm1447, %v3751, %v3760
      %v3763 = vshrl.u32 %v2010, 16
      %v3765 = vrot.slane %v3763, 4
      %v3766 = vshll.u32 %v2010, 16
      %v3768 = vrot.slane %v3766, 5
      %v3769 = vor.u32 %v3765, %v3768
      %v3770 = vsel %vm1447, %v3760, %v3769
      %v3772 = vshrl.u32 %v2011, 16
      %v3774 = vrot.slane %v3772, 4
      %v3775 = vshll.u32 %v2011, 16
      %v3777 = vrot.slane %v3775, 5
      %v3778 = vor.u32 %v3774, %v3777
      %v3779 = vsel %vm1447, %v3769, %v3778
      %v3781 = vshrl.u32 %v2012, 16
      %v3783 = vrot.slane %v3781, 4
      %v3784 = vshll.u32 %v2012, 16
      %v3786 = vrot.slane %v3784, 5
      %v3787 = vor.u32 %v3783, %v3786
      %v3788 = vsel %vm1447, %v3778, %v3787
      %v3790 = vshrl.u32 %v2013, 16
      %v3792 = vrot.slane %v3790, 4
      %v3793 = vshll.u32 %v2013, 16
      %v3795 = vrot.slane %v3793, 5
      %v3796 = vor.u32 %v3792, %v3795
      %v3797 = vsel %vm1447, %v3787, %v3796
      %v3799 = vshrl.u32 %v2014, 16
      %v3801 = vrot.slane %v3799, 4
      %v3802 = vshll.u32 %v2014, 16
      %v3804 = vrot.slane %v3802, 5
      %v3805 = vor.u32 %v3801, %v3804
      %v3806 = vsel %vm1447, %v3796, %v3805
      %v3808 = vshrl.u32 %v2015, 16
      %v3810 = vrot.slane %v3808, 4
      %v3811 = vshll.u32 %v2015, 16
      %v3813 = vrot.slane %v3811, 5
      %v3814 = vor.u32 %v3810, %v3813
      %v3815 = vsel %vm1447, %v3805, %v3814
      %v3817 = vshrl.u32 %v2016, 16
      %v3819 = vrot.slane %v3817, 4
      %v3820 = vshll.u32 %v2016, 16
      %v3822 = vrot.slane %v3820, 5
      %v3823 = vor.u32 %v3819, %v3822
      %v3824 = vsel %vm1447, %v3814, %v3823
      %v3826 = vshrl.u32 %v2017, 16
      %v3828 = vrot.slane %v3826, 4
      %v3829 = vshll.u32 %v2017, 16
      %v3831 = vrot.slane %v3829, 5
      %v3832 = vor.u32 %v3828, %v3831
      %v3833 = vsel %vm1447, %v3823, %v3832
      %v3835 = vshrl.u32 %v2018, 16
      %v3837 = vrot.slane %v3835, 4
      %v3838 = vshll.u32 %v2018, 16
      %v3840 = vrot.slane %v3838, 5
      %v3841 = vor.u32 %v3837, %v3840
      %v3842 = vsel %vm1447, %v3832, %v3841
      %v3844 = vshrl.u32 %v2019, 16
      %v3846 = vrot.slane %v3844, 4
      %v3847 = vshll.u32 %v2019, 16
      %v3849 = vrot.slane %v3847, 5
      %v3850 = vor.u32 %v3846, %v3849
      %v3851 = vsel %vm1447, %v3841, %v3850
      %v3853 = vsel %vm2112, %v3716, 0
      %v3856 = vsel %vm2112, %v3725, 0
      %v3859 = vsel %vm2112, %v3734, 0
      %v3862 = vsel %vm2112, %v3743, 0
      %v3865 = vsel %vm2112, %v3752, 0
      %v3868 = vsel %vm2112, %v3761, 0
      %v3871 = vsel %vm2112, %v3770, 0
      %v3874 = vsel %vm2112, %v3779, 0
      %v3877 = vsel %vm2112, %v3788, 0
      %v3880 = vsel %vm2112, %v3797, 0
      %v3883 = vsel %vm2112, %v3806, 0
      %v3886 = vsel %vm2112, %v3815, 0
      %v3889 = vsel %vm2112, %v3824, 0
      %v3892 = vsel %vm2112, %v3833, 0
      %v3895 = vsel %vm2112, %v3842, 0
      %v3898 = vsel %vm2112, %v3851, 0
      %v3901 = vsel %vm2161, %v3699, 0
      %3903 = vmatprep.subr.bf16.mxu0 0
      %3904 = vmatpush1.bf16.msra.mxu0 %v3901
      %3905 = vmatprep.subr.bf16.mxu0 0
      %3906 = vmatpush1.bf16.msra.mxu0 0
      %3907 = vmatprep.subr.bf16.mxu0 0
      %3908 = vmatpush1.bf16.msra.mxu0 0
      %3909 = vmatprep.subr.bf16.mxu0 0
      %3910 = vmatpush1.bf16.msra.mxu0 0
      %3911 = vmatprep.subr.bf16.mxu0 0
      %3912 = vmatpush1.bf16.msra.mxu0 0
      %3913 = vmatprep.subr.bf16.mxu0 0
      %3914 = vmatpush1.bf16.msra.mxu0 0
      %3915 = vmatprep.subr.bf16.mxu0 0
      %3916 = vmatpush1.bf16.msra.mxu0 0
      %3917 = vmatprep.subr.bf16.mxu0 0
      %3918 = vmatpush1.bf16.msra.mxu0 0
      %3919 = vmatprep.subr.bf16.mxu0 0
      %3920 = vmatpush1.bf16.msra.mxu0 0
      %3921 = vmatprep.subr.bf16.mxu0 0
      %3922 = vmatpush1.bf16.msra.mxu0 0
      %3923 = vmatprep.subr.bf16.mxu0 0
      %3924 = vmatpush1.bf16.msra.mxu0 0
      %3925 = vmatprep.subr.bf16.mxu0 0
      %3926 = vmatpush1.bf16.msra.mxu0 0
      %3927 = vmatprep.subr.bf16.mxu0 0
      %3928 = vmatpush1.bf16.msra.mxu0 0
      %3929 = vmatprep.subr.bf16.mxu0 0
      %3930 = vmatpush1.bf16.msra.mxu0 0
      %3931 = vmatprep.subr.bf16.mxu0 0
      %3932 = vmatpush1.bf16.msra.mxu0 0
      %3933 = vmatprep.subr.bf16.mxu0 0
      %3934 = vmatpush1.bf16.msra.mxu0 0
      %3935 = vmatprep.mubr.bf16.mxu0 0
      %3936 = vmatmul.mubr.bf16.gmra.mrb[0].mxu0 %v3853
      %v3937 = vpop.f32.mrb[0].mxu0
      %v3938 = vadd.f32 0.0, %v3937
      %v3939 = vpop.f32.mrb[0].mxu0
      %v3940 = vpop.f32.mrb[0].mxu0
      %v3941 = vadd.f32 0.0, %v3940
      %v3942 = vpop.f32.mrb[0].mxu0
      %3943 = vmatprep.mubr.bf16.mxu0 0
      %3944 = vmatmul.mubr.bf16.gmra.mrb[0].mxu0 %v3856
      %v3945 = vpop.f32.mrb[0].mxu0
      %v3946 = vadd.f32 0.0, %v3945
      %v3947 = vpop.f32.mrb[0].mxu0
      %v3948 = vpop.f32.mrb[0].mxu0
      %v3949 = vadd.f32 0.0, %v3948
      %v3950 = vpop.f32.mrb[0].mxu0
      %3951 = vmatprep.mubr.bf16.mxu0 0
      %3952 = vmatmul.mubr.bf16.gmra.mrb[0].mxu0 %v3859
      %v3953 = vpop.f32.mrb[0].mxu0
      %v3954 = vadd.f32 0.0, %v3953
      %v3955 = vpop.f32.mrb[0].mxu0
      %v3956 = vpop.f32.mrb[0].mxu0
      %v3957 = vadd.f32 0.0, %v3956
      %v3958 = vpop.f32.mrb[0].mxu0
      %3959 = vmatprep.mubr.bf16.mxu0 0
      %3960 = vmatmul.mubr.bf16.gmra.mrb[0].mxu0 %v3862
      %v3961 = vpop.f32.mrb[0].mxu0
      %v3962 = vadd.f32 0.0, %v3961
      %v3963 = vpop.f32.mrb[0].mxu0
      %v3964 = vpop.f32.mrb[0].mxu0
      %v3965 = vadd.f32 0.0, %v3964
      %v3966 = vpop.f32.mrb[0].mxu0
      %3967 = vmatprep.mubr.bf16.mxu0 0
      %3968 = vmatmul.mubr.bf16.gmra.mrb[0].mxu0 %v3865
      %v3969 = vpop.f32.mrb[0].mxu0
      %v3970 = vadd.f32 0.0, %v3969
      %v3971 = vpop.f32.mrb[0].mxu0
      %v3972 = vpop.f32.mrb[0].mxu0
      %v3973 = vadd.f32 0.0, %v3972
      %v3974 = vpop.f32.mrb[0].mxu0
      %3975 = vmatprep.mubr.bf16.mxu0 0
      %3976 = vmatmul.mubr.bf16.gmra.mrb[0].mxu0 %v3868
      %v3977 = vpop.f32.mrb[0].mxu0
      %v3978 = vadd.f32 0.0, %v3977
      %v3979 = vpop.f32.mrb[0].mxu0
      %v3980 = vpop.f32.mrb[0].mxu0
      %v3981 = vadd.f32 0.0, %v3980
      %v3982 = vpop.f32.mrb[0].mxu0
      %3983 = vmatprep.mubr.bf16.mxu0 0
      %3984 = vmatmul.mubr.bf16.gmra.mrb[0].mxu0 %v3871
      %v3985 = vpop.f32.mrb[0].mxu0
      %v3986 = vadd.f32 0.0, %v3985
      %v3987 = vpop.f32.mrb[0].mxu0
      %v3988 = vpop.f32.mrb[0].mxu0
      %v3989 = vadd.f32 0.0, %v3988
      %v3990 = vpop.f32.mrb[0].mxu0
      %3991 = vmatprep.mubr.bf16.mxu0 0
      %3992 = vmatmul.mubr.bf16.gmra.mrb[0].mxu0 %v3874
      %v3993 = vpop.f32.mrb[0].mxu0
      %v3994 = vadd.f32 0.0, %v3993
      %v3995 = vpop.f32.mrb[0].mxu0
      %v3996 = vpop.f32.mrb[0].mxu0
      %v3997 = vadd.f32 0.0, %v3996
      %v3998 = vpop.f32.mrb[0].mxu0
      %3999 = vmatprep.mubr.bf16.mxu0 0
      %4000 = vmatmul.mubr.bf16.gmra.mrb[0].mxu0 %v3877
      %v4001 = vpop.f32.mrb[0].mxu0
      %v4002 = vadd.f32 0.0, %v4001
      %v4003 = vpop.f32.mrb[0].mxu0
      %v4004 = vpop.f32.mrb[0].mxu0
      %v4005 = vadd.f32 0.0, %v4004
      %v4006 = vpop.f32.mrb[0].mxu0
      %4007 = vmatprep.mubr.bf16.mxu0 0
      %4008 = vmatmul.mubr.bf16.gmra.mrb[0].mxu0 %v3880
      %v4009 = vpop.f32.mrb[0].mxu0
      %v4010 = vadd.f32 0.0, %v4009
      %v4011 = vpop.f32.mrb[0].mxu0
      %v4012 = vpop.f32.mrb[0].mxu0
      %v4013 = vadd.f32 0.0, %v4012
      %v4014 = vpop.f32.mrb[0].mxu0
      %4015 = vmatprep.mubr.bf16.mxu0 0
      %4016 = vmatmul.mubr.bf16.gmra.mrb[0].mxu0 %v3883
      %v4017 = vpop.f32.mrb[0].mxu0
      %v4018 = vadd.f32 0.0, %v4017
      %v4019 = vpop.f32.mrb[0].mxu0
      %v4020 = vpop.f32.mrb[0].mxu0
      %v4021 = vadd.f32 0.0, %v4020
      %v4022 = vpop.f32.mrb[0].mxu0
      %4023 = vmatprep.mubr.bf16.mxu0 0
      %4024 = vmatmul.mubr.bf16.gmra.mrb[0].mxu0 %v3886
      %v4025 = vpop.f32.mrb[0].mxu0
      %v4026 = vadd.f32 0.0, %v4025
      %v4027 = vpop.f32.mrb[0].mxu0
      %v4028 = vpop.f32.mrb[0].mxu0
      %v4029 = vadd.f32 0.0, %v4028
      %v4030 = vpop.f32.mrb[0].mxu0
      %4031 = vmatprep.mubr.bf16.mxu0 0
      %4032 = vmatmul.mubr.bf16.gmra.mrb[0].mxu0 %v3889
      %v4033 = vpop.f32.mrb[0].mxu0
      %v4034 = vadd.f32 0.0, %v4033
      %v4035 = vpop.f32.mrb[0].mxu0
      %v4036 = vpop.f32.mrb[0].mxu0
      %v4037 = vadd.f32 0.0, %v4036
      %v4038 = vpop.f32.mrb[0].mxu0
      %4039 = vmatprep.mubr.bf16.mxu0 0
      %4040 = vmatmul.mubr.bf16.gmra.mrb[0].mxu0 %v3892
      %v4041 = vpop.f32.mrb[0].mxu0
      %v4042 = vadd.f32 0.0, %v4041
      %v4043 = vpop.f32.mrb[0].mxu0
      %v4044 = vpop.f32.mrb[0].mxu0
      %v4045 = vadd.f32 0.0, %v4044
      %v4046 = vpop.f32.mrb[0].mxu0
      %4047 = vmatprep.mubr.bf16.mxu0 0
      %4048 = vmatmul.mubr.bf16.gmra.mrb[0].mxu0 %v3895
      %v4049 = vpop.f32.mrb[0].mxu0
      %v4050 = vadd.f32 0.0, %v4049
      %v4051 = vpop.f32.mrb[0].mxu0
      %v4052 = vpop.f32.mrb[0].mxu0
      %v4053 = vadd.f32 0.0, %v4052
      %v4054 = vpop.f32.mrb[0].mxu0
      %4055 = vmatprep.mubr.bf16.mxu0 0
      %4056 = vmatmul.mubr.bf16.gmra.mrb[0].mxu0 %v3898
      %v4057 = vpop.f32.mrb[0].mxu0
      %v4058 = vadd.f32 0.0, %v4057
      %v4059 = vpop.f32.mrb[0].mxu0
      %v4060 = vpop.f32.mrb[0].mxu0
      %v4061 = vadd.f32 0.0, %v4060
      %v4062 = vpop.f32.mrb[0].mxu0
      %4063 = vdwg.mxu0
      %v4064 = vadd.f32 %v3667, %v3938
      %v4065 = vadd.f32 %v3668, %v3941
      %v4066 = vadd.f32 %v3669, %v3946
      %v4067 = vadd.f32 %v3670, %v3949
      %v4068 = vadd.f32 %v3671, %v3954
      %v4069 = vadd.f32 %v3672, %v3957
      %v4070 = vadd.f32 %v3673, %v3962
      %v4071 = vadd.f32 %v3674, %v3965
      %v4072 = vadd.f32 %v3675, %v3970
      %v4073 = vadd.f32 %v3676, %v3973
      %v4074 = vadd.f32 %v3677, %v3978
      %v4075 = vadd.f32 %v3678, %v3981
      %v4076 = vadd.f32 %v3679, %v3986
      %v4077 = vadd.f32 %v3680, %v3989
      %v4078 = vadd.f32 %v3681, %v3994
      %v4079 = vadd.f32 %v3682, %v3997
      %v4080 = vadd.f32 %v3683, %v4002
      %v4081 = vadd.f32 %v3684, %v4005
      %v4082 = vadd.f32 %v3685, %v4010
      %v4083 = vadd.f32 %v3686, %v4013
      %v4084 = vadd.f32 %v3687, %v4018
      %v4085 = vadd.f32 %v3688, %v4021
      %v4086 = vadd.f32 %v3689, %v4026
      %v4087 = vadd.f32 %v3690, %v4029
      %v4088 = vadd.f32 %v3691, %v4034
      %v4089 = vadd.f32 %v3692, %v4037
      %v4090 = vadd.f32 %v3693, %v4042
      %v4091 = vadd.f32 %v3694, %v4045
      %v4092 = vadd.f32 %v3695, %v4050
      %v4093 = vadd.f32 %v3696, %v4053
      %v4094 = vadd.f32 %v3697, %v4058
      %v4095 = vadd.f32 %v3698, %v4061
      %v4096 = vld [vmem:[%s362 + $0x18] sm:$0xf]
      %v4098 = vshrl.u32 %v2023, 16
      %v4100 = vrot.slane %v4098, 3
      %v4101 = vshll.u32 %v2023, 16
      %v4103 = vrot.slane %v4101, 4
      %v4104 = vor.u32 %v4100, %v4103
      %v4106 = vshrl.u32 %v2024, 16
      %v4108 = vrot.slane %v4106, 3
      %v4109 = vshll.u32 %v2024, 16
      %v4111 = vrot.slane %v4109, 4
      %v4112 = vor.u32 %v4108, %v4111
      %v4113 = vsel %vm1803, %v4104, %v4112
      %v4115 = vshrl.u32 %v2025, 16
      %v4117 = vrot.slane %v4115, 3
      %v4118 = vshll.u32 %v2025, 16
      %v4120 = vrot.slane %v4118, 4
      %v4121 = vor.u32 %v4117, %v4120
      %v4122 = vsel %vm1803, %v4112, %v4121
      %v4124 = vshrl.u32 %v2026, 16
      %v4126 = vrot.slane %v4124, 3
      %v4127 = vshll.u32 %v2026, 16
      %v4129 = vrot.slane %v4127, 4
      %v4130 = vor.u32 %v4126, %v4129
      %v4131 = vsel %vm1803, %v4121, %v4130
      %v4133 = vshrl.u32 %v2027, 16
      %v4135 = vrot.slane %v4133, 3
      %v4136 = vshll.u32 %v2027, 16
      %v4138 = vrot.slane %v4136, 4
      %v4139 = vor.u32 %v4135, %v4138
      %v4140 = vsel %vm1803, %v4130, %v4139
      %v4142 = vshrl.u32 %v2028, 16
      %v4144 = vrot.slane %v4142, 3
      %v4145 = vshll.u32 %v2028, 16
      %v4147 = vrot.slane %v4145, 4
      %v4148 = vor.u32 %v4144, %v4147
      %v4149 = vsel %vm1803, %v4139, %v4148
      %v4151 = vshrl.u32 %v2029, 16
      %v4153 = vrot.slane %v4151, 3
      %v4154 = vshll.u32 %v2029, 16
      %v4156 = vrot.slane %v4154, 4
      %v4157 = vor.u32 %v4153, %v4156
      %v4158 = vsel %vm1803, %v4148, %v4157
      %v4160 = vshrl.u32 %v2030, 16
      %v4162 = vrot.slane %v4160, 3
      %v4163 = vshll.u32 %v2030, 16
      %v4165 = vrot.slane %v4163, 4
      %v4166 = vor.u32 %v4162, %v4165
      %v4167 = vsel %vm1803, %v4157, %v4166
      %v4169 = vshrl.u32 %v2031, 16
      %v4171 = vrot.slane %v4169, 3
      %v4172 = vshll.u32 %v2031, 16
      %v4174 = vrot.slane %v4172, 4
      %v4175 = vor.u32 %v4171, %v4174
      %v4176 = vsel %vm1803, %v4166, %v4175
      %v4178 = vshrl.u32 %v2032, 16
      %v4180 = vrot.slane %v4178, 3
      %v4181 = vshll.u32 %v2032, 16
      %v4183 = vrot.slane %v4181, 4
      %v4184 = vor.u32 %v4180, %v4183
      %v4185 = vsel %vm1803, %v4175, %v4184
      %v4187 = vshrl.u32 %v2033, 16
      %v4189 = vrot.slane %v4187, 3
      %v4190 = vshll.u32 %v2033, 16
      %v4192 = vrot.slane %v4190, 4
      %v4193 = vor.u32 %v4189, %v4192
      %v4194 = vsel %vm1803, %v4184, %v4193
      %v4196 = vshrl.u32 %v2034, 16
      %v4198 = vrot.slane %v4196, 3
      %v4199 = vshll.u32 %v2034, 16
      %v4201 = vrot.slane %v4199, 4
      %v4202 = vor.u32 %v4198, %v4201
      %v4203 = vsel %vm1803, %v4193, %v4202
      %v4205 = vshrl.u32 %v2035, 16
      %v4207 = vrot.slane %v4205, 3
      %v4208 = vshll.u32 %v2035, 16
      %v4210 = vrot.slane %v4208, 4
      %v4211 = vor.u32 %v4207, %v4210
      %v4212 = vsel %vm1803, %v4202, %v4211
      %v4214 = vshrl.u32 %v2036, 16
      %v4216 = vrot.slane %v4214, 3
      %v4217 = vshll.u32 %v2036, 16
      %v4219 = vrot.slane %v4217, 4
      %v4220 = vor.u32 %v4216, %v4219
      %v4221 = vsel %vm1803, %v4211, %v4220
      %v4223 = vshrl.u32 %v2037, 16
      %v4225 = vrot.slane %v4223, 3
      %v4226 = vshll.u32 %v2037, 16
      %v4228 = vrot.slane %v4226, 4
      %v4229 = vor.u32 %v4225, %v4228
      %v4230 = vsel %vm1803, %v4220, %v4229
      %v4232 = vshrl.u32 %v2038, 16
      %v4234 = vrot.slane %v4232, 3
      %v4235 = vshll.u32 %v2038, 16
      %v4237 = vrot.slane %v4235, 4
      %v4238 = vor.u32 %v4234, %v4237
      %v4239 = vsel %vm1803, %v4229, %v4238
      %v4241 = vshrl.u32 %v2039, 16
      %v4243 = vrot.slane %v4241, 3
      %v4244 = vshll.u32 %v2039, 16
      %v4246 = vrot.slane %v4244, 4
      %v4247 = vor.u32 %v4243, %v4246
      %v4248 = vsel %vm1803, %v4238, %v4247
      %v4250 = vsel %vm2112, %v4113, 0
      %v4253 = vsel %vm2112, %v4122, 0
      %v4256 = vsel %vm2112, %v4131, 0
      %v4259 = vsel %vm2112, %v4140, 0
      %v4262 = vsel %vm2112, %v4149, 0
      %v4265 = vsel %vm2112, %v4158, 0
      %v4268 = vsel %vm2112, %v4167, 0
      %v4271 = vsel %vm2112, %v4176, 0
      %v4274 = vsel %vm2112, %v4185, 0
      %v4277 = vsel %vm2112, %v4194, 0
      %v4280 = vsel %vm2112, %v4203, 0
      %v4283 = vsel %vm2112, %v4212, 0
      %v4286 = vsel %vm2112, %v4221, 0
      %v4289 = vsel %vm2112, %v4230, 0
      %v4292 = vsel %vm2112, %v4239, 0
      %v4295 = vsel %vm2112, %v4248, 0
      %v4298 = vsel %vm2161, %v4096, 0
      %4300 = vmatprep.subr.bf16.mxu0 0
      %4301 = vmatpush1.bf16.msra.mxu0 %v4298
      %4302 = vmatprep.subr.bf16.mxu0 0
      %4303 = vmatpush1.bf16.msra.mxu0 0
      %4304 = vmatprep.subr.bf16.mxu0 0
      %4305 = vmatpush1.bf16.msra.mxu0 0
      %4306 = vmatprep.subr.bf16.mxu0 0
      %4307 = vmatpush1.bf16.msra.mxu0 0
      %4308 = vmatprep.subr.bf16.mxu0 0
      %4309 = vmatpush1.bf16.msra.mxu0 0
      %4310 = vmatprep.subr.bf16.mxu0 0
      %4311 = vmatpush1.bf16.msra.mxu0 0
      %4312 = vmatprep.subr.bf16.mxu0 0
      %4313 = vmatpush1.bf16.msra.mxu0 0
      %4314 = vmatprep.subr.bf16.mxu0 0
      %4315 = vmatpush1.bf16.msra.mxu0 0
      %4316 = vmatprep.subr.bf16.mxu0 0
      %4317 = vmatpush1.bf16.msra.mxu0 0
      %4318 = vmatprep.subr.bf16.mxu0 0
      %4319 = vmatpush1.bf16.msra.mxu0 0
      %4320 = vmatprep.subr.bf16.mxu0 0
      %4321 = vmatpush1.bf16.msra.mxu0 0
      %4322 = vmatprep.subr.bf16.mxu0 0
      %4323 = vmatpush1.bf16.msra.mxu0 0
      %4324 = vmatprep.subr.bf16.mxu0 0
      %4325 = vmatpush1.bf16.msra.mxu0 0
      %4326 = vmatprep.subr.bf16.mxu0 0
      %4327 = vmatpush1.bf16.msra.mxu0 0
      %4328 = vmatprep.subr.bf16.mxu0 0
      %4329 = vmatpush1.bf16.msra.mxu0 0
      %4330 = vmatprep.subr.bf16.mxu0 0
      %4331 = vmatpush1.bf16.msra.mxu0 0
      %4332 = vmatprep.mubr.bf16.mxu0 0
      %4333 = vmatmul.mubr.bf16.gmra.mrb[0].mxu0 %v4250
      %v4334 = vpop.f32.mrb[0].mxu0
      %v4335 = vadd.f32 0.0, %v4334
      %v4336 = vpop.f32.mrb[0].mxu0
      %v4337 = vpop.f32.mrb[0].mxu0
      %v4338 = vadd.f32 0.0, %v4337
      %v4339 = vpop.f32.mrb[0].mxu0
      %4340 = vmatprep.mubr.bf16.mxu0 0
      %4341 = vmatmul.mubr.bf16.gmra.mrb[0].mxu0 %v4253
      %v4342 = vpop.f32.mrb[0].mxu0
      %v4343 = vadd.f32 0.0, %v4342
      %v4344 = vpop.f32.mrb[0].mxu0
      %v4345 = vpop.f32.mrb[0].mxu0
      %v4346 = vadd.f32 0.0, %v4345
      %v4347 = vpop.f32.mrb[0].mxu0
      %4348 = vmatprep.mubr.bf16.mxu0 0
      %4349 = vmatmul.mubr.bf16.gmra.mrb[0].mxu0 %v4256
      %v4350 = vpop.f32.mrb[0].mxu0
      %v4351 = vadd.f32 0.0, %v4350
      %v4352 = vpop.f32.mrb[0].mxu0
      %v4353 = vpop.f32.mrb[0].mxu0
      %v4354 = vadd.f32 0.0, %v4353
      %v4355 = vpop.f32.mrb[0].mxu0
      %4356 = vmatprep.mubr.bf16.mxu0 0
      %4357 = vmatmul.mubr.bf16.gmra.mrb[0].mxu0 %v4259
      %v4358 = vpop.f32.mrb[0].mxu0
      %v4359 = vadd.f32 0.0, %v4358
      %v4360 = vpop.f32.mrb[0].mxu0
      %v4361 = vpop.f32.mrb[0].mxu0
      %v4362 = vadd.f32 0.0, %v4361
      %v4363 = vpop.f32.mrb[0].mxu0
      %4364 = vmatprep.mubr.bf16.mxu0 0
      %4365 = vmatmul.mubr.bf16.gmra.mrb[0].mxu0 %v4262
      %v4366 = vpop.f32.mrb[0].mxu0
      %v4367 = vadd.f32 0.0, %v4366
      %v4368 = vpop.f32.mrb[0].mxu0
      %v4369 = vpop.f32.mrb[0].mxu0
      %v4370 = vadd.f32 0.0, %v4369
      %v4371 = vpop.f32.mrb[0].mxu0
      %4372 = vmatprep.mubr.bf16.mxu0 0
      %4373 = vmatmul.mubr.bf16.gmra.mrb[0].mxu0 %v4265
      %v4374 = vpop.f32.mrb[0].mxu0
      %v4375 = vadd.f32 0.0, %v4374
      %v4376 = vpop.f32.mrb[0].mxu0
      %v4377 = vpop.f32.mrb[0].mxu0
      %v4378 = vadd.f32 0.0, %v4377
      %v4379 = vpop.f32.mrb[0].mxu0
      %4380 = vmatprep.mubr.bf16.mxu0 0
      %4381 = vmatmul.mubr.bf16.gmra.mrb[0].mxu0 %v4268
      %v4382 = vpop.f32.mrb[0].mxu0
      %v4383 = vadd.f32 0.0, %v4382
      %v4384 = vpop.f32.mrb[0].mxu0
      %v4385 = vpop.f32.mrb[0].mxu0
      %v4386 = vadd.f32 0.0, %v4385
      %v4387 = vpop.f32.mrb[0].mxu0
      %4388 = vmatprep.mubr.bf16.mxu0 0
      %4389 = vmatmul.mubr.bf16.gmra.mrb[0].mxu0 %v4271
      %v4390 = vpop.f32.mrb[0].mxu0
      %v4391 = vadd.f32 0.0, %v4390
      %v4392 = vpop.f32.mrb[0].mxu0
      %v4393 = vpop.f32.mrb[0].mxu0
      %v4394 = vadd.f32 0.0, %v4393
      %v4395 = vpop.f32.mrb[0].mxu0
      %4396 = vmatprep.mubr.bf16.mxu0 0
      %4397 = vmatmul.mubr.bf16.gmra.mrb[0].mxu0 %v4274
      %v4398 = vpop.f32.mrb[0].mxu0
      %v4399 = vadd.f32 0.0, %v4398
      %v4400 = vpop.f32.mrb[0].mxu0
      %v4401 = vpop.f32.mrb[0].mxu0
      %v4402 = vadd.f32 0.0, %v4401
      %v4403 = vpop.f32.mrb[0].mxu0
      %4404 = vmatprep.mubr.bf16.mxu0 0
      %4405 = vmatmul.mubr.bf16.gmra.mrb[0].mxu0 %v4277
      %v4406 = vpop.f32.mrb[0].mxu0
      %v4407 = vadd.f32 0.0, %v4406
      %v4408 = vpop.f32.mrb[0].mxu0
      %v4409 = vpop.f32.mrb[0].mxu0
      %v4410 = vadd.f32 0.0, %v4409
      %v4411 = vpop.f32.mrb[0].mxu0
      %4412 = vmatprep.mubr.bf16.mxu0 0
      %4413 = vmatmul.mubr.bf16.gmra.mrb[0].mxu0 %v4280
      %v4414 = vpop.f32.mrb[0].mxu0
      %v4415 = vadd.f32 0.0, %v4414
      %v4416 = vpop.f32.mrb[0].mxu0
      %v4417 = vpop.f32.mrb[0].mxu0
      %v4418 = vadd.f32 0.0, %v4417
      %v4419 = vpop.f32.mrb[0].mxu0
      %4420 = vmatprep.mubr.bf16.mxu0 0
      %4421 = vmatmul.mubr.bf16.gmra.mrb[0].mxu0 %v4283
      %v4422 = vpop.f32.mrb[0].mxu0
      %v4423 = vadd.f32 0.0, %v4422
      %v4424 = vpop.f32.mrb[0].mxu0
      %v4425 = vpop.f32.mrb[0].mxu0
      %v4426 = vadd.f32 0.0, %v4425
      %v4427 = vpop.f32.mrb[0].mxu0
      %4428 = vmatprep.mubr.bf16.mxu0 0
      %4429 = vmatmul.mubr.bf16.gmra.mrb[0].mxu0 %v4286
      %v4430 = vpop.f32.mrb[0].mxu0
      %v4431 = vadd.f32 0.0, %v4430
      %v4432 = vpop.f32.mrb[0].mxu0
      %v4433 = vpop.f32.mrb[0].mxu0
      %v4434 = vadd.f32 0.0, %v4433
      %v4435 = vpop.f32.mrb[0].mxu0
      %4436 = vmatprep.mubr.bf16.mxu0 0
      %4437 = vmatmul.mubr.bf16.gmra.mrb[0].mxu0 %v4289
      %v4438 = vpop.f32.mrb[0].mxu0
      %v4439 = vadd.f32 0.0, %v4438
      %v4440 = vpop.f32.mrb[0].mxu0
      %v4441 = vpop.f32.mrb[0].mxu0
      %v4442 = vadd.f32 0.0, %v4441
      %v4443 = vpop.f32.mrb[0].mxu0
      %4444 = vmatprep.mubr.bf16.mxu0 0
      %4445 = vmatmul.mubr.bf16.gmra.mrb[0].mxu0 %v4292
      %v4446 = vpop.f32.mrb[0].mxu0
      %v4447 = vadd.f32 0.0, %v4446
      %v4448 = vpop.f32.mrb[0].mxu0
      %v4449 = vpop.f32.mrb[0].mxu0
      %v4450 = vadd.f32 0.0, %v4449
      %v4451 = vpop.f32.mrb[0].mxu0
      %4452 = vmatprep.mubr.bf16.mxu0 0
      %4453 = vmatmul.mubr.bf16.gmra.mrb[0].mxu0 %v4295
      %v4454 = vpop.f32.mrb[0].mxu0
      %v4455 = vadd.f32 0.0, %v4454
      %v4456 = vpop.f32.mrb[0].mxu0
      %v4457 = vpop.f32.mrb[0].mxu0
      %v4458 = vadd.f32 0.0, %v4457
      %v4459 = vpop.f32.mrb[0].mxu0
      %4460 = vdwg.mxu0
      %v4461 = vadd.f32 %v4064, %v4335
      %v4462 = vadd.f32 %v4065, %v4338
      %v4463 = vadd.f32 %v4066, %v4343
      %v4464 = vadd.f32 %v4067, %v4346
      %v4465 = vadd.f32 %v4068, %v4351
      %v4466 = vadd.f32 %v4069, %v4354
      %v4467 = vadd.f32 %v4070, %v4359
      %v4468 = vadd.f32 %v4071, %v4362
      %v4469 = vadd.f32 %v4072, %v4367
      %v4470 = vadd.f32 %v4073, %v4370
      %v4471 = vadd.f32 %v4074, %v4375
      %v4472 = vadd.f32 %v4075, %v4378
      %v4473 = vadd.f32 %v4076, %v4383
      %v4474 = vadd.f32 %v4077, %v4386
      %v4475 = vadd.f32 %v4078, %v4391
      %v4476 = vadd.f32 %v4079, %v4394
      %v4477 = vadd.f32 %v4080, %v4399
      %v4478 = vadd.f32 %v4081, %v4402
      %v4479 = vadd.f32 %v4082, %v4407
      %v4480 = vadd.f32 %v4083, %v4410
      %v4481 = vadd.f32 %v4084, %v4415
      %v4482 = vadd.f32 %v4085, %v4418
      %v4483 = vadd.f32 %v4086, %v4423
      %v4484 = vadd.f32 %v4087, %v4426
      %v4485 = vadd.f32 %v4088, %v4431
      %v4486 = vadd.f32 %v4089, %v4434
      %v4487 = vadd.f32 %v4090, %v4439
      %v4488 = vadd.f32 %v4091, %v4442
      %v4489 = vadd.f32 %v4092, %v4447
      %v4490 = vadd.f32 %v4093, %v4450
      %v4491 = vadd.f32 %v4094, %v4455
      %v4492 = vadd.f32 %v4095, %v4458
      %v4493 = vld [vmem:[%s362 + $0x1c] sm:$0xf]
      %v4497 = vrot.slane %v2040, 4
      %v4498 = vsel %vm2078, %v4497, %v2084
      %v4499 = vrot.slane %v2021, 4
      %v4500 = vsel %vm2078, %v3490, %v4499
      %v4501 = vrot.slane %v2022, 4
      %v4502 = vsel %vm2078, %v4499, %v4501
      %v4504 = vsel %vm2112, %v4498, 0
      %v4507 = vsel %vm2112, %v4500, 0
      %v4510 = vsel %vm2112, %v4502, 0
      %v4513 = vsel %vm2161, %v4493, 0
      %4515 = vmatprep.subr.bf16.mxu0 0
      %4516 = vmatpush1.bf16.msra.mxu0 %v4513
      %4517 = vmatprep.subr.bf16.mxu0 0
      %4518 = vmatpush1.bf16.msra.mxu0 0
      %4519 = vmatprep.subr.bf16.mxu0 0
      %4520 = vmatpush1.bf16.msra.mxu0 0
      %4521 = vmatprep.subr.bf16.mxu0 0
      %4522 = vmatpush1.bf16.msra.mxu0 0
      %4523 = vmatprep.subr.bf16.mxu0 0
      %4524 = vmatpush1.bf16.msra.mxu0 0
      %4525 = vmatprep.subr.bf16.mxu0 0
      %4526 = vmatpush1.bf16.msra.mxu0 0
      %4527 = vmatprep.subr.bf16.mxu0 0
      %4528 = vmatpush1.bf16.msra.mxu0 0
      %4529 = vmatprep.subr.bf16.mxu0 0
      %4530 = vmatpush1.bf16.msra.mxu0 0
      %4531 = vmatprep.subr.bf16.mxu0 0
      %4532 = vmatpush1.bf16.msra.mxu0 0
      %4533 = vmatprep.subr.bf16.mxu0 0
      %4534 = vmatpush1.bf16.msra.mxu0 0
      %4535 = vmatprep.subr.bf16.mxu0 0
      %4536 = vmatpush1.bf16.msra.mxu0 0
      %4537 = vmatprep.subr.bf16.mxu0 0
      %4538 = vmatpush1.bf16.msra.mxu0 0
      %4539 = vmatprep.subr.bf16.mxu0 0
      %4540 = vmatpush1.bf16.msra.mxu0 0
      %4541 = vmatprep.subr.bf16.mxu0 0
      %4542 = vmatpush1.bf16.msra.mxu0 0
      %4543 = vmatprep.subr.bf16.mxu0 0
      %4544 = vmatpush1.bf16.msra.mxu0 0
      %4545 = vmatprep.subr.bf16.mxu0 0
      %4546 = vmatpush1.bf16.msra.mxu0 0
      %4547 = vmatprep.mubr.bf16.mxu0 0
      %4548 = vmatmul.mubr.bf16.gmra.mrb[0].mxu0 %v4504
      %v4549 = vpop.f32.mrb[0].mxu0
      %v4550 = vadd.f32 0.0, %v4549
      %v4551 = vpop.f32.mrb[0].mxu0
      %v4552 = vpop.f32.mrb[0].mxu0
      %v4553 = vadd.f32 0.0, %v4552
      %v4554 = vpop.f32.mrb[0].mxu0
      %4555 = vmatprep.mubr.bf16.mxu0 0
      %4556 = vmatmul.mubr.bf16.gmra.mrb[0].mxu0 %v2123
      %v4557 = vpop.f32.mrb[0].mxu0
      %v4558 = vadd.f32 0.0, %v4557
      %v4559 = vpop.f32.mrb[0].mxu0
      %v4560 = vpop.f32.mrb[0].mxu0
      %v4561 = vadd.f32 0.0, %v4560
      %v4562 = vpop.f32.mrb[0].mxu0
      %4563 = vmatprep.mubr.bf16.mxu0 0
      %4564 = vmatmul.mubr.bf16.gmra.mrb[0].mxu0 %v2126
      %v4565 = vpop.f32.mrb[0].mxu0
      %v4566 = vadd.f32 0.0, %v4565
      %v4567 = vpop.f32.mrb[0].mxu0
      %v4568 = vpop.f32.mrb[0].mxu0
      %v4569 = vadd.f32 0.0, %v4568
      %v4570 = vpop.f32.mrb[0].mxu0
      %4571 = vmatprep.mubr.bf16.mxu0 0
      %4572 = vmatmul.mubr.bf16.gmra.mrb[0].mxu0 %v2129
      %v4573 = vpop.f32.mrb[0].mxu0
      %v4574 = vadd.f32 0.0, %v4573
      %v4575 = vpop.f32.mrb[0].mxu0
      %v4576 = vpop.f32.mrb[0].mxu0
      %v4577 = vadd.f32 0.0, %v4576
      %v4578 = vpop.f32.mrb[0].mxu0
      %4579 = vmatprep.mubr.bf16.mxu0 0
      %4580 = vmatmul.mubr.bf16.gmra.mrb[0].mxu0 %v2132
      %v4581 = vpop.f32.mrb[0].mxu0
      %v4582 = vadd.f32 0.0, %v4581
      %v4583 = vpop.f32.mrb[0].mxu0
      %v4584 = vpop.f32.mrb[0].mxu0
      %v4585 = vadd.f32 0.0, %v4584
      %v4586 = vpop.f32.mrb[0].mxu0
      %4587 = vmatprep.mubr.bf16.mxu0 0
      %4588 = vmatmul.mubr.bf16.gmra.mrb[0].mxu0 %v2135
      %v4589 = vpop.f32.mrb[0].mxu0
      %v4590 = vadd.f32 0.0, %v4589
      %v4591 = vpop.f32.mrb[0].mxu0
      %v4592 = vpop.f32.mrb[0].mxu0
      %v4593 = vadd.f32 0.0, %v4592
      %v4594 = vpop.f32.mrb[0].mxu0
      %4595 = vmatprep.mubr.bf16.mxu0 0
      %4596 = vmatmul.mubr.bf16.gmra.mrb[0].mxu0 %v2138
      %v4597 = vpop.f32.mrb[0].mxu0
      %v4598 = vadd.f32 0.0, %v4597
      %v4599 = vpop.f32.mrb[0].mxu0
      %v4600 = vpop.f32.mrb[0].mxu0
      %v4601 = vadd.f32 0.0, %v4600
      %v4602 = vpop.f32.mrb[0].mxu0
      %4603 = vmatprep.mubr.bf16.mxu0 0
      %4604 = vmatmul.mubr.bf16.gmra.mrb[0].mxu0 %v2141
      %v4605 = vpop.f32.mrb[0].mxu0
      %v4606 = vadd.f32 0.0, %v4605
      %v4607 = vpop.f32.mrb[0].mxu0
      %v4608 = vpop.f32.mrb[0].mxu0
      %v4609 = vadd.f32 0.0, %v4608
      %v4610 = vpop.f32.mrb[0].mxu0
      %4611 = vmatprep.mubr.bf16.mxu0 0
      %4612 = vmatmul.mubr.bf16.gmra.mrb[0].mxu0 %v2144
      %v4613 = vpop.f32.mrb[0].mxu0
      %v4614 = vadd.f32 0.0, %v4613
      %v4615 = vpop.f32.mrb[0].mxu0
      %v4616 = vpop.f32.mrb[0].mxu0
      %v4617 = vadd.f32 0.0, %v4616
      %v4618 = vpop.f32.mrb[0].mxu0
      %4619 = vmatprep.mubr.bf16.mxu0 0
      %4620 = vmatmul.mubr.bf16.gmra.mrb[0].mxu0 %v2147
      %v4621 = vpop.f32.mrb[0].mxu0
      %v4622 = vadd.f32 0.0, %v4621
      %v4623 = vpop.f32.mrb[0].mxu0
      %v4624 = vpop.f32.mrb[0].mxu0
      %v4625 = vadd.f32 0.0, %v4624
      %v4626 = vpop.f32.mrb[0].mxu0
      %4627 = vmatprep.mubr.bf16.mxu0 0
      %4628 = vmatmul.mubr.bf16.gmra.mrb[0].mxu0 %v2150
      %v4629 = vpop.f32.mrb[0].mxu0
      %v4630 = vadd.f32 0.0, %v4629
      %v4631 = vpop.f32.mrb[0].mxu0
      %v4632 = vpop.f32.mrb[0].mxu0
      %v4633 = vadd.f32 0.0, %v4632
      %v4634 = vpop.f32.mrb[0].mxu0
      %4635 = vmatprep.mubr.bf16.mxu0 0
      %4636 = vmatmul.mubr.bf16.gmra.mrb[0].mxu0 %v2153
      %v4637 = vpop.f32.mrb[0].mxu0
      %v4638 = vadd.f32 0.0, %v4637
      %v4639 = vpop.f32.mrb[0].mxu0
      %v4640 = vpop.f32.mrb[0].mxu0
      %v4641 = vadd.f32 0.0, %v4640
      %v4642 = vpop.f32.mrb[0].mxu0
      %4643 = vmatprep.mubr.bf16.mxu0 0
      %4644 = vmatmul.mubr.bf16.gmra.mrb[0].mxu0 %v2156
      %v4645 = vpop.f32.mrb[0].mxu0
      %v4646 = vadd.f32 0.0, %v4645
      %v4647 = vpop.f32.mrb[0].mxu0
      %v4648 = vpop.f32.mrb[0].mxu0
      %v4649 = vadd.f32 0.0, %v4648
      %v4650 = vpop.f32.mrb[0].mxu0
      %4651 = vmatprep.mubr.bf16.mxu0 0
      %4652 = vmatmul.mubr.bf16.gmra.mrb[0].mxu0 %v3498
      %v4653 = vpop.f32.mrb[0].mxu0
      %v4654 = vadd.f32 0.0, %v4653
      %v4655 = vpop.f32.mrb[0].mxu0
      %v4656 = vpop.f32.mrb[0].mxu0
      %v4657 = vadd.f32 0.0, %v4656
      %v4658 = vpop.f32.mrb[0].mxu0
      %4659 = vmatprep.mubr.bf16.mxu0 0
      %4660 = vmatmul.mubr.bf16.gmra.mrb[0].mxu0 %v4507
      %v4661 = vpop.f32.mrb[0].mxu0
      %v4662 = vadd.f32 0.0, %v4661
      %v4663 = vpop.f32.mrb[0].mxu0
      %v4664 = vpop.f32.mrb[0].mxu0
      %v4665 = vadd.f32 0.0, %v4664
      %v4666 = vpop.f32.mrb[0].mxu0
      %4667 = vmatprep.mubr.bf16.mxu0 0
      %4668 = vmatmul.mubr.bf16.gmra.mrb[0].mxu0 %v4510
      %v4669 = vpop.f32.mrb[0].mxu0
      %v4670 = vadd.f32 0.0, %v4669
      %v4671 = vpop.f32.mrb[0].mxu0
      %v4672 = vpop.f32.mrb[0].mxu0
      %v4673 = vadd.f32 0.0, %v4672
      %v4674 = vpop.f32.mrb[0].mxu0
      %4675 = vdwg.mxu0
      %v4676 = vadd.f32 %v4461, %v4550
      %v4677 = vadd.f32 %v4462, %v4553
      %v4678 = vadd.f32 %v4463, %v4558
      %v4679 = vadd.f32 %v4464, %v4561
      %v4680 = vadd.f32 %v4465, %v4566
      %v4681 = vadd.f32 %v4466, %v4569
      %v4682 = vadd.f32 %v4467, %v4574
      %v4683 = vadd.f32 %v4468, %v4577
      %v4684 = vadd.f32 %v4469, %v4582
      %v4685 = vadd.f32 %v4470, %v4585
      %v4686 = vadd.f32 %v4471, %v4590
      %v4687 = vadd.f32 %v4472, %v4593
      %v4688 = vadd.f32 %v4473, %v4598
      %v4689 = vadd.f32 %v4474, %v4601
      %v4690 = vadd.f32 %v4475, %v4606
      %v4691 = vadd.f32 %v4476, %v4609
      %v4692 = vadd.f32 %v4477, %v4614
      %v4693 = vadd.f32 %v4478, %v4617
      %v4694 = vadd.f32 %v4479, %v4622
      %v4695 = vadd.f32 %v4480, %v4625
      %v4696 = vadd.f32 %v4481, %v4630
      %v4697 = vadd.f32 %v4482, %v4633
      %v4698 = vadd.f32 %v4483, %v4638
      %v4699 = vadd.f32 %v4484, %v4641
      %v4700 = vadd.f32 %v4485, %v4646
      %v4701 = vadd.f32 %v4486, %v4649
      %v4702 = vadd.f32 %v4487, %v4654
      %v4703 = vadd.f32 %v4488, %v4657
      %v4704 = vadd.f32 %v4489, %v4662
      %v4705 = vadd.f32 %v4490, %v4665
      %v4706 = vadd.f32 %v4491, %v4670
      %v4707 = vadd.f32 %v4492, %v4673
      %v4708 = vld [vmem:[%s362 + $0x20] sm:$0xf]
      %v4710 = vshrl.u32 %v2042, 16
      %v4712 = vrot.slane %v4710, 4
      %v4713 = vshll.u32 %v2042, 16
      %v4715 = vrot.slane %v4713, 5
      %v4716 = vor.u32 %v4712, %v4715
      %v4718 = vshrl.u32 %v2043, 16
      %v4720 = vrot.slane %v4718, 4
      %v4721 = vshll.u32 %v2043, 16
      %v4723 = vrot.slane %v4721, 5
      %v4724 = vor.u32 %v4720, %v4723
      %v4725 = vsel %vm1447, %v4716, %v4724
      %v4727 = vshrl.u32 %v2044, 16
      %v4729 = vrot.slane %v4727, 4
      %v4730 = vshll.u32 %v2044, 16
      %v4732 = vrot.slane %v4730, 5
      %v4733 = vor.u32 %v4729, %v4732
      %v4734 = vsel %vm1447, %v4724, %v4733
      %v4736 = vshrl.u32 %v2045, 16
      %v4738 = vrot.slane %v4736, 4
      %v4739 = vshll.u32 %v2045, 16
      %v4741 = vrot.slane %v4739, 5
      %v4742 = vor.u32 %v4738, %v4741
      %v4743 = vsel %vm1447, %v4733, %v4742
      %v4745 = vshrl.u32 %v2046, 16
      %v4747 = vrot.slane %v4745, 4
      %v4748 = vshll.u32 %v2046, 16
      %v4750 = vrot.slane %v4748, 5
      %v4751 = vor.u32 %v4747, %v4750
      %v4752 = vsel %vm1447, %v4742, %v4751
      %v4754 = vshrl.u32 %v2047, 16
      %v4756 = vrot.slane %v4754, 4
      %v4757 = vshll.u32 %v2047, 16
      %v4759 = vrot.slane %v4757, 5
      %v4760 = vor.u32 %v4756, %v4759
      %v4761 = vsel %vm1447, %v4751, %v4760
      %v4763 = vshrl.u32 %v2048, 16
      %v4765 = vrot.slane %v4763, 4
      %v4766 = vshll.u32 %v2048, 16
      %v4768 = vrot.slane %v4766, 5
      %v4769 = vor.u32 %v4765, %v4768
      %v4770 = vsel %vm1447, %v4760, %v4769
      %v4772 = vshrl.u32 %v2049, 16
      %v4774 = vrot.slane %v4772, 4
      %v4775 = vshll.u32 %v2049, 16
      %v4777 = vrot.slane %v4775, 5
      %v4778 = vor.u32 %v4774, %v4777
      %v4779 = vsel %vm1447, %v4769, %v4778
      %v4781 = vshrl.u32 %v2050, 16
      %v4783 = vrot.slane %v4781, 4
      %v4784 = vshll.u32 %v2050, 16
      %v4786 = vrot.slane %v4784, 5
      %v4787 = vor.u32 %v4783, %v4786
      %v4788 = vsel %vm1447, %v4778, %v4787
      %v4790 = vshrl.u32 %v2051, 16
      %v4792 = vrot.slane %v4790, 4
      %v4793 = vshll.u32 %v2051, 16
      %v4795 = vrot.slane %v4793, 5
      %v4796 = vor.u32 %v4792, %v4795
      %v4797 = vsel %vm1447, %v4787, %v4796
      %v4799 = vshrl.u32 %v2052, 16
      %v4801 = vrot.slane %v4799, 4
      %v4802 = vshll.u32 %v2052, 16
      %v4804 = vrot.slane %v4802, 5
      %v4805 = vor.u32 %v4801, %v4804
      %v4806 = vsel %vm1447, %v4796, %v4805
      %v4808 = vshrl.u32 %v2053, 16
      %v4810 = vrot.slane %v4808, 4
      %v4811 = vshll.u32 %v2053, 16
      %v4813 = vrot.slane %v4811, 5
      %v4814 = vor.u32 %v4810, %v4813
      %v4815 = vsel %vm1447, %v4805, %v4814
      %v4817 = vshrl.u32 %v2054, 16
      %v4819 = vrot.slane %v4817, 4
      %v4820 = vshll.u32 %v2054, 16
      %v4822 = vrot.slane %v4820, 5
      %v4823 = vor.u32 %v4819, %v4822
      %v4824 = vsel %vm1447, %v4814, %v4823
      %v4826 = vshrl.u32 %v2055, 16
      %v4828 = vrot.slane %v4826, 4
      %v4829 = vshll.u32 %v2055, 16
      %v4831 = vrot.slane %v4829, 5
      %v4832 = vor.u32 %v4828, %v4831
      %v4833 = vsel %vm1447, %v4823, %v4832
      %v4835 = vshrl.u32 %v2056, 16
      %v4837 = vrot.slane %v4835, 4
      %v4838 = vshll.u32 %v2056, 16
      %v4840 = vrot.slane %v4838, 5
      %v4841 = vor.u32 %v4837, %v4840
      %v4842 = vsel %vm1447, %v4832, %v4841
      %v4844 = vshrl.u32 %v2057, 16
      %v4846 = vrot.slane %v4844, 4
      %v4847 = vshll.u32 %v2057, 16
      %v4849 = vrot.slane %v4847, 5
      %v4850 = vor.u32 %v4846, %v4849
      %v4851 = vsel %vm1447, %v4841, %v4850
      %v4853 = vshrl.u32 %v2058, 16
      %v4855 = vrot.slane %v4853, 4
      %v4856 = vshll.u32 %v2058, 16
      %v4858 = vrot.slane %v4856, 5
      %v4859 = vor.u32 %v4855, %v4858
      %v4860 = vsel %vm1447, %v4850, %v4859
      %v4862 = vsel %vm2112, %v4725, 0
      %v4865 = vsel %vm2112, %v4734, 0
      %v4868 = vsel %vm2112, %v4743, 0
      %v4871 = vsel %vm2112, %v4752, 0
      %v4874 = vsel %vm2112, %v4761, 0
      %v4877 = vsel %vm2112, %v4770, 0
      %v4880 = vsel %vm2112, %v4779, 0
      %v4883 = vsel %vm2112, %v4788, 0
      %v4886 = vsel %vm2112, %v4797, 0
      %v4889 = vsel %vm2112, %v4806, 0
      %v4892 = vsel %vm2112, %v4815, 0
      %v4895 = vsel %vm2112, %v4824, 0
      %v4898 = vsel %vm2112, %v4833, 0
      %v4901 = vsel %vm2112, %v4842, 0
      %v4904 = vsel %vm2112, %v4851, 0
      %v4907 = vsel %vm2112, %v4860, 0
      %v4910 = vsel %vm2161, %v4708, 0
      %4912 = vmatprep.subr.bf16.mxu0 0
      %4913 = vmatpush1.bf16.msra.mxu0 %v4910
      %4914 = vmatprep.subr.bf16.mxu0 0
      %4915 = vmatpush1.bf16.msra.mxu0 0
      %4916 = vmatprep.subr.bf16.mxu0 0
      %4917 = vmatpush1.bf16.msra.mxu0 0
      %4918 = vmatprep.subr.bf16.mxu0 0
      %4919 = vmatpush1.bf16.msra.mxu0 0
      %4920 = vmatprep.subr.bf16.mxu0 0
      %4921 = vmatpush1.bf16.msra.mxu0 0
      %4922 = vmatprep.subr.bf16.mxu0 0
      %4923 = vmatpush1.bf16.msra.mxu0 0
      %4924 = vmatprep.subr.bf16.mxu0 0
      %4925 = vmatpush1.bf16.msra.mxu0 0
      %4926 = vmatprep.subr.bf16.mxu0 0
      %4927 = vmatpush1.bf16.msra.mxu0 0
      %4928 = vmatprep.subr.bf16.mxu0 0
      %4929 = vmatpush1.bf16.msra.mxu0 0
      %4930 = vmatprep.subr.bf16.mxu0 0
      %4931 = vmatpush1.bf16.msra.mxu0 0
      %4932 = vmatprep.subr.bf16.mxu0 0
      %4933 = vmatpush1.bf16.msra.mxu0 0
      %4934 = vmatprep.subr.bf16.mxu0 0
      %4935 = vmatpush1.bf16.msra.mxu0 0
      %4936 = vmatprep.subr.bf16.mxu0 0
      %4937 = vmatpush1.bf16.msra.mxu0 0
      %4938 = vmatprep.subr.bf16.mxu0 0
      %4939 = vmatpush1.bf16.msra.mxu0 0
      %4940 = vmatprep.subr.bf16.mxu0 0
      %4941 = vmatpush1.bf16.msra.mxu0 0
      %4942 = vmatprep.subr.bf16.mxu0 0
      %4943 = vmatpush1.bf16.msra.mxu0 0
      %4944 = vmatprep.mubr.bf16.mxu0 0
      %4945 = vmatmul.mubr.bf16.gmra.mrb[0].mxu0 %v4862
      %v4946 = vpop.f32.mrb[0].mxu0
      %v4947 = vadd.f32 0.0, %v4946
      %v4948 = vpop.f32.mrb[0].mxu0
      %v4949 = vpop.f32.mrb[0].mxu0
      %v4950 = vadd.f32 0.0, %v4949
      %v4951 = vpop.f32.mrb[0].mxu0
      %4952 = vmatprep.mubr.bf16.mxu0 0
      %4953 = vmatmul.mubr.bf16.gmra.mrb[0].mxu0 %v4865
      %v4954 = vpop.f32.mrb[0].mxu0
      %v4955 = vadd.f32 0.0, %v4954
      %v4956 = vpop.f32.mrb[0].mxu0
      %v4957 = vpop.f32.mrb[0].mxu0
      %v4958 = vadd.f32 0.0, %v4957
      %v4959 = vpop.f32.mrb[0].mxu0
      %4960 = vmatprep.mubr.bf16.mxu0 0
      %4961 = vmatmul.mubr.bf16.gmra.mrb[0].mxu0 %v4868
      %v4962 = vpop.f32.mrb[0].mxu0
      %v4963 = vadd.f32 0.0, %v4962
      %v4964 = vpop.f32.mrb[0].mxu0
      %v4965 = vpop.f32.mrb[0].mxu0
      %v4966 = vadd.f32 0.0, %v4965
      %v4967 = vpop.f32.mrb[0].mxu0
      %4968 = vmatprep.mubr.bf16.mxu0 0
      %4969 = vmatmul.mubr.bf16.gmra.mrb[0].mxu0 %v4871
      %v4970 = vpop.f32.mrb[0].mxu0
      %v4971 = vadd.f32 0.0, %v4970
      %v4972 = vpop.f32.mrb[0].mxu0
      %v4973 = vpop.f32.mrb[0].mxu0
      %v4974 = vadd.f32 0.0, %v4973
      %v4975 = vpop.f32.mrb[0].mxu0
      %4976 = vmatprep.mubr.bf16.mxu0 0
      %4977 = vmatmul.mubr.bf16.gmra.mrb[0].mxu0 %v4874
      %v4978 = vpop.f32.mrb[0].mxu0
      %v4979 = vadd.f32 0.0, %v4978
      %v4980 = vpop.f32.mrb[0].mxu0
      %v4981 = vpop.f32.mrb[0].mxu0
      %v4982 = vadd.f32 0.0, %v4981
      %v4983 = vpop.f32.mrb[0].mxu0
      %4984 = vmatprep.mubr.bf16.mxu0 0
      %4985 = vmatmul.mubr.bf16.gmra.mrb[0].mxu0 %v4877
      %v4986 = vpop.f32.mrb[0].mxu0
      %v4987 = vadd.f32 0.0, %v4986
      %v4988 = vpop.f32.mrb[0].mxu0
      %v4989 = vpop.f32.mrb[0].mxu0
      %v4990 = vadd.f32 0.0, %v4989
      %v4991 = vpop.f32.mrb[0].mxu0
      %4992 = vmatprep.mubr.bf16.mxu0 0
      %4993 = vmatmul.mubr.bf16.gmra.mrb[0].mxu0 %v4880
      %v4994 = vpop.f32.mrb[0].mxu0
      %v4995 = vadd.f32 0.0, %v4994
      %v4996 = vpop.f32.mrb[0].mxu0
      %v4997 = vpop.f32.mrb[0].mxu0
      %v4998 = vadd.f32 0.0, %v4997
      %v4999 = vpop.f32.mrb[0].mxu0
      %5000 = vmatprep.mubr.bf16.mxu0 0
      %5001 = vmatmul.mubr.bf16.gmra.mrb[0].mxu0 %v4883
      %v5002 = vpop.f32.mrb[0].mxu0
      %v5003 = vadd.f32 0.0, %v5002
      %v5004 = vpop.f32.mrb[0].mxu0
      %v5005 = vpop.f32.mrb[0].mxu0
      %v5006 = vadd.f32 0.0, %v5005
      %v5007 = vpop.f32.mrb[0].mxu0
      %5008 = vmatprep.mubr.bf16.mxu0 0
      %5009 = vmatmul.mubr.bf16.gmra.mrb[0].mxu0 %v4886
      %v5010 = vpop.f32.mrb[0].mxu0
      %v5011 = vadd.f32 0.0, %v5010
      %v5012 = vpop.f32.mrb[0].mxu0
      %v5013 = vpop.f32.mrb[0].mxu0
      %v5014 = vadd.f32 0.0, %v5013
      %v5015 = vpop.f32.mrb[0].mxu0
      %5016 = vmatprep.mubr.bf16.mxu0 0
      %5017 = vmatmul.mubr.bf16.gmra.mrb[0].mxu0 %v4889
      %v5018 = vpop.f32.mrb[0].mxu0
      %v5019 = vadd.f32 0.0, %v5018
      %v5020 = vpop.f32.mrb[0].mxu0
      %v5021 = vpop.f32.mrb[0].mxu0
      %v5022 = vadd.f32 0.0, %v5021
      %v5023 = vpop.f32.mrb[0].mxu0
      %5024 = vmatprep.mubr.bf16.mxu0 0
      %5025 = vmatmul.mubr.bf16.gmra.mrb[0].mxu0 %v4892
      %v5026 = vpop.f32.mrb[0].mxu0
      %v5027 = vadd.f32 0.0, %v5026
      %v5028 = vpop.f32.mrb[0].mxu0
      %v5029 = vpop.f32.mrb[0].mxu0
      %v5030 = vadd.f32 0.0, %v5029
      %v5031 = vpop.f32.mrb[0].mxu0
      %5032 = vmatprep.mubr.bf16.mxu0 0
      %5033 = vmatmul.mubr.bf16.gmra.mrb[0].mxu0 %v4895
      %v5034 = vpop.f32.mrb[0].mxu0
      %v5035 = vadd.f32 0.0, %v5034
      %v5036 = vpop.f32.mrb[0].mxu0
      %v5037 = vpop.f32.mrb[0].mxu0
      %v5038 = vadd.f32 0.0, %v5037
      %v5039 = vpop.f32.mrb[0].mxu0
      %5040 = vmatprep.mubr.bf16.mxu0 0
      %5041 = vmatmul.mubr.bf16.gmra.mrb[0].mxu0 %v4898
      %v5042 = vpop.f32.mrb[0].mxu0
      %v5043 = vadd.f32 0.0, %v5042
      %v5044 = vpop.f32.mrb[0].mxu0
      %v5045 = vpop.f32.mrb[0].mxu0
      %v5046 = vadd.f32 0.0, %v5045
      %v5047 = vpop.f32.mrb[0].mxu0
      %5048 = vmatprep.mubr.bf16.mxu0 0
      %5049 = vmatmul.mubr.bf16.gmra.mrb[0].mxu0 %v4901
      %v5050 = vpop.f32.mrb[0].mxu0
      %v5051 = vadd.f32 0.0, %v5050
      %v5052 = vpop.f32.mrb[0].mxu0
      %v5053 = vpop.f32.mrb[0].mxu0
      %v5054 = vadd.f32 0.0, %v5053
      %v5055 = vpop.f32.mrb[0].mxu0
      %5056 = vmatprep.mubr.bf16.mxu0 0
      %5057 = vmatmul.mubr.bf16.gmra.mrb[0].mxu0 %v4904
      %v5058 = vpop.f32.mrb[0].mxu0
      %v5059 = vadd.f32 0.0, %v5058
      %v5060 = vpop.f32.mrb[0].mxu0
      %v5061 = vpop.f32.mrb[0].mxu0
      %v5062 = vadd.f32 0.0, %v5061
      %v5063 = vpop.f32.mrb[0].mxu0
      %5064 = vmatprep.mubr.bf16.mxu0 0
      %5065 = vmatmul.mubr.bf16.gmra.mrb[0].mxu0 %v4907
      %v5066 = vpop.f32.mrb[0].mxu0
      %v5067 = vadd.f32 0.0, %v5066
      %v5068 = vpop.f32.mrb[0].mxu0
      %v5069 = vpop.f32.mrb[0].mxu0
      %v5070 = vadd.f32 0.0, %v5069
      %v5071 = vpop.f32.mrb[0].mxu0
      %5072 = vdwg.mxu0
      %v5073 = vadd.f32 %v4676, %v4947
      %v5074 = vadd.f32 %v4677, %v4950
      %v5075 = vadd.f32 %v4678, %v4955
      %v5076 = vadd.f32 %v4679, %v4958
      %v5077 = vadd.f32 %v4680, %v4963
      %v5078 = vadd.f32 %v4681, %v4966
      %v5079 = vadd.f32 %v4682, %v4971
      %v5080 = vadd.f32 %v4683, %v4974
      %v5081 = vadd.f32 %v4684, %v4979
      %v5082 = vadd.f32 %v4685, %v4982
      %v5083 = vadd.f32 %v4686, %v4987
      %v5084 = vadd.f32 %v4687, %v4990
      %v5085 = vadd.f32 %v4688, %v4995
      %v5086 = vadd.f32 %v4689, %v4998
      %v5087 = vadd.f32 %v4690, %v5003
      %v5088 = vadd.f32 %v4691, %v5006
      %v5089 = vadd.f32 %v4692, %v5011
      %v5090 = vadd.f32 %v4693, %v5014
      %v5091 = vadd.f32 %v4694, %v5019
      %v5092 = vadd.f32 %v4695, %v5022
      %v5093 = vadd.f32 %v4696, %v5027
      %v5094 = vadd.f32 %v4697, %v5030
      %v5095 = vadd.f32 %v4698, %v5035
      %v5096 = vadd.f32 %v4699, %v5038
      %v5097 = vadd.f32 %v4700, %v5043
      %v5098 = vadd.f32 %v4701, %v5046
      %v5099 = vadd.f32 %v4702, %v5051
      %v5100 = vadd.f32 %v4703, %v5054
      %v5101 = vadd.f32 %v4704, %v5059
      %v5102 = vadd.f32 %v4705, %v5062
      %v5103 = vadd.f32 %v4706, %v5067
      %v5104 = vadd.f32 %v4707, %v5070
      %v5105 = vld [vmem:[%s365] sm:$0x1]
      %v5107 = vlaneseq
      %v5108 = vshrl.u32 %v5107, 7
      %v5109 = vsub.s32 0, %v5108
      %v5110 = vrot.slane %v5105, %v5109
      %v5112 = vadd.f32 %v5073, %v5110
      %v5113 = vadd.f32 %v5074, %v5110
      %v5114 = vadd.f32 %v5075, %v5110
      %v5115 = vadd.f32 %v5076, %v5110
      %v5116 = vadd.f32 %v5077, %v5110
      %v5117 = vadd.f32 %v5078, %v5110
      %v5118 = vadd.f32 %v5079, %v5110
      %v5119 = vadd.f32 %v5080, %v5110
      %v5120 = vadd.f32 %v5081, %v5110
      %v5121 = vadd.f32 %v5082, %v5110
      %v5122 = vadd.f32 %v5083, %v5110
      %v5123 = vadd.f32 %v5084, %v5110
      %v5124 = vadd.f32 %v5085, %v5110
      %v5125 = vadd.f32 %v5086, %v5110
      %v5126 = vadd.f32 %v5087, %v5110
      %v5127 = vadd.f32 %v5088, %v5110
      %v5128 = vadd.f32 %v5089, %v5110
      %v5129 = vadd.f32 %v5090, %v5110
      %v5130 = vadd.f32 %v5091, %v5110
      %v5131 = vadd.f32 %v5092, %v5110
      %v5132 = vadd.f32 %v5093, %v5110
      %v5133 = vadd.f32 %v5094, %v5110
      %v5134 = vadd.f32 %v5095, %v5110
      %v5135 = vadd.f32 %v5096, %v5110
      %v5136 = vadd.f32 %v5097, %v5110
      %v5137 = vadd.f32 %v5098, %v5110
      %v5138 = vadd.f32 %v5099, %v5110
      %v5139 = vadd.f32 %v5100, %v5110
      %v5140 = vadd.f32 %v5101, %v5110
      %v5141 = vadd.f32 %v5102, %v5110
      %v5142 = vadd.f32 %v5103, %v5110
      %v5143 = vadd.f32 %v5104, %v5110
      %5144 = vmatprep.subr.mxu0 0.0
      %5145 = vmatpush1.msra.mxu0 %v5112
      %5146 = vmatprep.subr.mxu0 0.0
      %5147 = vmatpush1.msra.mxu0 %v5113
      %5148 = vmatprep.subr.mxu0 0.0
      %5149 = vmatpush1.msra.mxu0 %v5114
      %5150 = vmatprep.subr.mxu0 0.0
      %5151 = vmatpush1.msra.mxu0 %v5115
      %5152 = vmatprep.subr.mxu0 0.0
      %5153 = vmatpush1.msra.mxu0 %v5116
      %5154 = vmatprep.subr.mxu0 0.0
      %5155 = vmatpush1.msra.mxu0 %v5117
      %5156 = vmatprep.subr.mxu0 0.0
      %5157 = vmatpush1.msra.mxu0 %v5118
      %5158 = vmatprep.subr.mxu0 0.0
      %5159 = vmatpush1.msra.mxu0 %v5119
      %5160 = vmatprep.subr.mxu0 0.0
      %5161 = vmatpush1.msra.mxu0 %v5120
      %5162 = vmatprep.subr.mxu0 0.0
      %5163 = vmatpush1.msra.mxu0 %v5121
      %5164 = vmatprep.subr.mxu0 0.0
      %5165 = vmatpush1.msra.mxu0 %v5122
      %5166 = vmatprep.subr.mxu0 0.0
      %5167 = vmatpush1.msra.mxu0 %v5123
      %5168 = vmatprep.subr.mxu0 0.0
      %5169 = vmatpush1.msra.mxu0 %v5124
      %5170 = vmatprep.subr.mxu0 0.0
      %5171 = vmatpush1.msra.mxu0 %v5125
      %5172 = vmatprep.subr.mxu0 0.0
      %5173 = vmatpush1.msra.mxu0 %v5126
      %5174 = vmatprep.subr.mxu0 0.0
      %5175 = vmatpush1.msra.mxu0 %v5127
      %5176 = vmatprep.subr.mxu0 0.0
      %5177 = vmatpush1.msra.mxu0 %v5128
      %5178 = vmatprep.subr.mxu0 0.0
      %5179 = vmatpush1.msra.mxu0 %v5129
      %5180 = vmatprep.subr.mxu0 0.0
      %5181 = vmatpush1.msra.mxu0 %v5130
      %5182 = vmatprep.subr.mxu0 0.0
      %5183 = vmatpush1.msra.mxu0 %v5131
      %5184 = vmatprep.subr.mxu0 0.0
      %5185 = vmatpush1.msra.mxu0 %v5132
      %5186 = vmatprep.subr.mxu0 0.0
      %5187 = vmatpush1.msra.mxu0 %v5133
      %5188 = vmatprep.subr.mxu0 0.0
      %5189 = vmatpush1.msra.mxu0 %v5134
      %5190 = vmatprep.subr.mxu0 0.0
      %5191 = vmatpush1.msra.mxu0 %v5135
      %5192 = vmatprep.subr.mxu0 0.0
      %5193 = vmatpush1.msra.mxu0 %v5136
      %5194 = vmatprep.subr.mxu0 0.0
      %5195 = vmatpush1.msra.mxu0 %v5137
      %5196 = vmatprep.subr.mxu0 0.0
      %5197 = vmatpush1.msra.mxu0 %v5138
      %5198 = vmatprep.subr.mxu0 0.0
      %5199 = vmatpush1.msra.mxu0 %v5139
      %5200 = vmatprep.subr.mxu0 0.0
      %5201 = vmatpush1.msra.mxu0 %v5140
      %5202 = vmatprep.subr.mxu0 0.0
      %5203 = vmatpush1.msra.mxu0 %v5141
      %5204 = vmatprep.subr.mxu0 0.0
      %5205 = vmatpush1.msra.mxu0 %v5142
      %5206 = vmatprep.subr.mxu0 0.0
      %5207 = vmatpush1.msra.mxu0 %v5143
      %5208 = vmatprep.mubr.f32.mxu0 1.0
      %5209 = vmatmul.mubr.f32.gmra.mrb[0].mxu0 1.0
      %v5210 = vpop.f32.mrb[0].mxu0
      %v5211 = vadd.f32 0.0, %v5210
      %v5212 = vpop.f32.mrb[0].mxu0
      %5213 = vdwg.mxu0
      %vm5214 = vcmask 57344
      %5215 = vst.msk [vmem:[%s387] sm:$0x1] %vm5214, %v5211
      %v5216 = vmul.f32 %v5112, %v5112
      %v5217 = vmul.f32 %v5113, %v5113
      %v5218 = vmul.f32 %v5114, %v5114
      %v5219 = vmul.f32 %v5115, %v5115
      %v5220 = vmul.f32 %v5116, %v5116
      %v5221 = vmul.f32 %v5117, %v5117
      %v5222 = vmul.f32 %v5118, %v5118
      %v5223 = vmul.f32 %v5119, %v5119
      %v5224 = vmul.f32 %v5120, %v5120
      %v5225 = vmul.f32 %v5121, %v5121
      %v5226 = vmul.f32 %v5122, %v5122
      %v5227 = vmul.f32 %v5123, %v5123
      %v5228 = vmul.f32 %v5124, %v5124
      %v5229 = vmul.f32 %v5125, %v5125
      %v5230 = vmul.f32 %v5126, %v5126
      %v5231 = vmul.f32 %v5127, %v5127
      %v5232 = vmul.f32 %v5128, %v5128
      %v5233 = vmul.f32 %v5129, %v5129
      %v5234 = vmul.f32 %v5130, %v5130
      %v5235 = vmul.f32 %v5131, %v5131
      %v5236 = vmul.f32 %v5132, %v5132
      %v5237 = vmul.f32 %v5133, %v5133
      %v5238 = vmul.f32 %v5134, %v5134
      %v5239 = vmul.f32 %v5135, %v5135
      %v5240 = vmul.f32 %v5136, %v5136
      %v5241 = vmul.f32 %v5137, %v5137
      %v5242 = vmul.f32 %v5138, %v5138
      %v5243 = vmul.f32 %v5139, %v5139
      %v5244 = vmul.f32 %v5140, %v5140
      %v5245 = vmul.f32 %v5141, %v5141
      %v5246 = vmul.f32 %v5142, %v5142
      %v5247 = vmul.f32 %v5143, %v5143
      %5248 = vmatprep.subr.mxu0 0.0
      %5249 = vmatpush1.msra.mxu0 %v5216
      %5250 = vmatprep.subr.mxu0 0.0
      %5251 = vmatpush1.msra.mxu0 %v5217
      %5252 = vmatprep.subr.mxu0 0.0
      %5253 = vmatpush1.msra.mxu0 %v5218
      %5254 = vmatprep.subr.mxu0 0.0
      %5255 = vmatpush1.msra.mxu0 %v5219
      %5256 = vmatprep.subr.mxu0 0.0
      %5257 = vmatpush1.msra.mxu0 %v5220
      %5258 = vmatprep.subr.mxu0 0.0
      %5259 = vmatpush1.msra.mxu0 %v5221
      %5260 = vmatprep.subr.mxu0 0.0
      %5261 = vmatpush1.msra.mxu0 %v5222
      %5262 = vmatprep.subr.mxu0 0.0
      %5263 = vmatpush1.msra.mxu0 %v5223
      %5264 = vmatprep.subr.mxu0 0.0
      %5265 = vmatpush1.msra.mxu0 %v5224
      %5266 = vmatprep.subr.mxu0 0.0
      %5267 = vmatpush1.msra.mxu0 %v5225
      %5268 = vmatprep.subr.mxu0 0.0
      %5269 = vmatpush1.msra.mxu0 %v5226
      %5270 = vmatprep.subr.mxu0 0.0
      %5271 = vmatpush1.msra.mxu0 %v5227
      %5272 = vmatprep.subr.mxu0 0.0
      %5273 = vmatpush1.msra.mxu0 %v5228
      %5274 = vmatprep.subr.mxu0 0.0
      %5275 = vmatpush1.msra.mxu0 %v5229
      %5276 = vmatprep.subr.mxu0 0.0
      %5277 = vmatpush1.msra.mxu0 %v5230
      %5278 = vmatprep.subr.mxu0 0.0
      %5279 = vmatpush1.msra.mxu0 %v5231
      %5280 = vmatprep.subr.mxu0 0.0
      %5281 = vmatpush1.msra.mxu0 %v5232
      %5282 = vmatprep.subr.mxu0 0.0
      %5283 = vmatpush1.msra.mxu0 %v5233
      %5284 = vmatprep.subr.mxu0 0.0
      %5285 = vmatpush1.msra.mxu0 %v5234
      %5286 = vmatprep.subr.mxu0 0.0
      %5287 = vmatpush1.msra.mxu0 %v5235
      %5288 = vmatprep.subr.mxu0 0.0
      %5289 = vmatpush1.msra.mxu0 %v5236
      %5290 = vmatprep.subr.mxu0 0.0
      %5291 = vmatpush1.msra.mxu0 %v5237
      %5292 = vmatprep.subr.mxu0 0.0
      %5293 = vmatpush1.msra.mxu0 %v5238
      %5294 = vmatprep.subr.mxu0 0.0
      %5295 = vmatpush1.msra.mxu0 %v5239
      %5296 = vmatprep.subr.mxu0 0.0
      %5297 = vmatpush1.msra.mxu0 %v5240
      %5298 = vmatprep.subr.mxu0 0.0
      %5299 = vmatpush1.msra.mxu0 %v5241
      %5300 = vmatprep.subr.mxu0 0.0
      %5301 = vmatpush1.msra.mxu0 %v5242
      %5302 = vmatprep.subr.mxu0 0.0
      %5303 = vmatpush1.msra.mxu0 %v5243
      %5304 = vmatprep.subr.mxu0 0.0
      %5305 = vmatpush1.msra.mxu0 %v5244
      %5306 = vmatprep.subr.mxu0 0.0
      %5307 = vmatpush1.msra.mxu0 %v5245
      %5308 = vmatprep.subr.mxu0 0.0
      %5309 = vmatpush1.msra.mxu0 %v5246
      %5310 = vmatprep.subr.mxu0 0.0
      %5311 = vmatpush1.msra.mxu0 %v5247
      %5312 = vmatprep.mubr.f32.mxu0 1.0
      %5313 = vmatmul.mubr.f32.gmra.mrb[0].mxu0 1.0
      %v5314 = vpop.f32.mrb[0].mxu0
      %v5315 = vadd.f32 0.0, %v5314
      %v5316 = vpop.f32.mrb[0].mxu0
      %5317 = vdwg.mxu0
      %5318 = vst.msk [vmem:[%s396] sm:$0x1] %vm5214, %v5315
      %v5319 = vpack.c.bf16 %v5113, %v5112
      %v5320 = vpack.c.bf16 %v5115, %v5114
      %v5321 = vpack.c.bf16 %v5117, %v5116
      %v5322 = vpack.c.bf16 %v5119, %v5118
      %v5323 = vpack.c.bf16 %v5121, %v5120
      %v5324 = vpack.c.bf16 %v5123, %v5122
      %v5325 = vpack.c.bf16 %v5125, %v5124
      %v5326 = vpack.c.bf16 %v5127, %v5126
      %v5327 = vpack.c.bf16 %v5129, %v5128
      %v5328 = vpack.c.bf16 %v5131, %v5130
      %v5329 = vpack.c.bf16 %v5133, %v5132
      %v5330 = vpack.c.bf16 %v5135, %v5134
      %v5331 = vpack.c.bf16 %v5137, %v5136
      %v5332 = vpack.c.bf16 %v5139, %v5138
      %v5333 = vpack.c.bf16 %v5141, %v5140
      %v5334 = vpack.c.bf16 %v5143, %v5142
      %v5351 = vunpack.c.l.b16 %v5319
      %v5352 = vunpack.c.h.b16 %v5319
      %v5353 = vunpack.c.l.b16 %v5320
      %v5354 = vunpack.c.h.b16 %v5320
      %v5355 = vunpack.c.l.b16 %v5321
      %v5356 = vunpack.c.h.b16 %v5321
      %v5357 = vunpack.c.l.b16 %v5322
      %v5358 = vunpack.c.h.b16 %v5322
      %v5359 = vunpack.c.l.b16 %v5323
      %v5360 = vunpack.c.h.b16 %v5323
      %v5361 = vunpack.c.l.b16 %v5324
      %v5362 = vunpack.c.h.b16 %v5324
      %v5363 = vunpack.c.l.b16 %v5325
      %v5364 = vunpack.c.h.b16 %v5325
      %v5365 = vunpack.c.l.b16 %v5326
      %v5366 = vunpack.c.h.b16 %v5326
      %v5367 = vunpack.c.l.b16 %v5327
      %v5368 = vunpack.c.h.b16 %v5327
      %v5369 = vunpack.c.l.b16 %v5328
      %v5370 = vunpack.c.h.b16 %v5328
      %v5371 = vunpack.c.l.b16 %v5329
      %v5372 = vunpack.c.h.b16 %v5329
      %v5373 = vunpack.c.l.b16 %v5330
      %v5374 = vunpack.c.h.b16 %v5330
      %v5375 = vunpack.c.l.b16 %v5331
      %v5376 = vunpack.c.h.b16 %v5331
      %v5377 = vunpack.c.l.b16 %v5332
      %v5378 = vunpack.c.h.b16 %v5332
      %v5379 = vunpack.c.l.b16 %v5333
      %v5380 = vunpack.c.h.b16 %v5333
      %v5381 = vunpack.c.l.b16 %v5334
      %v5382 = vunpack.c.h.b16 %v5334
      %v5383 = vpack.c.b16 %v5351, %v5351
      %v5384 = vpack.c.b16 %v5352, %v5352
      %v5385 = vpack.c.b16 %v5353, %v5353
      %v5386 = vpack.c.b16 %v5354, %v5354
      %v5387 = vpack.c.b16 %v5355, %v5355
      %v5388 = vpack.c.b16 %v5356, %v5356
      %v5389 = vpack.c.b16 %v5357, %v5357
      %v5390 = vpack.c.b16 %v5358, %v5358
      %v5391 = vpack.c.b16 %v5359, %v5359
      %v5392 = vpack.c.b16 %v5360, %v5360
      %v5393 = vpack.c.b16 %v5361, %v5361
      %v5394 = vpack.c.b16 %v5362, %v5362
      %v5395 = vpack.c.b16 %v5363, %v5363
      %v5396 = vpack.c.b16 %v5364, %v5364
      %v5397 = vpack.c.b16 %v5365, %v5365
      %v5398 = vpack.c.b16 %v5366, %v5366
      %v5399 = vpack.c.b16 %v5367, %v5367
      %v5400 = vpack.c.b16 %v5368, %v5368
      %v5401 = vpack.c.b16 %v5369, %v5369
      %v5402 = vpack.c.b16 %v5370, %v5370
      %v5403 = vpack.c.b16 %v5371, %v5371
      %v5404 = vpack.c.b16 %v5372, %v5372
      %v5405 = vpack.c.b16 %v5373, %v5373
      %v5406 = vpack.c.b16 %v5374, %v5374
      %v5407 = vpack.c.b16 %v5375, %v5375
      %v5408 = vpack.c.b16 %v5376, %v5376
      %v5409 = vpack.c.b16 %v5377, %v5377
      %v5410 = vpack.c.b16 %v5378, %v5378
      %v5411 = vpack.c.b16 %v5379, %v5379
      %v5412 = vpack.c.b16 %v5380, %v5380
      %v5413 = vpack.c.b16 %v5381, %v5381
      %v5414 = vpack.c.b16 %v5382, %v5382
      %vm5447 = vcmask 60416
      %5448 = vst.msk [vmem:[%s377] sm:$0xf] %vm5447, %v5383
      %5449 = vst.msk [vmem:[%s377 + $0x4] sm:$0xf] %vm5447, %v5384
      %5450 = vst.msk [vmem:[%s377 + $0x8] sm:$0xf] %vm5447, %v5385
      %5451 = vst.msk [vmem:[%s377 + $0xc] sm:$0xf] %vm5447, %v5386
      %5452 = vst.msk [vmem:[%s377 + $0x10] sm:$0xf] %vm5447, %v5387
      %5453 = vst.msk [vmem:[%s377 + $0x14] sm:$0xf] %vm5447, %v5388
      %5454 = vst.msk [vmem:[%s377 + $0x18] sm:$0xf] %vm5447, %v5389
      %5455 = vst.msk [vmem:[%s377 + $0x1c] sm:$0xf] %vm5447, %v5390
      %5456 = vst.msk [vmem:[%s377 + $0x20] sm:$0xf] %vm5447, %v5391
      %5457 = vst.msk [vmem:[%s377 + $0x24] sm:$0xf] %vm5447, %v5392
      %5458 = vst.msk [vmem:[%s377 + $0x28] sm:$0xf] %vm5447, %v5393
      %5459 = vst.msk [vmem:[%s377 + $0x2c] sm:$0xf] %vm5447, %v5394
      %5460 = vst.msk [vmem:[%s377 + $0x30] sm:$0xf] %vm5447, %v5395
      %5461 = vst.msk [vmem:[%s377 + $0x34] sm:$0xf] %vm5447, %v5396
      %5462 = vst.msk [vmem:[%s377 + $0x38] sm:$0xf] %vm5447, %v5397
      %5463 = vst.msk [vmem:[%s377 + $0x3c] sm:$0xf] %vm5447, %v5398
      %5464 = vst.msk [vmem:[%s377 + $0x40] sm:$0xf] %vm5447, %v5399
      %5465 = vst.msk [vmem:[%s377 + $0x44] sm:$0xf] %vm5447, %v5400
      %5466 = vst.msk [vmem:[%s377 + $0x48] sm:$0xf] %vm5447, %v5401
      %5467 = vst.msk [vmem:[%s377 + $0x4c] sm:$0xf] %vm5447, %v5402
      %5468 = vst.msk [vmem:[%s377 + $0x50] sm:$0xf] %vm5447, %v5403
      %5469 = vst.msk [vmem:[%s377 + $0x54] sm:$0xf] %vm5447, %v5404
      %5470 = vst.msk [vmem:[%s377 + $0x58] sm:$0xf] %vm5447, %v5405
      %5471 = vst.msk [vmem:[%s377 + $0x5c] sm:$0xf] %vm5447, %v5406
      %5472 = vst.msk [vmem:[%s377 + $0x60] sm:$0xf] %vm5447, %v5407
      %5473 = vst.msk [vmem:[%s377 + $0x64] sm:$0xf] %vm5447, %v5408
      %5474 = vst.msk [vmem:[%s377 + $0x68] sm:$0xf] %vm5447, %v5409
      %5475 = vst.msk [vmem:[%s377 + $0x6c] sm:$0xf] %vm5447, %v5410
      %5476 = vst.msk [vmem:[%s377 + $0x70] sm:$0xf] %vm5447, %v5411
      %5477 = vst.msk [vmem:[%s377 + $0x74] sm:$0xf] %vm5447, %v5412
      %5478 = vst.msk [vmem:[%s377 + $0x78] sm:$0xf] %vm5447, %v5413
      %5479 = vst.msk [vmem:[%s377 + $0x7c] sm:$0xf] %vm5447, %v5414
      %s5480 = smul.u32 32, %s25
      %p5481 = scmp.lt.s32.totalorder %s24, 1
      %s5482 = scalar_select %p5481, %s24, 1
      %p5483 = scmp.lt.s32.totalorder %s5480, 31
      %s5484 = scalar_select %p5483, %s5480, 31
      %p5485 = scmp.lt.s32.totalorder %s26, 0
      %s5486 = scalar_select %p5485, %s26, 0
      %s5487 = sadd.s32 %s5486, %s5484
      %s5488 = smul.addr %s5482, 32
      %s5489 = sadd.s32 %s5487, %s5488
      %s5490 = smul.addr %s5489, 4
      %s5491 = scalar_lea.vmem %s5, %s5490
      %p5492 = scmp.lt.s32.totalorder %s24, 1
      %s5493 = scalar_select %p5492, %s24, 1
      %p5494 = scmp.lt.s32.totalorder %s25, 0
      %s5495 = scalar_select %p5494, %s25, 0
      %p5496 = scmp.lt.s32.totalorder %s26, 0
      %s5497 = scalar_select %p5496, %s26, 0
      %s5498 = sadd.s32 %s5497, %s5495
      %s5499 = sadd.s32 %s5498, %s5493
      %s5500 = scalar_lea.vmem %s6, %s5499
      %p5501 = scmp.lt.s32.totalorder %s24, 1
      %s5502 = scalar_select %p5501, %s24, 1
      %p5503 = scmp.lt.s32.totalorder %s25, 0
      %s5504 = scalar_select %p5503, %s25, 0
      %p5505 = scmp.lt.s32.totalorder %s26, 0
      %s5506 = scalar_select %p5505, %s26, 0
      %s5507 = sadd.s32 %s5506, %s5504
      %s5508 = sadd.s32 %s5507, %s5502
      %s5509 = scalar_lea.vmem %s7, %s5508
      // Predicated region
      $region61: #{double_conv.4} parent=39 // pred_check
        %p5510 = pneg %p180
      $region62: #{double_conv.4} parent=39 // pred_check_branch
        %5512 = sbr.rel (%p5510) target = $region64
      $region63: #{double_conv.4} parent=39 // pred_region
        %s5513 = smul.u32 32, %s25
      $region64: #{double_conv.4} parent=39 // pred_fallthru
        _
      // Predicated region
      $region65: #{double_conv.4} parent=39 // pred_check
        %p5514 = pneg %p210
      $region66: #{double_conv.4} parent=39 // pred_check_branch
        %5516 = sbr.rel (%p5514) target = $region68
      $region67: #{double_conv.4} parent=39 // pred_region
        _
      $region68: #{double_conv.4} parent=39 // pred_fallthru
        _
      // Predicated region
      $region69: #{double_conv.4} parent=39 // pred_check
        %p5517 = pneg %p240
      $region70: #{double_conv.4} parent=39 // pred_check_branch
        %5519 = sbr.rel (%p5517) target = $region72
      $region71: #{double_conv.4} parent=39 // pred_region
        _
      $region72: #{double_conv.4} parent=39 // pred_fallthru
        _
    $region40: #{double_conv.4} parent=5 // pred_fallthru
      _
    %p5520 = scmp.le.s32.totalorder 2, %s14
    // Predicated region
    $region73: #{double_conv.4} parent=5 // pred_check
      %p5521 = pneg %p5520
    $region74: #{double_conv.4} parent=5 // pred_check_branch
      %5523 = sbr.rel (%p5521) target = $region76
    $region75: #{double_conv.4} parent=5 // pred_region
      %s5524 = ssub.s32 %s14, 2
      // Predicated region
      $region77: #{double_conv.4} parent=75 // pred_check
        %p5525 = pneg %p186
      $region78: #{double_conv.4} parent=75 // pred_check_branch
        %5527 = sbr.rel (%p5525) target = $region80
      $region79: #{double_conv.4} parent=75 // pred_region
        %s5528 = smul.u32 32, %s28
        %p5529 = scmp.lt.s32.totalorder %s27, 1
        %s5530 = scalar_select %p5529, %s27, 1
        %p5531 = scmp.lt.s32.totalorder %s5528, 31
        %s5532 = scalar_select %p5531, %s5528, 31
        %p5533 = scmp.lt.s32.totalorder %s29, 0
        %s5534 = scalar_select %p5533, %s29, 0
        %s5535 = sadd.s32 %s5534, %s5532
        %s5536 = smul.addr %s5530, 32
        %s5537 = sadd.s32 %s5535, %s5536
        %s5538 = smul.addr %s5537, 4
        %s5539 = scalar_lea.vmem %s5, %s5538
      $region80: #{double_conv.4} parent=75 // pred_fallthru
        _
      // Predicated region
      $region81: #{double_conv.4} parent=75 // pred_check
        %p5540 = pneg %p216
      $region82: #{double_conv.4} parent=75 // pred_check_branch
        %5542 = sbr.rel (%p5540) target = $region84
      $region83: #{double_conv.4} parent=75 // pred_region
        %p5543 = scmp.lt.s32.totalorder %s27, 1
        %s5544 = scalar_select %p5543, %s27, 1
        %p5545 = scmp.lt.s32.totalorder %s28, 0
        %s5546 = scalar_select %p5545, %s28, 0
        %p5547 = scmp.lt.s32.totalorder %s29, 0
        %s5548 = scalar_select %p5547, %s29, 0
        %s5549 = sadd.s32 %s5548, %s5546
        %s5550 = sadd.s32 %s5549, %s5544
        %s5551 = scalar_lea.vmem %s6, %s5550
      $region84: #{double_conv.4} parent=75 // pred_fallthru
        _
      // Predicated region
      $region85: #{double_conv.4} parent=75 // pred_check
        %p5552 = pneg %p246
      $region86: #{double_conv.4} parent=75 // pred_check_branch
        %5554 = sbr.rel (%p5552) target = $region88
      $region87: #{double_conv.4} parent=75 // pred_region
        %p5555 = scmp.lt.s32.totalorder %s27, 1
        %s5556 = scalar_select %p5555, %s27, 1
        %p5557 = scmp.lt.s32.totalorder %s28, 0
        %s5558 = scalar_select %p5557, %s28, 0
        %p5559 = scmp.lt.s32.totalorder %s29, 0
        %s5560 = scalar_select %p5559, %s29, 0
        %s5561 = sadd.s32 %s5560, %s5558
        %s5562 = sadd.s32 %s5561, %s5556
        %s5563 = scalar_lea.vmem %s7, %s5562
      $region88: #{double_conv.4} parent=75 // pred_fallthru
        _
    $region76: #{double_conv.4} parent=5 // pred_fallthru
      _
  $region6: #{double_conv.4} parent=0 // loop_footer
    %s18 = sadd.s32 1, %s14
  $region7: #{double_conv.4} parent=0 // loop_footer_branch
    %13 = sbr.rel target = $region3
  $region8: #{double_conv.4} parent=0 // loop_exit
    _

</llo_original>
